<compile_context>
chip_gen: v7x
topology: tpu7x:2x2x1
jax: 0.10.0
libtpu: 0.0.40
codegen_flags: <defaults>
</compile_context>

<pallas_src>
import math

import jax
import jax.numpy as jnp
from jax.experimental import pallas as pl
from jax.experimental.pallas import tpu as pltpu

# ---- module config (Critic -> Transformer(hidden_size=1) defaults) ----
D_FEAT = 6
D_MODEL = 8
NHEAD = 4
HEAD_DIM = D_MODEL // NHEAD          # = 2
NUM_LAYERS = 2
DFF = 2048                           # nn.TransformerEncoderLayer default dim_feedforward
HIDDEN = 1                           # Critic uses Transformer(hidden_size=1)
LN_EPS = 1e-5


def critic_kernel(feat_ref, xt_ref, pe_ref,
                  wf_ref, bf_ref,
                  wq_ref, bq_ref, wk_ref, bk_ref, wv_ref, bv_ref,
                  outw_ref, outb_ref,
                  ln1g_ref, ln1b_ref,
                  w1_ref, b1_ref, w2_ref, b2_ref,
                  ln2g_ref, ln2b_ref,
                  hm_ref,
                  wdo_ref, wdx_ref, bd_ref,
                  o_ref):
    feat = feat_ref[...]                               # [NB, T, d_feat] f32
    NB, T, DF = feat.shape
    D = D_MODEL
    NT = NB * T

    def layer_norm(x, g, b):
        mu = jnp.mean(x, axis=-1, keepdims=True)
        var = jnp.mean((x - mu) ** 2, axis=-1, keepdims=True)   # biased, like torch LN
        return (x - mu) * jax.lax.rsqrt(var + LN_EPS) * g + b

    hm = hm_ref[...]                                   # [NHEAD, D] disjoint head masks

    # ---- feature_layer + positional encoding (canonical 2-D [NT, D] layout) ----
    h = jnp.dot(feat.reshape(NT, DF), wf_ref[...],
                preferred_element_type=jnp.float32) + bf_ref[...]
    h = (h.reshape(NB, T, D) + pe_ref[...][None, :, :]).reshape(NT, D)

    # TODO(synk): dropout (attn / dropout1 / dropout2) omitted — eval-mode forward.
    for l in range(NUM_LAYERS):
        # ---- self-attention (post-norm encoder layer) ----
        # wq/bq are pre-scaled by 1/sqrt(head_dim) at parameter-prep time.
        q = jnp.dot(h, wq_ref[l], preferred_element_type=jnp.float32) + bq_ref[l]
        k = jnp.dot(h, wk_ref[l], preferred_element_type=jnp.float32) + bk_ref[l]
        v = jnp.dot(h, wv_ref[l], preferred_element_type=jnp.float32) + bv_ref[l]
        q3 = q.reshape(NB, T, D)
        k3 = k.reshape(NB, T, D)
        v3 = v.reshape(NB, T, D)

        # All heads in one pair of batched matmuls: mask q per head (zeros outside
        # that head's feature slots), stack heads along the query/sublane axis.
        qh = jnp.concatenate([q3 * hm[hd] for hd in range(NHEAD)], axis=1)  # [NB, H*T, D]
        s = jnp.einsum('nqd,nsd->nqs', qh, k3,
                       preferred_element_type=jnp.float32)                  # [NB, H*T, T]
        s = s - jnp.max(s, axis=-1, keepdims=True)
        p = jnp.exp(s)
        p = p * pl.reciprocal(jnp.sum(p, axis=-1, keepdims=True), approx=True)
        pv = jnp.einsum('nqs,nsd->nqd', p, v3,
                        preferred_element_type=jnp.float32)                 # [NB, H*T, D]
        # masking after p@v (== p @ (v*mask)); summing disjoint head pieces
        # reconstructs the concatenated multi-head context.
        ctx = pv[:, 0:T, :] * hm[0]
        for hd in range(1, NHEAD):
            ctx = ctx + pv[:, hd * T:(hd + 1) * T, :] * hm[hd]              # [NB, T, D]

        attn = jnp.dot(ctx.reshape(NT, D), outw_ref[l],
                       preferred_element_type=jnp.float32) + outb_ref[l]
        h = layer_norm(h + attn, ln1g_ref[l], ln1b_ref[l])

        # ---- feed-forward (relu, dff=2048): bf16 weights/inputs, f32 accumulate ----
        ff = jnp.dot(h.astype(jnp.bfloat16), w1_ref[l],
                     preferred_element_type=jnp.float32) + b1_ref[l]
        ff = jnp.maximum(ff, 0.0)
        ff = jnp.dot(ff.astype(jnp.bfloat16), w2_ref[l],
                     preferred_element_type=jnp.float32) + b2_ref[l]
        h = layer_norm(h + ff, ln2g_ref[l], ln2b_ref[l])

    # ---- last time step, concat xt, decoder linear ----
    last = h.reshape(NB, T, D)[:, T - 1, :]                      # [NB, D]
    out = (jnp.dot(last, wdo_ref[...], preferred_element_type=jnp.float32)
           + xt_ref[...] * wdx_ref[...]
           + bd_ref[...])
    o_ref[...] = out.astype(o_ref.dtype)


def positional_encoding(seq_len, d_model):
    pos = jnp.arange(seq_len, dtype=jnp.float32)[:, None]
    div = jnp.exp(jnp.arange(0, d_model, 2, dtype=jnp.float32)
                  * (-math.log(10000.0) / d_model))
    pe = jnp.zeros((seq_len, d_model), jnp.float32)
    pe = pe.at[:, 0::2].set(jnp.sin(pos * div))
    pe = pe.at[:, 1::2].set(jnp.cos(pos * div))
    return pe


def init_params(key):
    ks = jax.random.split(key, 12)

    def w(k, shape, scale=0.1):
        return (scale * jax.random.normal(k, shape)).astype(jnp.float32)

    return dict(
        wf=w(ks[0], (D_MODEL, D_FEAT)),                     # Linear(d_feat, d_model) [out, in]
        bf=w(ks[1], (D_MODEL,)),
        in_w=w(ks[2], (NUM_LAYERS, 3 * D_MODEL, D_MODEL)),  # MHA in_proj_weight
        in_b=w(ks[3], (NUM_LAYERS, 3 * D_MODEL)),
        out_w=w(ks[4], (NUM_LAYERS, D_MODEL, D_MODEL)),     # MHA out_proj
        out_b=w(ks[5], (NUM_LAYERS, D_MODEL)),
        ln1_g=jnp.ones((NUM_LAYERS, D_MODEL), jnp.float32),
        ln1_b=jnp.zeros((NUM_LAYERS, D_MODEL), jnp.float32),
        w1=w(ks[6], (NUM_LAYERS, DFF, D_MODEL)),            # linear1
        b1=w(ks[7], (NUM_LAYERS, DFF)),
        w2=w(ks[8], (NUM_LAYERS, D_MODEL, DFF)),            # linear2
        b2=w(ks[9], (NUM_LAYERS, D_MODEL)),
        ln2_g=jnp.ones((NUM_LAYERS, D_MODEL), jnp.float32),
        ln2_b=jnp.zeros((NUM_LAYERS, D_MODEL), jnp.float32),
        wd=w(ks[10], (HIDDEN, D_MODEL + 1)),                # decoder Linear(d_model+1, hidden)
        bd=w(ks[11], (HIDDEN,)),
    )


def prepare_params(params, max_len=1000):
    """One-time conversion of PyTorch-layout params into kernel-ready tensors
    (all transposes / splits / bf16 casts / 1/sqrt(head_dim) scaling hoisted
    out of the per-call forward)."""
    D = D_MODEL
    scale = 1.0 / math.sqrt(HEAD_DIM)
    in_w, in_b = params['in_w'], params['in_b']
    prep = dict(
        wf=params['wf'].T,                                       # [d_feat, D]
        bf=params['bf'][None, :],                                # [1, D]
        wq=jnp.swapaxes(in_w[:, 0:D, :], 1, 2) * scale,          # [L, D, D]  (pre-scaled)
        bq=(in_b[:, 0:D] * scale)[:, None, :],                   # [L, 1, D]
        wk=jnp.swapaxes(in_w[:, D:2 * D, :], 1, 2),
        bk=in_b[:, D:2 * D][:, None, :],
        wv=jnp.swapaxes(in_w[:, 2 * D:3 * D, :], 1, 2),
        bv=in_b[:, 2 * D:3 * D][:, None, :],
        outw=jnp.swapaxes(params['out_w'], 1, 2),                # [L, D, D]
        outb=params['out_b'][:, None, :],
        ln1_g=params['ln1_g'][:, None, :],
        ln1_b=params['ln1_b'][:, None, :],
        w1=jnp.swapaxes(params['w1'], 1, 2).astype(jnp.bfloat16),   # [L, D, DFF] bf16
        b1=params['b1'][:, None, :],
        w2=jnp.swapaxes(params['w2'], 1, 2).astype(jnp.bfloat16),   # [L, DFF, D] bf16
        b2=params['b2'][:, None, :],
        ln2_g=params['ln2_g'][:, None, :],
        ln2_b=params['ln2_b'][:, None, :],
        hm=(jnp.arange(D)[None, :] // HEAD_DIM
            == jnp.arange(NHEAD)[:, None]).astype(jnp.float32),  # [nhead, D]
        wdo=params['wd'][:, :D].T,                               # [D, hidden]
        wdx=params['wd'][:, D:].T,                               # [1, hidden]
        bd=params['bd'][None, :],                                # [1, hidden]
        pe=positional_encoding(max_len, D),                      # [max_len, D]
    )
    return {k: jnp.asarray(v) for k, v in prep.items()}


def critic_forward(src_input, prep):
    N, F = src_input.shape
    T = (F - 1) // D_FEAT
    # input glue (matches: src_input[:, :-1].reshape(N, d_feat, -1).permute(0, 2, 1))
    feature = src_input[:, :-1].reshape(N, D_FEAT, T).transpose(0, 2, 1)   # [N, T, d_feat]
    xt = src_input[:, -1:]                                                 # [N, 1]
    pe = prep['pe'][:T]                                                    # [T, D]

    # batch grid: lets megacore (v7x) split batches; toy sizes collapse to grid=(1,)
    NB = N if N < 8 else 8
    n_blocks = pl.cdiv(N, NB)
    Npad = n_blocks * NB
    if Npad != N:
        feature = jnp.pad(feature, ((0, Npad - N), (0, 0), (0, 0)))
        xt = jnp.pad(xt, ((0, Npad - N), (0, 0)))

    weights = (prep['wf'], prep['bf'],
               prep['wq'], prep['bq'], prep['wk'], prep['bk'], prep['wv'], prep['bv'],
               prep['outw'], prep['outb'],
               prep['ln1_g'], prep['ln1_b'],
               prep['w1'], prep['b1'], prep['w2'], prep['b2'],
               prep['ln2_g'], prep['ln2_b'],
               prep['hm'],
               prep['wdo'], prep['wdx'], prep['bd'])

    def const_spec(arr):
        nd = arr.ndim
        return pl.BlockSpec(arr.shape, lambda i, _nd=nd: (0,) * _nd)

    in_specs = ([pl.BlockSpec((NB, T, D_FEAT), lambda i: (i, 0, 0)),
                 pl.BlockSpec((NB, 1), lambda i: (i, 0)),
                 pl.BlockSpec((T, D_MODEL), lambda i: (0, 0))]
                + [const_spec(w) for w in weights])
    out_specs = pl.BlockSpec((NB, HIDDEN), lambda i: (i, 0))

    out = pl.pallas_call(
        critic_kernel,
        out_shape=jax.ShapeDtypeStruct((Npad, HIDDEN), jnp.float32),
        grid=(n_blocks,),
        in_specs=in_specs,
        out_specs=out_specs,
        compiler_params=pltpu.CompilerParams(
            dimension_semantics=("parallel",)),
    )(feature, xt, pe, *weights)
    return out[:N]


if __name__ == "__main__":
    key = jax.random.PRNGKey(0)
    pkey, xkey = jax.random.split(key)
    params = init_params(pkey)
    prep = prepare_params(params)          # one-time parameter preparation

    N, T = 4, 8                            # batch=4, seq=8  -> state dim = 6*8+1 = 49
    src_input = jax.random.normal(xkey, (N, D_FEAT * T + 1), dtype=jnp.float32)

    fwd = jax.jit(critic_forward)
    out = fwd(src_input, prep)
    out = jax.block_until_ready(out)
    assert out.shape == (N, HIDDEN)
    assert bool(jnp.all(jnp.isfinite(out)))
    print("KERNEL_OK")
</pallas_src>

<mosaic_0001>
module attributes {stable_mosaic.version = 11 : i64} {
  func.func @critic_kernel(%arg0: i32, %arg1: memref<4x8x6xf32, #tpu.memory_space<vmem>>, %arg2: memref<4x1xf32, #tpu.memory_space<vmem>>, %arg3: memref<8x8xf32, #tpu.memory_space<vmem>>, %arg4: memref<6x8xf32, #tpu.memory_space<vmem>>, %arg5: memref<1x8xf32, #tpu.memory_space<vmem>>, %arg6: memref<2x8x8xf32, #tpu.memory_space<vmem>>, %arg7: memref<2x1x8xf32, #tpu.memory_space<vmem>>, %arg8: memref<2x8x8xf32, #tpu.memory_space<vmem>>, %arg9: memref<2x1x8xf32, #tpu.memory_space<vmem>>, %arg10: memref<2x8x8xf32, #tpu.memory_space<vmem>>, %arg11: memref<2x1x8xf32, #tpu.memory_space<vmem>>, %arg12: memref<2x8x8xf32, #tpu.memory_space<vmem>>, %arg13: memref<2x1x8xf32, #tpu.memory_space<vmem>>, %arg14: memref<2x1x8xf32, #tpu.memory_space<vmem>>, %arg15: memref<2x1x8xf32, #tpu.memory_space<vmem>>, %arg16: memref<2x8x2048xbf16, #tpu.memory_space<vmem>>, %arg17: memref<2x1x2048xf32, #tpu.memory_space<vmem>>, %arg18: memref<2x2048x8xbf16, #tpu.memory_space<vmem>>, %arg19: memref<2x1x8xf32, #tpu.memory_space<vmem>>, %arg20: memref<2x1x8xf32, #tpu.memory_space<vmem>>, %arg21: memref<2x1x8xf32, #tpu.memory_space<vmem>>, %arg22: memref<4x8xf32, #tpu.memory_space<vmem>>, %arg23: memref<8x1xf32, #tpu.memory_space<vmem>>, %arg24: memref<1x1xf32, #tpu.memory_space<vmem>>, %arg25: memref<1x1xf32, #tpu.memory_space<vmem>>, %arg26: memref<4x1xf32, #tpu.memory_space<vmem>>) attributes {dimension_semantics = [#tpu.dimension_semantics<parallel>], iteration_bounds = array<i64: 1>, scalar_prefetch = 0 : i64, scratch_operands = 0 : i64, tpu.core_type = #tpu.core_type<tc>, window_params = [{transform_indices = @transform_0, window_bounds = array<i64: 4, 8, 6>}, {transform_indices = @transform_1, window_bounds = array<i64: 4, 1>}, {pipeline_mode = #tpu.pipeline_mode<synchronous>, transform_indices = @transform_2, window_bounds = array<i64: 8, 8>}, {pipeline_mode = #tpu.pipeline_mode<synchronous>, transform_indices = @transform_3, window_bounds = array<i64: 6, 8>}, {pipeline_mode = #tpu.pipeline_mode<synchronous>, transform_indices = @transform_4, window_bounds = array<i64: 1, 8>}, {pipeline_mode = #tpu.pipeline_mode<synchronous>, transform_indices = @transform_5, window_bounds = array<i64: 2, 8, 8>}, {pipeline_mode = #tpu.pipeline_mode<synchronous>, transform_indices = @transform_6, window_bounds = array<i64: 2, 1, 8>}, {pipeline_mode = #tpu.pipeline_mode<synchronous>, transform_indices = @transform_7, window_bounds = array<i64: 2, 8, 8>}, {pipeline_mode = #tpu.pipeline_mode<synchronous>, transform_indices = @transform_8, window_bounds = array<i64: 2, 1, 8>}, {pipeline_mode = #tpu.pipeline_mode<synchronous>, transform_indices = @transform_9, window_bounds = array<i64: 2, 8, 8>}, {pipeline_mode = #tpu.pipeline_mode<synchronous>, transform_indices = @transform_10, window_bounds = array<i64: 2, 1, 8>}, {pipeline_mode = #tpu.pipeline_mode<synchronous>, transform_indices = @transform_11, window_bounds = array<i64: 2, 8, 8>}, {pipeline_mode = #tpu.pipeline_mode<synchronous>, transform_indices = @transform_12, window_bounds = array<i64: 2, 1, 8>}, {pipeline_mode = #tpu.pipeline_mode<synchronous>, transform_indices = @transform_13, window_bounds = array<i64: 2, 1, 8>}, {pipeline_mode = #tpu.pipeline_mode<synchronous>, transform_indices = @transform_14, window_bounds = array<i64: 2, 1, 8>}, {pipeline_mode = #tpu.pipeline_mode<synchronous>, transform_indices = @transform_15, window_bounds = array<i64: 2, 8, 2048>}, {pipeline_mode = #tpu.pipeline_mode<synchronous>, transform_indices = @transform_16, window_bounds = array<i64: 2, 1, 2048>}, {pipeline_mode = #tpu.pipeline_mode<synchronous>, transform_indices = @transform_17, window_bounds = array<i64: 2, 2048, 8>}, {pipeline_mode = #tpu.pipeline_mode<synchronous>, transform_indices = @transform_18, window_bounds = array<i64: 2, 1, 8>}, {pipeline_mode = #tpu.pipeline_mode<synchronous>, transform_indices = @transform_19, window_bounds = array<i64: 2, 1, 8>}, {pipeline_mode = #tpu.pipeline_mode<synchronous>, transform_indices = @transform_20, window_bounds = array<i64: 2, 1, 8>}, {pipeline_mode = #tpu.pipeline_mode<synchronous>, transform_indices = @transform_21, window_bounds = array<i64: 4, 8>}, {pipeline_mode = #tpu.pipeline_mode<synchronous>, transform_indices = @transform_22, window_bounds = array<i64: 8, 1>}, {pipeline_mode = #tpu.pipeline_mode<synchronous>, transform_indices = @transform_23, window_bounds = array<i64: 1, 1>}, {pipeline_mode = #tpu.pipeline_mode<synchronous>, transform_indices = @transform_24, window_bounds = array<i64: 1, 1>}, {transform_indices = @transform_25, window_bounds = array<i64: 4, 1>}]} {
    %c0 = arith.constant 0 : index
    %c0_0 = arith.constant 0 : index
    %c0_1 = arith.constant 0 : index
    %0 = vector.load %arg1[%c0, %c0_0, %c0_1] : memref<4x8x6xf32, #tpu.memory_space<vmem>>, vector<4x8x6xf32>
    %c0_2 = arith.constant 0 : index
    %c0_3 = arith.constant 0 : index
    %1 = vector.load %arg22[%c0_2, %c0_3] : memref<4x8xf32, #tpu.memory_space<vmem>>, vector<4x8xf32>
    %2 = vector.shape_cast %0 : vector<4x8x6xf32> to vector<32x6xf32>
    %c0_4 = arith.constant 0 : index
    %c0_5 = arith.constant 0 : index
    %3 = vector.load %arg4[%c0_4, %c0_5] : memref<6x8xf32, #tpu.memory_space<vmem>>, vector<6x8xf32>
    %cst = arith.constant dense<0.000000e+00> : vector<32x8xf32>
    %4 = tpu.matmul %2, %3, %cst {dimension_numbers = #tpu.dot_dimension_numbers<[1], [0], [0], [1], [0, 0, 1, 1], [], []>} : vector<32x6xf32>, vector<6x8xf32>, vector<32x8xf32> -> vector<32x8xf32>
    %c0_6 = arith.constant 0 : index
    %c0_7 = arith.constant 0 : index
    %5 = vector.load %arg5[%c0_6, %c0_7] : memref<1x8xf32, #tpu.memory_space<vmem>>, vector<1x8xf32>
    %6 = vector.broadcast %5 : vector<1x8xf32> to vector<32x8xf32>
    %7 = arith.addf %4, %6 : vector<32x8xf32>
    %8 = vector.shape_cast %7 : vector<32x8xf32> to vector<4x8x8xf32>
    %c0_8 = arith.constant 0 : index
    %c0_9 = arith.constant 0 : index
    %9 = vector.load %arg3[%c0_8, %c0_9] : memref<8x8xf32, #tpu.memory_space<vmem>>, vector<8x8xf32>
    %10 = vector.shape_cast %9 : vector<8x8xf32> to vector<1x8x8xf32>
    %11 = vector.broadcast %10 : vector<1x8x8xf32> to vector<4x8x8xf32>
    %12 = arith.addf %8, %11 : vector<4x8x8xf32>
    %13 = vector.shape_cast %12 : vector<4x8x8xf32> to vector<32x8xf32>
    %c0_10 = arith.constant 0 : index
    %c0_11 = arith.constant 0 : index
    %c0_12 = arith.constant 0 : index
    %14 = vector.load %arg6[%c0_10, %c0_11, %c0_12] : memref<2x8x8xf32, #tpu.memory_space<vmem>>, vector<1x8x8xf32>
    %15 = vector.shape_cast %14 : vector<1x8x8xf32> to vector<8x8xf32>
    %cst_13 = arith.constant dense<0.000000e+00> : vector<32x8xf32>
    %16 = tpu.matmul %13, %15, %cst_13 {dimension_numbers = #tpu.dot_dimension_numbers<[1], [0], [0], [1], [0, 0, 1, 1], [], []>} : vector<32x8xf32>, vector<8x8xf32>, vector<32x8xf32> -> vector<32x8xf32>
    %c0_14 = arith.constant 0 : index
    %c0_15 = arith.constant 0 : index
    %c0_16 = arith.constant 0 : index
    %17 = vector.load %arg7[%c0_14, %c0_15, %c0_16] : memref<2x1x8xf32, #tpu.memory_space<vmem>>, vector<1x1x8xf32>
    %18 = vector.shape_cast %17 : vector<1x1x8xf32> to vector<1x8xf32>
    %19 = vector.broadcast %18 : vector<1x8xf32> to vector<32x8xf32>
    %20 = arith.addf %16, %19 : vector<32x8xf32>
    %c0_17 = arith.constant 0 : index
    %c0_18 = arith.constant 0 : index
    %c0_19 = arith.constant 0 : index
    %21 = vector.load %arg8[%c0_17, %c0_18, %c0_19] : memref<2x8x8xf32, #tpu.memory_space<vmem>>, vector<1x8x8xf32>
    %22 = vector.shape_cast %21 : vector<1x8x8xf32> to vector<8x8xf32>
    %cst_20 = arith.constant dense<0.000000e+00> : vector<32x8xf32>
    %23 = tpu.matmul %13, %22, %cst_20 {dimension_numbers = #tpu.dot_dimension_numbers<[1], [0], [0], [1], [0, 0, 1, 1], [], []>} : vector<32x8xf32>, vector<8x8xf32>, vector<32x8xf32> -> vector<32x8xf32>
    %c0_21 = arith.constant 0 : index
    %c0_22 = arith.constant 0 : index
    %c0_23 = arith.constant 0 : index
    %24 = vector.load %arg9[%c0_21, %c0_22, %c0_23] : memref<2x1x8xf32, #tpu.memory_space<vmem>>, vector<1x1x8xf32>
    %25 = vector.shape_cast %24 : vector<1x1x8xf32> to vector<1x8xf32>
    %26 = vector.broadcast %25 : vector<1x8xf32> to vector<32x8xf32>
    %27 = arith.addf %23, %26 : vector<32x8xf32>
    %c0_24 = arith.constant 0 : index
    %c0_25 = arith.constant 0 : index
    %c0_26 = arith.constant 0 : index
    %28 = vector.load %arg10[%c0_24, %c0_25, %c0_26] : memref<2x8x8xf32, #tpu.memory_space<vmem>>, vector<1x8x8xf32>
    %29 = vector.shape_cast %28 : vector<1x8x8xf32> to vector<8x8xf32>
    %cst_27 = arith.constant dense<0.000000e+00> : vector<32x8xf32>
    %30 = tpu.matmul %13, %29, %cst_27 {dimension_numbers = #tpu.dot_dimension_numbers<[1], [0], [0], [1], [0, 0, 1, 1], [], []>} : vector<32x8xf32>, vector<8x8xf32>, vector<32x8xf32> -> vector<32x8xf32>
    %c0_28 = arith.constant 0 : index
    %c0_29 = arith.constant 0 : index
    %c0_30 = arith.constant 0 : index
    %31 = vector.load %arg11[%c0_28, %c0_29, %c0_30] : memref<2x1x8xf32, #tpu.memory_space<vmem>>, vector<1x1x8xf32>
    %32 = vector.shape_cast %31 : vector<1x1x8xf32> to vector<1x8xf32>
    %33 = vector.broadcast %32 : vector<1x8xf32> to vector<32x8xf32>
    %34 = arith.addf %30, %33 : vector<32x8xf32>
    %35 = vector.shape_cast %20 : vector<32x8xf32> to vector<4x8x8xf32>
    %36 = vector.shape_cast %27 : vector<32x8xf32> to vector<4x8x8xf32>
    %37 = vector.shape_cast %34 : vector<32x8xf32> to vector<4x8x8xf32>
    %38 = vector.extract_strided_slice %1 {offsets = [0, 0], sizes = [1, 8], strides = [1, 1]} : vector<4x8xf32> to vector<1x8xf32>
    %39 = vector.shape_cast %38 : vector<1x8xf32> to vector<8xf32>
    %40 = vector.shape_cast %39 : vector<8xf32> to vector<1x1x8xf32>
    %41 = vector.broadcast %40 : vector<1x1x8xf32> to vector<4x8x8xf32>
    %42 = arith.mulf %35, %41 : vector<4x8x8xf32>
    %43 = vector.extract_strided_slice %1 {offsets = [1, 0], sizes = [1, 8], strides = [1, 1]} : vector<4x8xf32> to vector<1x8xf32>
    %44 = vector.shape_cast %43 : vector<1x8xf32> to vector<8xf32>
    %45 = vector.shape_cast %44 : vector<8xf32> to vector<1x1x8xf32>
    %46 = vector.broadcast %45 : vector<1x1x8xf32> to vector<4x8x8xf32>
    %47 = arith.mulf %35, %46 : vector<4x8x8xf32>
    %48 = vector.extract_strided_slice %1 {offsets = [2, 0], sizes = [1, 8], strides = [1, 1]} : vector<4x8xf32> to vector<1x8xf32>
    %49 = vector.shape_cast %48 : vector<1x8xf32> to vector<8xf32>
    %50 = vector.shape_cast %49 : vector<8xf32> to vector<1x1x8xf32>
    %51 = vector.broadcast %50 : vector<1x1x8xf32> to vector<4x8x8xf32>
    %52 = arith.mulf %35, %51 : vector<4x8x8xf32>
    %53 = vector.extract_strided_slice %1 {offsets = [3, 0], sizes = [1, 8], strides = [1, 1]} : vector<4x8xf32> to vector<1x8xf32>
    %54 = vector.shape_cast %53 : vector<1x8xf32> to vector<8xf32>
    %55 = vector.shape_cast %54 : vector<8xf32> to vector<1x1x8xf32>
    %56 = vector.broadcast %55 : vector<1x1x8xf32> to vector<4x8x8xf32>
    %57 = arith.mulf %35, %56 : vector<4x8x8xf32>
    %58 = tpu.concatenate %42, %47, %52, %57 in 1 : vector<4x8x8xf32>, vector<4x8x8xf32>, vector<4x8x8xf32>, vector<4x8x8xf32> -> vector<4x32x8xf32>
    "tpu.trace_start"() <{level = 10 : i32, message = "nqd,nsd->nqs"}> : () -> ()
    %cst_31 = arith.constant dense<0.000000e+00> : vector<4x32x8xf32>
    %59 = tpu.matmul %58, %36, %cst_31 {dimension_numbers = #tpu.dot_dimension_numbers<[2], [2], [1], [1], [0, 0, 0, 1, 1, 1], [0], [0]>} : vector<4x32x8xf32>, vector<4x8x8xf32>, vector<4x32x8xf32> -> vector<4x32x8xf32>
    "tpu.trace_stop"() : () -> ()
    %cst_32 = arith.constant dense<0xFF800000> : vector<4x32xf32>
    %60 = vector.multi_reduction <maximumf>, %59, %cst_32 [2] : vector<4x32x8xf32> to vector<4x32xf32>
    %61 = vector.shape_cast %60 : vector<4x32xf32> to vector<4x32x1xf32>
    %62 = vector.broadcast %61 : vector<4x32x1xf32> to vector<4x32x8xf32>
    %63 = arith.subf %59, %62 : vector<4x32x8xf32>
    %64 = math.exp %63 : vector<4x32x8xf32>
    %cst_33 = arith.constant dense<0.000000e+00> : vector<4x32xf32>
    %65 = vector.multi_reduction <add>, %64, %cst_33 [2] : vector<4x32x8xf32> to vector<4x32xf32>
    %66 = vector.shape_cast %65 : vector<4x32xf32> to vector<4x32x1xf32>
    %67 = tpu.reciprocal %66 {approx = true} : vector<4x32x1xf32> -> vector<4x32x1xf32>
    %68 = vector.broadcast %67 : vector<4x32x1xf32> to vector<4x32x8xf32>
    %69 = arith.mulf %64, %68 : vector<4x32x8xf32>
    "tpu.trace_start"() <{level = 10 : i32, message = "nqs,nsd->nqd"}> : () -> ()
    %cst_34 = arith.constant dense<0.000000e+00> : vector<4x32x8xf32>
    %70 = tpu.matmul %69, %37, %cst_34 {dimension_numbers = #tpu.dot_dimension_numbers<[2], [1], [1], [2], [0, 0, 0, 1, 1, 2], [0], [0]>} : vector<4x32x8xf32>, vector<4x8x8xf32>, vector<4x32x8xf32> -> vector<4x32x8xf32>
    "tpu.trace_stop"() : () -> ()
    %71 = vector.extract_strided_slice %70 {offsets = [0, 0, 0], sizes = [4, 8, 8], strides = [1, 1, 1]} : vector<4x32x8xf32> to vector<4x8x8xf32>
    %72 = vector.extract_strided_slice %1 {offsets = [0, 0], sizes = [1, 8], strides = [1, 1]} : vector<4x8xf32> to vector<1x8xf32>
    %73 = vector.shape_cast %72 : vector<1x8xf32> to vector<8xf32>
    %74 = vector.shape_cast %73 : vector<8xf32> to vector<1x1x8xf32>
    %75 = vector.broadcast %74 : vector<1x1x8xf32> to vector<4x8x8xf32>
    %76 = arith.mulf %71, %75 : vector<4x8x8xf32>
    %77 = vector.extract_strided_slice %70 {offsets = [0, 8, 0], sizes = [4, 8, 8], strides = [1, 1, 1]} : vector<4x32x8xf32> to vector<4x8x8xf32>
    %78 = vector.extract_strided_slice %1 {offsets = [1, 0], sizes = [1, 8], strides = [1, 1]} : vector<4x8xf32> to vector<1x8xf32>
    %79 = vector.shape_cast %78 : vector<1x8xf32> to vector<8xf32>
    %80 = vector.shape_cast %79 : vector<8xf32> to vector<1x1x8xf32>
    %81 = vector.broadcast %80 : vector<1x1x8xf32> to vector<4x8x8xf32>
    %82 = arith.mulf %77, %81 : vector<4x8x8xf32>
    %83 = arith.addf %76, %82 : vector<4x8x8xf32>
    %84 = vector.extract_strided_slice %70 {offsets = [0, 16, 0], sizes = [4, 8, 8], strides = [1, 1, 1]} : vector<4x32x8xf32> to vector<4x8x8xf32>
    %85 = vector.extract_strided_slice %1 {offsets = [2, 0], sizes = [1, 8], strides = [1, 1]} : vector<4x8xf32> to vector<1x8xf32>
    %86 = vector.shape_cast %85 : vector<1x8xf32> to vector<8xf32>
    %87 = vector.shape_cast %86 : vector<8xf32> to vector<1x1x8xf32>
    %88 = vector.broadcast %87 : vector<1x1x8xf32> to vector<4x8x8xf32>
    %89 = arith.mulf %84, %88 : vector<4x8x8xf32>
    %90 = arith.addf %83, %89 : vector<4x8x8xf32>
    %91 = vector.extract_strided_slice %70 {offsets = [0, 24, 0], sizes = [4, 8, 8], strides = [1, 1, 1]} : vector<4x32x8xf32> to vector<4x8x8xf32>
    %92 = vector.extract_strided_slice %1 {offsets = [3, 0], sizes = [1, 8], strides = [1, 1]} : vector<4x8xf32> to vector<1x8xf32>
    %93 = vector.shape_cast %92 : vector<1x8xf32> to vector<8xf32>
    %94 = vector.shape_cast %93 : vector<8xf32> to vector<1x1x8xf32>
    %95 = vector.broadcast %94 : vector<1x1x8xf32> to vector<4x8x8xf32>
    %96 = arith.mulf %91, %95 : vector<4x8x8xf32>
    %97 = arith.addf %90, %96 : vector<4x8x8xf32>
    %98 = vector.shape_cast %97 : vector<4x8x8xf32> to vector<32x8xf32>
    %c0_35 = arith.constant 0 : index
    %c0_36 = arith.constant 0 : index
    %c0_37 = arith.constant 0 : index
    %99 = vector.load %arg12[%c0_35, %c0_36, %c0_37] : memref<2x8x8xf32, #tpu.memory_space<vmem>>, vector<1x8x8xf32>
    %100 = vector.shape_cast %99 : vector<1x8x8xf32> to vector<8x8xf32>
    %cst_38 = arith.constant dense<0.000000e+00> : vector<32x8xf32>
    %101 = tpu.matmul %98, %100, %cst_38 {dimension_numbers = #tpu.dot_dimension_numbers<[1], [0], [0], [1], [0, 0, 1, 1], [], []>} : vector<32x8xf32>, vector<8x8xf32>, vector<32x8xf32> -> vector<32x8xf32>
    %c0_39 = arith.constant 0 : index
    %c0_40 = arith.constant 0 : index
    %c0_41 = arith.constant 0 : index
    %102 = vector.load %arg13[%c0_39, %c0_40, %c0_41] : memref<2x1x8xf32, #tpu.memory_space<vmem>>, vector<1x1x8xf32>
    %103 = vector.shape_cast %102 : vector<1x1x8xf32> to vector<1x8xf32>
    %104 = vector.broadcast %103 : vector<1x8xf32> to vector<32x8xf32>
    %105 = arith.addf %101, %104 : vector<32x8xf32>
    %106 = arith.addf %13, %105 : vector<32x8xf32>
    %c0_42 = arith.constant 0 : index
    %c0_43 = arith.constant 0 : index
    %c0_44 = arith.constant 0 : index
    %107 = vector.load %arg14[%c0_42, %c0_43, %c0_44] : memref<2x1x8xf32, #tpu.memory_space<vmem>>, vector<1x1x8xf32>
    %108 = vector.shape_cast %107 : vector<1x1x8xf32> to vector<1x8xf32>
    %c0_45 = arith.constant 0 : index
    %c0_46 = arith.constant 0 : index
    %c0_47 = arith.constant 0 : index
    %109 = vector.load %arg15[%c0_45, %c0_46, %c0_47] : memref<2x1x8xf32, #tpu.memory_space<vmem>>, vector<1x1x8xf32>
    %110 = vector.shape_cast %109 : vector<1x1x8xf32> to vector<1x8xf32>
    %cst_48 = arith.constant dense<0.000000e+00> : vector<32xf32>
    %111 = vector.multi_reduction <add>, %106, %cst_48 [1] : vector<32x8xf32> to vector<32xf32>
    %112 = vector.shape_cast %111 : vector<32xf32> to vector<32x1xf32>
    %cst_49 = arith.constant 8.000000e+00 : f32
    %113 = vector.broadcast %cst_49 : f32 to vector<32x1xf32>
    %114 = arith.divf %112, %113 : vector<32x1xf32>
    %115 = vector.broadcast %114 : vector<32x1xf32> to vector<32x8xf32>
    %116 = arith.subf %106, %115 : vector<32x8xf32>
    %117 = arith.mulf %116, %116 : vector<32x8xf32>
    %cst_50 = arith.constant dense<0.000000e+00> : vector<32xf32>
    %118 = vector.multi_reduction <add>, %117, %cst_50 [1] : vector<32x8xf32> to vector<32xf32>
    %119 = vector.shape_cast %118 : vector<32xf32> to vector<32x1xf32>
    %cst_51 = arith.constant 8.000000e+00 : f32
    %120 = vector.broadcast %cst_51 : f32 to vector<32x1xf32>
    %121 = arith.divf %119, %120 : vector<32x1xf32>
    %122 = vector.broadcast %114 : vector<32x1xf32> to vector<32x8xf32>
    %123 = arith.subf %106, %122 : vector<32x8xf32>
    %cst_52 = arith.constant 9.99999974E-6 : f32
    %124 = vector.broadcast %cst_52 : f32 to vector<32x1xf32>
    %125 = arith.addf %121, %124 : vector<32x1xf32>
    %126 = math.rsqrt %125 : vector<32x1xf32>
    %127 = vector.broadcast %126 : vector<32x1xf32> to vector<32x8xf32>
    %128 = arith.mulf %123, %127 : vector<32x8xf32>
    %129 = vector.broadcast %108 : vector<1x8xf32> to vector<32x8xf32>
    %130 = arith.mulf %128, %129 : vector<32x8xf32>
    %131 = vector.broadcast %110 : vector<1x8xf32> to vector<32x8xf32>
    %132 = arith.addf %130, %131 : vector<32x8xf32>
    %133 = arith.truncf %132 : vector<32x8xf32> to vector<32x8xbf16>
    %c0_53 = arith.constant 0 : index
    %c0_54 = arith.constant 0 : index
    %c0_55 = arith.constant 0 : index
    %134 = vector.load %arg16[%c0_53, %c0_54, %c0_55] : memref<2x8x2048xbf16, #tpu.memory_space<vmem>>, vector<1x8x2048xbf16>
    %135 = vector.shape_cast %134 : vector<1x8x2048xbf16> to vector<8x2048xbf16>
    %cst_56 = arith.constant dense<0.000000e+00> : vector<32x2048xf32>
    %136 = tpu.matmul %133, %135, %cst_56 {dimension_numbers = #tpu.dot_dimension_numbers<[1], [0], [0], [1], [0, 0, 1, 1], [], []>} : vector<32x8xbf16>, vector<8x2048xbf16>, vector<32x2048xf32> -> vector<32x2048xf32>
    %c0_57 = arith.constant 0 : index
    %c0_58 = arith.constant 0 : index
    %c0_59 = arith.constant 0 : index
    %137 = vector.load %arg17[%c0_57, %c0_58, %c0_59] : memref<2x1x2048xf32, #tpu.memory_space<vmem>>, vector<1x1x2048xf32>
    %138 = vector.shape_cast %137 : vector<1x1x2048xf32> to vector<1x2048xf32>
    %139 = vector.broadcast %138 : vector<1x2048xf32> to vector<32x2048xf32>
    %140 = arith.addf %136, %139 : vector<32x2048xf32>
    %cst_60 = arith.constant 0.000000e+00 : f32
    %141 = vector.broadcast %cst_60 : f32 to vector<32x2048xf32>
    %142 = arith.maximumf %140, %141 : vector<32x2048xf32>
    %143 = arith.truncf %142 : vector<32x2048xf32> to vector<32x2048xbf16>
    %c0_61 = arith.constant 0 : index
    %c0_62 = arith.constant 0 : index
    %c0_63 = arith.constant 0 : index
    %144 = vector.load %arg18[%c0_61, %c0_62, %c0_63] : memref<2x2048x8xbf16, #tpu.memory_space<vmem>>, vector<1x2048x8xbf16>
    %145 = vector.shape_cast %144 : vector<1x2048x8xbf16> to vector<2048x8xbf16>
    %cst_64 = arith.constant dense<0.000000e+00> : vector<32x8xf32>
    %146 = tpu.matmul %143, %145, %cst_64 {dimension_numbers = #tpu.dot_dimension_numbers<[1], [0], [0], [1], [0, 0, 1, 1], [], []>} : vector<32x2048xbf16>, vector<2048x8xbf16>, vector<32x8xf32> -> vector<32x8xf32>
    %c0_65 = arith.constant 0 : index
    %c0_66 = arith.constant 0 : index
    %c0_67 = arith.constant 0 : index
    %147 = vector.load %arg19[%c0_65, %c0_66, %c0_67] : memref<2x1x8xf32, #tpu.memory_space<vmem>>, vector<1x1x8xf32>
    %148 = vector.shape_cast %147 : vector<1x1x8xf32> to vector<1x8xf32>
    %149 = vector.broadcast %148 : vector<1x8xf32> to vector<32x8xf32>
    %150 = arith.addf %146, %149 : vector<32x8xf32>
    %151 = arith.addf %132, %150 : vector<32x8xf32>
    %c0_68 = arith.constant 0 : index
    %c0_69 = arith.constant 0 : index
    %c0_70 = arith.constant 0 : index
    %152 = vector.load %arg20[%c0_68, %c0_69, %c0_70] : memref<2x1x8xf32, #tpu.memory_space<vmem>>, vector<1x1x8xf32>
    %153 = vector.shape_cast %152 : vector<1x1x8xf32> to vector<1x8xf32>
    %c0_71 = arith.constant 0 : index
    %c0_72 = arith.constant 0 : index
    %c0_73 = arith.constant 0 : index
    %154 = vector.load %arg21[%c0_71, %c0_72, %c0_73] : memref<2x1x8xf32, #tpu.memory_space<vmem>>, vector<1x1x8xf32>
    %155 = vector.shape_cast %154 : vector<1x1x8xf32> to vector<1x8xf32>
    %cst_74 = arith.constant dense<0.000000e+00> : vector<32xf32>
    %156 = vector.multi_reduction <add>, %151, %cst_74 [1] : vector<32x8xf32> to vector<32xf32>
    %157 = vector.shape_cast %156 : vector<32xf32> to vector<32x1xf32>
    %cst_75 = arith.constant 8.000000e+00 : f32
    %158 = vector.broadcast %cst_75 : f32 to vector<32x1xf32>
    %159 = arith.divf %157, %158 : vector<32x1xf32>
    %160 = vector.broadcast %159 : vector<32x1xf32> to vector<32x8xf32>
    %161 = arith.subf %151, %160 : vector<32x8xf32>
    %162 = arith.mulf %161, %161 : vector<32x8xf32>
    %cst_76 = arith.constant dense<0.000000e+00> : vector<32xf32>
    %163 = vector.multi_reduction <add>, %162, %cst_76 [1] : vector<32x8xf32> to vector<32xf32>
    %164 = vector.shape_cast %163 : vector<32xf32> to vector<32x1xf32>
    %cst_77 = arith.constant 8.000000e+00 : f32
    %165 = vector.broadcast %cst_77 : f32 to vector<32x1xf32>
    %166 = arith.divf %164, %165 : vector<32x1xf32>
    %167 = vector.broadcast %159 : vector<32x1xf32> to vector<32x8xf32>
    %168 = arith.subf %151, %167 : vector<32x8xf32>
    %cst_78 = arith.constant 9.99999974E-6 : f32
    %169 = vector.broadcast %cst_78 : f32 to vector<32x1xf32>
    %170 = arith.addf %166, %169 : vector<32x1xf32>
    %171 = math.rsqrt %170 : vector<32x1xf32>
    %172 = vector.broadcast %171 : vector<32x1xf32> to vector<32x8xf32>
    %173 = arith.mulf %168, %172 : vector<32x8xf32>
    %174 = vector.broadcast %153 : vector<1x8xf32> to vector<32x8xf32>
    %175 = arith.mulf %173, %174 : vector<32x8xf32>
    %176 = vector.broadcast %155 : vector<1x8xf32> to vector<32x8xf32>
    %177 = arith.addf %175, %176 : vector<32x8xf32>
    %c1 = arith.constant 1 : index
    %c0_79 = arith.constant 0 : index
    %c0_80 = arith.constant 0 : index
    %178 = vector.load %arg6[%c1, %c0_79, %c0_80] : memref<2x8x8xf32, #tpu.memory_space<vmem>>, vector<1x8x8xf32>
    %179 = vector.shape_cast %178 : vector<1x8x8xf32> to vector<8x8xf32>
    %cst_81 = arith.constant dense<0.000000e+00> : vector<32x8xf32>
    %180 = tpu.matmul %177, %179, %cst_81 {dimension_numbers = #tpu.dot_dimension_numbers<[1], [0], [0], [1], [0, 0, 1, 1], [], []>} : vector<32x8xf32>, vector<8x8xf32>, vector<32x8xf32> -> vector<32x8xf32>
    %c1_82 = arith.constant 1 : index
    %c0_83 = arith.constant 0 : index
    %c0_84 = arith.constant 0 : index
    %181 = vector.load %arg7[%c1_82, %c0_83, %c0_84] : memref<2x1x8xf32, #tpu.memory_space<vmem>>, vector<1x1x8xf32>
    %182 = vector.shape_cast %181 : vector<1x1x8xf32> to vector<1x8xf32>
    %183 = vector.broadcast %182 : vector<1x8xf32> to vector<32x8xf32>
    %184 = arith.addf %180, %183 : vector<32x8xf32>
    %c1_85 = arith.constant 1 : index
    %c0_86 = arith.constant 0 : index
    %c0_87 = arith.constant 0 : index
    %185 = vector.load %arg8[%c1_85, %c0_86, %c0_87] : memref<2x8x8xf32, #tpu.memory_space<vmem>>, vector<1x8x8xf32>
    %186 = vector.shape_cast %185 : vector<1x8x8xf32> to vector<8x8xf32>
    %cst_88 = arith.constant dense<0.000000e+00> : vector<32x8xf32>
    %187 = tpu.matmul %177, %186, %cst_88 {dimension_numbers = #tpu.dot_dimension_numbers<[1], [0], [0], [1], [0, 0, 1, 1], [], []>} : vector<32x8xf32>, vector<8x8xf32>, vector<32x8xf32> -> vector<32x8xf32>
    %c1_89 = arith.constant 1 : index
    %c0_90 = arith.constant 0 : index
    %c0_91 = arith.constant 0 : index
    %188 = vector.load %arg9[%c1_89, %c0_90, %c0_91] : memref<2x1x8xf32, #tpu.memory_space<vmem>>, vector<1x1x8xf32>
    %189 = vector.shape_cast %188 : vector<1x1x8xf32> to vector<1x8xf32>
    %190 = vector.broadcast %189 : vector<1x8xf32> to vector<32x8xf32>
    %191 = arith.addf %187, %190 : vector<32x8xf32>
    %c1_92 = arith.constant 1 : index
    %c0_93 = arith.constant 0 : index
    %c0_94 = arith.constant 0 : index
    %192 = vector.load %arg10[%c1_92, %c0_93, %c0_94] : memref<2x8x8xf32, #tpu.memory_space<vmem>>, vector<1x8x8xf32>
    %193 = vector.shape_cast %192 : vector<1x8x8xf32> to vector<8x8xf32>
    %cst_95 = arith.constant dense<0.000000e+00> : vector<32x8xf32>
    %194 = tpu.matmul %177, %193, %cst_95 {dimension_numbers = #tpu.dot_dimension_numbers<[1], [0], [0], [1], [0, 0, 1, 1], [], []>} : vector<32x8xf32>, vector<8x8xf32>, vector<32x8xf32> -> vector<32x8xf32>
    %c1_96 = arith.constant 1 : index
    %c0_97 = arith.constant 0 : index
    %c0_98 = arith.constant 0 : index
    %195 = vector.load %arg11[%c1_96, %c0_97, %c0_98] : memref<2x1x8xf32, #tpu.memory_space<vmem>>, vector<1x1x8xf32>
    %196 = vector.shape_cast %195 : vector<1x1x8xf32> to vector<1x8xf32>
    %197 = vector.broadcast %196 : vector<1x8xf32> to vector<32x8xf32>
    %198 = arith.addf %194, %197 : vector<32x8xf32>
    %199 = vector.shape_cast %184 : vector<32x8xf32> to vector<4x8x8xf32>
    %200 = vector.shape_cast %191 : vector<32x8xf32> to vector<4x8x8xf32>
    %201 = vector.shape_cast %198 : vector<32x8xf32> to vector<4x8x8xf32>
    %202 = vector.extract_strided_slice %1 {offsets = [0, 0], sizes = [1, 8], strides = [1, 1]} : vector<4x8xf32> to vector<1x8xf32>
    %203 = vector.shape_cast %202 : vector<1x8xf32> to vector<8xf32>
    %204 = vector.shape_cast %203 : vector<8xf32> to vector<1x1x8xf32>
    %205 = vector.broadcast %204 : vector<1x1x8xf32> to vector<4x8x8xf32>
    %206 = arith.mulf %199, %205 : vector<4x8x8xf32>
    %207 = vector.extract_strided_slice %1 {offsets = [1, 0], sizes = [1, 8], strides = [1, 1]} : vector<4x8xf32> to vector<1x8xf32>
    %208 = vector.shape_cast %207 : vector<1x8xf32> to vector<8xf32>
    %209 = vector.shape_cast %208 : vector<8xf32> to vector<1x1x8xf32>
    %210 = vector.broadcast %209 : vector<1x1x8xf32> to vector<4x8x8xf32>
    %211 = arith.mulf %199, %210 : vector<4x8x8xf32>
    %212 = vector.extract_strided_slice %1 {offsets = [2, 0], sizes = [1, 8], strides = [1, 1]} : vector<4x8xf32> to vector<1x8xf32>
    %213 = vector.shape_cast %212 : vector<1x8xf32> to vector<8xf32>
    %214 = vector.shape_cast %213 : vector<8xf32> to vector<1x1x8xf32>
    %215 = vector.broadcast %214 : vector<1x1x8xf32> to vector<4x8x8xf32>
    %216 = arith.mulf %199, %215 : vector<4x8x8xf32>
    %217 = vector.extract_strided_slice %1 {offsets = [3, 0], sizes = [1, 8], strides = [1, 1]} : vector<4x8xf32> to vector<1x8xf32>
    %218 = vector.shape_cast %217 : vector<1x8xf32> to vector<8xf32>
    %219 = vector.shape_cast %218 : vector<8xf32> to vector<1x1x8xf32>
    %220 = vector.broadcast %219 : vector<1x1x8xf32> to vector<4x8x8xf32>
    %221 = arith.mulf %199, %220 : vector<4x8x8xf32>
    %222 = tpu.concatenate %206, %211, %216, %221 in 1 : vector<4x8x8xf32>, vector<4x8x8xf32>, vector<4x8x8xf32>, vector<4x8x8xf32> -> vector<4x32x8xf32>
    "tpu.trace_start"() <{level = 10 : i32, message = "nqd,nsd->nqs"}> : () -> ()
    %cst_99 = arith.constant dense<0.000000e+00> : vector<4x32x8xf32>
    %223 = tpu.matmul %222, %200, %cst_99 {dimension_numbers = #tpu.dot_dimension_numbers<[2], [2], [1], [1], [0, 0, 0, 1, 1, 1], [0], [0]>} : vector<4x32x8xf32>, vector<4x8x8xf32>, vector<4x32x8xf32> -> vector<4x32x8xf32>
    "tpu.trace_stop"() : () -> ()
    %cst_100 = arith.constant dense<0xFF800000> : vector<4x32xf32>
    %224 = vector.multi_reduction <maximumf>, %223, %cst_100 [2] : vector<4x32x8xf32> to vector<4x32xf32>
    %225 = vector.shape_cast %224 : vector<4x32xf32> to vector<4x32x1xf32>
    %226 = vector.broadcast %225 : vector<4x32x1xf32> to vector<4x32x8xf32>
    %227 = arith.subf %223, %226 : vector<4x32x8xf32>
    %228 = math.exp %227 : vector<4x32x8xf32>
    %cst_101 = arith.constant dense<0.000000e+00> : vector<4x32xf32>
    %229 = vector.multi_reduction <add>, %228, %cst_101 [2] : vector<4x32x8xf32> to vector<4x32xf32>
    %230 = vector.shape_cast %229 : vector<4x32xf32> to vector<4x32x1xf32>
    %231 = tpu.reciprocal %230 {approx = true} : vector<4x32x1xf32> -> vector<4x32x1xf32>
    %232 = vector.broadcast %231 : vector<4x32x1xf32> to vector<4x32x8xf32>
    %233 = arith.mulf %228, %232 : vector<4x32x8xf32>
    "tpu.trace_start"() <{level = 10 : i32, message = "nqs,nsd->nqd"}> : () -> ()
    %cst_102 = arith.constant dense<0.000000e+00> : vector<4x32x8xf32>
    %234 = tpu.matmul %233, %201, %cst_102 {dimension_numbers = #tpu.dot_dimension_numbers<[2], [1], [1], [2], [0, 0, 0, 1, 1, 2], [0], [0]>} : vector<4x32x8xf32>, vector<4x8x8xf32>, vector<4x32x8xf32> -> vector<4x32x8xf32>
    "tpu.trace_stop"() : () -> ()
    %235 = vector.extract_strided_slice %234 {offsets = [0, 0, 0], sizes = [4, 8, 8], strides = [1, 1, 1]} : vector<4x32x8xf32> to vector<4x8x8xf32>
    %236 = vector.extract_strided_slice %1 {offsets = [0, 0], sizes = [1, 8], strides = [1, 1]} : vector<4x8xf32> to vector<1x8xf32>
    %237 = vector.shape_cast %236 : vector<1x8xf32> to vector<8xf32>
    %238 = vector.shape_cast %237 : vector<8xf32> to vector<1x1x8xf32>
    %239 = vector.broadcast %238 : vector<1x1x8xf32> to vector<4x8x8xf32>
    %240 = arith.mulf %235, %239 : vector<4x8x8xf32>
    %241 = vector.extract_strided_slice %234 {offsets = [0, 8, 0], sizes = [4, 8, 8], strides = [1, 1, 1]} : vector<4x32x8xf32> to vector<4x8x8xf32>
    %242 = vector.extract_strided_slice %1 {offsets = [1, 0], sizes = [1, 8], strides = [1, 1]} : vector<4x8xf32> to vector<1x8xf32>
    %243 = vector.shape_cast %242 : vector<1x8xf32> to vector<8xf32>
    %244 = vector.shape_cast %243 : vector<8xf32> to vector<1x1x8xf32>
    %245 = vector.broadcast %244 : vector<1x1x8xf32> to vector<4x8x8xf32>
    %246 = arith.mulf %241, %245 : vector<4x8x8xf32>
    %247 = arith.addf %240, %246 : vector<4x8x8xf32>
    %248 = vector.extract_strided_slice %234 {offsets = [0, 16, 0], sizes = [4, 8, 8], strides = [1, 1, 1]} : vector<4x32x8xf32> to vector<4x8x8xf32>
    %249 = vector.extract_strided_slice %1 {offsets = [2, 0], sizes = [1, 8], strides = [1, 1]} : vector<4x8xf32> to vector<1x8xf32>
    %250 = vector.shape_cast %249 : vector<1x8xf32> to vector<8xf32>
    %251 = vector.shape_cast %250 : vector<8xf32> to vector<1x1x8xf32>
    %252 = vector.broadcast %251 : vector<1x1x8xf32> to vector<4x8x8xf32>
    %253 = arith.mulf %248, %252 : vector<4x8x8xf32>
    %254 = arith.addf %247, %253 : vector<4x8x8xf32>
    %255 = vector.extract_strided_slice %234 {offsets = [0, 24, 0], sizes = [4, 8, 8], strides = [1, 1, 1]} : vector<4x32x8xf32> to vector<4x8x8xf32>
    %256 = vector.extract_strided_slice %1 {offsets = [3, 0], sizes = [1, 8], strides = [1, 1]} : vector<4x8xf32> to vector<1x8xf32>
    %257 = vector.shape_cast %256 : vector<1x8xf32> to vector<8xf32>
    %258 = vector.shape_cast %257 : vector<8xf32> to vector<1x1x8xf32>
    %259 = vector.broadcast %258 : vector<1x1x8xf32> to vector<4x8x8xf32>
    %260 = arith.mulf %255, %259 : vector<4x8x8xf32>
    %261 = arith.addf %254, %260 : vector<4x8x8xf32>
    %262 = vector.shape_cast %261 : vector<4x8x8xf32> to vector<32x8xf32>
    %c1_103 = arith.constant 1 : index
    %c0_104 = arith.constant 0 : index
    %c0_105 = arith.constant 0 : index
    %263 = vector.load %arg12[%c1_103, %c0_104, %c0_105] : memref<2x8x8xf32, #tpu.memory_space<vmem>>, vector<1x8x8xf32>
    %264 = vector.shape_cast %263 : vector<1x8x8xf32> to vector<8x8xf32>
    %cst_106 = arith.constant dense<0.000000e+00> : vector<32x8xf32>
    %265 = tpu.matmul %262, %264, %cst_106 {dimension_numbers = #tpu.dot_dimension_numbers<[1], [0], [0], [1], [0, 0, 1, 1], [], []>} : vector<32x8xf32>, vector<8x8xf32>, vector<32x8xf32> -> vector<32x8xf32>
    %c1_107 = arith.constant 1 : index
    %c0_108 = arith.constant 0 : index
    %c0_109 = arith.constant 0 : index
    %266 = vector.load %arg13[%c1_107, %c0_108, %c0_109] : memref<2x1x8xf32, #tpu.memory_space<vmem>>, vector<1x1x8xf32>
    %267 = vector.shape_cast %266 : vector<1x1x8xf32> to vector<1x8xf32>
    %268 = vector.broadcast %267 : vector<1x8xf32> to vector<32x8xf32>
    %269 = arith.addf %265, %268 : vector<32x8xf32>
    %270 = arith.addf %177, %269 : vector<32x8xf32>
    %c1_110 = arith.constant 1 : index
    %c0_111 = arith.constant 0 : index
    %c0_112 = arith.constant 0 : index
    %271 = vector.load %arg14[%c1_110, %c0_111, %c0_112] : memref<2x1x8xf32, #tpu.memory_space<vmem>>, vector<1x1x8xf32>
    %272 = vector.shape_cast %271 : vector<1x1x8xf32> to vector<1x8xf32>
    %c1_113 = arith.constant 1 : index
    %c0_114 = arith.constant 0 : index
    %c0_115 = arith.constant 0 : index
    %273 = vector.load %arg15[%c1_113, %c0_114, %c0_115] : memref<2x1x8xf32, #tpu.memory_space<vmem>>, vector<1x1x8xf32>
    %274 = vector.shape_cast %273 : vector<1x1x8xf32> to vector<1x8xf32>
    %cst_116 = arith.constant dense<0.000000e+00> : vector<32xf32>
    %275 = vector.multi_reduction <add>, %270, %cst_116 [1] : vector<32x8xf32> to vector<32xf32>
    %276 = vector.shape_cast %275 : vector<32xf32> to vector<32x1xf32>
    %cst_117 = arith.constant 8.000000e+00 : f32
    %277 = vector.broadcast %cst_117 : f32 to vector<32x1xf32>
    %278 = arith.divf %276, %277 : vector<32x1xf32>
    %279 = vector.broadcast %278 : vector<32x1xf32> to vector<32x8xf32>
    %280 = arith.subf %270, %279 : vector<32x8xf32>
    %281 = arith.mulf %280, %280 : vector<32x8xf32>
    %cst_118 = arith.constant dense<0.000000e+00> : vector<32xf32>
    %282 = vector.multi_reduction <add>, %281, %cst_118 [1] : vector<32x8xf32> to vector<32xf32>
    %283 = vector.shape_cast %282 : vector<32xf32> to vector<32x1xf32>
    %cst_119 = arith.constant 8.000000e+00 : f32
    %284 = vector.broadcast %cst_119 : f32 to vector<32x1xf32>
    %285 = arith.divf %283, %284 : vector<32x1xf32>
    %286 = vector.broadcast %278 : vector<32x1xf32> to vector<32x8xf32>
    %287 = arith.subf %270, %286 : vector<32x8xf32>
    %cst_120 = arith.constant 9.99999974E-6 : f32
    %288 = vector.broadcast %cst_120 : f32 to vector<32x1xf32>
    %289 = arith.addf %285, %288 : vector<32x1xf32>
    %290 = math.rsqrt %289 : vector<32x1xf32>
    %291 = vector.broadcast %290 : vector<32x1xf32> to vector<32x8xf32>
    %292 = arith.mulf %287, %291 : vector<32x8xf32>
    %293 = vector.broadcast %272 : vector<1x8xf32> to vector<32x8xf32>
    %294 = arith.mulf %292, %293 : vector<32x8xf32>
    %295 = vector.broadcast %274 : vector<1x8xf32> to vector<32x8xf32>
    %296 = arith.addf %294, %295 : vector<32x8xf32>
    %297 = arith.truncf %296 : vector<32x8xf32> to vector<32x8xbf16>
    %c1_121 = arith.constant 1 : index
    %c0_122 = arith.constant 0 : index
    %c0_123 = arith.constant 0 : index
    %298 = vector.load %arg16[%c1_121, %c0_122, %c0_123] : memref<2x8x2048xbf16, #tpu.memory_space<vmem>>, vector<1x8x2048xbf16>
    %299 = vector.shape_cast %298 : vector<1x8x2048xbf16> to vector<8x2048xbf16>
    %cst_124 = arith.constant dense<0.000000e+00> : vector<32x2048xf32>
    %300 = tpu.matmul %297, %299, %cst_124 {dimension_numbers = #tpu.dot_dimension_numbers<[1], [0], [0], [1], [0, 0, 1, 1], [], []>} : vector<32x8xbf16>, vector<8x2048xbf16>, vector<32x2048xf32> -> vector<32x2048xf32>
    %c1_125 = arith.constant 1 : index
    %c0_126 = arith.constant 0 : index
    %c0_127 = arith.constant 0 : index
    %301 = vector.load %arg17[%c1_125, %c0_126, %c0_127] : memref<2x1x2048xf32, #tpu.memory_space<vmem>>, vector<1x1x2048xf32>
    %302 = vector.shape_cast %301 : vector<1x1x2048xf32> to vector<1x2048xf32>
    %303 = vector.broadcast %302 : vector<1x2048xf32> to vector<32x2048xf32>
    %304 = arith.addf %300, %303 : vector<32x2048xf32>
    %cst_128 = arith.constant 0.000000e+00 : f32
    %305 = vector.broadcast %cst_128 : f32 to vector<32x2048xf32>
    %306 = arith.maximumf %304, %305 : vector<32x2048xf32>
    %307 = arith.truncf %306 : vector<32x2048xf32> to vector<32x2048xbf16>
    %c1_129 = arith.constant 1 : index
    %c0_130 = arith.constant 0 : index
    %c0_131 = arith.constant 0 : index
    %308 = vector.load %arg18[%c1_129, %c0_130, %c0_131] : memref<2x2048x8xbf16, #tpu.memory_space<vmem>>, vector<1x2048x8xbf16>
    %309 = vector.shape_cast %308 : vector<1x2048x8xbf16> to vector<2048x8xbf16>
    %cst_132 = arith.constant dense<0.000000e+00> : vector<32x8xf32>
    %310 = tpu.matmul %307, %309, %cst_132 {dimension_numbers = #tpu.dot_dimension_numbers<[1], [0], [0], [1], [0, 0, 1, 1], [], []>} : vector<32x2048xbf16>, vector<2048x8xbf16>, vector<32x8xf32> -> vector<32x8xf32>
    %c1_133 = arith.constant 1 : index
    %c0_134 = arith.constant 0 : index
    %c0_135 = arith.constant 0 : index
    %311 = vector.load %arg19[%c1_133, %c0_134, %c0_135] : memref<2x1x8xf32, #tpu.memory_space<vmem>>, vector<1x1x8xf32>
    %312 = vector.shape_cast %311 : vector<1x1x8xf32> to vector<1x8xf32>
    %313 = vector.broadcast %312 : vector<1x8xf32> to vector<32x8xf32>
    %314 = arith.addf %310, %313 : vector<32x8xf32>
    %315 = arith.addf %296, %314 : vector<32x8xf32>
    %c1_136 = arith.constant 1 : index
    %c0_137 = arith.constant 0 : index
    %c0_138 = arith.constant 0 : index
    %316 = vector.load %arg20[%c1_136, %c0_137, %c0_138] : memref<2x1x8xf32, #tpu.memory_space<vmem>>, vector<1x1x8xf32>
    %317 = vector.shape_cast %316 : vector<1x1x8xf32> to vector<1x8xf32>
    %c1_139 = arith.constant 1 : index
    %c0_140 = arith.constant 0 : index
    %c0_141 = arith.constant 0 : index
    %318 = vector.load %arg21[%c1_139, %c0_140, %c0_141] : memref<2x1x8xf32, #tpu.memory_space<vmem>>, vector<1x1x8xf32>
    %319 = vector.shape_cast %318 : vector<1x1x8xf32> to vector<1x8xf32>
    %cst_142 = arith.constant dense<0.000000e+00> : vector<32xf32>
    %320 = vector.multi_reduction <add>, %315, %cst_142 [1] : vector<32x8xf32> to vector<32xf32>
    %321 = vector.shape_cast %320 : vector<32xf32> to vector<32x1xf32>
    %cst_143 = arith.constant 8.000000e+00 : f32
    %322 = vector.broadcast %cst_143 : f32 to vector<32x1xf32>
    %323 = arith.divf %321, %322 : vector<32x1xf32>
    %324 = vector.broadcast %323 : vector<32x1xf32> to vector<32x8xf32>
    %325 = arith.subf %315, %324 : vector<32x8xf32>
    %326 = arith.mulf %325, %325 : vector<32x8xf32>
    %cst_144 = arith.constant dense<0.000000e+00> : vector<32xf32>
    %327 = vector.multi_reduction <add>, %326, %cst_144 [1] : vector<32x8xf32> to vector<32xf32>
    %328 = vector.shape_cast %327 : vector<32xf32> to vector<32x1xf32>
    %cst_145 = arith.constant 8.000000e+00 : f32
    %329 = vector.broadcast %cst_145 : f32 to vector<32x1xf32>
    %330 = arith.divf %328, %329 : vector<32x1xf32>
    %331 = vector.broadcast %323 : vector<32x1xf32> to vector<32x8xf32>
    %332 = arith.subf %315, %331 : vector<32x8xf32>
    %cst_146 = arith.constant 9.99999974E-6 : f32
    %333 = vector.broadcast %cst_146 : f32 to vector<32x1xf32>
    %334 = arith.addf %330, %333 : vector<32x1xf32>
    %335 = math.rsqrt %334 : vector<32x1xf32>
    %336 = vector.broadcast %335 : vector<32x1xf32> to vector<32x8xf32>
    %337 = arith.mulf %332, %336 : vector<32x8xf32>
    %338 = vector.broadcast %317 : vector<1x8xf32> to vector<32x8xf32>
    %339 = arith.mulf %337, %338 : vector<32x8xf32>
    %340 = vector.broadcast %319 : vector<1x8xf32> to vector<32x8xf32>
    %341 = arith.addf %339, %340 : vector<32x8xf32>
    %342 = vector.shape_cast %341 : vector<32x8xf32> to vector<4x8x8xf32>
    %343 = vector.extract_strided_slice %342 {offsets = [0, 7, 0], sizes = [4, 1, 8], strides = [1, 1, 1]} : vector<4x8x8xf32> to vector<4x1x8xf32>
    %344 = vector.shape_cast %343 : vector<4x1x8xf32> to vector<4x8xf32>
    %c0_147 = arith.constant 0 : index
    %c0_148 = arith.constant 0 : index
    %345 = vector.load %arg23[%c0_147, %c0_148] : memref<8x1xf32, #tpu.memory_space<vmem>>, vector<8x1xf32>
    %cst_149 = arith.constant dense<0.000000e+00> : vector<4x1xf32>
    %346 = tpu.matmul %344, %345, %cst_149 {dimension_numbers = #tpu.dot_dimension_numbers<[1], [0], [0], [1], [0, 0, 1, 1], [], []>} : vector<4x8xf32>, vector<8x1xf32>, vector<4x1xf32> -> vector<4x1xf32>
    %c0_150 = arith.constant 0 : index
    %c0_151 = arith.constant 0 : index
    %347 = vector.load %arg2[%c0_150, %c0_151] : memref<4x1xf32, #tpu.memory_space<vmem>>, vector<4x1xf32>
    %c0_152 = arith.constant 0 : index
    %c0_153 = arith.constant 0 : index
    %348 = vector.load %arg24[%c0_152, %c0_153] : memref<1x1xf32, #tpu.memory_space<vmem>>, vector<1x1xf32>
    %349 = vector.broadcast %348 : vector<1x1xf32> to vector<4x1xf32>
    %350 = arith.mulf %347, %349 : vector<4x1xf32>
    %351 = arith.addf %346, %350 : vector<4x1xf32>
    %c0_154 = arith.constant 0 : index
    %c0_155 = arith.constant 0 : index
    %352 = vector.load %arg25[%c0_154, %c0_155] : memref<1x1xf32, #tpu.memory_space<vmem>>, vector<1x1xf32>
    %353 = vector.broadcast %352 : vector<1x1xf32> to vector<4x1xf32>
    %354 = arith.addf %351, %353 : vector<4x1xf32>
    %c0_156 = arith.constant 0 : index
    %c0_157 = arith.constant 0 : index
    %355 = vector.load %arg26[%c0_156, %c0_157] : memref<4x1xf32, #tpu.memory_space<vmem>>, vector<4x1xf32>
    tpu.vector_store %arg26[%c0_156, %c0_157], %354 {strides = array<i32>} : memref<4x1xf32, #tpu.memory_space<vmem>>, vector<4x1xf32>,
    return
  }
  func.func @transform_0(%arg0: i32) -> (i32, i32, i32) {
    %c0_i32 = arith.constant 0 : i32
    %c0_i32_0 = arith.constant 0 : i32
    %c0_i32_1 = arith.constant 0 : i32
    return %arg0, %c0_i32, %c0_i32_0 : i32, i32, i32
  }
  func.func @transform_1(%arg0: i32) -> (i32, i32) {
    %c0_i32 = arith.constant 0 : i32
    %c0_i32_0 = arith.constant 0 : i32
    return %arg0, %c0_i32 : i32, i32
  }
  func.func @transform_2(%arg0: i32) -> (i32, i32) {
    %c0_i32 = arith.constant 0 : i32
    %c0_i32_0 = arith.constant 0 : i32
    %c0_i32_1 = arith.constant 0 : i32
    return %c0_i32, %c0_i32_0 : i32, i32
  }
  func.func @transform_3(%arg0: i32) -> (i32, i32) {
    %c0_i32 = arith.constant 0 : i32
    %c0_i32_0 = arith.constant 0 : i32
    %c0_i32_1 = arith.constant 0 : i32
    return %c0_i32, %c0_i32_0 : i32, i32
  }
  func.func @transform_4(%arg0: i32) -> (i32, i32) {
    %c0_i32 = arith.constant 0 : i32
    %c0_i32_0 = arith.constant 0 : i32
    %c0_i32_1 = arith.constant 0 : i32
    return %c0_i32, %c0_i32_0 : i32, i32
  }
  func.func @transform_5(%arg0: i32) -> (i32, i32, i32) {
    %c0_i32 = arith.constant 0 : i32
    %c0_i32_0 = arith.constant 0 : i32
    %c0_i32_1 = arith.constant 0 : i32
    %c0_i32_2 = arith.constant 0 : i32
    return %c0_i32, %c0_i32_0, %c0_i32_1 : i32, i32, i32
  }
  func.func @transform_6(%arg0: i32) -> (i32, i32, i32) {
    %c0_i32 = arith.constant 0 : i32
    %c0_i32_0 = arith.constant 0 : i32
    %c0_i32_1 = arith.constant 0 : i32
    %c0_i32_2 = arith.constant 0 : i32
    return %c0_i32, %c0_i32_0, %c0_i32_1 : i32, i32, i32
  }
  func.func @transform_7(%arg0: i32) -> (i32, i32, i32) {
    %c0_i32 = arith.constant 0 : i32
    %c0_i32_0 = arith.constant 0 : i32
    %c0_i32_1 = arith.constant 0 : i32
    %c0_i32_2 = arith.constant 0 : i32
    return %c0_i32, %c0_i32_0, %c0_i32_1 : i32, i32, i32
  }
  func.func @transform_8(%arg0: i32) -> (i32, i32, i32) {
    %c0_i32 = arith.constant 0 : i32
    %c0_i32_0 = arith.constant 0 : i32
    %c0_i32_1 = arith.constant 0 : i32
    %c0_i32_2 = arith.constant 0 : i32
    return %c0_i32, %c0_i32_0, %c0_i32_1 : i32, i32, i32
  }
  func.func @transform_9(%arg0: i32) -> (i32, i32, i32) {
    %c0_i32 = arith.constant 0 : i32
    %c0_i32_0 = arith.constant 0 : i32
    %c0_i32_1 = arith.constant 0 : i32
    %c0_i32_2 = arith.constant 0 : i32
    return %c0_i32, %c0_i32_0, %c0_i32_1 : i32, i32, i32
  }
  func.func @transform_10(%arg0: i32) -> (i32, i32, i32) {
    %c0_i32 = arith.constant 0 : i32
    %c0_i32_0 = arith.constant 0 : i32
    %c0_i32_1 = arith.constant 0 : i32
    %c0_i32_2 = arith.constant 0 : i32
    return %c0_i32, %c0_i32_0, %c0_i32_1 : i32, i32, i32
  }
  func.func @transform_11(%arg0: i32) -> (i32, i32, i32) {
    %c0_i32 = arith.constant 0 : i32
    %c0_i32_0 = arith.constant 0 : i32
    %c0_i32_1 = arith.constant 0 : i32
    %c0_i32_2 = arith.constant 0 : i32
    return %c0_i32, %c0_i32_0, %c0_i32_1 : i32, i32, i32
  }
  func.func @transform_12(%arg0: i32) -> (i32, i32, i32) {
    %c0_i32 = arith.constant 0 : i32
    %c0_i32_0 = arith.constant 0 : i32
    %c0_i32_1 = arith.constant 0 : i32
    %c0_i32_2 = arith.constant 0 : i32
    return %c0_i32, %c0_i32_0, %c0_i32_1 : i32, i32, i32
  }
  func.func @transform_13(%arg0: i32) -> (i32, i32, i32) {
    %c0_i32 = arith.constant 0 : i32
    %c0_i32_0 = arith.constant 0 : i32
    %c0_i32_1 = arith.constant 0 : i32
    %c0_i32_2 = arith.constant 0 : i32
    return %c0_i32, %c0_i32_0, %c0_i32_1 : i32, i32, i32
  }
  func.func @transform_14(%arg0: i32) -> (i32, i32, i32) {
    %c0_i32 = arith.constant 0 : i32
    %c0_i32_0 = arith.constant 0 : i32
    %c0_i32_1 = arith.constant 0 : i32
    %c0_i32_2 = arith.constant 0 : i32
    return %c0_i32, %c0_i32_0, %c0_i32_1 : i32, i32, i32
  }
  func.func @transform_15(%arg0: i32) -> (i32, i32, i32) {
    %c0_i32 = arith.constant 0 : i32
    %c0_i32_0 = arith.constant 0 : i32
    %c0_i32_1 = arith.constant 0 : i32
    %c0_i32_2 = arith.constant 0 : i32
    return %c0_i32, %c0_i32_0, %c0_i32_1 : i32, i32, i32
  }
  func.func @transform_16(%arg0: i32) -> (i32, i32, i32) {
    %c0_i32 = arith.constant 0 : i32
    %c0_i32_0 = arith.constant 0 : i32
    %c0_i32_1 = arith.constant 0 : i32
    %c0_i32_2 = arith.constant 0 : i32
    return %c0_i32, %c0_i32_0, %c0_i32_1 : i32, i32, i32
  }
  func.func @transform_17(%arg0: i32) -> (i32, i32, i32) {
    %c0_i32 = arith.constant 0 : i32
    %c0_i32_0 = arith.constant 0 : i32
    %c0_i32_1 = arith.constant 0 : i32
    %c0_i32_2 = arith.constant 0 : i32
    return %c0_i32, %c0_i32_0, %c0_i32_1 : i32, i32, i32
  }
  func.func @transform_18(%arg0: i32) -> (i32, i32, i32) {
    %c0_i32 = arith.constant 0 : i32
    %c0_i32_0 = arith.constant 0 : i32
    %c0_i32_1 = arith.constant 0 : i32
    %c0_i32_2 = arith.constant 0 : i32
    return %c0_i32, %c0_i32_0, %c0_i32_1 : i32, i32, i32
  }
  func.func @transform_19(%arg0: i32) -> (i32, i32, i32) {
    %c0_i32 = arith.constant 0 : i32
    %c0_i32_0 = arith.constant 0 : i32
    %c0_i32_1 = arith.constant 0 : i32
    %c0_i32_2 = arith.constant 0 : i32
    return %c0_i32, %c0_i32_0, %c0_i32_1 : i32, i32, i32
  }
  func.func @transform_20(%arg0: i32) -> (i32, i32, i32) {
    %c0_i32 = arith.constant 0 : i32
    %c0_i32_0 = arith.constant 0 : i32
    %c0_i32_1 = arith.constant 0 : i32
    %c0_i32_2 = arith.constant 0 : i32
    return %c0_i32, %c0_i32_0, %c0_i32_1 : i32, i32, i32
  }
  func.func @transform_21(%arg0: i32) -> (i32, i32) {
    %c0_i32 = arith.constant 0 : i32
    %c0_i32_0 = arith.constant 0 : i32
    %c0_i32_1 = arith.constant 0 : i32
    return %c0_i32, %c0_i32_0 : i32, i32
  }
  func.func @transform_22(%arg0: i32) -> (i32, i32) {
    %c0_i32 = arith.constant 0 : i32
    %c0_i32_0 = arith.constant 0 : i32
    %c0_i32_1 = arith.constant 0 : i32
    return %c0_i32, %c0_i32_0 : i32, i32
  }
  func.func @transform_23(%arg0: i32) -> (i32, i32) {
    %c0_i32 = arith.constant 0 : i32
    %c0_i32_0 = arith.constant 0 : i32
    %c0_i32_1 = arith.constant 0 : i32
    return %c0_i32, %c0_i32_0 : i32, i32
  }
  func.func @transform_24(%arg0: i32) -> (i32, i32) {
    %c0_i32 = arith.constant 0 : i32
    %c0_i32_0 = arith.constant 0 : i32
    %c0_i32_1 = arith.constant 0 : i32
    return %c0_i32, %c0_i32_0 : i32, i32
  }
  func.func @transform_25(%arg0: i32) -> (i32, i32) {
    %c0_i32 = arith.constant 0 : i32
    %c0_i32_0 = arith.constant 0 : i32
    return %arg0, %c0_i32 : i32, i32
  }
}

</mosaic_0001>

<llo_original>
// kernel: critic_forward.1
$region0: #{critic_forward.1}
  #allocation0 [shape = 'u32[]', space=smem, size = 0x4, offset = 0x4, fixed_abs, tag = 'smem constant byte address 0x4 - core index']
  #allocation1 [shape = 'u32[144,128]{1,0:T(1,128)}', space=vmem, size = 0x12000, scoped, tag = 'internal scratch']
  #allocation2 [shape = 'f32[1,1]{1,0:T(1,128)S(1)}', space=vmem, size = 0x200, scoped, tag = 'scoped memory for critic_forward.1']
  #allocation3 [shape = 'f32[1,1]{1,0:T(1,128)S(1)}', space=vmem, size = 0x200, scoped, tag = 'scoped memory for critic_forward.1']
  %s0 = inlined_call_operand.vmem [shape: f32[4,8,6], index: 0, kind: input, shape index: {}]
  %s1 = inlined_call_operand.vmem [shape: f32[4,1], index: 1, kind: input, shape index: {}]
  %s2 = inlined_call_operand.vmem [shape: f32[8,8], index: 2, kind: input, shape index: {}]
  %s3 = inlined_call_operand.vmem [shape: f32[6,8], index: 3, kind: input, shape index: {}]
  %s4 = inlined_call_operand.vmem [shape: f32[1,8], index: 4, kind: input, shape index: {}]
  %s5 = inlined_call_operand.vmem [shape: f32[2,8,8], index: 5, kind: input, shape index: {}]
  %s6 = inlined_call_operand.vmem [shape: f32[2,1,8], index: 6, kind: input, shape index: {}]
  %s7 = inlined_call_operand.vmem [shape: f32[2,8,8], index: 7, kind: input, shape index: {}]
  %s8 = inlined_call_operand.vmem [shape: f32[2,1,8], index: 8, kind: input, shape index: {}]
  %s9 = inlined_call_operand.vmem [shape: f32[2,8,8], index: 9, kind: input, shape index: {}]
  %s10 = inlined_call_operand.vmem [shape: f32[2,1,8], index: 10, kind: input, shape index: {}]
  %s11 = inlined_call_operand.vmem [shape: f32[2,8,8], index: 11, kind: input, shape index: {}]
  %s12 = inlined_call_operand.vmem [shape: f32[2,1,8], index: 12, kind: input, shape index: {}]
  %s13 = inlined_call_operand.vmem [shape: f32[2,1,8], index: 13, kind: input, shape index: {}]
  %s14 = inlined_call_operand.vmem [shape: f32[2,1,8], index: 14, kind: input, shape index: {}]
  %s15 = inlined_call_operand.vmem [shape: bf16[2,8,2048], index: 15, kind: input, shape index: {}]
  %s16 = inlined_call_operand.vmem [shape: f32[2,1,2048], index: 16, kind: input, shape index: {}]
  %s17 = inlined_call_operand.vmem [shape: bf16[2,2048,8], index: 17, kind: input, shape index: {}]
  %s18 = inlined_call_operand.vmem [shape: f32[2,1,8], index: 18, kind: input, shape index: {}]
  %s19 = inlined_call_operand.vmem [shape: f32[2,1,8], index: 19, kind: input, shape index: {}]
  %s20 = inlined_call_operand.vmem [shape: f32[2,1,8], index: 20, kind: input, shape index: {}]
  %s21 = inlined_call_operand.vmem [shape: f32[4,8], index: 21, kind: input, shape index: {}]
  %s22 = inlined_call_operand.vmem [shape: f32[8,1], index: 22, kind: input, shape index: {}]
  %s23 = inlined_call_operand.<no memory space> [shape: f32[1,1], index: 23, kind: input, shape index: {}]
  %s24 = inlined_call_operand.<no memory space> [shape: f32[1,1], index: 24, kind: input, shape index: {}]
  %s25 = inlined_call_operand.vmem [shape: f32[4,1], index: 25, kind: output, shape index: {}]
  %s26 = sld [smem:[#allocation0]]
  $region110: #{critic_forward.1} parent=0
    _
  %s28 = ssub.s32 1, %s26
  %s29 = scalar_select 0, %s28, %s26
  %v30 = vstv %s23
  %31 = vst [vmem:[#allocation2] sm:$0x1] %v30
  %v32 = vstv %s24
  %33 = vst [vmem:[#allocation3] sm:$0x1] %v32
  // Predicated region
  $region2: #{critic_forward.1} parent=0 // pred_check
    _
  $region3: #{critic_forward.1} parent=0 // pred_check_branch
    %35 = sbr.rel (0) target = $region5
  $region4: #{critic_forward.1} parent=0 // pred_region
    _
  $region5: #{critic_forward.1} parent=0 // pred_fallthru
    _
  // Predicated region
  $region6: #{critic_forward.1} parent=0 // pred_check
    _
  $region7: #{critic_forward.1} parent=0 // pred_check_branch
    %37 = sbr.rel (0) target = $region9
  $region8: #{critic_forward.1} parent=0 // pred_region
    _
  $region9: #{critic_forward.1} parent=0 // pred_fallthru
    _
  // Predicated region
  $region10: #{critic_forward.1} parent=0 // pred_check
    _
  $region11: #{critic_forward.1} parent=0 // pred_check_branch
    %39 = sbr.rel (0) target = $region13
  $region12: #{critic_forward.1} parent=0 // pred_region
    _
  $region13: #{critic_forward.1} parent=0 // pred_fallthru
    _
  // Predicated region
  $region14: #{critic_forward.1} parent=0 // pred_check
    _
  $region15: #{critic_forward.1} parent=0 // pred_check_branch
    %41 = sbr.rel (0) target = $region17
  $region16: #{critic_forward.1} parent=0 // pred_region
    _
  $region17: #{critic_forward.1} parent=0 // pred_fallthru
    _
  // Predicated region
  $region18: #{critic_forward.1} parent=0 // pred_check
    _
  $region19: #{critic_forward.1} parent=0 // pred_check_branch
    %43 = sbr.rel (0) target = $region21
  $region20: #{critic_forward.1} parent=0 // pred_region
    _
  $region21: #{critic_forward.1} parent=0 // pred_fallthru
    _
  // Predicated region
  $region22: #{critic_forward.1} parent=0 // pred_check
    _
  $region23: #{critic_forward.1} parent=0 // pred_check_branch
    %45 = sbr.rel (0) target = $region25
  $region24: #{critic_forward.1} parent=0 // pred_region
    _
  $region25: #{critic_forward.1} parent=0 // pred_fallthru
    _
  // Predicated region
  $region26: #{critic_forward.1} parent=0 // pred_check
    _
  $region27: #{critic_forward.1} parent=0 // pred_check_branch
    %47 = sbr.rel (0) target = $region29
  $region28: #{critic_forward.1} parent=0 // pred_region
    _
  $region29: #{critic_forward.1} parent=0 // pred_fallthru
    _
  // Predicated region
  $region30: #{critic_forward.1} parent=0 // pred_check
    _
  $region31: #{critic_forward.1} parent=0 // pred_check_branch
    %49 = sbr.rel (0) target = $region33
  $region32: #{critic_forward.1} parent=0 // pred_region
    _
  $region33: #{critic_forward.1} parent=0 // pred_fallthru
    _
  // Predicated region
  $region34: #{critic_forward.1} parent=0 // pred_check
    _
  $region35: #{critic_forward.1} parent=0 // pred_check_branch
    %51 = sbr.rel (0) target = $region37
  $region36: #{critic_forward.1} parent=0 // pred_region
    _
  $region37: #{critic_forward.1} parent=0 // pred_fallthru
    _
  // Predicated region
  $region38: #{critic_forward.1} parent=0 // pred_check
    _
  $region39: #{critic_forward.1} parent=0 // pred_check_branch
    %53 = sbr.rel (0) target = $region41
  $region40: #{critic_forward.1} parent=0 // pred_region
    _
  $region41: #{critic_forward.1} parent=0 // pred_fallthru
    _
  // Predicated region
  $region42: #{critic_forward.1} parent=0 // pred_check
    _
  $region43: #{critic_forward.1} parent=0 // pred_check_branch
    %55 = sbr.rel (0) target = $region45
  $region44: #{critic_forward.1} parent=0 // pred_region
    _
  $region45: #{critic_forward.1} parent=0 // pred_fallthru
    _
  // Predicated region
  $region46: #{critic_forward.1} parent=0 // pred_check
    _
  $region47: #{critic_forward.1} parent=0 // pred_check_branch
    %57 = sbr.rel (0) target = $region49
  $region48: #{critic_forward.1} parent=0 // pred_region
    _
  $region49: #{critic_forward.1} parent=0 // pred_fallthru
    _
  // Predicated region
  $region50: #{critic_forward.1} parent=0 // pred_check
    _
  $region51: #{critic_forward.1} parent=0 // pred_check_branch
    %59 = sbr.rel (0) target = $region53
  $region52: #{critic_forward.1} parent=0 // pred_region
    _
  $region53: #{critic_forward.1} parent=0 // pred_fallthru
    _
  // Predicated region
  $region54: #{critic_forward.1} parent=0 // pred_check
    _
  $region55: #{critic_forward.1} parent=0 // pred_check_branch
    %61 = sbr.rel (0) target = $region57
  $region56: #{critic_forward.1} parent=0 // pred_region
    _
  $region57: #{critic_forward.1} parent=0 // pred_fallthru
    _
  // Predicated region
  $region58: #{critic_forward.1} parent=0 // pred_check
    _
  $region59: #{critic_forward.1} parent=0 // pred_check_branch
    %63 = sbr.rel (0) target = $region61
  $region60: #{critic_forward.1} parent=0 // pred_region
    _
  $region61: #{critic_forward.1} parent=0 // pred_fallthru
    _
  // Predicated region
  $region62: #{critic_forward.1} parent=0 // pred_check
    _
  $region63: #{critic_forward.1} parent=0 // pred_check_branch
    %65 = sbr.rel (0) target = $region65
  $region64: #{critic_forward.1} parent=0 // pred_region
    _
  $region65: #{critic_forward.1} parent=0 // pred_fallthru
    _
  // Predicated region
  $region66: #{critic_forward.1} parent=0 // pred_check
    _
  $region67: #{critic_forward.1} parent=0 // pred_check_branch
    %67 = sbr.rel (0) target = $region69
  $region68: #{critic_forward.1} parent=0 // pred_region
    _
  $region69: #{critic_forward.1} parent=0 // pred_fallthru
    _
  // Predicated region
  $region70: #{critic_forward.1} parent=0 // pred_check
    _
  $region71: #{critic_forward.1} parent=0 // pred_check_branch
    %69 = sbr.rel (0) target = $region73
  $region72: #{critic_forward.1} parent=0 // pred_region
    _
  $region73: #{critic_forward.1} parent=0 // pred_fallthru
    _
  // Predicated region
  $region74: #{critic_forward.1} parent=0 // pred_check
    _
  $region75: #{critic_forward.1} parent=0 // pred_check_branch
    %71 = sbr.rel (0) target = $region77
  $region76: #{critic_forward.1} parent=0 // pred_region
    _
  $region77: #{critic_forward.1} parent=0 // pred_fallthru
    _
  // Predicated region
  $region78: #{critic_forward.1} parent=0 // pred_check
    _
  $region79: #{critic_forward.1} parent=0 // pred_check_branch
    %73 = sbr.rel (0) target = $region81
  $region80: #{critic_forward.1} parent=0 // pred_region
    _
  $region81: #{critic_forward.1} parent=0 // pred_fallthru
    _
  // Predicated region
  $region82: #{critic_forward.1} parent=0 // pred_check
    _
  $region83: #{critic_forward.1} parent=0 // pred_check_branch
    %75 = sbr.rel (0) target = $region85
  $region84: #{critic_forward.1} parent=0 // pred_region
    _
  $region85: #{critic_forward.1} parent=0 // pred_fallthru
    _
  // Predicated region
  $region86: #{critic_forward.1} parent=0 // pred_check
    _
  $region87: #{critic_forward.1} parent=0 // pred_check_branch
    %77 = sbr.rel (0) target = $region89
  $region88: #{critic_forward.1} parent=0 // pred_region
    _
  $region89: #{critic_forward.1} parent=0 // pred_fallthru
    _
  // Predicated region
  $region90: #{critic_forward.1} parent=0 // pred_check
    _
  $region91: #{critic_forward.1} parent=0 // pred_check_branch
    %79 = sbr.rel (0) target = $region93
  $region92: #{critic_forward.1} parent=0 // pred_region
    _
  $region93: #{critic_forward.1} parent=0 // pred_fallthru
    _
  // Predicated region
  $region94: #{critic_forward.1} parent=0 // pred_check
    _
  $region95: #{critic_forward.1} parent=0 // pred_check_branch
    %81 = sbr.rel (0) target = $region97
  $region96: #{critic_forward.1} parent=0 // pred_region
    _
  $region97: #{critic_forward.1} parent=0 // pred_fallthru
    _
  // Predicated region
  $region98: #{critic_forward.1} parent=0 // pred_check
    _
  $region99: #{critic_forward.1} parent=0 // pred_check_branch
    %83 = sbr.rel (0) target = $region101
  $region100: #{critic_forward.1} parent=0 // pred_region
    _
  $region101: #{critic_forward.1} parent=0 // pred_fallthru
    _
  %v85 = vld [vmem:[%s0] sm:$0xff]
  %v86 = vld [vmem:[%s0 + $0x8] sm:$0xff]
  %v87 = vld [vmem:[%s0 + $0x10] sm:$0xff]
  %v88 = vld [vmem:[%s0 + $0x18] sm:$0xff]
  %v89 = vld [vmem:[%s21] sm:$0xf]
  %v90 = vld [vmem:[%s3] sm:$0x3f]
  %v91 = vld [vmem:[%s4] sm:$0x1]
  %v93 = vlaneseq
  %v94 = vshrl.u32 %v93, 7
  %v95 = vsub.s32 0, %v94
  %v96 = vrot.slane %v91, %v95
  %vm98 = vcmask 48128
  %v100 = vsel %vm98, %v85, 0
  %v103 = vsel %vm98, %v86, 0
  %v106 = vsel %vm98, %v87, 0
  %v109 = vsel %vm98, %v88, 0
  %vm111 = vcmask 1045504
  %v113 = vsel %vm111, %v90, 0
  %115 = vmatprep.subr.mxu0 0.0
  %116 = vmatpush1.msra.mxu0 %v113
  %117 = vmatprep.subr.mxu0 0.0
  %118 = vmatpush1.msra.mxu0 0.0
  %119 = vmatprep.subr.mxu0 0.0
  %120 = vmatpush1.msra.mxu0 0.0
  %121 = vmatprep.subr.mxu0 0.0
  %122 = vmatpush1.msra.mxu0 0.0
  %123 = vmatprep.subr.mxu0 0.0
  %124 = vmatpush1.msra.mxu0 0.0
  %125 = vmatprep.subr.mxu0 0.0
  %126 = vmatpush1.msra.mxu0 0.0
  %127 = vmatprep.subr.mxu0 0.0
  %128 = vmatpush1.msra.mxu0 0.0
  %129 = vmatprep.subr.mxu0 0.0
  %130 = vmatpush1.msra.mxu0 0.0
  %131 = vmatprep.subr.mxu0 0.0
  %132 = vmatpush1.msra.mxu0 0.0
  %133 = vmatprep.subr.mxu0 0.0
  %134 = vmatpush1.msra.mxu0 0.0
  %135 = vmatprep.subr.mxu0 0.0
  %136 = vmatpush1.msra.mxu0 0.0
  %137 = vmatprep.subr.mxu0 0.0
  %138 = vmatpush1.msra.mxu0 0.0
  %139 = vmatprep.subr.mxu0 0.0
  %140 = vmatpush1.msra.mxu0 0.0
  %141 = vmatprep.subr.mxu0 0.0
  %142 = vmatpush1.msra.mxu0 0.0
  %143 = vmatprep.subr.mxu0 0.0
  %144 = vmatpush1.msra.mxu0 0.0
  %145 = vmatprep.subr.mxu0 0.0
  %146 = vmatpush1.msra.mxu0 0.0
  %147 = vmatprep.subr.mxu0 0.0
  %148 = vmatpush1.msra.mxu0 0.0
  %149 = vmatprep.subr.mxu0 0.0
  %150 = vmatpush1.msra.mxu0 0.0
  %151 = vmatprep.subr.mxu0 0.0
  %152 = vmatpush1.msra.mxu0 0.0
  %153 = vmatprep.subr.mxu0 0.0
  %154 = vmatpush1.msra.mxu0 0.0
  %155 = vmatprep.subr.mxu0 0.0
  %156 = vmatpush1.msra.mxu0 0.0
  %157 = vmatprep.subr.mxu0 0.0
  %158 = vmatpush1.msra.mxu0 0.0
  %159 = vmatprep.subr.mxu0 0.0
  %160 = vmatpush1.msra.mxu0 0.0
  %161 = vmatprep.subr.mxu0 0.0
  %162 = vmatpush1.msra.mxu0 0.0
  %163 = vmatprep.subr.mxu0 0.0
  %164 = vmatpush1.msra.mxu0 0.0
  %165 = vmatprep.subr.mxu0 0.0
  %166 = vmatpush1.msra.mxu0 0.0
  %167 = vmatprep.subr.mxu0 0.0
  %168 = vmatpush1.msra.mxu0 0.0
  %169 = vmatprep.subr.mxu0 0.0
  %170 = vmatpush1.msra.mxu0 0.0
  %171 = vmatprep.subr.mxu0 0.0
  %172 = vmatpush1.msra.mxu0 0.0
  %173 = vmatprep.subr.mxu0 0.0
  %174 = vmatpush1.msra.mxu0 0.0
  %175 = vmatprep.subr.mxu0 0.0
  %176 = vmatpush1.msra.mxu0 0.0
  %177 = vmatprep.subr.mxu0 0.0
  %178 = vmatpush1.msra.mxu0 0.0
  %179 = vmatprep.mubr.f32.mxu0 0.0
  %180 = vmatmul.mubr.f32.gmra.mrb[0].mxu0 %v100
  %v181 = vpop.f32.mrb[0].mxu0
  %v182 = vadd.f32 %v96, %v181
  %v183 = vpop.f32.mrb[0].mxu0
  %184 = vmatprep.mubr.f32.mxu0 0.0
  %185 = vmatmul.mubr.f32.gmra.mrb[0].mxu0 %v103
  %v186 = vpop.f32.mrb[0].mxu0
  %v187 = vadd.f32 %v96, %v186
  %v188 = vpop.f32.mrb[0].mxu0
  %189 = vmatprep.mubr.f32.mxu0 0.0
  %190 = vmatmul.mubr.f32.gmra.mrb[0].mxu0 %v106
  %v191 = vpop.f32.mrb[0].mxu0
  %v192 = vadd.f32 %v96, %v191
  %v193 = vpop.f32.mrb[0].mxu0
  %194 = vmatprep.mubr.f32.mxu0 0.0
  %195 = vmatmul.mubr.f32.gmra.mrb[0].mxu0 %v109
  %v196 = vpop.f32.mrb[0].mxu0
  %v197 = vadd.f32 %v96, %v196
  %v198 = vpop.f32.mrb[0].mxu0
  %199 = vdwg.mxu0
  %v200 = vld [vmem:[%s2] sm:$0xff]
  %v201 = vadd.f32 %v182, %v200
  %v202 = vadd.f32 %v187, %v200
  %v203 = vadd.f32 %v192, %v200
  %v204 = vadd.f32 %v197, %v200
  %v205 = vld [vmem:[%s5] sm:$0xff]
  %v206 = vld [vmem:[%s6] sm:$0x1]
  %v208 = vlaneseq
  %v209 = vshrl.u32 %v208, 7
  %v210 = vsub.s32 0, %v209
  %v211 = vrot.slane %v206, %v210
  %vm213 = vcmask 64512
  %v215 = vsel %vm213, %v201, 0
  %v218 = vsel %vm213, %v202, 0
  %v221 = vsel %vm213, %v203, 0
  %v224 = vsel %vm213, %v204, 0
  %226 = vmatprep.subr.mxu0 0.0
  %227 = vmatpush1.msra.mxu0 %v205
  %228 = vmatprep.subr.mxu0 0.0
  %229 = vmatpush1.msra.mxu0 0.0
  %230 = vmatprep.subr.mxu0 0.0
  %231 = vmatpush1.msra.mxu0 0.0
  %232 = vmatprep.subr.mxu0 0.0
  %233 = vmatpush1.msra.mxu0 0.0
  %234 = vmatprep.subr.mxu0 0.0
  %235 = vmatpush1.msra.mxu0 0.0
  %236 = vmatprep.subr.mxu0 0.0
  %237 = vmatpush1.msra.mxu0 0.0
  %238 = vmatprep.subr.mxu0 0.0
  %239 = vmatpush1.msra.mxu0 0.0
  %240 = vmatprep.subr.mxu0 0.0
  %241 = vmatpush1.msra.mxu0 0.0
  %242 = vmatprep.subr.mxu0 0.0
  %243 = vmatpush1.msra.mxu0 0.0
  %244 = vmatprep.subr.mxu0 0.0
  %245 = vmatpush1.msra.mxu0 0.0
  %246 = vmatprep.subr.mxu0 0.0
  %247 = vmatpush1.msra.mxu0 0.0
  %248 = vmatprep.subr.mxu0 0.0
  %249 = vmatpush1.msra.mxu0 0.0
  %250 = vmatprep.subr.mxu0 0.0
  %251 = vmatpush1.msra.mxu0 0.0
  %252 = vmatprep.subr.mxu0 0.0
  %253 = vmatpush1.msra.mxu0 0.0
  %254 = vmatprep.subr.mxu0 0.0
  %255 = vmatpush1.msra.mxu0 0.0
  %256 = vmatprep.subr.mxu0 0.0
  %257 = vmatpush1.msra.mxu0 0.0
  %258 = vmatprep.subr.mxu0 0.0
  %259 = vmatpush1.msra.mxu0 0.0
  %260 = vmatprep.subr.mxu0 0.0
  %261 = vmatpush1.msra.mxu0 0.0
  %262 = vmatprep.subr.mxu0 0.0
  %263 = vmatpush1.msra.mxu0 0.0
  %264 = vmatprep.subr.mxu0 0.0
  %265 = vmatpush1.msra.mxu0 0.0
  %266 = vmatprep.subr.mxu0 0.0
  %267 = vmatpush1.msra.mxu0 0.0
  %268 = vmatprep.subr.mxu0 0.0
  %269 = vmatpush1.msra.mxu0 0.0
  %270 = vmatprep.subr.mxu0 0.0
  %271 = vmatpush1.msra.mxu0 0.0
  %272 = vmatprep.subr.mxu0 0.0
  %273 = vmatpush1.msra.mxu0 0.0
  %274 = vmatprep.subr.mxu0 0.0
  %275 = vmatpush1.msra.mxu0 0.0
  %276 = vmatprep.subr.mxu0 0.0
  %277 = vmatpush1.msra.mxu0 0.0
  %278 = vmatprep.subr.mxu0 0.0
  %279 = vmatpush1.msra.mxu0 0.0
  %280 = vmatprep.subr.mxu0 0.0
  %281 = vmatpush1.msra.mxu0 0.0
  %282 = vmatprep.subr.mxu0 0.0
  %283 = vmatpush1.msra.mxu0 0.0
  %284 = vmatprep.subr.mxu0 0.0
  %285 = vmatpush1.msra.mxu0 0.0
  %286 = vmatprep.subr.mxu0 0.0
  %287 = vmatpush1.msra.mxu0 0.0
  %288 = vmatprep.subr.mxu0 0.0
  %289 = vmatpush1.msra.mxu0 0.0
  %290 = vmatprep.mubr.f32.mxu0 0.0
  %291 = vmatmul.mubr.f32.gmra.mrb[0].mxu0 %v215
  %v292 = vpop.f32.mrb[0].mxu0
  %v293 = vadd.f32 %v211, %v292
  %v294 = vpop.f32.mrb[0].mxu0
  %295 = vmatprep.mubr.f32.mxu0 0.0
  %296 = vmatmul.mubr.f32.gmra.mrb[0].mxu0 %v218
  %v297 = vpop.f32.mrb[0].mxu0
  %v298 = vadd.f32 %v211, %v297
  %v299 = vpop.f32.mrb[0].mxu0
  %300 = vmatprep.mubr.f32.mxu0 0.0
  %301 = vmatmul.mubr.f32.gmra.mrb[0].mxu0 %v221
  %v302 = vpop.f32.mrb[0].mxu0
  %v303 = vadd.f32 %v211, %v302
  %v304 = vpop.f32.mrb[0].mxu0
  %305 = vmatprep.mubr.f32.mxu0 0.0
  %306 = vmatmul.mubr.f32.gmra.mrb[0].mxu0 %v224
  %v307 = vpop.f32.mrb[0].mxu0
  %v308 = vadd.f32 %v211, %v307
  %v309 = vpop.f32.mrb[0].mxu0
  %310 = vdwg.mxu0
  %v311 = vld [vmem:[%s7] sm:$0xff]
  %v312 = vld [vmem:[%s8] sm:$0x1]
  %v314 = vlaneseq
  %v315 = vshrl.u32 %v314, 7
  %v316 = vsub.s32 0, %v315
  %v317 = vrot.slane %v312, %v316
  %319 = vmatprep.subr.mxu0 0.0
  %320 = vmatpush1.msra.mxu0 %v311
  %321 = vmatprep.subr.mxu0 0.0
  %322 = vmatpush1.msra.mxu0 0.0
  %323 = vmatprep.subr.mxu0 0.0
  %324 = vmatpush1.msra.mxu0 0.0
  %325 = vmatprep.subr.mxu0 0.0
  %326 = vmatpush1.msra.mxu0 0.0
  %327 = vmatprep.subr.mxu0 0.0
  %328 = vmatpush1.msra.mxu0 0.0
  %329 = vmatprep.subr.mxu0 0.0
  %330 = vmatpush1.msra.mxu0 0.0
  %331 = vmatprep.subr.mxu0 0.0
  %332 = vmatpush1.msra.mxu0 0.0
  %333 = vmatprep.subr.mxu0 0.0
  %334 = vmatpush1.msra.mxu0 0.0
  %335 = vmatprep.subr.mxu0 0.0
  %336 = vmatpush1.msra.mxu0 0.0
  %337 = vmatprep.subr.mxu0 0.0
  %338 = vmatpush1.msra.mxu0 0.0
  %339 = vmatprep.subr.mxu0 0.0
  %340 = vmatpush1.msra.mxu0 0.0
  %341 = vmatprep.subr.mxu0 0.0
  %342 = vmatpush1.msra.mxu0 0.0
  %343 = vmatprep.subr.mxu0 0.0
  %344 = vmatpush1.msra.mxu0 0.0
  %345 = vmatprep.subr.mxu0 0.0
  %346 = vmatpush1.msra.mxu0 0.0
  %347 = vmatprep.subr.mxu0 0.0
  %348 = vmatpush1.msra.mxu0 0.0
  %349 = vmatprep.subr.mxu0 0.0
  %350 = vmatpush1.msra.mxu0 0.0
  %351 = vmatprep.subr.mxu0 0.0
  %352 = vmatpush1.msra.mxu0 0.0
  %353 = vmatprep.subr.mxu0 0.0
  %354 = vmatpush1.msra.mxu0 0.0
  %355 = vmatprep.subr.mxu0 0.0
  %356 = vmatpush1.msra.mxu0 0.0
  %357 = vmatprep.subr.mxu0 0.0
  %358 = vmatpush1.msra.mxu0 0.0
  %359 = vmatprep.subr.mxu0 0.0
  %360 = vmatpush1.msra.mxu0 0.0
  %361 = vmatprep.subr.mxu0 0.0
  %362 = vmatpush1.msra.mxu0 0.0
  %363 = vmatprep.subr.mxu0 0.0
  %364 = vmatpush1.msra.mxu0 0.0
  %365 = vmatprep.subr.mxu0 0.0
  %366 = vmatpush1.msra.mxu0 0.0
  %367 = vmatprep.subr.mxu0 0.0
  %368 = vmatpush1.msra.mxu0 0.0
  %369 = vmatprep.subr.mxu0 0.0
  %370 = vmatpush1.msra.mxu0 0.0
  %371 = vmatprep.subr.mxu0 0.0
  %372 = vmatpush1.msra.mxu0 0.0
  %373 = vmatprep.subr.mxu0 0.0
  %374 = vmatpush1.msra.mxu0 0.0
  %375 = vmatprep.subr.mxu0 0.0
  %376 = vmatpush1.msra.mxu0 0.0
  %377 = vmatprep.subr.mxu0 0.0
  %378 = vmatpush1.msra.mxu0 0.0
  %379 = vmatprep.subr.mxu0 0.0
  %380 = vmatpush1.msra.mxu0 0.0
  %381 = vmatprep.subr.mxu0 0.0
  %382 = vmatpush1.msra.mxu0 0.0
  %383 = vmatprep.mubr.f32.mxu0 0.0
  %384 = vmatmul.mubr.f32.gmra.mrb[0].mxu0 %v215
  %v385 = vpop.f32.mrb[0].mxu0
  %v386 = vadd.f32 %v317, %v385
  %v387 = vpop.f32.mrb[0].mxu0
  %388 = vmatprep.mubr.f32.mxu0 0.0
  %389 = vmatmul.mubr.f32.gmra.mrb[0].mxu0 %v218
  %v390 = vpop.f32.mrb[0].mxu0
  %v391 = vadd.f32 %v317, %v390
  %v392 = vpop.f32.mrb[0].mxu0
  %393 = vmatprep.mubr.f32.mxu0 0.0
  %394 = vmatmul.mubr.f32.gmra.mrb[0].mxu0 %v221
  %v395 = vpop.f32.mrb[0].mxu0
  %v396 = vadd.f32 %v317, %v395
  %v397 = vpop.f32.mrb[0].mxu0
  %398 = vmatprep.mubr.f32.mxu0 0.0
  %399 = vmatmul.mubr.f32.gmra.mrb[0].mxu0 %v224
  %v400 = vpop.f32.mrb[0].mxu0
  %v401 = vadd.f32 %v317, %v400
  %v402 = vpop.f32.mrb[0].mxu0
  %403 = vdwg.mxu0
  %v404 = vld [vmem:[%s9] sm:$0xff]
  %v405 = vld [vmem:[%s10] sm:$0x1]
  %v407 = vlaneseq
  %v408 = vshrl.u32 %v407, 7
  %v409 = vsub.s32 0, %v408
  %v410 = vrot.slane %v405, %v409
  %412 = vmatprep.subr.mxu0 0.0
  %413 = vmatpush1.msra.mxu0 %v404
  %414 = vmatprep.subr.mxu0 0.0
  %415 = vmatpush1.msra.mxu0 0.0
  %416 = vmatprep.subr.mxu0 0.0
  %417 = vmatpush1.msra.mxu0 0.0
  %418 = vmatprep.subr.mxu0 0.0
  %419 = vmatpush1.msra.mxu0 0.0
  %420 = vmatprep.subr.mxu0 0.0
  %421 = vmatpush1.msra.mxu0 0.0
  %422 = vmatprep.subr.mxu0 0.0
  %423 = vmatpush1.msra.mxu0 0.0
  %424 = vmatprep.subr.mxu0 0.0
  %425 = vmatpush1.msra.mxu0 0.0
  %426 = vmatprep.subr.mxu0 0.0
  %427 = vmatpush1.msra.mxu0 0.0
  %428 = vmatprep.subr.mxu0 0.0
  %429 = vmatpush1.msra.mxu0 0.0
  %430 = vmatprep.subr.mxu0 0.0
  %431 = vmatpush1.msra.mxu0 0.0
  %432 = vmatprep.subr.mxu0 0.0
  %433 = vmatpush1.msra.mxu0 0.0
  %434 = vmatprep.subr.mxu0 0.0
  %435 = vmatpush1.msra.mxu0 0.0
  %436 = vmatprep.subr.mxu0 0.0
  %437 = vmatpush1.msra.mxu0 0.0
  %438 = vmatprep.subr.mxu0 0.0
  %439 = vmatpush1.msra.mxu0 0.0
  %440 = vmatprep.subr.mxu0 0.0
  %441 = vmatpush1.msra.mxu0 0.0
  %442 = vmatprep.subr.mxu0 0.0
  %443 = vmatpush1.msra.mxu0 0.0
  %444 = vmatprep.subr.mxu0 0.0
  %445 = vmatpush1.msra.mxu0 0.0
  %446 = vmatprep.subr.mxu0 0.0
  %447 = vmatpush1.msra.mxu0 0.0
  %448 = vmatprep.subr.mxu0 0.0
  %449 = vmatpush1.msra.mxu0 0.0
  %450 = vmatprep.subr.mxu0 0.0
  %451 = vmatpush1.msra.mxu0 0.0
  %452 = vmatprep.subr.mxu0 0.0
  %453 = vmatpush1.msra.mxu0 0.0
  %454 = vmatprep.subr.mxu0 0.0
  %455 = vmatpush1.msra.mxu0 0.0
  %456 = vmatprep.subr.mxu0 0.0
  %457 = vmatpush1.msra.mxu0 0.0
  %458 = vmatprep.subr.mxu0 0.0
  %459 = vmatpush1.msra.mxu0 0.0
  %460 = vmatprep.subr.mxu0 0.0
  %461 = vmatpush1.msra.mxu0 0.0
  %462 = vmatprep.subr.mxu0 0.0
  %463 = vmatpush1.msra.mxu0 0.0
  %464 = vmatprep.subr.mxu0 0.0
  %465 = vmatpush1.msra.mxu0 0.0
  %466 = vmatprep.subr.mxu0 0.0
  %467 = vmatpush1.msra.mxu0 0.0
  %468 = vmatprep.subr.mxu0 0.0
  %469 = vmatpush1.msra.mxu0 0.0
  %470 = vmatprep.subr.mxu0 0.0
  %471 = vmatpush1.msra.mxu0 0.0
  %472 = vmatprep.subr.mxu0 0.0
  %473 = vmatpush1.msra.mxu0 0.0
  %474 = vmatprep.subr.mxu0 0.0
  %475 = vmatpush1.msra.mxu0 0.0
  %476 = vmatprep.mubr.f32.mxu0 0.0
  %477 = vmatmul.mubr.f32.gmra.mrb[0].mxu0 %v215
  %v478 = vpop.f32.mrb[0].mxu0
  %v479 = vadd.f32 %v410, %v478
  %v480 = vpop.f32.mrb[0].mxu0
  %481 = vmatprep.mubr.f32.mxu0 0.0
  %482 = vmatmul.mubr.f32.gmra.mrb[0].mxu0 %v218
  %v483 = vpop.f32.mrb[0].mxu0
  %v484 = vadd.f32 %v410, %v483
  %v485 = vpop.f32.mrb[0].mxu0
  %486 = vmatprep.mubr.f32.mxu0 0.0
  %487 = vmatmul.mubr.f32.gmra.mrb[0].mxu0 %v221
  %v488 = vpop.f32.mrb[0].mxu0
  %v489 = vadd.f32 %v410, %v488
  %v490 = vpop.f32.mrb[0].mxu0
  %491 = vmatprep.mubr.f32.mxu0 0.0
  %492 = vmatmul.mubr.f32.gmra.mrb[0].mxu0 %v224
  %v493 = vpop.f32.mrb[0].mxu0
  %v494 = vadd.f32 %v410, %v493
  %v495 = vpop.f32.mrb[0].mxu0
  %496 = vdwg.mxu0
  %v497 = vlaneseq
  %v498 = vshrl.u32 %v497, 7
  %v499 = vsub.s32 0, %v498
  %v500 = vrot.slane %v89, %v499
  %v501 = vmul.f32 %v293, %v500
  %v502 = vmul.f32 %v298, %v500
  %v503 = vmul.f32 %v303, %v500
  %v504 = vmul.f32 %v308, %v500
  %v505 = vlaneseq
  %v506 = vshrl.u32 %v505, 7
  %v507 = vsub.s32 1, %v506
  %v508 = vrot.slane %v89, %v507
  %v509 = vmul.f32 %v293, %v508
  %v510 = vmul.f32 %v298, %v508
  %v511 = vmul.f32 %v303, %v508
  %v512 = vmul.f32 %v308, %v508
  %v513 = vlaneseq
  %v514 = vshrl.u32 %v513, 7
  %v515 = vsub.s32 2, %v514
  %v516 = vrot.slane %v89, %v515
  %v517 = vmul.f32 %v293, %v516
  %v518 = vmul.f32 %v298, %v516
  %v519 = vmul.f32 %v303, %v516
  %v520 = vmul.f32 %v308, %v516
  %v521 = vlaneseq
  %v522 = vshrl.u32 %v521, 7
  %v523 = vsub.s32 3, %v522
  %v524 = vrot.slane %v89, %v523
  %v525 = vmul.f32 %v293, %v524
  %v526 = vmul.f32 %v298, %v524
  %v527 = vmul.f32 %v303, %v524
  %v528 = vmul.f32 %v308, %v524
  %v530 = vsel %vm213, %v501, 0
  %v533 = vsel %vm213, %v509, 0
  %v536 = vsel %vm213, %v517, 0
  %v539 = vsel %vm213, %v525, 0
  %v542 = vsel %vm213, %v386, 0
  %544 = vmatprep.subr.mxu0 0.0
  %545 = vmatpush1.xpose.msra.mxu0 %v542
  %546 = vmatprep.subr.mxu0 0.0
  %547 = vmatpush1.xpose.msra.mxu0 0.0
  %548 = vmatprep.subr.mxu0 0.0
  %549 = vmatpush1.xpose.msra.mxu0 0.0
  %550 = vmatprep.subr.mxu0 0.0
  %551 = vmatpush1.xpose.msra.mxu0 0.0
  %552 = vmatprep.subr.mxu0 0.0
  %553 = vmatpush1.xpose.msra.mxu0 0.0
  %554 = vmatprep.subr.mxu0 0.0
  %555 = vmatpush1.xpose.msra.mxu0 0.0
  %556 = vmatprep.subr.mxu0 0.0
  %557 = vmatpush1.xpose.msra.mxu0 0.0
  %558 = vmatprep.subr.mxu0 0.0
  %559 = vmatpush1.xpose.msra.mxu0 0.0
  %560 = vmatprep.subr.mxu0 0.0
  %561 = vmatpush1.xpose.msra.mxu0 0.0
  %562 = vmatprep.subr.mxu0 0.0
  %563 = vmatpush1.xpose.msra.mxu0 0.0
  %564 = vmatprep.subr.mxu0 0.0
  %565 = vmatpush1.xpose.msra.mxu0 0.0
  %566 = vmatprep.subr.mxu0 0.0
  %567 = vmatpush1.xpose.msra.mxu0 0.0
  %568 = vmatprep.subr.mxu0 0.0
  %569 = vmatpush1.xpose.msra.mxu0 0.0
  %570 = vmatprep.subr.mxu0 0.0
  %571 = vmatpush1.xpose.msra.mxu0 0.0
  %572 = vmatprep.subr.mxu0 0.0
  %573 = vmatpush1.xpose.msra.mxu0 0.0
  %574 = vmatprep.subr.mxu0 0.0
  %575 = vmatpush1.xpose.msra.mxu0 0.0
  %576 = vmatprep.subr.mxu0 0.0
  %577 = vmatpush1.xpose.msra.mxu0 0.0
  %578 = vmatprep.subr.mxu0 0.0
  %579 = vmatpush1.xpose.msra.mxu0 0.0
  %580 = vmatprep.subr.mxu0 0.0
  %581 = vmatpush1.xpose.msra.mxu0 0.0
  %582 = vmatprep.subr.mxu0 0.0
  %583 = vmatpush1.xpose.msra.mxu0 0.0
  %584 = vmatprep.subr.mxu0 0.0
  %585 = vmatpush1.xpose.msra.mxu0 0.0
  %586 = vmatprep.subr.mxu0 0.0
  %587 = vmatpush1.xpose.msra.mxu0 0.0
  %588 = vmatprep.subr.mxu0 0.0
  %589 = vmatpush1.xpose.msra.mxu0 0.0
  %590 = vmatprep.subr.mxu0 0.0
  %591 = vmatpush1.xpose.msra.mxu0 0.0
  %592 = vmatprep.subr.mxu0 0.0
  %593 = vmatpush1.xpose.msra.mxu0 0.0
  %594 = vmatprep.subr.mxu0 0.0
  %595 = vmatpush1.xpose.msra.mxu0 0.0
  %596 = vmatprep.subr.mxu0 0.0
  %597 = vmatpush1.xpose.msra.mxu0 0.0
  %598 = vmatprep.subr.mxu0 0.0
  %599 = vmatpush1.xpose.msra.mxu0 0.0
  %600 = vmatprep.subr.mxu0 0.0
  %601 = vmatpush1.xpose.msra.mxu0 0.0
  %602 = vmatprep.subr.mxu0 0.0
  %603 = vmatpush1.xpose.msra.mxu0 0.0
  %604 = vmatprep.subr.mxu0 0.0
  %605 = vmatpush1.xpose.msra.mxu0 0.0
  %606 = vmatprep.subr.mxu0 0.0
  %607 = vmatpush1.xpose.msra.mxu0 0.0
  %608 = vmatprep.mubr.f32.mxu0 0.0
  %609 = vmatmul.mubr.f32.gmra.mrb[0].mxu0 %v530
  %v610 = vpop.f32.mrb[0].mxu0
  %v611 = vadd.f32 0.0, %v610
  %v612 = vpop.f32.mrb[0].mxu0
  %613 = vmatprep.mubr.f32.mxu0 0.0
  %614 = vmatmul.mubr.f32.gmra.mrb[0].mxu0 %v533
  %v615 = vpop.f32.mrb[0].mxu0
  %v616 = vadd.f32 0.0, %v615
  %v617 = vpop.f32.mrb[0].mxu0
  %618 = vmatprep.mubr.f32.mxu0 0.0
  %619 = vmatmul.mubr.f32.gmra.mrb[0].mxu0 %v536
  %v620 = vpop.f32.mrb[0].mxu0
  %v621 = vadd.f32 0.0, %v620
  %v622 = vpop.f32.mrb[0].mxu0
  %623 = vmatprep.mubr.f32.mxu0 0.0
  %624 = vmatmul.mubr.f32.gmra.mrb[0].mxu0 %v539
  %v625 = vpop.f32.mrb[0].mxu0
  %v626 = vadd.f32 0.0, %v625
  %v627 = vpop.f32.mrb[0].mxu0
  %628 = vdwg.mxu0
  %v630 = vsel %vm213, %v502, 0
  %v633 = vsel %vm213, %v510, 0
  %v636 = vsel %vm213, %v518, 0
  %v639 = vsel %vm213, %v526, 0
  %v642 = vsel %vm213, %v391, 0
  %644 = vmatprep.subr.mxu0 0.0
  %645 = vmatpush1.xpose.msra.mxu0 %v642
  %646 = vmatprep.subr.mxu0 0.0
  %647 = vmatpush1.xpose.msra.mxu0 0.0
  %648 = vmatprep.subr.mxu0 0.0
  %649 = vmatpush1.xpose.msra.mxu0 0.0
  %650 = vmatprep.subr.mxu0 0.0
  %651 = vmatpush1.xpose.msra.mxu0 0.0
  %652 = vmatprep.subr.mxu0 0.0
  %653 = vmatpush1.xpose.msra.mxu0 0.0
  %654 = vmatprep.subr.mxu0 0.0
  %655 = vmatpush1.xpose.msra.mxu0 0.0
  %656 = vmatprep.subr.mxu0 0.0
  %657 = vmatpush1.xpose.msra.mxu0 0.0
  %658 = vmatprep.subr.mxu0 0.0
  %659 = vmatpush1.xpose.msra.mxu0 0.0
  %660 = vmatprep.subr.mxu0 0.0
  %661 = vmatpush1.xpose.msra.mxu0 0.0
  %662 = vmatprep.subr.mxu0 0.0
  %663 = vmatpush1.xpose.msra.mxu0 0.0
  %664 = vmatprep.subr.mxu0 0.0
  %665 = vmatpush1.xpose.msra.mxu0 0.0
  %666 = vmatprep.subr.mxu0 0.0
  %667 = vmatpush1.xpose.msra.mxu0 0.0
  %668 = vmatprep.subr.mxu0 0.0
  %669 = vmatpush1.xpose.msra.mxu0 0.0
  %670 = vmatprep.subr.mxu0 0.0
  %671 = vmatpush1.xpose.msra.mxu0 0.0
  %672 = vmatprep.subr.mxu0 0.0
  %673 = vmatpush1.xpose.msra.mxu0 0.0
  %674 = vmatprep.subr.mxu0 0.0
  %675 = vmatpush1.xpose.msra.mxu0 0.0
  %676 = vmatprep.subr.mxu0 0.0
  %677 = vmatpush1.xpose.msra.mxu0 0.0
  %678 = vmatprep.subr.mxu0 0.0
  %679 = vmatpush1.xpose.msra.mxu0 0.0
  %680 = vmatprep.subr.mxu0 0.0
  %681 = vmatpush1.xpose.msra.mxu0 0.0
  %682 = vmatprep.subr.mxu0 0.0
  %683 = vmatpush1.xpose.msra.mxu0 0.0
  %684 = vmatprep.subr.mxu0 0.0
  %685 = vmatpush1.xpose.msra.mxu0 0.0
  %686 = vmatprep.subr.mxu0 0.0
  %687 = vmatpush1.xpose.msra.mxu0 0.0
  %688 = vmatprep.subr.mxu0 0.0
  %689 = vmatpush1.xpose.msra.mxu0 0.0
  %690 = vmatprep.subr.mxu0 0.0
  %691 = vmatpush1.xpose.msra.mxu0 0.0
  %692 = vmatprep.subr.mxu0 0.0
  %693 = vmatpush1.xpose.msra.mxu0 0.0
  %694 = vmatprep.subr.mxu0 0.0
  %695 = vmatpush1.xpose.msra.mxu0 0.0
  %696 = vmatprep.subr.mxu0 0.0
  %697 = vmatpush1.xpose.msra.mxu0 0.0
  %698 = vmatprep.subr.mxu0 0.0
  %699 = vmatpush1.xpose.msra.mxu0 0.0
  %700 = vmatprep.subr.mxu0 0.0
  %701 = vmatpush1.xpose.msra.mxu0 0.0
  %702 = vmatprep.subr.mxu0 0.0
  %703 = vmatpush1.xpose.msra.mxu0 0.0
  %704 = vmatprep.subr.mxu0 0.0
  %705 = vmatpush1.xpose.msra.mxu0 0.0
  %706 = vmatprep.subr.mxu0 0.0
  %707 = vmatpush1.xpose.msra.mxu0 0.0
  %708 = vmatprep.mubr.f32.mxu0 0.0
  %709 = vmatmul.mubr.f32.gmra.mrb[0].mxu0 %v630
  %v710 = vpop.f32.mrb[0].mxu0
  %v711 = vadd.f32 0.0, %v710
  %v712 = vpop.f32.mrb[0].mxu0
  %713 = vmatprep.mubr.f32.mxu0 0.0
  %714 = vmatmul.mubr.f32.gmra.mrb[0].mxu0 %v633
  %v715 = vpop.f32.mrb[0].mxu0
  %v716 = vadd.f32 0.0, %v715
  %v717 = vpop.f32.mrb[0].mxu0
  %718 = vmatprep.mubr.f32.mxu0 0.0
  %719 = vmatmul.mubr.f32.gmra.mrb[0].mxu0 %v636
  %v720 = vpop.f32.mrb[0].mxu0
  %v721 = vadd.f32 0.0, %v720
  %v722 = vpop.f32.mrb[0].mxu0
  %723 = vmatprep.mubr.f32.mxu0 0.0
  %724 = vmatmul.mubr.f32.gmra.mrb[0].mxu0 %v639
  %v725 = vpop.f32.mrb[0].mxu0
  %v726 = vadd.f32 0.0, %v725
  %v727 = vpop.f32.mrb[0].mxu0
  %728 = vdwg.mxu0
  %v730 = vsel %vm213, %v503, 0
  %v733 = vsel %vm213, %v511, 0
  %v736 = vsel %vm213, %v519, 0
  %v739 = vsel %vm213, %v527, 0
  %v742 = vsel %vm213, %v396, 0
  %744 = vmatprep.subr.mxu0 0.0
  %745 = vmatpush1.xpose.msra.mxu0 %v742
  %746 = vmatprep.subr.mxu0 0.0
  %747 = vmatpush1.xpose.msra.mxu0 0.0
  %748 = vmatprep.subr.mxu0 0.0
  %749 = vmatpush1.xpose.msra.mxu0 0.0
  %750 = vmatprep.subr.mxu0 0.0
  %751 = vmatpush1.xpose.msra.mxu0 0.0
  %752 = vmatprep.subr.mxu0 0.0
  %753 = vmatpush1.xpose.msra.mxu0 0.0
  %754 = vmatprep.subr.mxu0 0.0
  %755 = vmatpush1.xpose.msra.mxu0 0.0
  %756 = vmatprep.subr.mxu0 0.0
  %757 = vmatpush1.xpose.msra.mxu0 0.0
  %758 = vmatprep.subr.mxu0 0.0
  %759 = vmatpush1.xpose.msra.mxu0 0.0
  %760 = vmatprep.subr.mxu0 0.0
  %761 = vmatpush1.xpose.msra.mxu0 0.0
  %762 = vmatprep.subr.mxu0 0.0
  %763 = vmatpush1.xpose.msra.mxu0 0.0
  %764 = vmatprep.subr.mxu0 0.0
  %765 = vmatpush1.xpose.msra.mxu0 0.0
  %766 = vmatprep.subr.mxu0 0.0
  %767 = vmatpush1.xpose.msra.mxu0 0.0
  %768 = vmatprep.subr.mxu0 0.0
  %769 = vmatpush1.xpose.msra.mxu0 0.0
  %770 = vmatprep.subr.mxu0 0.0
  %771 = vmatpush1.xpose.msra.mxu0 0.0
  %772 = vmatprep.subr.mxu0 0.0
  %773 = vmatpush1.xpose.msra.mxu0 0.0
  %774 = vmatprep.subr.mxu0 0.0
  %775 = vmatpush1.xpose.msra.mxu0 0.0
  %776 = vmatprep.subr.mxu0 0.0
  %777 = vmatpush1.xpose.msra.mxu0 0.0
  %778 = vmatprep.subr.mxu0 0.0
  %779 = vmatpush1.xpose.msra.mxu0 0.0
  %780 = vmatprep.subr.mxu0 0.0
  %781 = vmatpush1.xpose.msra.mxu0 0.0
  %782 = vmatprep.subr.mxu0 0.0
  %783 = vmatpush1.xpose.msra.mxu0 0.0
  %784 = vmatprep.subr.mxu0 0.0
  %785 = vmatpush1.xpose.msra.mxu0 0.0
  %786 = vmatprep.subr.mxu0 0.0
  %787 = vmatpush1.xpose.msra.mxu0 0.0
  %788 = vmatprep.subr.mxu0 0.0
  %789 = vmatpush1.xpose.msra.mxu0 0.0
  %790 = vmatprep.subr.mxu0 0.0
  %791 = vmatpush1.xpose.msra.mxu0 0.0
  %792 = vmatprep.subr.mxu0 0.0
  %793 = vmatpush1.xpose.msra.mxu0 0.0
  %794 = vmatprep.subr.mxu0 0.0
  %795 = vmatpush1.xpose.msra.mxu0 0.0
  %796 = vmatprep.subr.mxu0 0.0
  %797 = vmatpush1.xpose.msra.mxu0 0.0
  %798 = vmatprep.subr.mxu0 0.0
  %799 = vmatpush1.xpose.msra.mxu0 0.0
  %800 = vmatprep.subr.mxu0 0.0
  %801 = vmatpush1.xpose.msra.mxu0 0.0
  %802 = vmatprep.subr.mxu0 0.0
  %803 = vmatpush1.xpose.msra.mxu0 0.0
  %804 = vmatprep.subr.mxu0 0.0
  %805 = vmatpush1.xpose.msra.mxu0 0.0
  %806 = vmatprep.subr.mxu0 0.0
  %807 = vmatpush1.xpose.msra.mxu0 0.0
  %808 = vmatprep.mubr.f32.mxu0 0.0
  %809 = vmatmul.mubr.f32.gmra.mrb[0].mxu0 %v730
  %v810 = vpop.f32.mrb[0].mxu0
  %v811 = vadd.f32 0.0, %v810
  %v812 = vpop.f32.mrb[0].mxu0
  %813 = vmatprep.mubr.f32.mxu0 0.0
  %814 = vmatmul.mubr.f32.gmra.mrb[0].mxu0 %v733
  %v815 = vpop.f32.mrb[0].mxu0
  %v816 = vadd.f32 0.0, %v815
  %v817 = vpop.f32.mrb[0].mxu0
  %818 = vmatprep.mubr.f32.mxu0 0.0
  %819 = vmatmul.mubr.f32.gmra.mrb[0].mxu0 %v736
  %v820 = vpop.f32.mrb[0].mxu0
  %v821 = vadd.f32 0.0, %v820
  %v822 = vpop.f32.mrb[0].mxu0
  %823 = vmatprep.mubr.f32.mxu0 0.0
  %824 = vmatmul.mubr.f32.gmra.mrb[0].mxu0 %v739
  %v825 = vpop.f32.mrb[0].mxu0
  %v826 = vadd.f32 0.0, %v825
  %v827 = vpop.f32.mrb[0].mxu0
  %828 = vdwg.mxu0
  %v830 = vsel %vm213, %v504, 0
  %v833 = vsel %vm213, %v512, 0
  %v836 = vsel %vm213, %v520, 0
  %v839 = vsel %vm213, %v528, 0
  %v842 = vsel %vm213, %v401, 0
  %844 = vmatprep.subr.mxu0 0.0
  %845 = vmatpush1.xpose.msra.mxu0 %v842
  %846 = vmatprep.subr.mxu0 0.0
  %847 = vmatpush1.xpose.msra.mxu0 0.0
  %848 = vmatprep.subr.mxu0 0.0
  %849 = vmatpush1.xpose.msra.mxu0 0.0
  %850 = vmatprep.subr.mxu0 0.0
  %851 = vmatpush1.xpose.msra.mxu0 0.0
  %852 = vmatprep.subr.mxu0 0.0
  %853 = vmatpush1.xpose.msra.mxu0 0.0
  %854 = vmatprep.subr.mxu0 0.0
  %855 = vmatpush1.xpose.msra.mxu0 0.0
  %856 = vmatprep.subr.mxu0 0.0
  %857 = vmatpush1.xpose.msra.mxu0 0.0
  %858 = vmatprep.subr.mxu0 0.0
  %859 = vmatpush1.xpose.msra.mxu0 0.0
  %860 = vmatprep.subr.mxu0 0.0
  %861 = vmatpush1.xpose.msra.mxu0 0.0
  %862 = vmatprep.subr.mxu0 0.0
  %863 = vmatpush1.xpose.msra.mxu0 0.0
  %864 = vmatprep.subr.mxu0 0.0
  %865 = vmatpush1.xpose.msra.mxu0 0.0
  %866 = vmatprep.subr.mxu0 0.0
  %867 = vmatpush1.xpose.msra.mxu0 0.0
  %868 = vmatprep.subr.mxu0 0.0
  %869 = vmatpush1.xpose.msra.mxu0 0.0
  %870 = vmatprep.subr.mxu0 0.0
  %871 = vmatpush1.xpose.msra.mxu0 0.0
  %872 = vmatprep.subr.mxu0 0.0
  %873 = vmatpush1.xpose.msra.mxu0 0.0
  %874 = vmatprep.subr.mxu0 0.0
  %875 = vmatpush1.xpose.msra.mxu0 0.0
  %876 = vmatprep.subr.mxu0 0.0
  %877 = vmatpush1.xpose.msra.mxu0 0.0
  %878 = vmatprep.subr.mxu0 0.0
  %879 = vmatpush1.xpose.msra.mxu0 0.0
  %880 = vmatprep.subr.mxu0 0.0
  %881 = vmatpush1.xpose.msra.mxu0 0.0
  %882 = vmatprep.subr.mxu0 0.0
  %883 = vmatpush1.xpose.msra.mxu0 0.0
  %884 = vmatprep.subr.mxu0 0.0
  %885 = vmatpush1.xpose.msra.mxu0 0.0
  %886 = vmatprep.subr.mxu0 0.0
  %887 = vmatpush1.xpose.msra.mxu0 0.0
  %888 = vmatprep.subr.mxu0 0.0
  %889 = vmatpush1.xpose.msra.mxu0 0.0
  %890 = vmatprep.subr.mxu0 0.0
  %891 = vmatpush1.xpose.msra.mxu0 0.0
  %892 = vmatprep.subr.mxu0 0.0
  %893 = vmatpush1.xpose.msra.mxu0 0.0
  %894 = vmatprep.subr.mxu0 0.0
  %895 = vmatpush1.xpose.msra.mxu0 0.0
  %896 = vmatprep.subr.mxu0 0.0
  %897 = vmatpush1.xpose.msra.mxu0 0.0
  %898 = vmatprep.subr.mxu0 0.0
  %899 = vmatpush1.xpose.msra.mxu0 0.0
  %900 = vmatprep.subr.mxu0 0.0
  %901 = vmatpush1.xpose.msra.mxu0 0.0
  %902 = vmatprep.subr.mxu0 0.0
  %903 = vmatpush1.xpose.msra.mxu0 0.0
  %904 = vmatprep.subr.mxu0 0.0
  %905 = vmatpush1.xpose.msra.mxu0 0.0
  %906 = vmatprep.subr.mxu0 0.0
  %907 = vmatpush1.xpose.msra.mxu0 0.0
  %908 = vmatprep.mubr.f32.mxu0 0.0
  %909 = vmatmul.mubr.f32.gmra.mrb[0].mxu0 %v830
  %v910 = vpop.f32.mrb[0].mxu0
  %v911 = vadd.f32 0.0, %v910
  %v912 = vpop.f32.mrb[0].mxu0
  %913 = vmatprep.mubr.f32.mxu0 0.0
  %914 = vmatmul.mubr.f32.gmra.mrb[0].mxu0 %v833
  %v915 = vpop.f32.mrb[0].mxu0
  %v916 = vadd.f32 0.0, %v915
  %v917 = vpop.f32.mrb[0].mxu0
  %918 = vmatprep.mubr.f32.mxu0 0.0
  %919 = vmatmul.mubr.f32.gmra.mrb[0].mxu0 %v836
  %v920 = vpop.f32.mrb[0].mxu0
  %v921 = vadd.f32 0.0, %v920
  %v922 = vpop.f32.mrb[0].mxu0
  %923 = vmatprep.mubr.f32.mxu0 0.0
  %924 = vmatmul.mubr.f32.gmra.mrb[0].mxu0 %v839
  %v925 = vpop.f32.mrb[0].mxu0
  %v926 = vadd.f32 0.0, %v925
  %v927 = vpop.f32.mrb[0].mxu0
  %928 = vdwg.mxu0
  %v929 = vsel %vm213, %v611, -inf
  %930 = vmax.xlane.f32.xlu0 %v929
  %v931 = vpop.xlane.xlu0 %930
  %v932 = vsel %vm213, %v616, -inf
  %933 = vmax.xlane.f32.xlu0 %v932
  %v934 = vpop.xlane.xlu0 %933
  %v935 = vsel %vm213, %v621, -inf
  %936 = vmax.xlane.f32.xlu0 %v935
  %v937 = vpop.xlane.xlu0 %936
  %v938 = vsel %vm213, %v626, -inf
  %939 = vmax.xlane.f32.xlu0 %v938
  %v940 = vpop.xlane.xlu0 %939
  %v941 = vsel %vm213, %v711, -inf
  %942 = vmax.xlane.f32.xlu0 %v941
  %v943 = vpop.xlane.xlu0 %942
  %v944 = vsel %vm213, %v716, -inf
  %945 = vmax.xlane.f32.xlu0 %v944
  %v946 = vpop.xlane.xlu0 %945
  %v947 = vsel %vm213, %v721, -inf
  %948 = vmax.xlane.f32.xlu0 %v947
  %v949 = vpop.xlane.xlu0 %948
  %v950 = vsel %vm213, %v726, -inf
  %951 = vmax.xlane.f32.xlu0 %v950
  %v952 = vpop.xlane.xlu0 %951
  %v953 = vsel %vm213, %v811, -inf
  %954 = vmax.xlane.f32.xlu0 %v953
  %v955 = vpop.xlane.xlu0 %954
  %v956 = vsel %vm213, %v816, -inf
  %957 = vmax.xlane.f32.xlu0 %v956
  %v958 = vpop.xlane.xlu0 %957
  %v959 = vsel %vm213, %v821, -inf
  %960 = vmax.xlane.f32.xlu0 %v959
  %v961 = vpop.xlane.xlu0 %960
  %v962 = vsel %vm213, %v826, -inf
  %963 = vmax.xlane.f32.xlu0 %v962
  %v964 = vpop.xlane.xlu0 %963
  %v965 = vsel %vm213, %v911, -inf
  %966 = vmax.xlane.f32.xlu0 %v965
  %v967 = vpop.xlane.xlu0 %966
  %v968 = vsel %vm213, %v916, -inf
  %969 = vmax.xlane.f32.xlu0 %v968
  %v970 = vpop.xlane.xlu0 %969
  %v971 = vsel %vm213, %v921, -inf
  %972 = vmax.xlane.f32.xlu0 %v971
  %v973 = vpop.xlane.xlu0 %972
  %v974 = vsel %vm213, %v926, -inf
  %975 = vmax.xlane.f32.xlu0 %v974
  %v976 = vpop.xlane.xlu0 %975
  %v977 = vsub.f32 %v611, %v931
  %v978 = vsub.f32 %v616, %v934
  %v979 = vsub.f32 %v621, %v937
  %v980 = vsub.f32 %v626, %v940
  %v981 = vsub.f32 %v711, %v943
  %v982 = vsub.f32 %v716, %v946
  %v983 = vsub.f32 %v721, %v949
  %v984 = vsub.f32 %v726, %v952
  %v985 = vsub.f32 %v811, %v955
  %v986 = vsub.f32 %v816, %v958
  %v987 = vsub.f32 %v821, %v961
  %v988 = vsub.f32 %v826, %v964
  %v989 = vsub.f32 %v911, %v967
  %v990 = vsub.f32 %v916, %v970
  %v991 = vsub.f32 %v921, %v973
  %v992 = vsub.f32 %v926, %v976
  %v993 = vmul.f32 %v977, 1.442695
  %v994 = vpow.pop %v993
  %v995 = vmul.f32 %v978, 1.442695
  %v996 = vpow.pop %v995
  %v997 = vmul.f32 %v979, 1.442695
  %v998 = vpow.pop %v997
  %v999 = vmul.f32 %v980, 1.442695
  %v1000 = vpow.pop %v999
  %v1001 = vmul.f32 %v981, 1.442695
  %v1002 = vpow.pop %v1001
  %v1003 = vmul.f32 %v982, 1.442695
  %v1004 = vpow.pop %v1003
  %v1005 = vmul.f32 %v983, 1.442695
  %v1006 = vpow.pop %v1005
  %v1007 = vmul.f32 %v984, 1.442695
  %v1008 = vpow.pop %v1007
  %v1009 = vmul.f32 %v985, 1.442695
  %v1010 = vpow.pop %v1009
  %v1011 = vmul.f32 %v986, 1.442695
  %v1012 = vpow.pop %v1011
  %v1013 = vmul.f32 %v987, 1.442695
  %v1014 = vpow.pop %v1013
  %v1015 = vmul.f32 %v988, 1.442695
  %v1016 = vpow.pop %v1015
  %v1017 = vmul.f32 %v989, 1.442695
  %v1018 = vpow.pop %v1017
  %v1019 = vmul.f32 %v990, 1.442695
  %v1020 = vpow.pop %v1019
  %v1021 = vmul.f32 %v991, 1.442695
  %v1022 = vpow.pop %v1021
  %v1023 = vmul.f32 %v992, 1.442695
  %v1024 = vpow.pop %v1023
  %v1025 = vsel %vm213, %v994, 0.0
  %1026 = vadd.xlane.f32.xlu0 %v1025
  %v1027 = vpop.xlane.xlu0 %1026
  %v1028 = vsel %vm213, %v996, 0.0
  %1029 = vadd.xlane.f32.xlu0 %v1028
  %v1030 = vpop.xlane.xlu0 %1029
  %v1031 = vsel %vm213, %v998, 0.0
  %1032 = vadd.xlane.f32.xlu0 %v1031
  %v1033 = vpop.xlane.xlu0 %1032
  %v1034 = vsel %vm213, %v1000, 0.0
  %1035 = vadd.xlane.f32.xlu0 %v1034
  %v1036 = vpop.xlane.xlu0 %1035
  %v1037 = vsel %vm213, %v1002, 0.0
  %1038 = vadd.xlane.f32.xlu0 %v1037
  %v1039 = vpop.xlane.xlu0 %1038
  %v1040 = vsel %vm213, %v1004, 0.0
  %1041 = vadd.xlane.f32.xlu0 %v1040
  %v1042 = vpop.xlane.xlu0 %1041
  %v1043 = vsel %vm213, %v1006, 0.0
  %1044 = vadd.xlane.f32.xlu0 %v1043
  %v1045 = vpop.xlane.xlu0 %1044
  %v1046 = vsel %vm213, %v1008, 0.0
  %1047 = vadd.xlane.f32.xlu0 %v1046
  %v1048 = vpop.xlane.xlu0 %1047
  %v1049 = vsel %vm213, %v1010, 0.0
  %1050 = vadd.xlane.f32.xlu0 %v1049
  %v1051 = vpop.xlane.xlu0 %1050
  %v1052 = vsel %vm213, %v1012, 0.0
  %1053 = vadd.xlane.f32.xlu0 %v1052
  %v1054 = vpop.xlane.xlu0 %1053
  %v1055 = vsel %vm213, %v1014, 0.0
  %1056 = vadd.xlane.f32.xlu0 %v1055
  %v1057 = vpop.xlane.xlu0 %1056
  %v1058 = vsel %vm213, %v1016, 0.0
  %1059 = vadd.xlane.f32.xlu0 %v1058
  %v1060 = vpop.xlane.xlu0 %1059
  %v1061 = vsel %vm213, %v1018, 0.0
  %1062 = vadd.xlane.f32.xlu0 %v1061
  %v1063 = vpop.xlane.xlu0 %1062
  %v1064 = vsel %vm213, %v1020, 0.0
  %1065 = vadd.xlane.f32.xlu0 %v1064
  %v1066 = vpop.xlane.xlu0 %1065
  %v1067 = vsel %vm213, %v1022, 0.0
  %1068 = vadd.xlane.f32.xlu0 %v1067
  %v1069 = vpop.xlane.xlu0 %1068
  %v1070 = vsel %vm213, %v1024, 0.0
  %1071 = vadd.xlane.f32.xlu0 %v1070
  %v1072 = vpop.xlane.xlu0 %1071
  %v1073 = vrcp.pop %v1027
  %v1074 = vrcp.pop %v1030
  %v1075 = vrcp.pop %v1033
  %v1076 = vrcp.pop %v1036
  %v1077 = vrcp.pop %v1039
  %v1078 = vrcp.pop %v1042
  %v1079 = vrcp.pop %v1045
  %v1080 = vrcp.pop %v1048
  %v1081 = vrcp.pop %v1051
  %v1082 = vrcp.pop %v1054
  %v1083 = vrcp.pop %v1057
  %v1084 = vrcp.pop %v1060
  %v1085 = vrcp.pop %v1063
  %v1086 = vrcp.pop %v1066
  %v1087 = vrcp.pop %v1069
  %v1088 = vrcp.pop %v1072
  %v1089 = vmul.f32 %v994, %v1073
  %v1090 = vmul.f32 %v996, %v1074
  %v1091 = vmul.f32 %v998, %v1075
  %v1092 = vmul.f32 %v1000, %v1076
  %v1093 = vmul.f32 %v1002, %v1077
  %v1094 = vmul.f32 %v1004, %v1078
  %v1095 = vmul.f32 %v1006, %v1079
  %v1096 = vmul.f32 %v1008, %v1080
  %v1097 = vmul.f32 %v1010, %v1081
  %v1098 = vmul.f32 %v1012, %v1082
  %v1099 = vmul.f32 %v1014, %v1083
  %v1100 = vmul.f32 %v1016, %v1084
  %v1101 = vmul.f32 %v1018, %v1085
  %v1102 = vmul.f32 %v1020, %v1086
  %v1103 = vmul.f32 %v1022, %v1087
  %v1104 = vmul.f32 %v1024, %v1088
  %v1106 = vsel %vm213, %v1089, 0
  %v1109 = vsel %vm213, %v1090, 0
  %v1112 = vsel %vm213, %v1091, 0
  %v1115 = vsel %vm213, %v1092, 0
  %1117 = vmatprep.subr.mxu0 0.0
  %1118 = vmatpush1.msra.mxu0 %v479
  %1119 = vmatprep.subr.mxu0 0.0
  %1120 = vmatpush1.msra.mxu0 0.0
  %1121 = vmatprep.subr.mxu0 0.0
  %1122 = vmatpush1.msra.mxu0 0.0
  %1123 = vmatprep.subr.mxu0 0.0
  %1124 = vmatpush1.msra.mxu0 0.0
  %1125 = vmatprep.subr.mxu0 0.0
  %1126 = vmatpush1.msra.mxu0 0.0
  %1127 = vmatprep.subr.mxu0 0.0
  %1128 = vmatpush1.msra.mxu0 0.0
  %1129 = vmatprep.subr.mxu0 0.0
  %1130 = vmatpush1.msra.mxu0 0.0
  %1131 = vmatprep.subr.mxu0 0.0
  %1132 = vmatpush1.msra.mxu0 0.0
  %1133 = vmatprep.subr.mxu0 0.0
  %1134 = vmatpush1.msra.mxu0 0.0
  %1135 = vmatprep.subr.mxu0 0.0
  %1136 = vmatpush1.msra.mxu0 0.0
  %1137 = vmatprep.subr.mxu0 0.0
  %1138 = vmatpush1.msra.mxu0 0.0
  %1139 = vmatprep.subr.mxu0 0.0
  %1140 = vmatpush1.msra.mxu0 0.0
  %1141 = vmatprep.subr.mxu0 0.0
  %1142 = vmatpush1.msra.mxu0 0.0
  %1143 = vmatprep.subr.mxu0 0.0
  %1144 = vmatpush1.msra.mxu0 0.0
  %1145 = vmatprep.subr.mxu0 0.0
  %1146 = vmatpush1.msra.mxu0 0.0
  %1147 = vmatprep.subr.mxu0 0.0
  %1148 = vmatpush1.msra.mxu0 0.0
  %1149 = vmatprep.subr.mxu0 0.0
  %1150 = vmatpush1.msra.mxu0 0.0
  %1151 = vmatprep.subr.mxu0 0.0
  %1152 = vmatpush1.msra.mxu0 0.0
  %1153 = vmatprep.subr.mxu0 0.0
  %1154 = vmatpush1.msra.mxu0 0.0
  %1155 = vmatprep.subr.mxu0 0.0
  %1156 = vmatpush1.msra.mxu0 0.0
  %1157 = vmatprep.subr.mxu0 0.0
  %1158 = vmatpush1.msra.mxu0 0.0
  %1159 = vmatprep.subr.mxu0 0.0
  %1160 = vmatpush1.msra.mxu0 0.0
  %1161 = vmatprep.subr.mxu0 0.0
  %1162 = vmatpush1.msra.mxu0 0.0
  %1163 = vmatprep.subr.mxu0 0.0
  %1164 = vmatpush1.msra.mxu0 0.0
  %1165 = vmatprep.subr.mxu0 0.0
  %1166 = vmatpush1.msra.mxu0 0.0
  %1167 = vmatprep.subr.mxu0 0.0
  %1168 = vmatpush1.msra.mxu0 0.0
  %1169 = vmatprep.subr.mxu0 0.0
  %1170 = vmatpush1.msra.mxu0 0.0
  %1171 = vmatprep.subr.mxu0 0.0
  %1172 = vmatpush1.msra.mxu0 0.0
  %1173 = vmatprep.subr.mxu0 0.0
  %1174 = vmatpush1.msra.mxu0 0.0
  %1175 = vmatprep.subr.mxu0 0.0
  %1176 = vmatpush1.msra.mxu0 0.0
  %1177 = vmatprep.subr.mxu0 0.0
  %1178 = vmatpush1.msra.mxu0 0.0
  %1179 = vmatprep.subr.mxu0 0.0
  %1180 = vmatpush1.msra.mxu0 0.0
  %1181 = vmatprep.mubr.f32.mxu0 0.0
  %1182 = vmatmul.mubr.f32.gmra.mrb[0].mxu0 %v1106
  %v1183 = vpop.f32.mrb[0].mxu0
  %v1184 = vadd.f32 0.0, %v1183
  %v1185 = vpop.f32.mrb[0].mxu0
  %1186 = vmatprep.mubr.f32.mxu0 0.0
  %1187 = vmatmul.mubr.f32.gmra.mrb[0].mxu0 %v1109
  %v1188 = vpop.f32.mrb[0].mxu0
  %v1189 = vadd.f32 0.0, %v1188
  %v1190 = vpop.f32.mrb[0].mxu0
  %1191 = vmatprep.mubr.f32.mxu0 0.0
  %1192 = vmatmul.mubr.f32.gmra.mrb[0].mxu0 %v1112
  %v1193 = vpop.f32.mrb[0].mxu0
  %v1194 = vadd.f32 0.0, %v1193
  %v1195 = vpop.f32.mrb[0].mxu0
  %1196 = vmatprep.mubr.f32.mxu0 0.0
  %1197 = vmatmul.mubr.f32.gmra.mrb[0].mxu0 %v1115
  %v1198 = vpop.f32.mrb[0].mxu0
  %v1199 = vadd.f32 0.0, %v1198
  %v1200 = vpop.f32.mrb[0].mxu0
  %1201 = vdwg.mxu0
  %v1203 = vsel %vm213, %v1093, 0
  %v1206 = vsel %vm213, %v1094, 0
  %v1209 = vsel %vm213, %v1095, 0
  %v1212 = vsel %vm213, %v1096, 0
  %1214 = vmatprep.subr.mxu0 0.0
  %1215 = vmatpush1.msra.mxu0 %v484
  %1216 = vmatprep.subr.mxu0 0.0
  %1217 = vmatpush1.msra.mxu0 0.0
  %1218 = vmatprep.subr.mxu0 0.0
  %1219 = vmatpush1.msra.mxu0 0.0
  %1220 = vmatprep.subr.mxu0 0.0
  %1221 = vmatpush1.msra.mxu0 0.0
  %1222 = vmatprep.subr.mxu0 0.0
  %1223 = vmatpush1.msra.mxu0 0.0
  %1224 = vmatprep.subr.mxu0 0.0
  %1225 = vmatpush1.msra.mxu0 0.0
  %1226 = vmatprep.subr.mxu0 0.0
  %1227 = vmatpush1.msra.mxu0 0.0
  %1228 = vmatprep.subr.mxu0 0.0
  %1229 = vmatpush1.msra.mxu0 0.0
  %1230 = vmatprep.subr.mxu0 0.0
  %1231 = vmatpush1.msra.mxu0 0.0
  %1232 = vmatprep.subr.mxu0 0.0
  %1233 = vmatpush1.msra.mxu0 0.0
  %1234 = vmatprep.subr.mxu0 0.0
  %1235 = vmatpush1.msra.mxu0 0.0
  %1236 = vmatprep.subr.mxu0 0.0
  %1237 = vmatpush1.msra.mxu0 0.0
  %1238 = vmatprep.subr.mxu0 0.0
  %1239 = vmatpush1.msra.mxu0 0.0
  %1240 = vmatprep.subr.mxu0 0.0
  %1241 = vmatpush1.msra.mxu0 0.0
  %1242 = vmatprep.subr.mxu0 0.0
  %1243 = vmatpush1.msra.mxu0 0.0
  %1244 = vmatprep.subr.mxu0 0.0
  %1245 = vmatpush1.msra.mxu0 0.0
  %1246 = vmatprep.subr.mxu0 0.0
  %1247 = vmatpush1.msra.mxu0 0.0
  %1248 = vmatprep.subr.mxu0 0.0
  %1249 = vmatpush1.msra.mxu0 0.0
  %1250 = vmatprep.subr.mxu0 0.0
  %1251 = vmatpush1.msra.mxu0 0.0
  %1252 = vmatprep.subr.mxu0 0.0
  %1253 = vmatpush1.msra.mxu0 0.0
  %1254 = vmatprep.subr.mxu0 0.0
  %1255 = vmatpush1.msra.mxu0 0.0
  %1256 = vmatprep.subr.mxu0 0.0
  %1257 = vmatpush1.msra.mxu0 0.0
  %1258 = vmatprep.subr.mxu0 0.0
  %1259 = vmatpush1.msra.mxu0 0.0
  %1260 = vmatprep.subr.mxu0 0.0
  %1261 = vmatpush1.msra.mxu0 0.0
  %1262 = vmatprep.subr.mxu0 0.0
  %1263 = vmatpush1.msra.mxu0 0.0
  %1264 = vmatprep.subr.mxu0 0.0
  %1265 = vmatpush1.msra.mxu0 0.0
  %1266 = vmatprep.subr.mxu0 0.0
  %1267 = vmatpush1.msra.mxu0 0.0
  %1268 = vmatprep.subr.mxu0 0.0
  %1269 = vmatpush1.msra.mxu0 0.0
  %1270 = vmatprep.subr.mxu0 0.0
  %1271 = vmatpush1.msra.mxu0 0.0
  %1272 = vmatprep.subr.mxu0 0.0
  %1273 = vmatpush1.msra.mxu0 0.0
  %1274 = vmatprep.subr.mxu0 0.0
  %1275 = vmatpush1.msra.mxu0 0.0
  %1276 = vmatprep.subr.mxu0 0.0
  %1277 = vmatpush1.msra.mxu0 0.0
  %1278 = vmatprep.mubr.f32.mxu0 0.0
  %1279 = vmatmul.mubr.f32.gmra.mrb[0].mxu0 %v1203
  %v1280 = vpop.f32.mrb[0].mxu0
  %v1281 = vadd.f32 0.0, %v1280
  %v1282 = vpop.f32.mrb[0].mxu0
  %1283 = vmatprep.mubr.f32.mxu0 0.0
  %1284 = vmatmul.mubr.f32.gmra.mrb[0].mxu0 %v1206
  %v1285 = vpop.f32.mrb[0].mxu0
  %v1286 = vadd.f32 0.0, %v1285
  %v1287 = vpop.f32.mrb[0].mxu0
  %1288 = vmatprep.mubr.f32.mxu0 0.0
  %1289 = vmatmul.mubr.f32.gmra.mrb[0].mxu0 %v1209
  %v1290 = vpop.f32.mrb[0].mxu0
  %v1291 = vadd.f32 0.0, %v1290
  %v1292 = vpop.f32.mrb[0].mxu0
  %1293 = vmatprep.mubr.f32.mxu0 0.0
  %1294 = vmatmul.mubr.f32.gmra.mrb[0].mxu0 %v1212
  %v1295 = vpop.f32.mrb[0].mxu0
  %v1296 = vadd.f32 0.0, %v1295
  %v1297 = vpop.f32.mrb[0].mxu0
  %1298 = vdwg.mxu0
  %v1300 = vsel %vm213, %v1097, 0
  %v1303 = vsel %vm213, %v1098, 0
  %v1306 = vsel %vm213, %v1099, 0
  %v1309 = vsel %vm213, %v1100, 0
  %1311 = vmatprep.subr.mxu0 0.0
  %1312 = vmatpush1.msra.mxu0 %v489
  %1313 = vmatprep.subr.mxu0 0.0
  %1314 = vmatpush1.msra.mxu0 0.0
  %1315 = vmatprep.subr.mxu0 0.0
  %1316 = vmatpush1.msra.mxu0 0.0
  %1317 = vmatprep.subr.mxu0 0.0
  %1318 = vmatpush1.msra.mxu0 0.0
  %1319 = vmatprep.subr.mxu0 0.0
  %1320 = vmatpush1.msra.mxu0 0.0
  %1321 = vmatprep.subr.mxu0 0.0
  %1322 = vmatpush1.msra.mxu0 0.0
  %1323 = vmatprep.subr.mxu0 0.0
  %1324 = vmatpush1.msra.mxu0 0.0
  %1325 = vmatprep.subr.mxu0 0.0
  %1326 = vmatpush1.msra.mxu0 0.0
  %1327 = vmatprep.subr.mxu0 0.0
  %1328 = vmatpush1.msra.mxu0 0.0
  %1329 = vmatprep.subr.mxu0 0.0
  %1330 = vmatpush1.msra.mxu0 0.0
  %1331 = vmatprep.subr.mxu0 0.0
  %1332 = vmatpush1.msra.mxu0 0.0
  %1333 = vmatprep.subr.mxu0 0.0
  %1334 = vmatpush1.msra.mxu0 0.0
  %1335 = vmatprep.subr.mxu0 0.0
  %1336 = vmatpush1.msra.mxu0 0.0
  %1337 = vmatprep.subr.mxu0 0.0
  %1338 = vmatpush1.msra.mxu0 0.0
  %1339 = vmatprep.subr.mxu0 0.0
  %1340 = vmatpush1.msra.mxu0 0.0
  %1341 = vmatprep.subr.mxu0 0.0
  %1342 = vmatpush1.msra.mxu0 0.0
  %1343 = vmatprep.subr.mxu0 0.0
  %1344 = vmatpush1.msra.mxu0 0.0
  %1345 = vmatprep.subr.mxu0 0.0
  %1346 = vmatpush1.msra.mxu0 0.0
  %1347 = vmatprep.subr.mxu0 0.0
  %1348 = vmatpush1.msra.mxu0 0.0
  %1349 = vmatprep.subr.mxu0 0.0
  %1350 = vmatpush1.msra.mxu0 0.0
  %1351 = vmatprep.subr.mxu0 0.0
  %1352 = vmatpush1.msra.mxu0 0.0
  %1353 = vmatprep.subr.mxu0 0.0
  %1354 = vmatpush1.msra.mxu0 0.0
  %1355 = vmatprep.subr.mxu0 0.0
  %1356 = vmatpush1.msra.mxu0 0.0
  %1357 = vmatprep.subr.mxu0 0.0
  %1358 = vmatpush1.msra.mxu0 0.0
  %1359 = vmatprep.subr.mxu0 0.0
  %1360 = vmatpush1.msra.mxu0 0.0
  %1361 = vmatprep.subr.mxu0 0.0
  %1362 = vmatpush1.msra.mxu0 0.0
  %1363 = vmatprep.subr.mxu0 0.0
  %1364 = vmatpush1.msra.mxu0 0.0
  %1365 = vmatprep.subr.mxu0 0.0
  %1366 = vmatpush1.msra.mxu0 0.0
  %1367 = vmatprep.subr.mxu0 0.0
  %1368 = vmatpush1.msra.mxu0 0.0
  %1369 = vmatprep.subr.mxu0 0.0
  %1370 = vmatpush1.msra.mxu0 0.0
  %1371 = vmatprep.subr.mxu0 0.0
  %1372 = vmatpush1.msra.mxu0 0.0
  %1373 = vmatprep.subr.mxu0 0.0
  %1374 = vmatpush1.msra.mxu0 0.0
  %1375 = vmatprep.mubr.f32.mxu0 0.0
  %1376 = vmatmul.mubr.f32.gmra.mrb[0].mxu0 %v1300
  %v1377 = vpop.f32.mrb[0].mxu0
  %v1378 = vadd.f32 0.0, %v1377
  %v1379 = vpop.f32.mrb[0].mxu0
  %1380 = vmatprep.mubr.f32.mxu0 0.0
  %1381 = vmatmul.mubr.f32.gmra.mrb[0].mxu0 %v1303
  %v1382 = vpop.f32.mrb[0].mxu0
  %v1383 = vadd.f32 0.0, %v1382
  %v1384 = vpop.f32.mrb[0].mxu0
  %1385 = vmatprep.mubr.f32.mxu0 0.0
  %1386 = vmatmul.mubr.f32.gmra.mrb[0].mxu0 %v1306
  %v1387 = vpop.f32.mrb[0].mxu0
  %v1388 = vadd.f32 0.0, %v1387
  %v1389 = vpop.f32.mrb[0].mxu0
  %1390 = vmatprep.mubr.f32.mxu0 0.0
  %1391 = vmatmul.mubr.f32.gmra.mrb[0].mxu0 %v1309
  %v1392 = vpop.f32.mrb[0].mxu0
  %v1393 = vadd.f32 0.0, %v1392
  %v1394 = vpop.f32.mrb[0].mxu0
  %1395 = vdwg.mxu0
  %v1397 = vsel %vm213, %v1101, 0
  %v1400 = vsel %vm213, %v1102, 0
  %v1403 = vsel %vm213, %v1103, 0
  %v1406 = vsel %vm213, %v1104, 0
  %1408 = vmatprep.subr.mxu0 0.0
  %1409 = vmatpush1.msra.mxu0 %v494
  %1410 = vmatprep.subr.mxu0 0.0
  %1411 = vmatpush1.msra.mxu0 0.0
  %1412 = vmatprep.subr.mxu0 0.0
  %1413 = vmatpush1.msra.mxu0 0.0
  %1414 = vmatprep.subr.mxu0 0.0
  %1415 = vmatpush1.msra.mxu0 0.0
  %1416 = vmatprep.subr.mxu0 0.0
  %1417 = vmatpush1.msra.mxu0 0.0
  %1418 = vmatprep.subr.mxu0 0.0
  %1419 = vmatpush1.msra.mxu0 0.0
  %1420 = vmatprep.subr.mxu0 0.0
  %1421 = vmatpush1.msra.mxu0 0.0
  %1422 = vmatprep.subr.mxu0 0.0
  %1423 = vmatpush1.msra.mxu0 0.0
  %1424 = vmatprep.subr.mxu0 0.0
  %1425 = vmatpush1.msra.mxu0 0.0
  %1426 = vmatprep.subr.mxu0 0.0
  %1427 = vmatpush1.msra.mxu0 0.0
  %1428 = vmatprep.subr.mxu0 0.0
  %1429 = vmatpush1.msra.mxu0 0.0
  %1430 = vmatprep.subr.mxu0 0.0
  %1431 = vmatpush1.msra.mxu0 0.0
  %1432 = vmatprep.subr.mxu0 0.0
  %1433 = vmatpush1.msra.mxu0 0.0
  %1434 = vmatprep.subr.mxu0 0.0
  %1435 = vmatpush1.msra.mxu0 0.0
  %1436 = vmatprep.subr.mxu0 0.0
  %1437 = vmatpush1.msra.mxu0 0.0
  %1438 = vmatprep.subr.mxu0 0.0
  %1439 = vmatpush1.msra.mxu0 0.0
  %1440 = vmatprep.subr.mxu0 0.0
  %1441 = vmatpush1.msra.mxu0 0.0
  %1442 = vmatprep.subr.mxu0 0.0
  %1443 = vmatpush1.msra.mxu0 0.0
  %1444 = vmatprep.subr.mxu0 0.0
  %1445 = vmatpush1.msra.mxu0 0.0
  %1446 = vmatprep.subr.mxu0 0.0
  %1447 = vmatpush1.msra.mxu0 0.0
  %1448 = vmatprep.subr.mxu0 0.0
  %1449 = vmatpush1.msra.mxu0 0.0
  %1450 = vmatprep.subr.mxu0 0.0
  %1451 = vmatpush1.msra.mxu0 0.0
  %1452 = vmatprep.subr.mxu0 0.0
  %1453 = vmatpush1.msra.mxu0 0.0
  %1454 = vmatprep.subr.mxu0 0.0
  %1455 = vmatpush1.msra.mxu0 0.0
  %1456 = vmatprep.subr.mxu0 0.0
  %1457 = vmatpush1.msra.mxu0 0.0
  %1458 = vmatprep.subr.mxu0 0.0
  %1459 = vmatpush1.msra.mxu0 0.0
  %1460 = vmatprep.subr.mxu0 0.0
  %1461 = vmatpush1.msra.mxu0 0.0
  %1462 = vmatprep.subr.mxu0 0.0
  %1463 = vmatpush1.msra.mxu0 0.0
  %1464 = vmatprep.subr.mxu0 0.0
  %1465 = vmatpush1.msra.mxu0 0.0
  %1466 = vmatprep.subr.mxu0 0.0
  %1467 = vmatpush1.msra.mxu0 0.0
  %1468 = vmatprep.subr.mxu0 0.0
  %1469 = vmatpush1.msra.mxu0 0.0
  %1470 = vmatprep.subr.mxu0 0.0
  %1471 = vmatpush1.msra.mxu0 0.0
  %1472 = vmatprep.mubr.f32.mxu0 0.0
  %1473 = vmatmul.mubr.f32.gmra.mrb[0].mxu0 %v1397
  %v1474 = vpop.f32.mrb[0].mxu0
  %v1475 = vadd.f32 0.0, %v1474
  %v1476 = vpop.f32.mrb[0].mxu0
  %1477 = vmatprep.mubr.f32.mxu0 0.0
  %1478 = vmatmul.mubr.f32.gmra.mrb[0].mxu0 %v1400
  %v1479 = vpop.f32.mrb[0].mxu0
  %v1480 = vadd.f32 0.0, %v1479
  %v1481 = vpop.f32.mrb[0].mxu0
  %1482 = vmatprep.mubr.f32.mxu0 0.0
  %1483 = vmatmul.mubr.f32.gmra.mrb[0].mxu0 %v1403
  %v1484 = vpop.f32.mrb[0].mxu0
  %v1485 = vadd.f32 0.0, %v1484
  %v1486 = vpop.f32.mrb[0].mxu0
  %1487 = vmatprep.mubr.f32.mxu0 0.0
  %1488 = vmatmul.mubr.f32.gmra.mrb[0].mxu0 %v1406
  %v1489 = vpop.f32.mrb[0].mxu0
  %v1490 = vadd.f32 0.0, %v1489
  %v1491 = vpop.f32.mrb[0].mxu0
  %1492 = vdwg.mxu0
  %v1493 = vmul.f32 %v1184, %v500
  %v1494 = vmul.f32 %v1281, %v500
  %v1495 = vmul.f32 %v1378, %v500
  %v1496 = vmul.f32 %v1475, %v500
  %v1497 = vmul.f32 %v1189, %v508
  %v1498 = vmul.f32 %v1286, %v508
  %v1499 = vmul.f32 %v1383, %v508
  %v1500 = vmul.f32 %v1480, %v508
  %v1501 = vadd.f32 %v1493, %v1497
  %v1502 = vadd.f32 %v1494, %v1498
  %v1503 = vadd.f32 %v1495, %v1499
  %v1504 = vadd.f32 %v1496, %v1500
  %v1505 = vmul.f32 %v1194, %v516
  %v1506 = vmul.f32 %v1291, %v516
  %v1507 = vmul.f32 %v1388, %v516
  %v1508 = vmul.f32 %v1485, %v516
  %v1509 = vadd.f32 %v1501, %v1505
  %v1510 = vadd.f32 %v1502, %v1506
  %v1511 = vadd.f32 %v1503, %v1507
  %v1512 = vadd.f32 %v1504, %v1508
  %v1513 = vmul.f32 %v1199, %v524
  %v1514 = vmul.f32 %v1296, %v524
  %v1515 = vmul.f32 %v1393, %v524
  %v1516 = vmul.f32 %v1490, %v524
  %v1517 = vadd.f32 %v1509, %v1513
  %v1518 = vadd.f32 %v1510, %v1514
  %v1519 = vadd.f32 %v1511, %v1515
  %v1520 = vadd.f32 %v1512, %v1516
  %v1521 = vld [vmem:[%s11] sm:$0xff]
  %v1522 = vld [vmem:[%s12] sm:$0x1]
  %v1524 = vlaneseq
  %v1525 = vshrl.u32 %v1524, 7
  %v1526 = vsub.s32 0, %v1525
  %v1527 = vrot.slane %v1522, %v1526
  %v1530 = vsel %vm213, %v1517, 0
  %v1533 = vsel %vm213, %v1518, 0
  %v1536 = vsel %vm213, %v1519, 0
  %v1539 = vsel %vm213, %v1520, 0
  %1541 = vmatprep.subr.mxu0 0.0
  %1542 = vmatpush1.msra.mxu0 %v1521
  %1543 = vmatprep.subr.mxu0 0.0
  %1544 = vmatpush1.msra.mxu0 0.0
  %1545 = vmatprep.subr.mxu0 0.0
  %1546 = vmatpush1.msra.mxu0 0.0
  %1547 = vmatprep.subr.mxu0 0.0
  %1548 = vmatpush1.msra.mxu0 0.0
  %1549 = vmatprep.subr.mxu0 0.0
  %1550 = vmatpush1.msra.mxu0 0.0
  %1551 = vmatprep.subr.mxu0 0.0
  %1552 = vmatpush1.msra.mxu0 0.0
  %1553 = vmatprep.subr.mxu0 0.0
  %1554 = vmatpush1.msra.mxu0 0.0
  %1555 = vmatprep.subr.mxu0 0.0
  %1556 = vmatpush1.msra.mxu0 0.0
  %1557 = vmatprep.subr.mxu0 0.0
  %1558 = vmatpush1.msra.mxu0 0.0
  %1559 = vmatprep.subr.mxu0 0.0
  %1560 = vmatpush1.msra.mxu0 0.0
  %1561 = vmatprep.subr.mxu0 0.0
  %1562 = vmatpush1.msra.mxu0 0.0
  %1563 = vmatprep.subr.mxu0 0.0
  %1564 = vmatpush1.msra.mxu0 0.0
  %1565 = vmatprep.subr.mxu0 0.0
  %1566 = vmatpush1.msra.mxu0 0.0
  %1567 = vmatprep.subr.mxu0 0.0
  %1568 = vmatpush1.msra.mxu0 0.0
  %1569 = vmatprep.subr.mxu0 0.0
  %1570 = vmatpush1.msra.mxu0 0.0
  %1571 = vmatprep.subr.mxu0 0.0
  %1572 = vmatpush1.msra.mxu0 0.0
  %1573 = vmatprep.subr.mxu0 0.0
  %1574 = vmatpush1.msra.mxu0 0.0
  %1575 = vmatprep.subr.mxu0 0.0
  %1576 = vmatpush1.msra.mxu0 0.0
  %1577 = vmatprep.subr.mxu0 0.0
  %1578 = vmatpush1.msra.mxu0 0.0
  %1579 = vmatprep.subr.mxu0 0.0
  %1580 = vmatpush1.msra.mxu0 0.0
  %1581 = vmatprep.subr.mxu0 0.0
  %1582 = vmatpush1.msra.mxu0 0.0
  %1583 = vmatprep.subr.mxu0 0.0
  %1584 = vmatpush1.msra.mxu0 0.0
  %1585 = vmatprep.subr.mxu0 0.0
  %1586 = vmatpush1.msra.mxu0 0.0
  %1587 = vmatprep.subr.mxu0 0.0
  %1588 = vmatpush1.msra.mxu0 0.0
  %1589 = vmatprep.subr.mxu0 0.0
  %1590 = vmatpush1.msra.mxu0 0.0
  %1591 = vmatprep.subr.mxu0 0.0
  %1592 = vmatpush1.msra.mxu0 0.0
  %1593 = vmatprep.subr.mxu0 0.0
  %1594 = vmatpush1.msra.mxu0 0.0
  %1595 = vmatprep.subr.mxu0 0.0
  %1596 = vmatpush1.msra.mxu0 0.0
  %1597 = vmatprep.subr.mxu0 0.0
  %1598 = vmatpush1.msra.mxu0 0.0
  %1599 = vmatprep.subr.mxu0 0.0
  %1600 = vmatpush1.msra.mxu0 0.0
  %1601 = vmatprep.subr.mxu0 0.0
  %1602 = vmatpush1.msra.mxu0 0.0
  %1603 = vmatprep.subr.mxu0 0.0
  %1604 = vmatpush1.msra.mxu0 0.0
  %1605 = vmatprep.mubr.f32.mxu0 0.0
  %1606 = vmatmul.mubr.f32.gmra.mrb[0].mxu0 %v1530
  %v1607 = vpop.f32.mrb[0].mxu0
  %v1608 = vadd.f32 %v1527, %v1607
  %v1609 = vpop.f32.mrb[0].mxu0
  %1610 = vmatprep.mubr.f32.mxu0 0.0
  %1611 = vmatmul.mubr.f32.gmra.mrb[0].mxu0 %v1533
  %v1612 = vpop.f32.mrb[0].mxu0
  %v1613 = vadd.f32 %v1527, %v1612
  %v1614 = vpop.f32.mrb[0].mxu0
  %1615 = vmatprep.mubr.f32.mxu0 0.0
  %1616 = vmatmul.mubr.f32.gmra.mrb[0].mxu0 %v1536
  %v1617 = vpop.f32.mrb[0].mxu0
  %v1618 = vadd.f32 %v1527, %v1617
  %v1619 = vpop.f32.mrb[0].mxu0
  %1620 = vmatprep.mubr.f32.mxu0 0.0
  %1621 = vmatmul.mubr.f32.gmra.mrb[0].mxu0 %v1539
  %v1622 = vpop.f32.mrb[0].mxu0
  %v1623 = vadd.f32 %v1527, %v1622
  %v1624 = vpop.f32.mrb[0].mxu0
  %1625 = vdwg.mxu0
  %v1626 = vadd.f32 %v201, %v1608
  %v1627 = vadd.f32 %v202, %v1613
  %v1628 = vadd.f32 %v203, %v1618
  %v1629 = vadd.f32 %v204, %v1623
  %v1630 = vld [vmem:[%s13] sm:$0x1]
  %v1631 = vld [vmem:[%s14] sm:$0x1]
  %v1632 = vsel %vm213, %v1626, 0.0
  %1633 = vadd.xlane.f32.xlu0 %v1632
  %v1634 = vpop.xlane.xlu0 %1633
  %v1635 = vsel %vm213, %v1627, 0.0
  %1636 = vadd.xlane.f32.xlu0 %v1635
  %v1637 = vpop.xlane.xlu0 %1636
  %v1638 = vsel %vm213, %v1628, 0.0
  %1639 = vadd.xlane.f32.xlu0 %v1638
  %v1640 = vpop.xlane.xlu0 %1639
  %v1641 = vsel %vm213, %v1629, 0.0
  %1642 = vadd.xlane.f32.xlu0 %v1641
  %v1643 = vpop.xlane.xlu0 %1642
  %v1644 = vrcp.pop 8.0
  %v1645 = vmul.f32 %v1634, %v1644
  %v1646 = vmul.f32 %v1637, %v1644
  %v1647 = vmul.f32 %v1640, %v1644
  %v1648 = vmul.f32 %v1643, %v1644
  %v1649 = vsub.f32 %v1626, %v1645
  %v1650 = vsub.f32 %v1627, %v1646
  %v1651 = vsub.f32 %v1628, %v1647
  %v1652 = vsub.f32 %v1629, %v1648
  %v1653 = vmul.f32 %v1649, %v1649
  %v1654 = vmul.f32 %v1650, %v1650
  %v1655 = vmul.f32 %v1651, %v1651
  %v1656 = vmul.f32 %v1652, %v1652
  %v1657 = vsel %vm213, %v1653, 0.0
  %1658 = vadd.xlane.f32.xlu0 %v1657
  %v1659 = vpop.xlane.xlu0 %1658
  %v1660 = vsel %vm213, %v1654, 0.0
  %1661 = vadd.xlane.f32.xlu0 %v1660
  %v1662 = vpop.xlane.xlu0 %1661
  %v1663 = vsel %vm213, %v1655, 0.0
  %1664 = vadd.xlane.f32.xlu0 %v1663
  %v1665 = vpop.xlane.xlu0 %1664
  %v1666 = vsel %vm213, %v1656, 0.0
  %1667 = vadd.xlane.f32.xlu0 %v1666
  %v1668 = vpop.xlane.xlu0 %1667
  %v1669 = vmul.f32 %v1659, %v1644
  %v1670 = vmul.f32 %v1662, %v1644
  %v1671 = vmul.f32 %v1665, %v1644
  %v1672 = vmul.f32 %v1668, %v1644
  %v1673 = vadd.f32 %v1669, 1e-05
  %v1674 = vadd.f32 %v1670, 1e-05
  %v1675 = vadd.f32 %v1671, 1e-05
  %v1676 = vadd.f32 %v1672, 1e-05
  %v1677 = vrsqrt.pop %v1673
  %v1678 = vrsqrt.pop %v1674
  %v1679 = vrsqrt.pop %v1675
  %v1680 = vrsqrt.pop %v1676
  %v1681 = vmul.f32 %v1649, %v1677
  %v1682 = vmul.f32 %v1650, %v1678
  %v1683 = vmul.f32 %v1651, %v1679
  %v1684 = vmul.f32 %v1652, %v1680
  %v1686 = vlaneseq
  %v1687 = vshrl.u32 %v1686, 7
  %v1688 = vsub.s32 0, %v1687
  %v1689 = vrot.slane %v1630, %v1688
  %v1691 = vmul.f32 %v1681, %v1689
  %v1692 = vmul.f32 %v1682, %v1689
  %v1693 = vmul.f32 %v1683, %v1689
  %v1694 = vmul.f32 %v1684, %v1689
  %v1696 = vlaneseq
  %v1697 = vshrl.u32 %v1696, 7
  %v1698 = vsub.s32 0, %v1697
  %v1699 = vrot.slane %v1631, %v1698
  %v1701 = vadd.f32 %v1691, %v1699
  %v1702 = vadd.f32 %v1692, %v1699
  %v1703 = vadd.f32 %v1693, %v1699
  %v1704 = vadd.f32 %v1694, %v1699
  %v1705 = vpack.c.bf16 %v1702, %v1701
  %v1706 = vpack.c.bf16 %v1704, %v1703
  %v1707 = vld [vmem:[%s15] sm:$0xff]
  %v1708 = vld [vmem:[%s15 + $0x8] sm:$0xff]
  %v1709 = vld [vmem:[%s15 + $0x10] sm:$0xff]
  %v1710 = vld [vmem:[%s15 + $0x18] sm:$0xff]
  %v1711 = vld [vmem:[%s15 + $0x20] sm:$0xff]
  %v1712 = vld [vmem:[%s15 + $0x28] sm:$0xff]
  %v1713 = vld [vmem:[%s15 + $0x30] sm:$0xff]
  %v1714 = vld [vmem:[%s15 + $0x38] sm:$0xff]
  %v1715 = vld [vmem:[%s16] sm:$0xff]
  %v1716 = vld [vmem:[%s16 + $0x8] sm:$0xff]
  %v1719 = vlaneseq
  %v1720 = vshrl.u32 %v1719, 7
  %v1721 = vsub.s32 0, %v1720
  %v1722 = vrot.slane %v1715, %v1721
  %v1723 = vlaneseq
  %v1724 = vshrl.u32 %v1723, 7
  %v1725 = vsub.s32 1, %v1724
  %v1726 = vrot.slane %v1715, %v1725
  %v1727 = vlaneseq
  %v1728 = vshrl.u32 %v1727, 7
  %v1729 = vsub.s32 2, %v1728
  %v1730 = vrot.slane %v1715, %v1729
  %v1731 = vlaneseq
  %v1732 = vshrl.u32 %v1731, 7
  %v1733 = vsub.s32 3, %v1732
  %v1734 = vrot.slane %v1715, %v1733
  %v1735 = vlaneseq
  %v1736 = vshrl.u32 %v1735, 7
  %v1737 = vsub.s32 4, %v1736
  %v1738 = vrot.slane %v1715, %v1737
  %v1739 = vlaneseq
  %v1740 = vshrl.u32 %v1739, 7
  %v1741 = vsub.s32 5, %v1740
  %v1742 = vrot.slane %v1715, %v1741
  %v1743 = vlaneseq
  %v1744 = vshrl.u32 %v1743, 7
  %v1745 = vsub.s32 6, %v1744
  %v1746 = vrot.slane %v1715, %v1745
  %v1747 = vlaneseq
  %v1748 = vshrl.u32 %v1747, 7
  %v1749 = vsub.s32 7, %v1748
  %v1750 = vrot.slane %v1715, %v1749
  %v1751 = vlaneseq
  %v1752 = vshrl.u32 %v1751, 7
  %v1753 = vsub.s32 0, %v1752
  %v1754 = vrot.slane %v1716, %v1753
  %v1755 = vlaneseq
  %v1756 = vshrl.u32 %v1755, 7
  %v1757 = vsub.s32 1, %v1756
  %v1758 = vrot.slane %v1716, %v1757
  %v1759 = vlaneseq
  %v1760 = vshrl.u32 %v1759, 7
  %v1761 = vsub.s32 2, %v1760
  %v1762 = vrot.slane %v1716, %v1761
  %v1763 = vlaneseq
  %v1764 = vshrl.u32 %v1763, 7
  %v1765 = vsub.s32 3, %v1764
  %v1766 = vrot.slane %v1716, %v1765
  %v1767 = vlaneseq
  %v1768 = vshrl.u32 %v1767, 7
  %v1769 = vsub.s32 4, %v1768
  %v1770 = vrot.slane %v1716, %v1769
  %v1771 = vlaneseq
  %v1772 = vshrl.u32 %v1771, 7
  %v1773 = vsub.s32 5, %v1772
  %v1774 = vrot.slane %v1716, %v1773
  %v1775 = vlaneseq
  %v1776 = vshrl.u32 %v1775, 7
  %v1777 = vsub.s32 6, %v1776
  %v1778 = vrot.slane %v1716, %v1777
  %v1779 = vlaneseq
  %v1780 = vshrl.u32 %v1779, 7
  %v1781 = vsub.s32 7, %v1780
  %v1782 = vrot.slane %v1716, %v1781
  %v1807 = vunpack.c.l.b16 %v1707
  %v1808 = vunpack.c.h.b16 %v1707
  %v1809 = vunpack.c.l.b16 %v1708
  %v1810 = vunpack.c.h.b16 %v1708
  %v1811 = vunpack.c.l.b16 %v1709
  %v1812 = vunpack.c.h.b16 %v1709
  %v1813 = vunpack.c.l.b16 %v1710
  %v1814 = vunpack.c.h.b16 %v1710
  %v1815 = vunpack.c.l.b16 %v1711
  %v1816 = vunpack.c.h.b16 %v1711
  %v1817 = vunpack.c.l.b16 %v1712
  %v1818 = vunpack.c.h.b16 %v1712
  %v1819 = vunpack.c.l.b16 %v1713
  %v1820 = vunpack.c.h.b16 %v1713
  %v1821 = vunpack.c.l.b16 %v1714
  %v1822 = vunpack.c.h.b16 %v1714
  %v1823 = vpack.c.b16 %v1807, %v1807
  %v1824 = vpack.c.b16 %v1808, %v1808
  %v1825 = vpack.c.b16 %v1809, %v1809
  %v1826 = vpack.c.b16 %v1810, %v1810
  %v1827 = vpack.c.b16 %v1811, %v1811
  %v1828 = vpack.c.b16 %v1812, %v1812
  %v1829 = vpack.c.b16 %v1813, %v1813
  %v1830 = vpack.c.b16 %v1814, %v1814
  %v1831 = vpack.c.b16 %v1815, %v1815
  %v1832 = vpack.c.b16 %v1816, %v1816
  %v1833 = vpack.c.b16 %v1817, %v1817
  %v1834 = vpack.c.b16 %v1818, %v1818
  %v1835 = vpack.c.b16 %v1819, %v1819
  %v1836 = vpack.c.b16 %v1820, %v1820
  %v1837 = vpack.c.b16 %v1821, %v1821
  %v1838 = vpack.c.b16 %v1822, %v1822
  %v1840 = vsel %vm213, %v1705, 0
  %v1843 = vsel %vm213, %v1706, 0
  %vm1845 = vcmask 1043456
  %v1847 = vsel %vm1845, %v1823, 0
  %v1850 = vsel %vm1845, %v1824, 0
  %v1853 = vsel %vm1845, %v1825, 0
  %v1856 = vsel %vm1845, %v1826, 0
  %v1859 = vsel %vm1845, %v1827, 0
  %v1862 = vsel %vm1845, %v1828, 0
  %v1865 = vsel %vm1845, %v1829, 0
  %v1868 = vsel %vm1845, %v1830, 0
  %v1871 = vsel %vm1845, %v1831, 0
  %v1874 = vsel %vm1845, %v1832, 0
  %v1877 = vsel %vm1845, %v1833, 0
  %v1880 = vsel %vm1845, %v1834, 0
  %v1883 = vsel %vm1845, %v1835, 0
  %v1886 = vsel %vm1845, %v1836, 0
  %v1889 = vsel %vm1845, %v1837, 0
  %v1892 = vsel %vm1845, %v1838, 0
  %1894 = vmatprep.subr.bf16.mxu0 %v1850
  %1895 = vmatpush1.bf16.msra.mxu0 %v1847
  %1896 = vmatprep.subr.bf16.mxu0 0
  %1897 = vmatpush1.bf16.msra.mxu0 0
  %1898 = vmatprep.subr.bf16.mxu0 0
  %1899 = vmatpush1.bf16.msra.mxu0 0
  %1900 = vmatprep.subr.bf16.mxu0 0
  %1901 = vmatpush1.bf16.msra.mxu0 0
  %1902 = vmatprep.subr.bf16.mxu0 0
  %1903 = vmatpush1.bf16.msra.mxu0 0
  %1904 = vmatprep.subr.bf16.mxu0 0
  %1905 = vmatpush1.bf16.msra.mxu0 0
  %1906 = vmatprep.subr.bf16.mxu0 0
  %1907 = vmatpush1.bf16.msra.mxu0 0
  %1908 = vmatprep.subr.bf16.mxu0 0
  %1909 = vmatpush1.bf16.msra.mxu0 0
  %1910 = vmatprep.subr.bf16.mxu0 0
  %1911 = vmatpush1.bf16.msra.mxu0 0
  %1912 = vmatprep.subr.bf16.mxu0 0
  %1913 = vmatpush1.bf16.msra.mxu0 0
  %1914 = vmatprep.subr.bf16.mxu0 0
  %1915 = vmatpush1.bf16.msra.mxu0 0
  %1916 = vmatprep.subr.bf16.mxu0 0
  %1917 = vmatpush1.bf16.msra.mxu0 0
  %1918 = vmatprep.subr.bf16.mxu0 0
  %1919 = vmatpush1.bf16.msra.mxu0 0
  %1920 = vmatprep.subr.bf16.mxu0 0
  %1921 = vmatpush1.bf16.msra.mxu0 0
  %1922 = vmatprep.subr.bf16.mxu0 0
  %1923 = vmatpush1.bf16.msra.mxu0 0
  %1924 = vmatprep.subr.bf16.mxu0 0
  %1925 = vmatpush1.bf16.msra.mxu0 0
  %1926 = vmatprep.mubr.bf16.mxu0 0
  %1927 = vmatmul.mubr.bf16.gmra.mrb[0].mxu0 %v1840
  %v1928 = vpop.f32.mrb[0].mxu0
  %v1929 = vadd.f32 %v1722, %v1928
  %v1930 = vpop.f32.mrb[0].mxu0
  %v1931 = vadd.f32 %v1726, %v1930
  %v1932 = vpop.f32.mrb[0].mxu0
  %v1933 = vadd.f32 %v1722, %v1932
  %v1934 = vpop.f32.mrb[0].mxu0
  %v1935 = vadd.f32 %v1726, %v1934
  %1936 = vmatprep.mubr.bf16.mxu0 0
  %1937 = vmatmul.mubr.bf16.gmra.mrb[0].mxu0 %v1843
  %v1938 = vpop.f32.mrb[0].mxu0
  %v1939 = vadd.f32 %v1722, %v1938
  %v1940 = vpop.f32.mrb[0].mxu0
  %v1941 = vadd.f32 %v1726, %v1940
  %v1942 = vpop.f32.mrb[0].mxu0
  %v1943 = vadd.f32 %v1722, %v1942
  %v1944 = vpop.f32.mrb[0].mxu0
  %v1945 = vadd.f32 %v1726, %v1944
  %1946 = vdwg.mxu0
  %1947 = vmatprep.subr.bf16.mxu0 %v1856
  %1948 = vmatpush1.bf16.msra.mxu0 %v1853
  %1949 = vmatprep.subr.bf16.mxu0 0
  %1950 = vmatpush1.bf16.msra.mxu0 0
  %1951 = vmatprep.subr.bf16.mxu0 0
  %1952 = vmatpush1.bf16.msra.mxu0 0
  %1953 = vmatprep.subr.bf16.mxu0 0
  %1954 = vmatpush1.bf16.msra.mxu0 0
  %1955 = vmatprep.subr.bf16.mxu0 0
  %1956 = vmatpush1.bf16.msra.mxu0 0
  %1957 = vmatprep.subr.bf16.mxu0 0
  %1958 = vmatpush1.bf16.msra.mxu0 0
  %1959 = vmatprep.subr.bf16.mxu0 0
  %1960 = vmatpush1.bf16.msra.mxu0 0
  %1961 = vmatprep.subr.bf16.mxu0 0
  %1962 = vmatpush1.bf16.msra.mxu0 0
  %1963 = vmatprep.subr.bf16.mxu0 0
  %1964 = vmatpush1.bf16.msra.mxu0 0
  %1965 = vmatprep.subr.bf16.mxu0 0
  %1966 = vmatpush1.bf16.msra.mxu0 0
  %1967 = vmatprep.subr.bf16.mxu0 0
  %1968 = vmatpush1.bf16.msra.mxu0 0
  %1969 = vmatprep.subr.bf16.mxu0 0
  %1970 = vmatpush1.bf16.msra.mxu0 0
  %1971 = vmatprep.subr.bf16.mxu0 0
  %1972 = vmatpush1.bf16.msra.mxu0 0
  %1973 = vmatprep.subr.bf16.mxu0 0
  %1974 = vmatpush1.bf16.msra.mxu0 0
  %1975 = vmatprep.subr.bf16.mxu0 0
  %1976 = vmatpush1.bf16.msra.mxu0 0
  %1977 = vmatprep.subr.bf16.mxu0 0
  %1978 = vmatpush1.bf16.msra.mxu0 0
  %1979 = vmatprep.mubr.bf16.mxu0 0
  %1980 = vmatmul.mubr.bf16.gmra.mrb[0].mxu0 %v1840
  %v1981 = vpop.f32.mrb[0].mxu0
  %v1982 = vadd.f32 %v1730, %v1981
  %v1983 = vpop.f32.mrb[0].mxu0
  %v1984 = vadd.f32 %v1734, %v1983
  %v1985 = vpop.f32.mrb[0].mxu0
  %v1986 = vadd.f32 %v1730, %v1985
  %v1987 = vpop.f32.mrb[0].mxu0
  %v1988 = vadd.f32 %v1734, %v1987
  %1989 = vmatprep.mubr.bf16.mxu0 0
  %1990 = vmatmul.mubr.bf16.gmra.mrb[0].mxu0 %v1843
  %v1991 = vpop.f32.mrb[0].mxu0
  %v1992 = vadd.f32 %v1730, %v1991
  %v1993 = vpop.f32.mrb[0].mxu0
  %v1994 = vadd.f32 %v1734, %v1993
  %v1995 = vpop.f32.mrb[0].mxu0
  %v1996 = vadd.f32 %v1730, %v1995
  %v1997 = vpop.f32.mrb[0].mxu0
  %v1998 = vadd.f32 %v1734, %v1997
  %1999 = vdwg.mxu0
  %2000 = vmatprep.subr.bf16.mxu0 %v1862
  %2001 = vmatpush1.bf16.msra.mxu0 %v1859
  %2002 = vmatprep.subr.bf16.mxu0 0
  %2003 = vmatpush1.bf16.msra.mxu0 0
  %2004 = vmatprep.subr.bf16.mxu0 0
  %2005 = vmatpush1.bf16.msra.mxu0 0
  %2006 = vmatprep.subr.bf16.mxu0 0
  %2007 = vmatpush1.bf16.msra.mxu0 0
  %2008 = vmatprep.subr.bf16.mxu0 0
  %2009 = vmatpush1.bf16.msra.mxu0 0
  %2010 = vmatprep.subr.bf16.mxu0 0
  %2011 = vmatpush1.bf16.msra.mxu0 0
  %2012 = vmatprep.subr.bf16.mxu0 0
  %2013 = vmatpush1.bf16.msra.mxu0 0
  %2014 = vmatprep.subr.bf16.mxu0 0
  %2015 = vmatpush1.bf16.msra.mxu0 0
  %2016 = vmatprep.subr.bf16.mxu0 0
  %2017 = vmatpush1.bf16.msra.mxu0 0
  %2018 = vmatprep.subr.bf16.mxu0 0
  %2019 = vmatpush1.bf16.msra.mxu0 0
  %2020 = vmatprep.subr.bf16.mxu0 0
  %2021 = vmatpush1.bf16.msra.mxu0 0
  %2022 = vmatprep.subr.bf16.mxu0 0
  %2023 = vmatpush1.bf16.msra.mxu0 0
  %2024 = vmatprep.subr.bf16.mxu0 0
  %2025 = vmatpush1.bf16.msra.mxu0 0
  %2026 = vmatprep.subr.bf16.mxu0 0
  %2027 = vmatpush1.bf16.msra.mxu0 0
  %2028 = vmatprep.subr.bf16.mxu0 0
  %2029 = vmatpush1.bf16.msra.mxu0 0
  %2030 = vmatprep.subr.bf16.mxu0 0
  %2031 = vmatpush1.bf16.msra.mxu0 0
  %2032 = vmatprep.mubr.bf16.mxu0 0
  %2033 = vmatmul.mubr.bf16.gmra.mrb[0].mxu0 %v1840
  %v2034 = vpop.f32.mrb[0].mxu0
  %v2035 = vadd.f32 %v1738, %v2034
  %v2036 = vpop.f32.mrb[0].mxu0
  %v2037 = vadd.f32 %v1742, %v2036
  %v2038 = vpop.f32.mrb[0].mxu0
  %v2039 = vadd.f32 %v1738, %v2038
  %v2040 = vpop.f32.mrb[0].mxu0
  %v2041 = vadd.f32 %v1742, %v2040
  %2042 = vmatprep.mubr.bf16.mxu0 0
  %2043 = vmatmul.mubr.bf16.gmra.mrb[0].mxu0 %v1843
  %v2044 = vpop.f32.mrb[0].mxu0
  %v2045 = vadd.f32 %v1738, %v2044
  %v2046 = vpop.f32.mrb[0].mxu0
  %v2047 = vadd.f32 %v1742, %v2046
  %v2048 = vpop.f32.mrb[0].mxu0
  %v2049 = vadd.f32 %v1738, %v2048
  %v2050 = vpop.f32.mrb[0].mxu0
  %v2051 = vadd.f32 %v1742, %v2050
  %2052 = vdwg.mxu0
  %2053 = vmatprep.subr.bf16.mxu0 %v1868
  %2054 = vmatpush1.bf16.msra.mxu0 %v1865
  %2055 = vmatprep.subr.bf16.mxu0 0
  %2056 = vmatpush1.bf16.msra.mxu0 0
  %2057 = vmatprep.subr.bf16.mxu0 0
  %2058 = vmatpush1.bf16.msra.mxu0 0
  %2059 = vmatprep.subr.bf16.mxu0 0
  %2060 = vmatpush1.bf16.msra.mxu0 0
  %2061 = vmatprep.subr.bf16.mxu0 0
  %2062 = vmatpush1.bf16.msra.mxu0 0
  %2063 = vmatprep.subr.bf16.mxu0 0
  %2064 = vmatpush1.bf16.msra.mxu0 0
  %2065 = vmatprep.subr.bf16.mxu0 0
  %2066 = vmatpush1.bf16.msra.mxu0 0
  %2067 = vmatprep.subr.bf16.mxu0 0
  %2068 = vmatpush1.bf16.msra.mxu0 0
  %2069 = vmatprep.subr.bf16.mxu0 0
  %2070 = vmatpush1.bf16.msra.mxu0 0
  %2071 = vmatprep.subr.bf16.mxu0 0
  %2072 = vmatpush1.bf16.msra.mxu0 0
  %2073 = vmatprep.subr.bf16.mxu0 0
  %2074 = vmatpush1.bf16.msra.mxu0 0
  %2075 = vmatprep.subr.bf16.mxu0 0
  %2076 = vmatpush1.bf16.msra.mxu0 0
  %2077 = vmatprep.subr.bf16.mxu0 0
  %2078 = vmatpush1.bf16.msra.mxu0 0
  %2079 = vmatprep.subr.bf16.mxu0 0
  %2080 = vmatpush1.bf16.msra.mxu0 0
  %2081 = vmatprep.subr.bf16.mxu0 0
  %2082 = vmatpush1.bf16.msra.mxu0 0
  %2083 = vmatprep.subr.bf16.mxu0 0
  %2084 = vmatpush1.bf16.msra.mxu0 0
  %2085 = vmatprep.mubr.bf16.mxu0 0
  %2086 = vmatmul.mubr.bf16.gmra.mrb[0].mxu0 %v1840
  %v2087 = vpop.f32.mrb[0].mxu0
  %v2088 = vadd.f32 %v1746, %v2087
  %v2089 = vpop.f32.mrb[0].mxu0
  %v2090 = vadd.f32 %v1750, %v2089
  %v2091 = vpop.f32.mrb[0].mxu0
  %v2092 = vadd.f32 %v1746, %v2091
  %v2093 = vpop.f32.mrb[0].mxu0
  %v2094 = vadd.f32 %v1750, %v2093
  %2095 = vmatprep.mubr.bf16.mxu0 0
  %2096 = vmatmul.mubr.bf16.gmra.mrb[0].mxu0 %v1843
  %v2097 = vpop.f32.mrb[0].mxu0
  %v2098 = vadd.f32 %v1746, %v2097
  %v2099 = vpop.f32.mrb[0].mxu0
  %v2100 = vadd.f32 %v1750, %v2099
  %v2101 = vpop.f32.mrb[0].mxu0
  %v2102 = vadd.f32 %v1746, %v2101
  %v2103 = vpop.f32.mrb[0].mxu0
  %v2104 = vadd.f32 %v1750, %v2103
  %2105 = vdwg.mxu0
  %2106 = vmatprep.subr.bf16.mxu0 %v1874
  %2107 = vmatpush1.bf16.msra.mxu0 %v1871
  %2108 = vmatprep.subr.bf16.mxu0 0
  %2109 = vmatpush1.bf16.msra.mxu0 0
  %2110 = vmatprep.subr.bf16.mxu0 0
  %2111 = vmatpush1.bf16.msra.mxu0 0
  %2112 = vmatprep.subr.bf16.mxu0 0
  %2113 = vmatpush1.bf16.msra.mxu0 0
  %2114 = vmatprep.subr.bf16.mxu0 0
  %2115 = vmatpush1.bf16.msra.mxu0 0
  %2116 = vmatprep.subr.bf16.mxu0 0
  %2117 = vmatpush1.bf16.msra.mxu0 0
  %2118 = vmatprep.subr.bf16.mxu0 0
  %2119 = vmatpush1.bf16.msra.mxu0 0
  %2120 = vmatprep.subr.bf16.mxu0 0
  %2121 = vmatpush1.bf16.msra.mxu0 0
  %2122 = vmatprep.subr.bf16.mxu0 0
  %2123 = vmatpush1.bf16.msra.mxu0 0
  %2124 = vmatprep.subr.bf16.mxu0 0
  %2125 = vmatpush1.bf16.msra.mxu0 0
  %2126 = vmatprep.subr.bf16.mxu0 0
  %2127 = vmatpush1.bf16.msra.mxu0 0
  %2128 = vmatprep.subr.bf16.mxu0 0
  %2129 = vmatpush1.bf16.msra.mxu0 0
  %2130 = vmatprep.subr.bf16.mxu0 0
  %2131 = vmatpush1.bf16.msra.mxu0 0
  %2132 = vmatprep.subr.bf16.mxu0 0
  %2133 = vmatpush1.bf16.msra.mxu0 0
  %2134 = vmatprep.subr.bf16.mxu0 0
  %2135 = vmatpush1.bf16.msra.mxu0 0
  %2136 = vmatprep.subr.bf16.mxu0 0
  %2137 = vmatpush1.bf16.msra.mxu0 0
  %2138 = vmatprep.mubr.bf16.mxu0 0
  %2139 = vmatmul.mubr.bf16.gmra.mrb[0].mxu0 %v1840
  %v2140 = vpop.f32.mrb[0].mxu0
  %v2141 = vadd.f32 %v1754, %v2140
  %v2142 = vpop.f32.mrb[0].mxu0
  %v2143 = vadd.f32 %v1758, %v2142
  %v2144 = vpop.f32.mrb[0].mxu0
  %v2145 = vadd.f32 %v1754, %v2144
  %v2146 = vpop.f32.mrb[0].mxu0
  %v2147 = vadd.f32 %v1758, %v2146
  %2148 = vmatprep.mubr.bf16.mxu0 0
  %2149 = vmatmul.mubr.bf16.gmra.mrb[0].mxu0 %v1843
  %v2150 = vpop.f32.mrb[0].mxu0
  %v2151 = vadd.f32 %v1754, %v2150
  %v2152 = vpop.f32.mrb[0].mxu0
  %v2153 = vadd.f32 %v1758, %v2152
  %v2154 = vpop.f32.mrb[0].mxu0
  %v2155 = vadd.f32 %v1754, %v2154
  %v2156 = vpop.f32.mrb[0].mxu0
  %v2157 = vadd.f32 %v1758, %v2156
  %2158 = vdwg.mxu0
  %2159 = vmatprep.subr.bf16.mxu0 %v1880
  %2160 = vmatpush1.bf16.msra.mxu0 %v1877
  %2161 = vmatprep.subr.bf16.mxu0 0
  %2162 = vmatpush1.bf16.msra.mxu0 0
  %2163 = vmatprep.subr.bf16.mxu0 0
  %2164 = vmatpush1.bf16.msra.mxu0 0
  %2165 = vmatprep.subr.bf16.mxu0 0
  %2166 = vmatpush1.bf16.msra.mxu0 0
  %2167 = vmatprep.subr.bf16.mxu0 0
  %2168 = vmatpush1.bf16.msra.mxu0 0
  %2169 = vmatprep.subr.bf16.mxu0 0
  %2170 = vmatpush1.bf16.msra.mxu0 0
  %2171 = vmatprep.subr.bf16.mxu0 0
  %2172 = vmatpush1.bf16.msra.mxu0 0
  %2173 = vmatprep.subr.bf16.mxu0 0
  %2174 = vmatpush1.bf16.msra.mxu0 0
  %2175 = vmatprep.subr.bf16.mxu0 0
  %2176 = vmatpush1.bf16.msra.mxu0 0
  %2177 = vmatprep.subr.bf16.mxu0 0
  %2178 = vmatpush1.bf16.msra.mxu0 0
  %2179 = vmatprep.subr.bf16.mxu0 0
  %2180 = vmatpush1.bf16.msra.mxu0 0
  %2181 = vmatprep.subr.bf16.mxu0 0
  %2182 = vmatpush1.bf16.msra.mxu0 0
  %2183 = vmatprep.subr.bf16.mxu0 0
  %2184 = vmatpush1.bf16.msra.mxu0 0
  %2185 = vmatprep.subr.bf16.mxu0 0
  %2186 = vmatpush1.bf16.msra.mxu0 0
  %2187 = vmatprep.subr.bf16.mxu0 0
  %2188 = vmatpush1.bf16.msra.mxu0 0
  %2189 = vmatprep.subr.bf16.mxu0 0
  %2190 = vmatpush1.bf16.msra.mxu0 0
  %2191 = vmatprep.mubr.bf16.mxu0 0
  %2192 = vmatmul.mubr.bf16.gmra.mrb[0].mxu0 %v1840
  %v2193 = vpop.f32.mrb[0].mxu0
  %v2194 = vadd.f32 %v1762, %v2193
  %v2195 = vpop.f32.mrb[0].mxu0
  %v2196 = vadd.f32 %v1766, %v2195
  %v2197 = vpop.f32.mrb[0].mxu0
  %v2198 = vadd.f32 %v1762, %v2197
  %v2199 = vpop.f32.mrb[0].mxu0
  %v2200 = vadd.f32 %v1766, %v2199
  %2201 = vmatprep.mubr.bf16.mxu0 0
  %2202 = vmatmul.mubr.bf16.gmra.mrb[0].mxu0 %v1843
  %v2203 = vpop.f32.mrb[0].mxu0
  %v2204 = vadd.f32 %v1762, %v2203
  %v2205 = vpop.f32.mrb[0].mxu0
  %v2206 = vadd.f32 %v1766, %v2205
  %v2207 = vpop.f32.mrb[0].mxu0
  %v2208 = vadd.f32 %v1762, %v2207
  %v2209 = vpop.f32.mrb[0].mxu0
  %v2210 = vadd.f32 %v1766, %v2209
  %2211 = vdwg.mxu0
  %2212 = vmatprep.subr.bf16.mxu0 %v1886
  %2213 = vmatpush1.bf16.msra.mxu0 %v1883
  %2214 = vmatprep.subr.bf16.mxu0 0
  %2215 = vmatpush1.bf16.msra.mxu0 0
  %2216 = vmatprep.subr.bf16.mxu0 0
  %2217 = vmatpush1.bf16.msra.mxu0 0
  %2218 = vmatprep.subr.bf16.mxu0 0
  %2219 = vmatpush1.bf16.msra.mxu0 0
  %2220 = vmatprep.subr.bf16.mxu0 0
  %2221 = vmatpush1.bf16.msra.mxu0 0
  %2222 = vmatprep.subr.bf16.mxu0 0
  %2223 = vmatpush1.bf16.msra.mxu0 0
  %2224 = vmatprep.subr.bf16.mxu0 0
  %2225 = vmatpush1.bf16.msra.mxu0 0
  %2226 = vmatprep.subr.bf16.mxu0 0
  %2227 = vmatpush1.bf16.msra.mxu0 0
  %2228 = vmatprep.subr.bf16.mxu0 0
  %2229 = vmatpush1.bf16.msra.mxu0 0
  %2230 = vmatprep.subr.bf16.mxu0 0
  %2231 = vmatpush1.bf16.msra.mxu0 0
  %2232 = vmatprep.subr.bf16.mxu0 0
  %2233 = vmatpush1.bf16.msra.mxu0 0
  %2234 = vmatprep.subr.bf16.mxu0 0
  %2235 = vmatpush1.bf16.msra.mxu0 0
  %2236 = vmatprep.subr.bf16.mxu0 0
  %2237 = vmatpush1.bf16.msra.mxu0 0
  %2238 = vmatprep.subr.bf16.mxu0 0
  %2239 = vmatpush1.bf16.msra.mxu0 0
  %2240 = vmatprep.subr.bf16.mxu0 0
  %2241 = vmatpush1.bf16.msra.mxu0 0
  %2242 = vmatprep.subr.bf16.mxu0 0
  %2243 = vmatpush1.bf16.msra.mxu0 0
  %2244 = vmatprep.mubr.bf16.mxu0 0
  %2245 = vmatmul.mubr.bf16.gmra.mrb[0].mxu0 %v1840
  %v2246 = vpop.f32.mrb[0].mxu0
  %v2247 = vadd.f32 %v1770, %v2246
  %v2248 = vpop.f32.mrb[0].mxu0
  %v2249 = vadd.f32 %v1774, %v2248
  %v2250 = vpop.f32.mrb[0].mxu0
  %v2251 = vadd.f32 %v1770, %v2250
  %v2252 = vpop.f32.mrb[0].mxu0
  %v2253 = vadd.f32 %v1774, %v2252
  %2254 = vmatprep.mubr.bf16.mxu0 0
  %2255 = vmatmul.mubr.bf16.gmra.mrb[0].mxu0 %v1843
  %v2256 = vpop.f32.mrb[0].mxu0
  %v2257 = vadd.f32 %v1770, %v2256
  %v2258 = vpop.f32.mrb[0].mxu0
  %v2259 = vadd.f32 %v1774, %v2258
  %v2260 = vpop.f32.mrb[0].mxu0
  %v2261 = vadd.f32 %v1770, %v2260
  %v2262 = vpop.f32.mrb[0].mxu0
  %v2263 = vadd.f32 %v1774, %v2262
  %2264 = vdwg.mxu0
  %2265 = vmatprep.subr.bf16.mxu0 %v1892
  %2266 = vmatpush1.bf16.msra.mxu0 %v1889
  %2267 = vmatprep.subr.bf16.mxu0 0
  %2268 = vmatpush1.bf16.msra.mxu0 0
  %2269 = vmatprep.subr.bf16.mxu0 0
  %2270 = vmatpush1.bf16.msra.mxu0 0
  %2271 = vmatprep.subr.bf16.mxu0 0
  %2272 = vmatpush1.bf16.msra.mxu0 0
  %2273 = vmatprep.subr.bf16.mxu0 0
  %2274 = vmatpush1.bf16.msra.mxu0 0
  %2275 = vmatprep.subr.bf16.mxu0 0
  %2276 = vmatpush1.bf16.msra.mxu0 0
  %2277 = vmatprep.subr.bf16.mxu0 0
  %2278 = vmatpush1.bf16.msra.mxu0 0
  %2279 = vmatprep.subr.bf16.mxu0 0
  %2280 = vmatpush1.bf16.msra.mxu0 0
  %2281 = vmatprep.subr.bf16.mxu0 0
  %2282 = vmatpush1.bf16.msra.mxu0 0
  %2283 = vmatprep.subr.bf16.mxu0 0
  %2284 = vmatpush1.bf16.msra.mxu0 0
  %2285 = vmatprep.subr.bf16.mxu0 0
  %2286 = vmatpush1.bf16.msra.mxu0 0
  %2287 = vmatprep.subr.bf16.mxu0 0
  %2288 = vmatpush1.bf16.msra.mxu0 0
  %2289 = vmatprep.subr.bf16.mxu0 0
  %2290 = vmatpush1.bf16.msra.mxu0 0
  %2291 = vmatprep.subr.bf16.mxu0 0
  %2292 = vmatpush1.bf16.msra.mxu0 0
  %2293 = vmatprep.subr.bf16.mxu0 0
  %2294 = vmatpush1.bf16.msra.mxu0 0
  %2295 = vmatprep.subr.bf16.mxu0 0
  %2296 = vmatpush1.bf16.msra.mxu0 0
  %2297 = vmatprep.mubr.bf16.mxu0 0
  %2298 = vmatmul.mubr.bf16.gmra.mrb[0].mxu0 %v1840
  %v2299 = vpop.f32.mrb[0].mxu0
  %v2300 = vadd.f32 %v1778, %v2299
  %v2301 = vpop.f32.mrb[0].mxu0
  %v2302 = vadd.f32 %v1782, %v2301
  %v2303 = vpop.f32.mrb[0].mxu0
  %v2304 = vadd.f32 %v1778, %v2303
  %v2305 = vpop.f32.mrb[0].mxu0
  %v2306 = vadd.f32 %v1782, %v2305
  %2307 = vmatprep.mubr.bf16.mxu0 0
  %2308 = vmatmul.mubr.bf16.gmra.mrb[0].mxu0 %v1843
  %v2309 = vpop.f32.mrb[0].mxu0
  %v2310 = vadd.f32 %v1778, %v2309
  %v2311 = vpop.f32.mrb[0].mxu0
  %v2312 = vadd.f32 %v1782, %v2311
  %v2313 = vpop.f32.mrb[0].mxu0
  %v2314 = vadd.f32 %v1778, %v2313
  %v2315 = vpop.f32.mrb[0].mxu0
  %v2316 = vadd.f32 %v1782, %v2315
  %2317 = vdwg.mxu0
  %v2318 = vmax.f32 %v1929, 0.0
  %v2319 = vmax.f32 %v1931, 0.0
  %v2320 = vmax.f32 %v1982, 0.0
  %v2321 = vmax.f32 %v1984, 0.0
  %v2322 = vmax.f32 %v2035, 0.0
  %v2323 = vmax.f32 %v2037, 0.0
  %v2324 = vmax.f32 %v2088, 0.0
  %v2325 = vmax.f32 %v2090, 0.0
  %v2326 = vmax.f32 %v2141, 0.0
  %v2327 = vmax.f32 %v2143, 0.0
  %v2328 = vmax.f32 %v2194, 0.0
  %v2329 = vmax.f32 %v2196, 0.0
  %v2330 = vmax.f32 %v2247, 0.0
  %v2331 = vmax.f32 %v2249, 0.0
  %v2332 = vmax.f32 %v2300, 0.0
  %v2333 = vmax.f32 %v2302, 0.0
  %v2334 = vmax.f32 %v1933, 0.0
  %v2335 = vmax.f32 %v1935, 0.0
  %v2336 = vmax.f32 %v1986, 0.0
  %v2337 = vmax.f32 %v1988, 0.0
  %v2338 = vmax.f32 %v2039, 0.0
  %v2339 = vmax.f32 %v2041, 0.0
  %v2340 = vmax.f32 %v2092, 0.0
  %v2341 = vmax.f32 %v2094, 0.0
  %v2342 = vmax.f32 %v2145, 0.0
  %v2343 = vmax.f32 %v2147, 0.0
  %v2344 = vmax.f32 %v2198, 0.0
  %v2345 = vmax.f32 %v2200, 0.0
  %v2346 = vmax.f32 %v2251, 0.0
  %v2347 = vmax.f32 %v2253, 0.0
  %v2348 = vmax.f32 %v2304, 0.0
  %v2349 = vmax.f32 %v2306, 0.0
  %v2350 = vmax.f32 %v1939, 0.0
  %v2351 = vmax.f32 %v1941, 0.0
  %v2352 = vmax.f32 %v1992, 0.0
  %v2353 = vmax.f32 %v1994, 0.0
  %v2354 = vmax.f32 %v2045, 0.0
  %v2355 = vmax.f32 %v2047, 0.0
  %v2356 = vmax.f32 %v2098, 0.0
  %v2357 = vmax.f32 %v2100, 0.0
  %v2358 = vmax.f32 %v2151, 0.0
  %v2359 = vmax.f32 %v2153, 0.0
  %v2360 = vmax.f32 %v2204, 0.0
  %v2361 = vmax.f32 %v2206, 0.0
  %v2362 = vmax.f32 %v2257, 0.0
  %v2363 = vmax.f32 %v2259, 0.0
  %v2364 = vmax.f32 %v2310, 0.0
  %v2365 = vmax.f32 %v2312, 0.0
  %v2366 = vmax.f32 %v1943, 0.0
  %v2367 = vmax.f32 %v1945, 0.0
  %v2368 = vmax.f32 %v1996, 0.0
  %v2369 = vmax.f32 %v1998, 0.0
  %v2370 = vmax.f32 %v2049, 0.0
  %v2371 = vmax.f32 %v2051, 0.0
  %v2372 = vmax.f32 %v2102, 0.0
  %v2373 = vmax.f32 %v2104, 0.0
  %v2374 = vmax.f32 %v2155, 0.0
  %v2375 = vmax.f32 %v2157, 0.0
  %v2376 = vmax.f32 %v2208, 0.0
  %v2377 = vmax.f32 %v2210, 0.0
  %v2378 = vmax.f32 %v2261, 0.0
  %v2379 = vmax.f32 %v2263, 0.0
  %v2380 = vmax.f32 %v2314, 0.0
  %v2381 = vmax.f32 %v2316, 0.0
  %v2382 = vpack.c.bf16 %v2334, %v2318
  %v2383 = vpack.c.bf16 %v2335, %v2319
  %v2384 = vpack.c.bf16 %v2336, %v2320
  %v2385 = vpack.c.bf16 %v2337, %v2321
  %v2386 = vpack.c.bf16 %v2338, %v2322
  %v2387 = vpack.c.bf16 %v2339, %v2323
  %v2388 = vpack.c.bf16 %v2340, %v2324
  %v2389 = vpack.c.bf16 %v2341, %v2325
  %v2390 = vpack.c.bf16 %v2342, %v2326
  %v2391 = vpack.c.bf16 %v2343, %v2327
  %v2392 = vpack.c.bf16 %v2344, %v2328
  %v2393 = vpack.c.bf16 %v2345, %v2329
  %v2394 = vpack.c.bf16 %v2346, %v2330
  %v2395 = vpack.c.bf16 %v2347, %v2331
  %v2396 = vpack.c.bf16 %v2348, %v2332
  %v2397 = vpack.c.bf16 %v2349, %v2333
  %v2398 = vpack.c.bf16 %v2366, %v2350
  %v2399 = vpack.c.bf16 %v2367, %v2351
  %v2400 = vpack.c.bf16 %v2368, %v2352
  %v2401 = vpack.c.bf16 %v2369, %v2353
  %v2402 = vpack.c.bf16 %v2370, %v2354
  %v2403 = vpack.c.bf16 %v2371, %v2355
  %v2404 = vpack.c.bf16 %v2372, %v2356
  %v2405 = vpack.c.bf16 %v2373, %v2357
  %v2406 = vpack.c.bf16 %v2374, %v2358
  %v2407 = vpack.c.bf16 %v2375, %v2359
  %v2408 = vpack.c.bf16 %v2376, %v2360
  %v2409 = vpack.c.bf16 %v2377, %v2361
  %v2410 = vpack.c.bf16 %v2378, %v2362
  %v2411 = vpack.c.bf16 %v2379, %v2363
  %v2412 = vpack.c.bf16 %v2380, %v2364
  %v2413 = vpack.c.bf16 %v2381, %v2365
  %v2414 = vld [vmem:[%s17] sm:$0xf]
  %v2415 = vld [vmem:[%s17 + $0x4] sm:$0xf]
  %v2416 = vld [vmem:[%s17 + $0x8] sm:$0xf]
  %v2417 = vld [vmem:[%s17 + $0xc] sm:$0xf]
  %v2418 = vld [vmem:[%s17 + $0x10] sm:$0xf]
  %v2419 = vld [vmem:[%s17 + $0x14] sm:$0xf]
  %v2420 = vld [vmem:[%s17 + $0x18] sm:$0xf]
  %v2421 = vld [vmem:[%s17 + $0x1c] sm:$0xf]
  %v2422 = vld [vmem:[%s17 + $0x20] sm:$0xf]
  %v2423 = vld [vmem:[%s17 + $0x24] sm:$0xf]
  %v2424 = vld [vmem:[%s17 + $0x28] sm:$0xf]
  %v2425 = vld [vmem:[%s17 + $0x2c] sm:$0xf]
  %v2426 = vld [vmem:[%s17 + $0x30] sm:$0xf]
  %v2427 = vld [vmem:[%s17 + $0x34] sm:$0xf]
  %v2428 = vld [vmem:[%s17 + $0x38] sm:$0xf]
  %v2429 = vld [vmem:[%s17 + $0x3c] sm:$0xf]
  %v2430 = vld [vmem:[%s17 + $0x40] sm:$0xf]
  %v2431 = vld [vmem:[%s17 + $0x44] sm:$0xf]
  %v2432 = vld [vmem:[%s17 + $0x48] sm:$0xf]
  %v2433 = vld [vmem:[%s17 + $0x4c] sm:$0xf]
  %v2434 = vld [vmem:[%s17 + $0x50] sm:$0xf]
  %v2435 = vld [vmem:[%s17 + $0x54] sm:$0xf]
  %v2436 = vld [vmem:[%s17 + $0x58] sm:$0xf]
  %v2437 = vld [vmem:[%s17 + $0x5c] sm:$0xf]
  %v2438 = vld [vmem:[%s17 + $0x60] sm:$0xf]
  %v2439 = vld [vmem:[%s17 + $0x64] sm:$0xf]
  %v2440 = vld [vmem:[%s17 + $0x68] sm:$0xf]
  %v2441 = vld [vmem:[%s17 + $0x6c] sm:$0xf]
  %v2442 = vld [vmem:[%s17 + $0x70] sm:$0xf]
  %v2443 = vld [vmem:[%s17 + $0x74] sm:$0xf]
  %v2444 = vld [vmem:[%s17 + $0x78] sm:$0xf]
  %v2445 = vld [vmem:[%s17 + $0x7c] sm:$0xf]
  %v2446 = vld [vmem:[%s17 + $0x80] sm:$0xf]
  %v2447 = vld [vmem:[%s17 + $0x84] sm:$0xf]
  %v2448 = vld [vmem:[%s17 + $0x88] sm:$0xf]
  %v2449 = vld [vmem:[%s17 + $0x8c] sm:$0xf]
  %v2450 = vld [vmem:[%s17 + $0x90] sm:$0xf]
  %v2451 = vld [vmem:[%s17 + $0x94] sm:$0xf]
  %v2452 = vld [vmem:[%s17 + $0x98] sm:$0xf]
  %v2453 = vld [vmem:[%s17 + $0x9c] sm:$0xf]
  %v2454 = vld [vmem:[%s17 + $0xa0] sm:$0xf]
  %v2455 = vld [vmem:[%s17 + $0xa4] sm:$0xf]
  %v2456 = vld [vmem:[%s17 + $0xa8] sm:$0xf]
  %v2457 = vld [vmem:[%s17 + $0xac] sm:$0xf]
  %v2458 = vld [vmem:[%s17 + $0xb0] sm:$0xf]
  %v2459 = vld [vmem:[%s17 + $0xb4] sm:$0xf]
  %v2460 = vld [vmem:[%s17 + $0xb8] sm:$0xf]
  %v2461 = vld [vmem:[%s17 + $0xbc] sm:$0xf]
  %v2462 = vld [vmem:[%s17 + $0xc0] sm:$0xf]
  %v2463 = vld [vmem:[%s17 + $0xc4] sm:$0xf]
  %v2464 = vld [vmem:[%s17 + $0xc8] sm:$0xf]
  %v2465 = vld [vmem:[%s17 + $0xcc] sm:$0xf]
  %v2466 = vld [vmem:[%s17 + $0xd0] sm:$0xf]
  %v2467 = vld [vmem:[%s17 + $0xd4] sm:$0xf]
  %v2468 = vld [vmem:[%s17 + $0xd8] sm:$0xf]
  %v2469 = vld [vmem:[%s17 + $0xdc] sm:$0xf]
  %v2470 = vld [vmem:[%s17 + $0xe0] sm:$0xf]
  %v2471 = vld [vmem:[%s17 + $0xe4] sm:$0xf]
  %v2472 = vld [vmem:[%s17 + $0xe8] sm:$0xf]
  %v2473 = vld [vmem:[%s17 + $0xec] sm:$0xf]
  %v2474 = vld [vmem:[%s17 + $0xf0] sm:$0xf]
  %v2475 = vld [vmem:[%s17 + $0xf4] sm:$0xf]
  %v2476 = vld [vmem:[%s17 + $0xf8] sm:$0xf]
  %v2477 = vld [vmem:[%s17 + $0xfc] sm:$0xf]
  %v2478 = vld [vmem:[%s17 + $0x100] sm:$0xf]
  %v2479 = vld [vmem:[%s17 + $0x104] sm:$0xf]
  %v2480 = vld [vmem:[%s17 + $0x108] sm:$0xf]
  %v2481 = vld [vmem:[%s17 + $0x10c] sm:$0xf]
  %v2482 = vld [vmem:[%s17 + $0x110] sm:$0xf]
  %v2483 = vld [vmem:[%s17 + $0x114] sm:$0xf]
  %v2484 = vld [vmem:[%s17 + $0x118] sm:$0xf]
  %v2485 = vld [vmem:[%s17 + $0x11c] sm:$0xf]
  %v2486 = vld [vmem:[%s17 + $0x120] sm:$0xf]
  %v2487 = vld [vmem:[%s17 + $0x124] sm:$0xf]
  %v2488 = vld [vmem:[%s17 + $0x128] sm:$0xf]
  %v2489 = vld [vmem:[%s17 + $0x12c] sm:$0xf]
  %v2490 = vld [vmem:[%s17 + $0x130] sm:$0xf]
  %v2491 = vld [vmem:[%s17 + $0x134] sm:$0xf]
  %v2492 = vld [vmem:[%s17 + $0x138] sm:$0xf]
  %v2493 = vld [vmem:[%s17 + $0x13c] sm:$0xf]
  %v2494 = vld [vmem:[%s17 + $0x140] sm:$0xf]
  %v2495 = vld [vmem:[%s17 + $0x144] sm:$0xf]
  %v2496 = vld [vmem:[%s17 + $0x148] sm:$0xf]
  %v2497 = vld [vmem:[%s17 + $0x14c] sm:$0xf]
  %v2498 = vld [vmem:[%s17 + $0x150] sm:$0xf]
  %v2499 = vld [vmem:[%s17 + $0x154] sm:$0xf]
  %v2500 = vld [vmem:[%s17 + $0x158] sm:$0xf]
  %v2501 = vld [vmem:[%s17 + $0x15c] sm:$0xf]
  %v2502 = vld [vmem:[%s17 + $0x160] sm:$0xf]
  %v2503 = vld [vmem:[%s17 + $0x164] sm:$0xf]
  %v2504 = vld [vmem:[%s17 + $0x168] sm:$0xf]
  %v2505 = vld [vmem:[%s17 + $0x16c] sm:$0xf]
  %v2506 = vld [vmem:[%s17 + $0x170] sm:$0xf]
  %v2507 = vld [vmem:[%s17 + $0x174] sm:$0xf]
  %v2508 = vld [vmem:[%s17 + $0x178] sm:$0xf]
  %v2509 = vld [vmem:[%s17 + $0x17c] sm:$0xf]
  %v2510 = vld [vmem:[%s17 + $0x180] sm:$0xf]
  %v2511 = vld [vmem:[%s17 + $0x184] sm:$0xf]
  %v2512 = vld [vmem:[%s17 + $0x188] sm:$0xf]
  %v2513 = vld [vmem:[%s17 + $0x18c] sm:$0xf]
  %v2514 = vld [vmem:[%s17 + $0x190] sm:$0xf]
  %v2515 = vld [vmem:[%s17 + $0x194] sm:$0xf]
  %v2516 = vld [vmem:[%s17 + $0x198] sm:$0xf]
  %v2517 = vld [vmem:[%s17 + $0x19c] sm:$0xf]
  %v2518 = vld [vmem:[%s17 + $0x1a0] sm:$0xf]
  %v2519 = vld [vmem:[%s17 + $0x1a4] sm:$0xf]
  %v2520 = vld [vmem:[%s17 + $0x1a8] sm:$0xf]
  %v2521 = vld [vmem:[%s17 + $0x1ac] sm:$0xf]
  %v2522 = vld [vmem:[%s17 + $0x1b0] sm:$0xf]
  %v2523 = vld [vmem:[%s17 + $0x1b4] sm:$0xf]
  %v2524 = vld [vmem:[%s17 + $0x1b8] sm:$0xf]
  %v2525 = vld [vmem:[%s17 + $0x1bc] sm:$0xf]
  %v2526 = vld [vmem:[%s17 + $0x1c0] sm:$0xf]
  %v2527 = vld [vmem:[%s17 + $0x1c4] sm:$0xf]
  %v2528 = vld [vmem:[%s17 + $0x1c8] sm:$0xf]
  %v2529 = vld [vmem:[%s17 + $0x1cc] sm:$0xf]
  %v2530 = vld [vmem:[%s17 + $0x1d0] sm:$0xf]
  %v2531 = vld [vmem:[%s17 + $0x1d4] sm:$0xf]
  %v2532 = vld [vmem:[%s17 + $0x1d8] sm:$0xf]
  %v2533 = vld [vmem:[%s17 + $0x1dc] sm:$0xf]
  %v2534 = vld [vmem:[%s17 + $0x1e0] sm:$0xf]
  %v2535 = vld [vmem:[%s17 + $0x1e4] sm:$0xf]
  %v2536 = vld [vmem:[%s17 + $0x1e8] sm:$0xf]
  %v2537 = vld [vmem:[%s17 + $0x1ec] sm:$0xf]
  %v2538 = vld [vmem:[%s17 + $0x1f0] sm:$0xf]
  %v2539 = vld [vmem:[%s17 + $0x1f4] sm:$0xf]
  %v2540 = vld [vmem:[%s17 + $0x1f8] sm:$0xf]
  %v2541 = vld [vmem:[%s17 + $0x1fc] sm:$0xf]
  %v2542 = vld [vmem:[%s17 + $0x200] sm:$0xf]
  %v2543 = vld [vmem:[%s17 + $0x204] sm:$0xf]
  %v2544 = vld [vmem:[%s17 + $0x208] sm:$0xf]
  %v2545 = vld [vmem:[%s17 + $0x20c] sm:$0xf]
  %v2546 = vld [vmem:[%s17 + $0x210] sm:$0xf]
  %v2547 = vld [vmem:[%s17 + $0x214] sm:$0xf]
  %v2548 = vld [vmem:[%s17 + $0x218] sm:$0xf]
  %v2549 = vld [vmem:[%s17 + $0x21c] sm:$0xf]
  %v2550 = vld [vmem:[%s17 + $0x220] sm:$0xf]
  %v2551 = vld [vmem:[%s17 + $0x224] sm:$0xf]
  %v2552 = vld [vmem:[%s17 + $0x228] sm:$0xf]
  %v2553 = vld [vmem:[%s17 + $0x22c] sm:$0xf]
  %v2554 = vld [vmem:[%s17 + $0x230] sm:$0xf]
  %v2555 = vld [vmem:[%s17 + $0x234] sm:$0xf]
  %v2556 = vld [vmem:[%s17 + $0x238] sm:$0xf]
  %v2557 = vld [vmem:[%s17 + $0x23c] sm:$0xf]
  %v2558 = vld [vmem:[%s17 + $0x240] sm:$0xf]
  %v2559 = vld [vmem:[%s17 + $0x244] sm:$0xf]
  %v2560 = vld [vmem:[%s17 + $0x248] sm:$0xf]
  %v2561 = vld [vmem:[%s17 + $0x24c] sm:$0xf]
  %v2562 = vld [vmem:[%s17 + $0x250] sm:$0xf]
  %v2563 = vld [vmem:[%s17 + $0x254] sm:$0xf]
  %v2564 = vld [vmem:[%s17 + $0x258] sm:$0xf]
  %v2565 = vld [vmem:[%s17 + $0x25c] sm:$0xf]
  %v2566 = vld [vmem:[%s17 + $0x260] sm:$0xf]
  %v2567 = vld [vmem:[%s17 + $0x264] sm:$0xf]
  %v2568 = vld [vmem:[%s17 + $0x268] sm:$0xf]
  %v2569 = vld [vmem:[%s17 + $0x26c] sm:$0xf]
  %v2570 = vld [vmem:[%s17 + $0x270] sm:$0xf]
  %v2571 = vld [vmem:[%s17 + $0x274] sm:$0xf]
  %v2572 = vld [vmem:[%s17 + $0x278] sm:$0xf]
  %v2573 = vld [vmem:[%s17 + $0x27c] sm:$0xf]
  %v2574 = vld [vmem:[%s17 + $0x280] sm:$0xf]
  %v2575 = vld [vmem:[%s17 + $0x284] sm:$0xf]
  %v2576 = vld [vmem:[%s17 + $0x288] sm:$0xf]
  %v2577 = vld [vmem:[%s17 + $0x28c] sm:$0xf]
  %v2578 = vld [vmem:[%s17 + $0x290] sm:$0xf]
  %v2579 = vld [vmem:[%s17 + $0x294] sm:$0xf]
  %v2580 = vld [vmem:[%s17 + $0x298] sm:$0xf]
  %v2581 = vld [vmem:[%s17 + $0x29c] sm:$0xf]
  %v2582 = vld [vmem:[%s17 + $0x2a0] sm:$0xf]
  %v2583 = vld [vmem:[%s17 + $0x2a4] sm:$0xf]
  %v2584 = vld [vmem:[%s17 + $0x2a8] sm:$0xf]
  %v2585 = vld [vmem:[%s17 + $0x2ac] sm:$0xf]
  %v2586 = vld [vmem:[%s17 + $0x2b0] sm:$0xf]
  %v2587 = vld [vmem:[%s17 + $0x2b4] sm:$0xf]
  %v2588 = vld [vmem:[%s17 + $0x2b8] sm:$0xf]
  %v2589 = vld [vmem:[%s17 + $0x2bc] sm:$0xf]
  %v2590 = vld [vmem:[%s17 + $0x2c0] sm:$0xf]
  %v2591 = vld [vmem:[%s17 + $0x2c4] sm:$0xf]
  %v2592 = vld [vmem:[%s17 + $0x2c8] sm:$0xf]
  %v2593 = vld [vmem:[%s17 + $0x2cc] sm:$0xf]
  %v2594 = vld [vmem:[%s17 + $0x2d0] sm:$0xf]
  %v2595 = vld [vmem:[%s17 + $0x2d4] sm:$0xf]
  %v2596 = vld [vmem:[%s17 + $0x2d8] sm:$0xf]
  %v2597 = vld [vmem:[%s17 + $0x2dc] sm:$0xf]
  %v2598 = vld [vmem:[%s17 + $0x2e0] sm:$0xf]
  %v2599 = vld [vmem:[%s17 + $0x2e4] sm:$0xf]
  %v2600 = vld [vmem:[%s17 + $0x2e8] sm:$0xf]
  %v2601 = vld [vmem:[%s17 + $0x2ec] sm:$0xf]
  %v2602 = vld [vmem:[%s17 + $0x2f0] sm:$0xf]
  %v2603 = vld [vmem:[%s17 + $0x2f4] sm:$0xf]
  %v2604 = vld [vmem:[%s17 + $0x2f8] sm:$0xf]
  %v2605 = vld [vmem:[%s17 + $0x2fc] sm:$0xf]
  %v2606 = vld [vmem:[%s17 + $0x300] sm:$0xf]
  %v2607 = vld [vmem:[%s17 + $0x304] sm:$0xf]
  %v2608 = vld [vmem:[%s17 + $0x308] sm:$0xf]
  %v2609 = vld [vmem:[%s17 + $0x30c] sm:$0xf]
  %v2610 = vld [vmem:[%s17 + $0x310] sm:$0xf]
  %v2611 = vld [vmem:[%s17 + $0x314] sm:$0xf]
  %v2612 = vld [vmem:[%s17 + $0x318] sm:$0xf]
  %v2613 = vld [vmem:[%s17 + $0x31c] sm:$0xf]
  %v2614 = vld [vmem:[%s17 + $0x320] sm:$0xf]
  %v2615 = vld [vmem:[%s17 + $0x324] sm:$0xf]
  %v2616 = vld [vmem:[%s17 + $0x328] sm:$0xf]
  %v2617 = vld [vmem:[%s17 + $0x32c] sm:$0xf]
  %v2618 = vld [vmem:[%s17 + $0x330] sm:$0xf]
  %v2619 = vld [vmem:[%s17 + $0x334] sm:$0xf]
  %v2620 = vld [vmem:[%s17 + $0x338] sm:$0xf]
  %v2621 = vld [vmem:[%s17 + $0x33c] sm:$0xf]
  %v2622 = vld [vmem:[%s17 + $0x340] sm:$0xf]
  %v2623 = vld [vmem:[%s17 + $0x344] sm:$0xf]
  %v2624 = vld [vmem:[%s17 + $0x348] sm:$0xf]
  %v2625 = vld [vmem:[%s17 + $0x34c] sm:$0xf]
  %v2626 = vld [vmem:[%s17 + $0x350] sm:$0xf]
  %v2627 = vld [vmem:[%s17 + $0x354] sm:$0xf]
  %v2628 = vld [vmem:[%s17 + $0x358] sm:$0xf]
  %v2629 = vld [vmem:[%s17 + $0x35c] sm:$0xf]
  %v2630 = vld [vmem:[%s17 + $0x360] sm:$0xf]
  %v2631 = vld [vmem:[%s17 + $0x364] sm:$0xf]
  %v2632 = vld [vmem:[%s17 + $0x368] sm:$0xf]
  %v2633 = vld [vmem:[%s17 + $0x36c] sm:$0xf]
  %v2634 = vld [vmem:[%s17 + $0x370] sm:$0xf]
  %v2635 = vld [vmem:[%s17 + $0x374] sm:$0xf]
  %v2636 = vld [vmem:[%s17 + $0x378] sm:$0xf]
  %v2637 = vld [vmem:[%s17 + $0x37c] sm:$0xf]
  %v2638 = vld [vmem:[%s17 + $0x380] sm:$0xf]
  %v2639 = vld [vmem:[%s17 + $0x384] sm:$0xf]
  %v2640 = vld [vmem:[%s17 + $0x388] sm:$0xf]
  %v2641 = vld [vmem:[%s17 + $0x38c] sm:$0xf]
  %v2642 = vld [vmem:[%s17 + $0x390] sm:$0xf]
  %v2643 = vld [vmem:[%s17 + $0x394] sm:$0xf]
  %v2644 = vld [vmem:[%s17 + $0x398] sm:$0xf]
  %v2645 = vld [vmem:[%s17 + $0x39c] sm:$0xf]
  %v2646 = vld [vmem:[%s17 + $0x3a0] sm:$0xf]
  %v2647 = vld [vmem:[%s17 + $0x3a4] sm:$0xf]
  %v2648 = vld [vmem:[%s17 + $0x3a8] sm:$0xf]
  %v2649 = vld [vmem:[%s17 + $0x3ac] sm:$0xf]
  %v2650 = vld [vmem:[%s17 + $0x3b0] sm:$0xf]
  %v2651 = vld [vmem:[%s17 + $0x3b4] sm:$0xf]
  %v2652 = vld [vmem:[%s17 + $0x3b8] sm:$0xf]
  %v2653 = vld [vmem:[%s17 + $0x3bc] sm:$0xf]
  %v2654 = vld [vmem:[%s17 + $0x3c0] sm:$0xf]
  %v2655 = vld [vmem:[%s17 + $0x3c4] sm:$0xf]
  %v2656 = vld [vmem:[%s17 + $0x3c8] sm:$0xf]
  %v2657 = vld [vmem:[%s17 + $0x3cc] sm:$0xf]
  %v2658 = vld [vmem:[%s17 + $0x3d0] sm:$0xf]
  %v2659 = vld [vmem:[%s17 + $0x3d4] sm:$0xf]
  %v2660 = vld [vmem:[%s17 + $0x3d8] sm:$0xf]
  %v2661 = vld [vmem:[%s17 + $0x3dc] sm:$0xf]
  %v2662 = vld [vmem:[%s17 + $0x3e0] sm:$0xf]
  %v2663 = vld [vmem:[%s17 + $0x3e4] sm:$0xf]
  %v2664 = vld [vmem:[%s17 + $0x3e8] sm:$0xf]
  %v2665 = vld [vmem:[%s17 + $0x3ec] sm:$0xf]
  %v2666 = vld [vmem:[%s17 + $0x3f0] sm:$0xf]
  %v2667 = vld [vmem:[%s17 + $0x3f4] sm:$0xf]
  %v2668 = vld [vmem:[%s17 + $0x3f8] sm:$0xf]
  %v2669 = vld [vmem:[%s17 + $0x3fc] sm:$0xf]
  %v2670 = vld [vmem:[%s18] sm:$0x1]
  %v2672 = vlaneseq
  %v2673 = vshrl.u32 %v2672, 7
  %v2674 = vsub.s32 0, %v2673
  %v2675 = vrot.slane %v2670, %v2674
  %v2933 = vunpack.c.l.b16 %v2414
  %v2934 = vunpack.c.l.b16 %v2415
  %v2935 = vunpack.c.l.b16 %v2416
  %v2936 = vunpack.c.l.b16 %v2417
  %v2937 = vunpack.c.l.b16 %v2418
  %v2938 = vunpack.c.l.b16 %v2419
  %v2939 = vunpack.c.l.b16 %v2420
  %v2940 = vunpack.c.l.b16 %v2421
  %v2941 = vunpack.c.l.b16 %v2422
  %v2942 = vunpack.c.l.b16 %v2423
  %v2943 = vunpack.c.l.b16 %v2424
  %v2944 = vunpack.c.l.b16 %v2425
  %v2945 = vunpack.c.l.b16 %v2426
  %v2946 = vunpack.c.l.b16 %v2427
  %v2947 = vunpack.c.l.b16 %v2428
  %v2948 = vunpack.c.l.b16 %v2429
  %v2949 = vunpack.c.l.b16 %v2430
  %v2950 = vunpack.c.l.b16 %v2431
  %v2951 = vunpack.c.l.b16 %v2432
  %v2952 = vunpack.c.l.b16 %v2433
  %v2953 = vunpack.c.l.b16 %v2434
  %v2954 = vunpack.c.l.b16 %v2435
  %v2955 = vunpack.c.l.b16 %v2436
  %v2956 = vunpack.c.l.b16 %v2437
  %v2957 = vunpack.c.l.b16 %v2438
  %v2958 = vunpack.c.l.b16 %v2439
  %v2959 = vunpack.c.l.b16 %v2440
  %v2960 = vunpack.c.l.b16 %v2441
  %v2961 = vunpack.c.l.b16 %v2442
  %v2962 = vunpack.c.l.b16 %v2443
  %v2963 = vunpack.c.l.b16 %v2444
  %v2964 = vunpack.c.l.b16 %v2445
  %v2965 = vunpack.c.l.b16 %v2446
  %v2966 = vunpack.c.l.b16 %v2447
  %v2967 = vunpack.c.l.b16 %v2448
  %v2968 = vunpack.c.l.b16 %v2449
  %v2969 = vunpack.c.l.b16 %v2450
  %v2970 = vunpack.c.l.b16 %v2451
  %v2971 = vunpack.c.l.b16 %v2452
  %v2972 = vunpack.c.l.b16 %v2453
  %v2973 = vunpack.c.l.b16 %v2454
  %v2974 = vunpack.c.l.b16 %v2455
  %v2975 = vunpack.c.l.b16 %v2456
  %v2976 = vunpack.c.l.b16 %v2457
  %v2977 = vunpack.c.l.b16 %v2458
  %v2978 = vunpack.c.l.b16 %v2459
  %v2979 = vunpack.c.l.b16 %v2460
  %v2980 = vunpack.c.l.b16 %v2461
  %v2981 = vunpack.c.l.b16 %v2462
  %v2982 = vunpack.c.l.b16 %v2463
  %v2983 = vunpack.c.l.b16 %v2464
  %v2984 = vunpack.c.l.b16 %v2465
  %v2985 = vunpack.c.l.b16 %v2466
  %v2986 = vunpack.c.l.b16 %v2467
  %v2987 = vunpack.c.l.b16 %v2468
  %v2988 = vunpack.c.l.b16 %v2469
  %v2989 = vunpack.c.l.b16 %v2470
  %v2990 = vunpack.c.l.b16 %v2471
  %v2991 = vunpack.c.l.b16 %v2472
  %v2992 = vunpack.c.l.b16 %v2473
  %v2993 = vunpack.c.l.b16 %v2474
  %v2994 = vunpack.c.l.b16 %v2475
  %v2995 = vunpack.c.l.b16 %v2476
  %v2996 = vunpack.c.l.b16 %v2477
  %v2997 = vunpack.c.l.b16 %v2478
  %v2998 = vunpack.c.l.b16 %v2479
  %v2999 = vunpack.c.l.b16 %v2480
  %v3000 = vunpack.c.l.b16 %v2481
  %v3001 = vunpack.c.l.b16 %v2482
  %v3002 = vunpack.c.l.b16 %v2483
  %v3003 = vunpack.c.l.b16 %v2484
  %v3004 = vunpack.c.l.b16 %v2485
  %v3005 = vunpack.c.l.b16 %v2486
  %v3006 = vunpack.c.l.b16 %v2487
  %v3007 = vunpack.c.l.b16 %v2488
  %v3008 = vunpack.c.l.b16 %v2489
  %v3009 = vunpack.c.l.b16 %v2490
  %v3010 = vunpack.c.l.b16 %v2491
  %v3011 = vunpack.c.l.b16 %v2492
  %v3012 = vunpack.c.l.b16 %v2493
  %v3013 = vunpack.c.l.b16 %v2494
  %v3014 = vunpack.c.l.b16 %v2495
  %v3015 = vunpack.c.l.b16 %v2496
  %v3016 = vunpack.c.l.b16 %v2497
  %v3017 = vunpack.c.l.b16 %v2498
  %v3018 = vunpack.c.l.b16 %v2499
  %v3019 = vunpack.c.l.b16 %v2500
  %v3020 = vunpack.c.l.b16 %v2501
  %v3021 = vunpack.c.l.b16 %v2502
  %v3022 = vunpack.c.l.b16 %v2503
  %v3023 = vunpack.c.l.b16 %v2504
  %v3024 = vunpack.c.l.b16 %v2505
  %v3025 = vunpack.c.l.b16 %v2506
  %v3026 = vunpack.c.l.b16 %v2507
  %v3027 = vunpack.c.l.b16 %v2508
  %v3028 = vunpack.c.l.b16 %v2509
  %v3029 = vunpack.c.l.b16 %v2510
  %v3030 = vunpack.c.l.b16 %v2511
  %v3031 = vunpack.c.l.b16 %v2512
  %v3032 = vunpack.c.l.b16 %v2513
  %v3033 = vunpack.c.l.b16 %v2514
  %v3034 = vunpack.c.l.b16 %v2515
  %v3035 = vunpack.c.l.b16 %v2516
  %v3036 = vunpack.c.l.b16 %v2517
  %v3037 = vunpack.c.l.b16 %v2518
  %v3038 = vunpack.c.l.b16 %v2519
  %v3039 = vunpack.c.l.b16 %v2520
  %v3040 = vunpack.c.l.b16 %v2521
  %v3041 = vunpack.c.l.b16 %v2522
  %v3042 = vunpack.c.l.b16 %v2523
  %v3043 = vunpack.c.l.b16 %v2524
  %v3044 = vunpack.c.l.b16 %v2525
  %v3045 = vunpack.c.l.b16 %v2526
  %v3046 = vunpack.c.l.b16 %v2527
  %v3047 = vunpack.c.l.b16 %v2528
  %v3048 = vunpack.c.l.b16 %v2529
  %v3049 = vunpack.c.l.b16 %v2530
  %v3050 = vunpack.c.l.b16 %v2531
  %v3051 = vunpack.c.l.b16 %v2532
  %v3052 = vunpack.c.l.b16 %v2533
  %v3053 = vunpack.c.l.b16 %v2534
  %v3054 = vunpack.c.l.b16 %v2535
  %v3055 = vunpack.c.l.b16 %v2536
  %v3056 = vunpack.c.l.b16 %v2537
  %v3057 = vunpack.c.l.b16 %v2538
  %v3058 = vunpack.c.l.b16 %v2539
  %v3059 = vunpack.c.l.b16 %v2540
  %v3060 = vunpack.c.l.b16 %v2541
  %v3061 = vunpack.c.l.b16 %v2542
  %v3062 = vunpack.c.l.b16 %v2543
  %v3063 = vunpack.c.l.b16 %v2544
  %v3064 = vunpack.c.l.b16 %v2545
  %v3065 = vunpack.c.l.b16 %v2546
  %v3066 = vunpack.c.l.b16 %v2547
  %v3067 = vunpack.c.l.b16 %v2548
  %v3068 = vunpack.c.l.b16 %v2549
  %v3069 = vunpack.c.l.b16 %v2550
  %v3070 = vunpack.c.l.b16 %v2551
  %v3071 = vunpack.c.l.b16 %v2552
  %v3072 = vunpack.c.l.b16 %v2553
  %v3073 = vunpack.c.l.b16 %v2554
  %v3074 = vunpack.c.l.b16 %v2555
  %v3075 = vunpack.c.l.b16 %v2556
  %v3076 = vunpack.c.l.b16 %v2557
  %v3077 = vunpack.c.l.b16 %v2558
  %v3078 = vunpack.c.l.b16 %v2559
  %v3079 = vunpack.c.l.b16 %v2560
  %v3080 = vunpack.c.l.b16 %v2561
  %v3081 = vunpack.c.l.b16 %v2562
  %v3082 = vunpack.c.l.b16 %v2563
  %v3083 = vunpack.c.l.b16 %v2564
  %v3084 = vunpack.c.l.b16 %v2565
  %v3085 = vunpack.c.l.b16 %v2566
  %v3086 = vunpack.c.l.b16 %v2567
  %v3087 = vunpack.c.l.b16 %v2568
  %v3088 = vunpack.c.l.b16 %v2569
  %v3089 = vunpack.c.l.b16 %v2570
  %v3090 = vunpack.c.l.b16 %v2571
  %v3091 = vunpack.c.l.b16 %v2572
  %v3092 = vunpack.c.l.b16 %v2573
  %v3093 = vunpack.c.l.b16 %v2574
  %v3094 = vunpack.c.l.b16 %v2575
  %v3095 = vunpack.c.l.b16 %v2576
  %v3096 = vunpack.c.l.b16 %v2577
  %v3097 = vunpack.c.l.b16 %v2578
  %v3098 = vunpack.c.l.b16 %v2579
  %v3099 = vunpack.c.l.b16 %v2580
  %v3100 = vunpack.c.l.b16 %v2581
  %v3101 = vunpack.c.l.b16 %v2582
  %v3102 = vunpack.c.l.b16 %v2583
  %v3103 = vunpack.c.l.b16 %v2584
  %v3104 = vunpack.c.l.b16 %v2585
  %v3105 = vunpack.c.l.b16 %v2586
  %v3106 = vunpack.c.l.b16 %v2587
  %v3107 = vunpack.c.l.b16 %v2588
  %v3108 = vunpack.c.l.b16 %v2589
  %v3109 = vunpack.c.l.b16 %v2590
  %v3110 = vunpack.c.l.b16 %v2591
  %v3111 = vunpack.c.l.b16 %v2592
  %v3112 = vunpack.c.l.b16 %v2593
  %v3113 = vunpack.c.l.b16 %v2594
  %v3114 = vunpack.c.l.b16 %v2595
  %v3115 = vunpack.c.l.b16 %v2596
  %v3116 = vunpack.c.l.b16 %v2597
  %v3117 = vunpack.c.l.b16 %v2598
  %v3118 = vunpack.c.l.b16 %v2599
  %v3119 = vunpack.c.l.b16 %v2600
  %v3120 = vunpack.c.l.b16 %v2601
  %v3121 = vunpack.c.l.b16 %v2602
  %v3122 = vunpack.c.l.b16 %v2603
  %v3123 = vunpack.c.l.b16 %v2604
  %v3124 = vunpack.c.l.b16 %v2605
  %v3125 = vunpack.c.l.b16 %v2606
  %v3126 = vunpack.c.l.b16 %v2607
  %v3127 = vunpack.c.l.b16 %v2608
  %v3128 = vunpack.c.l.b16 %v2609
  %v3129 = vunpack.c.l.b16 %v2610
  %v3130 = vunpack.c.l.b16 %v2611
  %v3131 = vunpack.c.l.b16 %v2612
  %v3132 = vunpack.c.l.b16 %v2613
  %v3133 = vunpack.c.l.b16 %v2614
  %v3134 = vunpack.c.l.b16 %v2615
  %v3135 = vunpack.c.l.b16 %v2616
  %v3136 = vunpack.c.l.b16 %v2617
  %v3137 = vunpack.c.l.b16 %v2618
  %v3138 = vunpack.c.l.b16 %v2619
  %v3139 = vunpack.c.l.b16 %v2620
  %v3140 = vunpack.c.l.b16 %v2621
  %v3141 = vunpack.c.l.b16 %v2622
  %v3142 = vunpack.c.l.b16 %v2623
  %v3143 = vunpack.c.l.b16 %v2624
  %v3144 = vunpack.c.l.b16 %v2625
  %v3145 = vunpack.c.l.b16 %v2626
  %v3146 = vunpack.c.l.b16 %v2627
  %v3147 = vunpack.c.l.b16 %v2628
  %v3148 = vunpack.c.l.b16 %v2629
  %v3149 = vunpack.c.l.b16 %v2630
  %v3150 = vunpack.c.l.b16 %v2631
  %v3151 = vunpack.c.l.b16 %v2632
  %v3152 = vunpack.c.l.b16 %v2633
  %v3153 = vunpack.c.l.b16 %v2634
  %v3154 = vunpack.c.l.b16 %v2635
  %v3155 = vunpack.c.l.b16 %v2636
  %v3156 = vunpack.c.l.b16 %v2637
  %v3157 = vunpack.c.l.b16 %v2638
  %v3158 = vunpack.c.l.b16 %v2639
  %v3159 = vunpack.c.l.b16 %v2640
  %v3160 = vunpack.c.l.b16 %v2641
  %v3161 = vunpack.c.l.b16 %v2642
  %v3162 = vunpack.c.l.b16 %v2643
  %v3163 = vunpack.c.l.b16 %v2644
  %v3164 = vunpack.c.l.b16 %v2645
  %v3165 = vunpack.c.l.b16 %v2646
  %v3166 = vunpack.c.l.b16 %v2647
  %v3167 = vunpack.c.l.b16 %v2648
  %v3168 = vunpack.c.l.b16 %v2649
  %v3169 = vunpack.c.l.b16 %v2650
  %v3170 = vunpack.c.l.b16 %v2651
  %v3171 = vunpack.c.l.b16 %v2652
  %v3172 = vunpack.c.l.b16 %v2653
  %v3173 = vunpack.c.l.b16 %v2654
  %v3174 = vunpack.c.l.b16 %v2655
  %v3175 = vunpack.c.l.b16 %v2656
  %v3176 = vunpack.c.l.b16 %v2657
  %v3177 = vunpack.c.l.b16 %v2658
  %v3178 = vunpack.c.l.b16 %v2659
  %v3179 = vunpack.c.l.b16 %v2660
  %v3180 = vunpack.c.l.b16 %v2661
  %v3181 = vunpack.c.l.b16 %v2662
  %v3182 = vunpack.c.l.b16 %v2663
  %v3183 = vunpack.c.l.b16 %v2664
  %v3184 = vunpack.c.l.b16 %v2665
  %v3185 = vunpack.c.l.b16 %v2666
  %v3186 = vunpack.c.l.b16 %v2667
  %v3187 = vunpack.c.l.b16 %v2668
  %v3188 = vunpack.c.l.b16 %v2669
  %v3189 = vpack.c.b16 %v2934, %v2933
  %v3190 = vpack.c.b16 %v2936, %v2935
  %v3191 = vpack.c.b16 %v2938, %v2937
  %v3192 = vpack.c.b16 %v2940, %v2939
  %v3193 = vpack.c.b16 %v2942, %v2941
  %v3194 = vpack.c.b16 %v2944, %v2943
  %v3195 = vpack.c.b16 %v2946, %v2945
  %v3196 = vpack.c.b16 %v2948, %v2947
  %v3197 = vpack.c.b16 %v2950, %v2949
  %v3198 = vpack.c.b16 %v2952, %v2951
  %v3199 = vpack.c.b16 %v2954, %v2953
  %v3200 = vpack.c.b16 %v2956, %v2955
  %v3201 = vpack.c.b16 %v2958, %v2957
  %v3202 = vpack.c.b16 %v2960, %v2959
  %v3203 = vpack.c.b16 %v2962, %v2961
  %v3204 = vpack.c.b16 %v2964, %v2963
  %v3205 = vpack.c.b16 %v2966, %v2965
  %v3206 = vpack.c.b16 %v2968, %v2967
  %v3207 = vpack.c.b16 %v2970, %v2969
  %v3208 = vpack.c.b16 %v2972, %v2971
  %v3209 = vpack.c.b16 %v2974, %v2973
  %v3210 = vpack.c.b16 %v2976, %v2975
  %v3211 = vpack.c.b16 %v2978, %v2977
  %v3212 = vpack.c.b16 %v2980, %v2979
  %v3213 = vpack.c.b16 %v2982, %v2981
  %v3214 = vpack.c.b16 %v2984, %v2983
  %v3215 = vpack.c.b16 %v2986, %v2985
  %v3216 = vpack.c.b16 %v2988, %v2987
  %v3217 = vpack.c.b16 %v2990, %v2989
  %v3218 = vpack.c.b16 %v2992, %v2991
  %v3219 = vpack.c.b16 %v2994, %v2993
  %v3220 = vpack.c.b16 %v2996, %v2995
  %v3221 = vpack.c.b16 %v2998, %v2997
  %v3222 = vpack.c.b16 %v3000, %v2999
  %v3223 = vpack.c.b16 %v3002, %v3001
  %v3224 = vpack.c.b16 %v3004, %v3003
  %v3225 = vpack.c.b16 %v3006, %v3005
  %v3226 = vpack.c.b16 %v3008, %v3007
  %v3227 = vpack.c.b16 %v3010, %v3009
  %v3228 = vpack.c.b16 %v3012, %v3011
  %v3229 = vpack.c.b16 %v3014, %v3013
  %v3230 = vpack.c.b16 %v3016, %v3015
  %v3231 = vpack.c.b16 %v3018, %v3017
  %v3232 = vpack.c.b16 %v3020, %v3019
  %v3233 = vpack.c.b16 %v3022, %v3021
  %v3234 = vpack.c.b16 %v3024, %v3023
  %v3235 = vpack.c.b16 %v3026, %v3025
  %v3236 = vpack.c.b16 %v3028, %v3027
  %v3237 = vpack.c.b16 %v3030, %v3029
  %v3238 = vpack.c.b16 %v3032, %v3031
  %v3239 = vpack.c.b16 %v3034, %v3033
  %v3240 = vpack.c.b16 %v3036, %v3035
  %v3241 = vpack.c.b16 %v3038, %v3037
  %v3242 = vpack.c.b16 %v3040, %v3039
  %v3243 = vpack.c.b16 %v3042, %v3041
  %v3244 = vpack.c.b16 %v3044, %v3043
  %v3245 = vpack.c.b16 %v3046, %v3045
  %v3246 = vpack.c.b16 %v3048, %v3047
  %v3247 = vpack.c.b16 %v3050, %v3049
  %v3248 = vpack.c.b16 %v3052, %v3051
  %v3249 = vpack.c.b16 %v3054, %v3053
  %v3250 = vpack.c.b16 %v3056, %v3055
  %v3251 = vpack.c.b16 %v3058, %v3057
  %v3252 = vpack.c.b16 %v3060, %v3059
  %v3253 = vpack.c.b16 %v3062, %v3061
  %v3254 = vpack.c.b16 %v3064, %v3063
  %v3255 = vpack.c.b16 %v3066, %v3065
  %v3256 = vpack.c.b16 %v3068, %v3067
  %v3257 = vpack.c.b16 %v3070, %v3069
  %v3258 = vpack.c.b16 %v3072, %v3071
  %v3259 = vpack.c.b16 %v3074, %v3073
  %v3260 = vpack.c.b16 %v3076, %v3075
  %v3261 = vpack.c.b16 %v3078, %v3077
  %v3262 = vpack.c.b16 %v3080, %v3079
  %v3263 = vpack.c.b16 %v3082, %v3081
  %v3264 = vpack.c.b16 %v3084, %v3083
  %v3265 = vpack.c.b16 %v3086, %v3085
  %v3266 = vpack.c.b16 %v3088, %v3087
  %v3267 = vpack.c.b16 %v3090, %v3089
  %v3268 = vpack.c.b16 %v3092, %v3091
  %v3269 = vpack.c.b16 %v3094, %v3093
  %v3270 = vpack.c.b16 %v3096, %v3095
  %v3271 = vpack.c.b16 %v3098, %v3097
  %v3272 = vpack.c.b16 %v3100, %v3099
  %v3273 = vpack.c.b16 %v3102, %v3101
  %v3274 = vpack.c.b16 %v3104, %v3103
  %v3275 = vpack.c.b16 %v3106, %v3105
  %v3276 = vpack.c.b16 %v3108, %v3107
  %v3277 = vpack.c.b16 %v3110, %v3109
  %v3278 = vpack.c.b16 %v3112, %v3111
  %v3279 = vpack.c.b16 %v3114, %v3113
  %v3280 = vpack.c.b16 %v3116, %v3115
  %v3281 = vpack.c.b16 %v3118, %v3117
  %v3282 = vpack.c.b16 %v3120, %v3119
  %v3283 = vpack.c.b16 %v3122, %v3121
  %v3284 = vpack.c.b16 %v3124, %v3123
  %v3285 = vpack.c.b16 %v3126, %v3125
  %v3286 = vpack.c.b16 %v3128, %v3127
  %v3287 = vpack.c.b16 %v3130, %v3129
  %v3288 = vpack.c.b16 %v3132, %v3131
  %v3289 = vpack.c.b16 %v3134, %v3133
  %v3290 = vpack.c.b16 %v3136, %v3135
  %v3291 = vpack.c.b16 %v3138, %v3137
  %v3292 = vpack.c.b16 %v3140, %v3139
  %v3293 = vpack.c.b16 %v3142, %v3141
  %v3294 = vpack.c.b16 %v3144, %v3143
  %v3295 = vpack.c.b16 %v3146, %v3145
  %v3296 = vpack.c.b16 %v3148, %v3147
  %v3297 = vpack.c.b16 %v3150, %v3149
  %v3298 = vpack.c.b16 %v3152, %v3151
  %v3299 = vpack.c.b16 %v3154, %v3153
  %v3300 = vpack.c.b16 %v3156, %v3155
  %v3301 = vpack.c.b16 %v3158, %v3157
  %v3302 = vpack.c.b16 %v3160, %v3159
  %v3303 = vpack.c.b16 %v3162, %v3161
  %v3304 = vpack.c.b16 %v3164, %v3163
  %v3305 = vpack.c.b16 %v3166, %v3165
  %v3306 = vpack.c.b16 %v3168, %v3167
  %v3307 = vpack.c.b16 %v3170, %v3169
  %v3308 = vpack.c.b16 %v3172, %v3171
  %v3309 = vpack.c.b16 %v3174, %v3173
  %v3310 = vpack.c.b16 %v3176, %v3175
  %v3311 = vpack.c.b16 %v3178, %v3177
  %v3312 = vpack.c.b16 %v3180, %v3179
  %v3313 = vpack.c.b16 %v3182, %v3181
  %v3314 = vpack.c.b16 %v3184, %v3183
  %v3315 = vpack.c.b16 %v3186, %v3185
  %v3316 = vpack.c.b16 %v3188, %v3187
  %3445 = vmatprep.subr.bf16.mxu0 0
  %3446 = vmatpush1.bf16.msra.mxu0 %v3189
  %3447 = vmatprep.subr.bf16.mxu0 0
  %3448 = vmatpush1.bf16.msra.mxu0 %v3190
  %3449 = vmatprep.subr.bf16.mxu0 0
  %3450 = vmatpush1.bf16.msra.mxu0 %v3191
  %3451 = vmatprep.subr.bf16.mxu0 0
  %3452 = vmatpush1.bf16.msra.mxu0 %v3192
  %3453 = vmatprep.subr.bf16.mxu0 0
  %3454 = vmatpush1.bf16.msra.mxu0 %v3193
  %3455 = vmatprep.subr.bf16.mxu0 0
  %3456 = vmatpush1.bf16.msra.mxu0 %v3194
  %3457 = vmatprep.subr.bf16.mxu0 0
  %3458 = vmatpush1.bf16.msra.mxu0 %v3195
  %3459 = vmatprep.subr.bf16.mxu0 0
  %3460 = vmatpush1.bf16.msra.mxu0 %v3196
  %3461 = vmatprep.subr.bf16.mxu0 0
  %3462 = vmatpush1.bf16.msra.mxu0 %v3197
  %3463 = vmatprep.subr.bf16.mxu0 0
  %3464 = vmatpush1.bf16.msra.mxu0 %v3198
  %3465 = vmatprep.subr.bf16.mxu0 0
  %3466 = vmatpush1.bf16.msra.mxu0 %v3199
  %3467 = vmatprep.subr.bf16.mxu0 0
  %3468 = vmatpush1.bf16.msra.mxu0 %v3200
  %3469 = vmatprep.subr.bf16.mxu0 0
  %3470 = vmatpush1.bf16.msra.mxu0 %v3201
  %3471 = vmatprep.subr.bf16.mxu0 0
  %3472 = vmatpush1.bf16.msra.mxu0 %v3202
  %3473 = vmatprep.subr.bf16.mxu0 0
  %3474 = vmatpush1.bf16.msra.mxu0 %v3203
  %3475 = vmatprep.subr.bf16.mxu0 0
  %3476 = vmatpush1.bf16.msra.mxu0 %v3204
  %3477 = vmatprep.mubr.bf16.mxu0 %v2383
  %3478 = vmatmul.mubr.bf16.gmra.mrb[0].mxu0 %v2382
  %v3479 = vpop.f32.mrb[0].mxu0
  %v3480 = vadd.f32 %v2675, %v3479
  %v3481 = vpop.f32.mrb[0].mxu0
  %v3482 = vpop.f32.mrb[0].mxu0
  %v3483 = vadd.f32 %v2675, %v3482
  %v3484 = vpop.f32.mrb[0].mxu0
  %3485 = vmatprep.mubr.bf16.mxu0 %v2399
  %3486 = vmatmul.mubr.bf16.gmra.mrb[0].mxu0 %v2398
  %v3487 = vpop.f32.mrb[0].mxu0
  %v3488 = vadd.f32 %v2675, %v3487
  %v3489 = vpop.f32.mrb[0].mxu0
  %v3490 = vpop.f32.mrb[0].mxu0
  %v3491 = vadd.f32 %v2675, %v3490
  %v3492 = vpop.f32.mrb[0].mxu0
  %3493 = vdwg.mxu0
  %3494 = vmatprep.subr.bf16.mxu0 0
  %3495 = vmatpush1.bf16.msra.mxu0 %v3205
  %3496 = vmatprep.subr.bf16.mxu0 0
  %3497 = vmatpush1.bf16.msra.mxu0 %v3206
  %3498 = vmatprep.subr.bf16.mxu0 0
  %3499 = vmatpush1.bf16.msra.mxu0 %v3207
  %3500 = vmatprep.subr.bf16.mxu0 0
  %3501 = vmatpush1.bf16.msra.mxu0 %v3208
  %3502 = vmatprep.subr.bf16.mxu0 0
  %3503 = vmatpush1.bf16.msra.mxu0 %v3209
  %3504 = vmatprep.subr.bf16.mxu0 0
  %3505 = vmatpush1.bf16.msra.mxu0 %v3210
  %3506 = vmatprep.subr.bf16.mxu0 0
  %3507 = vmatpush1.bf16.msra.mxu0 %v3211
  %3508 = vmatprep.subr.bf16.mxu0 0
  %3509 = vmatpush1.bf16.msra.mxu0 %v3212
  %3510 = vmatprep.subr.bf16.mxu0 0
  %3511 = vmatpush1.bf16.msra.mxu0 %v3213
  %3512 = vmatprep.subr.bf16.mxu0 0
  %3513 = vmatpush1.bf16.msra.mxu0 %v3214
  %3514 = vmatprep.subr.bf16.mxu0 0
  %3515 = vmatpush1.bf16.msra.mxu0 %v3215
  %3516 = vmatprep.subr.bf16.mxu0 0
  %3517 = vmatpush1.bf16.msra.mxu0 %v3216
  %3518 = vmatprep.subr.bf16.mxu0 0
  %3519 = vmatpush1.bf16.msra.mxu0 %v3217
  %3520 = vmatprep.subr.bf16.mxu0 0
  %3521 = vmatpush1.bf16.msra.mxu0 %v3218
  %3522 = vmatprep.subr.bf16.mxu0 0
  %3523 = vmatpush1.bf16.msra.mxu0 %v3219
  %3524 = vmatprep.subr.bf16.mxu0 0
  %3525 = vmatpush1.bf16.msra.mxu0 %v3220
  %3526 = vmatprep.mubr.bf16.mxu0 %v2385
  %3527 = vmatmul.mubr.bf16.gmra.mrb[0].mxu0 %v2384
  %v3528 = vpop.f32.mrb[0].mxu0
  %v3529 = vadd.f32 %v3480, %v3528
  %v3530 = vpop.f32.mrb[0].mxu0
  %v3531 = vpop.f32.mrb[0].mxu0
  %v3532 = vadd.f32 %v3483, %v3531
  %v3533 = vpop.f32.mrb[0].mxu0
  %3534 = vmatprep.mubr.bf16.mxu0 %v2401
  %3535 = vmatmul.mubr.bf16.gmra.mrb[0].mxu0 %v2400
  %v3536 = vpop.f32.mrb[0].mxu0
  %v3537 = vadd.f32 %v3488, %v3536
  %v3538 = vpop.f32.mrb[0].mxu0
  %v3539 = vpop.f32.mrb[0].mxu0
  %v3540 = vadd.f32 %v3491, %v3539
  %v3541 = vpop.f32.mrb[0].mxu0
  %3542 = vdwg.mxu0
  %3543 = vmatprep.subr.bf16.mxu0 0
  %3544 = vmatpush1.bf16.msra.mxu0 %v3221
  %3545 = vmatprep.subr.bf16.mxu0 0
  %3546 = vmatpush1.bf16.msra.mxu0 %v3222
  %3547 = vmatprep.subr.bf16.mxu0 0
  %3548 = vmatpush1.bf16.msra.mxu0 %v3223
  %3549 = vmatprep.subr.bf16.mxu0 0
  %3550 = vmatpush1.bf16.msra.mxu0 %v3224
  %3551 = vmatprep.subr.bf16.mxu0 0
  %3552 = vmatpush1.bf16.msra.mxu0 %v3225
  %3553 = vmatprep.subr.bf16.mxu0 0
  %3554 = vmatpush1.bf16.msra.mxu0 %v3226
  %3555 = vmatprep.subr.bf16.mxu0 0
  %3556 = vmatpush1.bf16.msra.mxu0 %v3227
  %3557 = vmatprep.subr.bf16.mxu0 0
  %3558 = vmatpush1.bf16.msra.mxu0 %v3228
  %3559 = vmatprep.subr.bf16.mxu0 0
  %3560 = vmatpush1.bf16.msra.mxu0 %v3229
  %3561 = vmatprep.subr.bf16.mxu0 0
  %3562 = vmatpush1.bf16.msra.mxu0 %v3230
  %3563 = vmatprep.subr.bf16.mxu0 0
  %3564 = vmatpush1.bf16.msra.mxu0 %v3231
  %3565 = vmatprep.subr.bf16.mxu0 0
  %3566 = vmatpush1.bf16.msra.mxu0 %v3232
  %3567 = vmatprep.subr.bf16.mxu0 0
  %3568 = vmatpush1.bf16.msra.mxu0 %v3233
  %3569 = vmatprep.subr.bf16.mxu0 0
  %3570 = vmatpush1.bf16.msra.mxu0 %v3234
  %3571 = vmatprep.subr.bf16.mxu0 0
  %3572 = vmatpush1.bf16.msra.mxu0 %v3235
  %3573 = vmatprep.subr.bf16.mxu0 0
  %3574 = vmatpush1.bf16.msra.mxu0 %v3236
  %3575 = vmatprep.mubr.bf16.mxu0 %v2387
  %3576 = vmatmul.mubr.bf16.gmra.mrb[0].mxu0 %v2386
  %v3577 = vpop.f32.mrb[0].mxu0
  %v3578 = vadd.f32 %v3529, %v3577
  %v3579 = vpop.f32.mrb[0].mxu0
  %v3580 = vpop.f32.mrb[0].mxu0
  %v3581 = vadd.f32 %v3532, %v3580
  %v3582 = vpop.f32.mrb[0].mxu0
  %3583 = vmatprep.mubr.bf16.mxu0 %v2403
  %3584 = vmatmul.mubr.bf16.gmra.mrb[0].mxu0 %v2402
  %v3585 = vpop.f32.mrb[0].mxu0
  %v3586 = vadd.f32 %v3537, %v3585
  %v3587 = vpop.f32.mrb[0].mxu0
  %v3588 = vpop.f32.mrb[0].mxu0
  %v3589 = vadd.f32 %v3540, %v3588
  %v3590 = vpop.f32.mrb[0].mxu0
  %3591 = vdwg.mxu0
  %3592 = vmatprep.subr.bf16.mxu0 0
  %3593 = vmatpush1.bf16.msra.mxu0 %v3237
  %3594 = vmatprep.subr.bf16.mxu0 0
  %3595 = vmatpush1.bf16.msra.mxu0 %v3238
  %3596 = vmatprep.subr.bf16.mxu0 0
  %3597 = vmatpush1.bf16.msra.mxu0 %v3239
  %3598 = vmatprep.subr.bf16.mxu0 0
  %3599 = vmatpush1.bf16.msra.mxu0 %v3240
  %3600 = vmatprep.subr.bf16.mxu0 0
  %3601 = vmatpush1.bf16.msra.mxu0 %v3241
  %3602 = vmatprep.subr.bf16.mxu0 0
  %3603 = vmatpush1.bf16.msra.mxu0 %v3242
  %3604 = vmatprep.subr.bf16.mxu0 0
  %3605 = vmatpush1.bf16.msra.mxu0 %v3243
  %3606 = vmatprep.subr.bf16.mxu0 0
  %3607 = vmatpush1.bf16.msra.mxu0 %v3244
  %3608 = vmatprep.subr.bf16.mxu0 0
  %3609 = vmatpush1.bf16.msra.mxu0 %v3245
  %3610 = vmatprep.subr.bf16.mxu0 0
  %3611 = vmatpush1.bf16.msra.mxu0 %v3246
  %3612 = vmatprep.subr.bf16.mxu0 0
  %3613 = vmatpush1.bf16.msra.mxu0 %v3247
  %3614 = vmatprep.subr.bf16.mxu0 0
  %3615 = vmatpush1.bf16.msra.mxu0 %v3248
  %3616 = vmatprep.subr.bf16.mxu0 0
  %3617 = vmatpush1.bf16.msra.mxu0 %v3249
  %3618 = vmatprep.subr.bf16.mxu0 0
  %3619 = vmatpush1.bf16.msra.mxu0 %v3250
  %3620 = vmatprep.subr.bf16.mxu0 0
  %3621 = vmatpush1.bf16.msra.mxu0 %v3251
  %3622 = vmatprep.subr.bf16.mxu0 0
  %3623 = vmatpush1.bf16.msra.mxu0 %v3252
  %3624 = vmatprep.mubr.bf16.mxu0 %v2389
  %3625 = vmatmul.mubr.bf16.gmra.mrb[0].mxu0 %v2388
  %v3626 = vpop.f32.mrb[0].mxu0
  %v3627 = vadd.f32 %v3578, %v3626
  %v3628 = vpop.f32.mrb[0].mxu0
  %v3629 = vpop.f32.mrb[0].mxu0
  %v3630 = vadd.f32 %v3581, %v3629
  %v3631 = vpop.f32.mrb[0].mxu0
  %3632 = vmatprep.mubr.bf16.mxu0 %v2405
  %3633 = vmatmul.mubr.bf16.gmra.mrb[0].mxu0 %v2404
  %v3634 = vpop.f32.mrb[0].mxu0
  %v3635 = vadd.f32 %v3586, %v3634
  %v3636 = vpop.f32.mrb[0].mxu0
  %v3637 = vpop.f32.mrb[0].mxu0
  %v3638 = vadd.f32 %v3589, %v3637
  %v3639 = vpop.f32.mrb[0].mxu0
  %3640 = vdwg.mxu0
  %3641 = vmatprep.subr.bf16.mxu0 0
  %3642 = vmatpush1.bf16.msra.mxu0 %v3253
  %3643 = vmatprep.subr.bf16.mxu0 0
  %3644 = vmatpush1.bf16.msra.mxu0 %v3254
  %3645 = vmatprep.subr.bf16.mxu0 0
  %3646 = vmatpush1.bf16.msra.mxu0 %v3255
  %3647 = vmatprep.subr.bf16.mxu0 0
  %3648 = vmatpush1.bf16.msra.mxu0 %v3256
  %3649 = vmatprep.subr.bf16.mxu0 0
  %3650 = vmatpush1.bf16.msra.mxu0 %v3257
  %3651 = vmatprep.subr.bf16.mxu0 0
  %3652 = vmatpush1.bf16.msra.mxu0 %v3258
  %3653 = vmatprep.subr.bf16.mxu0 0
  %3654 = vmatpush1.bf16.msra.mxu0 %v3259
  %3655 = vmatprep.subr.bf16.mxu0 0
  %3656 = vmatpush1.bf16.msra.mxu0 %v3260
  %3657 = vmatprep.subr.bf16.mxu0 0
  %3658 = vmatpush1.bf16.msra.mxu0 %v3261
  %3659 = vmatprep.subr.bf16.mxu0 0
  %3660 = vmatpush1.bf16.msra.mxu0 %v3262
  %3661 = vmatprep.subr.bf16.mxu0 0
  %3662 = vmatpush1.bf16.msra.mxu0 %v3263
  %3663 = vmatprep.subr.bf16.mxu0 0
  %3664 = vmatpush1.bf16.msra.mxu0 %v3264
  %3665 = vmatprep.subr.bf16.mxu0 0
  %3666 = vmatpush1.bf16.msra.mxu0 %v3265
  %3667 = vmatprep.subr.bf16.mxu0 0
  %3668 = vmatpush1.bf16.msra.mxu0 %v3266
  %3669 = vmatprep.subr.bf16.mxu0 0
  %3670 = vmatpush1.bf16.msra.mxu0 %v3267
  %3671 = vmatprep.subr.bf16.mxu0 0
  %3672 = vmatpush1.bf16.msra.mxu0 %v3268
  %3673 = vmatprep.mubr.bf16.mxu0 %v2391
  %3674 = vmatmul.mubr.bf16.gmra.mrb[0].mxu0 %v2390
  %v3675 = vpop.f32.mrb[0].mxu0
  %v3676 = vadd.f32 %v3627, %v3675
  %v3677 = vpop.f32.mrb[0].mxu0
  %v3678 = vpop.f32.mrb[0].mxu0
  %v3679 = vadd.f32 %v3630, %v3678
  %v3680 = vpop.f32.mrb[0].mxu0
  %3681 = vmatprep.mubr.bf16.mxu0 %v2407
  %3682 = vmatmul.mubr.bf16.gmra.mrb[0].mxu0 %v2406
  %v3683 = vpop.f32.mrb[0].mxu0
  %v3684 = vadd.f32 %v3635, %v3683
  %v3685 = vpop.f32.mrb[0].mxu0
  %v3686 = vpop.f32.mrb[0].mxu0
  %v3687 = vadd.f32 %v3638, %v3686
  %v3688 = vpop.f32.mrb[0].mxu0
  %3689 = vdwg.mxu0
  %3690 = vmatprep.subr.bf16.mxu0 0
  %3691 = vmatpush1.bf16.msra.mxu0 %v3269
  %3692 = vmatprep.subr.bf16.mxu0 0
  %3693 = vmatpush1.bf16.msra.mxu0 %v3270
  %3694 = vmatprep.subr.bf16.mxu0 0
  %3695 = vmatpush1.bf16.msra.mxu0 %v3271
  %3696 = vmatprep.subr.bf16.mxu0 0
  %3697 = vmatpush1.bf16.msra.mxu0 %v3272
  %3698 = vmatprep.subr.bf16.mxu0 0
  %3699 = vmatpush1.bf16.msra.mxu0 %v3273
  %3700 = vmatprep.subr.bf16.mxu0 0
  %3701 = vmatpush1.bf16.msra.mxu0 %v3274
  %3702 = vmatprep.subr.bf16.mxu0 0
  %3703 = vmatpush1.bf16.msra.mxu0 %v3275
  %3704 = vmatprep.subr.bf16.mxu0 0
  %3705 = vmatpush1.bf16.msra.mxu0 %v3276
  %3706 = vmatprep.subr.bf16.mxu0 0
  %3707 = vmatpush1.bf16.msra.mxu0 %v3277
  %3708 = vmatprep.subr.bf16.mxu0 0
  %3709 = vmatpush1.bf16.msra.mxu0 %v3278
  %3710 = vmatprep.subr.bf16.mxu0 0
  %3711 = vmatpush1.bf16.msra.mxu0 %v3279
  %3712 = vmatprep.subr.bf16.mxu0 0
  %3713 = vmatpush1.bf16.msra.mxu0 %v3280
  %3714 = vmatprep.subr.bf16.mxu0 0
  %3715 = vmatpush1.bf16.msra.mxu0 %v3281
  %3716 = vmatprep.subr.bf16.mxu0 0
  %3717 = vmatpush1.bf16.msra.mxu0 %v3282
  %3718 = vmatprep.subr.bf16.mxu0 0
  %3719 = vmatpush1.bf16.msra.mxu0 %v3283
  %3720 = vmatprep.subr.bf16.mxu0 0
  %3721 = vmatpush1.bf16.msra.mxu0 %v3284
  %3722 = vmatprep.mubr.bf16.mxu0 %v2393
  %3723 = vmatmul.mubr.bf16.gmra.mrb[0].mxu0 %v2392
  %v3724 = vpop.f32.mrb[0].mxu0
  %v3725 = vadd.f32 %v3676, %v3724
  %v3726 = vpop.f32.mrb[0].mxu0
  %v3727 = vpop.f32.mrb[0].mxu0
  %v3728 = vadd.f32 %v3679, %v3727
  %v3729 = vpop.f32.mrb[0].mxu0
  %3730 = vmatprep.mubr.bf16.mxu0 %v2409
  %3731 = vmatmul.mubr.bf16.gmra.mrb[0].mxu0 %v2408
  %v3732 = vpop.f32.mrb[0].mxu0
  %v3733 = vadd.f32 %v3684, %v3732
  %v3734 = vpop.f32.mrb[0].mxu0
  %v3735 = vpop.f32.mrb[0].mxu0
  %v3736 = vadd.f32 %v3687, %v3735
  %v3737 = vpop.f32.mrb[0].mxu0
  %3738 = vdwg.mxu0
  %3739 = vmatprep.subr.bf16.mxu0 0
  %3740 = vmatpush1.bf16.msra.mxu0 %v3285
  %3741 = vmatprep.subr.bf16.mxu0 0
  %3742 = vmatpush1.bf16.msra.mxu0 %v3286
  %3743 = vmatprep.subr.bf16.mxu0 0
  %3744 = vmatpush1.bf16.msra.mxu0 %v3287
  %3745 = vmatprep.subr.bf16.mxu0 0
  %3746 = vmatpush1.bf16.msra.mxu0 %v3288
  %3747 = vmatprep.subr.bf16.mxu0 0
  %3748 = vmatpush1.bf16.msra.mxu0 %v3289
  %3749 = vmatprep.subr.bf16.mxu0 0
  %3750 = vmatpush1.bf16.msra.mxu0 %v3290
  %3751 = vmatprep.subr.bf16.mxu0 0
  %3752 = vmatpush1.bf16.msra.mxu0 %v3291
  %3753 = vmatprep.subr.bf16.mxu0 0
  %3754 = vmatpush1.bf16.msra.mxu0 %v3292
  %3755 = vmatprep.subr.bf16.mxu0 0
  %3756 = vmatpush1.bf16.msra.mxu0 %v3293
  %3757 = vmatprep.subr.bf16.mxu0 0
  %3758 = vmatpush1.bf16.msra.mxu0 %v3294
  %3759 = vmatprep.subr.bf16.mxu0 0
  %3760 = vmatpush1.bf16.msra.mxu0 %v3295
  %3761 = vmatprep.subr.bf16.mxu0 0
  %3762 = vmatpush1.bf16.msra.mxu0 %v3296
  %3763 = vmatprep.subr.bf16.mxu0 0
  %3764 = vmatpush1.bf16.msra.mxu0 %v3297
  %3765 = vmatprep.subr.bf16.mxu0 0
  %3766 = vmatpush1.bf16.msra.mxu0 %v3298
  %3767 = vmatprep.subr.bf16.mxu0 0
  %3768 = vmatpush1.bf16.msra.mxu0 %v3299
  %3769 = vmatprep.subr.bf16.mxu0 0
  %3770 = vmatpush1.bf16.msra.mxu0 %v3300
  %3771 = vmatprep.mubr.bf16.mxu0 %v2395
  %3772 = vmatmul.mubr.bf16.gmra.mrb[0].mxu0 %v2394
  %v3773 = vpop.f32.mrb[0].mxu0
  %v3774 = vadd.f32 %v3725, %v3773
  %v3775 = vpop.f32.mrb[0].mxu0
  %v3776 = vpop.f32.mrb[0].mxu0
  %v3777 = vadd.f32 %v3728, %v3776
  %v3778 = vpop.f32.mrb[0].mxu0
  %3779 = vmatprep.mubr.bf16.mxu0 %v2411
  %3780 = vmatmul.mubr.bf16.gmra.mrb[0].mxu0 %v2410
  %v3781 = vpop.f32.mrb[0].mxu0
  %v3782 = vadd.f32 %v3733, %v3781
  %v3783 = vpop.f32.mrb[0].mxu0
  %v3784 = vpop.f32.mrb[0].mxu0
  %v3785 = vadd.f32 %v3736, %v3784
  %v3786 = vpop.f32.mrb[0].mxu0
  %3787 = vdwg.mxu0
  %3788 = vmatprep.subr.bf16.mxu0 0
  %3789 = vmatpush1.bf16.msra.mxu0 %v3301
  %3790 = vmatprep.subr.bf16.mxu0 0
  %3791 = vmatpush1.bf16.msra.mxu0 %v3302
  %3792 = vmatprep.subr.bf16.mxu0 0
  %3793 = vmatpush1.bf16.msra.mxu0 %v3303
  %3794 = vmatprep.subr.bf16.mxu0 0
  %3795 = vmatpush1.bf16.msra.mxu0 %v3304
  %3796 = vmatprep.subr.bf16.mxu0 0
  %3797 = vmatpush1.bf16.msra.mxu0 %v3305
  %3798 = vmatprep.subr.bf16.mxu0 0
  %3799 = vmatpush1.bf16.msra.mxu0 %v3306
  %3800 = vmatprep.subr.bf16.mxu0 0
  %3801 = vmatpush1.bf16.msra.mxu0 %v3307
  %3802 = vmatprep.subr.bf16.mxu0 0
  %3803 = vmatpush1.bf16.msra.mxu0 %v3308
  %3804 = vmatprep.subr.bf16.mxu0 0
  %3805 = vmatpush1.bf16.msra.mxu0 %v3309
  %3806 = vmatprep.subr.bf16.mxu0 0
  %3807 = vmatpush1.bf16.msra.mxu0 %v3310
  %3808 = vmatprep.subr.bf16.mxu0 0
  %3809 = vmatpush1.bf16.msra.mxu0 %v3311
  %3810 = vmatprep.subr.bf16.mxu0 0
  %3811 = vmatpush1.bf16.msra.mxu0 %v3312
  %3812 = vmatprep.subr.bf16.mxu0 0
  %3813 = vmatpush1.bf16.msra.mxu0 %v3313
  %3814 = vmatprep.subr.bf16.mxu0 0
  %3815 = vmatpush1.bf16.msra.mxu0 %v3314
  %3816 = vmatprep.subr.bf16.mxu0 0
  %3817 = vmatpush1.bf16.msra.mxu0 %v3315
  %3818 = vmatprep.subr.bf16.mxu0 0
  %3819 = vmatpush1.bf16.msra.mxu0 %v3316
  %3820 = vmatprep.mubr.bf16.mxu0 %v2397
  %3821 = vmatmul.mubr.bf16.gmra.mrb[0].mxu0 %v2396
  %v3822 = vpop.f32.mrb[0].mxu0
  %v3823 = vadd.f32 %v3774, %v3822
  %v3824 = vpop.f32.mrb[0].mxu0
  %v3825 = vpop.f32.mrb[0].mxu0
  %v3826 = vadd.f32 %v3777, %v3825
  %v3827 = vpop.f32.mrb[0].mxu0
  %3828 = vmatprep.mubr.bf16.mxu0 %v2413
  %3829 = vmatmul.mubr.bf16.gmra.mrb[0].mxu0 %v2412
  %v3830 = vpop.f32.mrb[0].mxu0
  %v3831 = vadd.f32 %v3782, %v3830
  %v3832 = vpop.f32.mrb[0].mxu0
  %v3833 = vpop.f32.mrb[0].mxu0
  %v3834 = vadd.f32 %v3785, %v3833
  %v3835 = vpop.f32.mrb[0].mxu0
  %3836 = vdwg.mxu0
  %v3837 = vadd.f32 %v1701, %v3823
  %v3838 = vadd.f32 %v1702, %v3826
  %v3839 = vadd.f32 %v1703, %v3831
  %v3840 = vadd.f32 %v1704, %v3834
  %v3841 = vld [vmem:[%s19] sm:$0x1]
  %v3842 = vld [vmem:[%s20] sm:$0x1]
  %v3843 = vsel %vm213, %v3837, 0.0
  %3844 = vadd.xlane.f32.xlu0 %v3843
  %v3845 = vpop.xlane.xlu0 %3844
  %v3846 = vsel %vm213, %v3838, 0.0
  %3847 = vadd.xlane.f32.xlu0 %v3846
  %v3848 = vpop.xlane.xlu0 %3847
  %v3849 = vsel %vm213, %v3839, 0.0
  %3850 = vadd.xlane.f32.xlu0 %v3849
  %v3851 = vpop.xlane.xlu0 %3850
  %v3852 = vsel %vm213, %v3840, 0.0
  %3853 = vadd.xlane.f32.xlu0 %v3852
  %v3854 = vpop.xlane.xlu0 %3853
  %v3855 = vmul.f32 %v3845, %v1644
  %v3856 = vmul.f32 %v3848, %v1644
  %v3857 = vmul.f32 %v3851, %v1644
  %v3858 = vmul.f32 %v3854, %v1644
  %v3859 = vsub.f32 %v3837, %v3855
  %v3860 = vsub.f32 %v3838, %v3856
  %v3861 = vsub.f32 %v3839, %v3857
  %v3862 = vsub.f32 %v3840, %v3858
  %v3863 = vmul.f32 %v3859, %v3859
  %v3864 = vmul.f32 %v3860, %v3860
  %v3865 = vmul.f32 %v3861, %v3861
  %v3866 = vmul.f32 %v3862, %v3862
  %v3867 = vsel %vm213, %v3863, 0.0
  %3868 = vadd.xlane.f32.xlu0 %v3867
  %v3869 = vpop.xlane.xlu0 %3868
  %v3870 = vsel %vm213, %v3864, 0.0
  %3871 = vadd.xlane.f32.xlu0 %v3870
  %v3872 = vpop.xlane.xlu0 %3871
  %v3873 = vsel %vm213, %v3865, 0.0
  %3874 = vadd.xlane.f32.xlu0 %v3873
  %v3875 = vpop.xlane.xlu0 %3874
  %v3876 = vsel %vm213, %v3866, 0.0
  %3877 = vadd.xlane.f32.xlu0 %v3876
  %v3878 = vpop.xlane.xlu0 %3877
  %v3879 = vmul.f32 %v3869, %v1644
  %v3880 = vmul.f32 %v3872, %v1644
  %v3881 = vmul.f32 %v3875, %v1644
  %v3882 = vmul.f32 %v3878, %v1644
  %v3883 = vadd.f32 %v3879, 1e-05
  %v3884 = vadd.f32 %v3880, 1e-05
  %v3885 = vadd.f32 %v3881, 1e-05
  %v3886 = vadd.f32 %v3882, 1e-05
  %v3887 = vrsqrt.pop %v3883
  %v3888 = vrsqrt.pop %v3884
  %v3889 = vrsqrt.pop %v3885
  %v3890 = vrsqrt.pop %v3886
  %v3891 = vmul.f32 %v3859, %v3887
  %v3892 = vmul.f32 %v3860, %v3888
  %v3893 = vmul.f32 %v3861, %v3889
  %v3894 = vmul.f32 %v3862, %v3890
  %v3896 = vlaneseq
  %v3897 = vshrl.u32 %v3896, 7
  %v3898 = vsub.s32 0, %v3897
  %v3899 = vrot.slane %v3841, %v3898
  %v3901 = vmul.f32 %v3891, %v3899
  %v3902 = vmul.f32 %v3892, %v3899
  %v3903 = vmul.f32 %v3893, %v3899
  %v3904 = vmul.f32 %v3894, %v3899
  %v3906 = vlaneseq
  %v3907 = vshrl.u32 %v3906, 7
  %v3908 = vsub.s32 0, %v3907
  %v3909 = vrot.slane %v3842, %v3908
  %v3911 = vadd.f32 %v3901, %v3909
  %v3912 = vadd.f32 %v3902, %v3909
  %v3913 = vadd.f32 %v3903, %v3909
  %v3914 = vadd.f32 %v3904, %v3909
  %s3915 = scalar_lea.vmem %s5, 8
  %v3916 = vld [vmem:[%s3915] sm:$0xff]
  %s3917 = scalar_lea.vmem %s6, 1
  %v3918 = vld [vmem:[%s3917] sm:$0x1]
  %v3920 = vlaneseq
  %v3921 = vshrl.u32 %v3920, 7
  %v3922 = vsub.s32 0, %v3921
  %v3923 = vrot.slane %v3918, %v3922
  %v3926 = vsel %vm213, %v3911, 0
  %v3929 = vsel %vm213, %v3912, 0
  %v3932 = vsel %vm213, %v3913, 0
  %v3935 = vsel %vm213, %v3914, 0
  %3937 = vmatprep.subr.mxu0 0.0
  %3938 = vmatpush1.msra.mxu0 %v3916
  %3939 = vmatprep.subr.mxu0 0.0
  %3940 = vmatpush1.msra.mxu0 0.0
  %3941 = vmatprep.subr.mxu0 0.0
  %3942 = vmatpush1.msra.mxu0 0.0
  %3943 = vmatprep.subr.mxu0 0.0
  %3944 = vmatpush1.msra.mxu0 0.0
  %3945 = vmatprep.subr.mxu0 0.0
  %3946 = vmatpush1.msra.mxu0 0.0
  %3947 = vmatprep.subr.mxu0 0.0
  %3948 = vmatpush1.msra.mxu0 0.0
  %3949 = vmatprep.subr.mxu0 0.0
  %3950 = vmatpush1.msra.mxu0 0.0
  %3951 = vmatprep.subr.mxu0 0.0
  %3952 = vmatpush1.msra.mxu0 0.0
  %3953 = vmatprep.subr.mxu0 0.0
  %3954 = vmatpush1.msra.mxu0 0.0
  %3955 = vmatprep.subr.mxu0 0.0
  %3956 = vmatpush1.msra.mxu0 0.0
  %3957 = vmatprep.subr.mxu0 0.0
  %3958 = vmatpush1.msra.mxu0 0.0
  %3959 = vmatprep.subr.mxu0 0.0
  %3960 = vmatpush1.msra.mxu0 0.0
  %3961 = vmatprep.subr.mxu0 0.0
  %3962 = vmatpush1.msra.mxu0 0.0
  %3963 = vmatprep.subr.mxu0 0.0
  %3964 = vmatpush1.msra.mxu0 0.0
  %3965 = vmatprep.subr.mxu0 0.0
  %3966 = vmatpush1.msra.mxu0 0.0
  %3967 = vmatprep.subr.mxu0 0.0
  %3968 = vmatpush1.msra.mxu0 0.0
  %3969 = vmatprep.subr.mxu0 0.0
  %3970 = vmatpush1.msra.mxu0 0.0
  %3971 = vmatprep.subr.mxu0 0.0
  %3972 = vmatpush1.msra.mxu0 0.0
  %3973 = vmatprep.subr.mxu0 0.0
  %3974 = vmatpush1.msra.mxu0 0.0
  %3975 = vmatprep.subr.mxu0 0.0
  %3976 = vmatpush1.msra.mxu0 0.0
  %3977 = vmatprep.subr.mxu0 0.0
  %3978 = vmatpush1.msra.mxu0 0.0
  %3979 = vmatprep.subr.mxu0 0.0
  %3980 = vmatpush1.msra.mxu0 0.0
  %3981 = vmatprep.subr.mxu0 0.0
  %3982 = vmatpush1.msra.mxu0 0.0
  %3983 = vmatprep.subr.mxu0 0.0
  %3984 = vmatpush1.msra.mxu0 0.0
  %3985 = vmatprep.subr.mxu0 0.0
  %3986 = vmatpush1.msra.mxu0 0.0
  %3987 = vmatprep.subr.mxu0 0.0
  %3988 = vmatpush1.msra.mxu0 0.0
  %3989 = vmatprep.subr.mxu0 0.0
  %3990 = vmatpush1.msra.mxu0 0.0
  %3991 = vmatprep.subr.mxu0 0.0
  %3992 = vmatpush1.msra.mxu0 0.0
  %3993 = vmatprep.subr.mxu0 0.0
  %3994 = vmatpush1.msra.mxu0 0.0
  %3995 = vmatprep.subr.mxu0 0.0
  %3996 = vmatpush1.msra.mxu0 0.0
  %3997 = vmatprep.subr.mxu0 0.0
  %3998 = vmatpush1.msra.mxu0 0.0
  %3999 = vmatprep.subr.mxu0 0.0
  %4000 = vmatpush1.msra.mxu0 0.0
  %4001 = vmatprep.mubr.f32.mxu0 0.0
  %4002 = vmatmul.mubr.f32.gmra.mrb[0].mxu0 %v3926
  %v4003 = vpop.f32.mrb[0].mxu0
  %v4004 = vadd.f32 %v3923, %v4003
  %v4005 = vpop.f32.mrb[0].mxu0
  %4006 = vmatprep.mubr.f32.mxu0 0.0
  %4007 = vmatmul.mubr.f32.gmra.mrb[0].mxu0 %v3929
  %v4008 = vpop.f32.mrb[0].mxu0
  %v4009 = vadd.f32 %v3923, %v4008
  %v4010 = vpop.f32.mrb[0].mxu0
  %4011 = vmatprep.mubr.f32.mxu0 0.0
  %4012 = vmatmul.mubr.f32.gmra.mrb[0].mxu0 %v3932
  %v4013 = vpop.f32.mrb[0].mxu0
  %v4014 = vadd.f32 %v3923, %v4013
  %v4015 = vpop.f32.mrb[0].mxu0
  %4016 = vmatprep.mubr.f32.mxu0 0.0
  %4017 = vmatmul.mubr.f32.gmra.mrb[0].mxu0 %v3935
  %v4018 = vpop.f32.mrb[0].mxu0
  %v4019 = vadd.f32 %v3923, %v4018
  %v4020 = vpop.f32.mrb[0].mxu0
  %4021 = vdwg.mxu0
  %s4022 = scalar_lea.vmem %s7, 8
  %v4023 = vld [vmem:[%s4022] sm:$0xff]
  %s4024 = scalar_lea.vmem %s8, 1
  %v4025 = vld [vmem:[%s4024] sm:$0x1]
  %v4027 = vlaneseq
  %v4028 = vshrl.u32 %v4027, 7
  %v4029 = vsub.s32 0, %v4028
  %v4030 = vrot.slane %v4025, %v4029
  %4032 = vmatprep.subr.mxu0 0.0
  %4033 = vmatpush1.msra.mxu0 %v4023
  %4034 = vmatprep.subr.mxu0 0.0
  %4035 = vmatpush1.msra.mxu0 0.0
  %4036 = vmatprep.subr.mxu0 0.0
  %4037 = vmatpush1.msra.mxu0 0.0
  %4038 = vmatprep.subr.mxu0 0.0
  %4039 = vmatpush1.msra.mxu0 0.0
  %4040 = vmatprep.subr.mxu0 0.0
  %4041 = vmatpush1.msra.mxu0 0.0
  %4042 = vmatprep.subr.mxu0 0.0
  %4043 = vmatpush1.msra.mxu0 0.0
  %4044 = vmatprep.subr.mxu0 0.0
  %4045 = vmatpush1.msra.mxu0 0.0
  %4046 = vmatprep.subr.mxu0 0.0
  %4047 = vmatpush1.msra.mxu0 0.0
  %4048 = vmatprep.subr.mxu0 0.0
  %4049 = vmatpush1.msra.mxu0 0.0
  %4050 = vmatprep.subr.mxu0 0.0
  %4051 = vmatpush1.msra.mxu0 0.0
  %4052 = vmatprep.subr.mxu0 0.0
  %4053 = vmatpush1.msra.mxu0 0.0
  %4054 = vmatprep.subr.mxu0 0.0
  %4055 = vmatpush1.msra.mxu0 0.0
  %4056 = vmatprep.subr.mxu0 0.0
  %4057 = vmatpush1.msra.mxu0 0.0
  %4058 = vmatprep.subr.mxu0 0.0
  %4059 = vmatpush1.msra.mxu0 0.0
  %4060 = vmatprep.subr.mxu0 0.0
  %4061 = vmatpush1.msra.mxu0 0.0
  %4062 = vmatprep.subr.mxu0 0.0
  %4063 = vmatpush1.msra.mxu0 0.0
  %4064 = vmatprep.subr.mxu0 0.0
  %4065 = vmatpush1.msra.mxu0 0.0
  %4066 = vmatprep.subr.mxu0 0.0
  %4067 = vmatpush1.msra.mxu0 0.0
  %4068 = vmatprep.subr.mxu0 0.0
  %4069 = vmatpush1.msra.mxu0 0.0
  %4070 = vmatprep.subr.mxu0 0.0
  %4071 = vmatpush1.msra.mxu0 0.0
  %4072 = vmatprep.subr.mxu0 0.0
  %4073 = vmatpush1.msra.mxu0 0.0
  %4074 = vmatprep.subr.mxu0 0.0
  %4075 = vmatpush1.msra.mxu0 0.0
  %4076 = vmatprep.subr.mxu0 0.0
  %4077 = vmatpush1.msra.mxu0 0.0
  %4078 = vmatprep.subr.mxu0 0.0
  %4079 = vmatpush1.msra.mxu0 0.0
  %4080 = vmatprep.subr.mxu0 0.0
  %4081 = vmatpush1.msra.mxu0 0.0
  %4082 = vmatprep.subr.mxu0 0.0
  %4083 = vmatpush1.msra.mxu0 0.0
  %4084 = vmatprep.subr.mxu0 0.0
  %4085 = vmatpush1.msra.mxu0 0.0
  %4086 = vmatprep.subr.mxu0 0.0
  %4087 = vmatpush1.msra.mxu0 0.0
  %4088 = vmatprep.subr.mxu0 0.0
  %4089 = vmatpush1.msra.mxu0 0.0
  %4090 = vmatprep.subr.mxu0 0.0
  %4091 = vmatpush1.msra.mxu0 0.0
  %4092 = vmatprep.subr.mxu0 0.0
  %4093 = vmatpush1.msra.mxu0 0.0
  %4094 = vmatprep.subr.mxu0 0.0
  %4095 = vmatpush1.msra.mxu0 0.0
  %4096 = vmatprep.mubr.f32.mxu0 0.0
  %4097 = vmatmul.mubr.f32.gmra.mrb[0].mxu0 %v3926
  %v4098 = vpop.f32.mrb[0].mxu0
  %v4099 = vadd.f32 %v4030, %v4098
  %v4100 = vpop.f32.mrb[0].mxu0
  %4101 = vmatprep.mubr.f32.mxu0 0.0
  %4102 = vmatmul.mubr.f32.gmra.mrb[0].mxu0 %v3929
  %v4103 = vpop.f32.mrb[0].mxu0
  %v4104 = vadd.f32 %v4030, %v4103
  %v4105 = vpop.f32.mrb[0].mxu0
  %4106 = vmatprep.mubr.f32.mxu0 0.0
  %4107 = vmatmul.mubr.f32.gmra.mrb[0].mxu0 %v3932
  %v4108 = vpop.f32.mrb[0].mxu0
  %v4109 = vadd.f32 %v4030, %v4108
  %v4110 = vpop.f32.mrb[0].mxu0
  %4111 = vmatprep.mubr.f32.mxu0 0.0
  %4112 = vmatmul.mubr.f32.gmra.mrb[0].mxu0 %v3935
  %v4113 = vpop.f32.mrb[0].mxu0
  %v4114 = vadd.f32 %v4030, %v4113
  %v4115 = vpop.f32.mrb[0].mxu0
  %4116 = vdwg.mxu0
  %s4117 = scalar_lea.vmem %s9, 8
  %v4118 = vld [vmem:[%s4117] sm:$0xff]
  %s4119 = scalar_lea.vmem %s10, 1
  %v4120 = vld [vmem:[%s4119] sm:$0x1]
  %v4122 = vlaneseq
  %v4123 = vshrl.u32 %v4122, 7
  %v4124 = vsub.s32 0, %v4123
  %v4125 = vrot.slane %v4120, %v4124
  %4127 = vmatprep.subr.mxu0 0.0
  %4128 = vmatpush1.msra.mxu0 %v4118
  %4129 = vmatprep.subr.mxu0 0.0
  %4130 = vmatpush1.msra.mxu0 0.0
  %4131 = vmatprep.subr.mxu0 0.0
  %4132 = vmatpush1.msra.mxu0 0.0
  %4133 = vmatprep.subr.mxu0 0.0
  %4134 = vmatpush1.msra.mxu0 0.0
  %4135 = vmatprep.subr.mxu0 0.0
  %4136 = vmatpush1.msra.mxu0 0.0
  %4137 = vmatprep.subr.mxu0 0.0
  %4138 = vmatpush1.msra.mxu0 0.0
  %4139 = vmatprep.subr.mxu0 0.0
  %4140 = vmatpush1.msra.mxu0 0.0
  %4141 = vmatprep.subr.mxu0 0.0
  %4142 = vmatpush1.msra.mxu0 0.0
  %4143 = vmatprep.subr.mxu0 0.0
  %4144 = vmatpush1.msra.mxu0 0.0
  %4145 = vmatprep.subr.mxu0 0.0
  %4146 = vmatpush1.msra.mxu0 0.0
  %4147 = vmatprep.subr.mxu0 0.0
  %4148 = vmatpush1.msra.mxu0 0.0
  %4149 = vmatprep.subr.mxu0 0.0
  %4150 = vmatpush1.msra.mxu0 0.0
  %4151 = vmatprep.subr.mxu0 0.0
  %4152 = vmatpush1.msra.mxu0 0.0
  %4153 = vmatprep.subr.mxu0 0.0
  %4154 = vmatpush1.msra.mxu0 0.0
  %4155 = vmatprep.subr.mxu0 0.0
  %4156 = vmatpush1.msra.mxu0 0.0
  %4157 = vmatprep.subr.mxu0 0.0
  %4158 = vmatpush1.msra.mxu0 0.0
  %4159 = vmatprep.subr.mxu0 0.0
  %4160 = vmatpush1.msra.mxu0 0.0
  %4161 = vmatprep.subr.mxu0 0.0
  %4162 = vmatpush1.msra.mxu0 0.0
  %4163 = vmatprep.subr.mxu0 0.0
  %4164 = vmatpush1.msra.mxu0 0.0
  %4165 = vmatprep.subr.mxu0 0.0
  %4166 = vmatpush1.msra.mxu0 0.0
  %4167 = vmatprep.subr.mxu0 0.0
  %4168 = vmatpush1.msra.mxu0 0.0
  %4169 = vmatprep.subr.mxu0 0.0
  %4170 = vmatpush1.msra.mxu0 0.0
  %4171 = vmatprep.subr.mxu0 0.0
  %4172 = vmatpush1.msra.mxu0 0.0
  %4173 = vmatprep.subr.mxu0 0.0
  %4174 = vmatpush1.msra.mxu0 0.0
  %4175 = vmatprep.subr.mxu0 0.0
  %4176 = vmatpush1.msra.mxu0 0.0
  %4177 = vmatprep.subr.mxu0 0.0
  %4178 = vmatpush1.msra.mxu0 0.0
  %4179 = vmatprep.subr.mxu0 0.0
  %4180 = vmatpush1.msra.mxu0 0.0
  %4181 = vmatprep.subr.mxu0 0.0
  %4182 = vmatpush1.msra.mxu0 0.0
  %4183 = vmatprep.subr.mxu0 0.0
  %4184 = vmatpush1.msra.mxu0 0.0
  %4185 = vmatprep.subr.mxu0 0.0
  %4186 = vmatpush1.msra.mxu0 0.0
  %4187 = vmatprep.subr.mxu0 0.0
  %4188 = vmatpush1.msra.mxu0 0.0
  %4189 = vmatprep.subr.mxu0 0.0
  %4190 = vmatpush1.msra.mxu0 0.0
  %4191 = vmatprep.mubr.f32.mxu0 0.0
  %4192 = vmatmul.mubr.f32.gmra.mrb[0].mxu0 %v3926
  %v4193 = vpop.f32.mrb[0].mxu0
  %v4194 = vadd.f32 %v4125, %v4193
  %v4195 = vpop.f32.mrb[0].mxu0
  %4196 = vmatprep.mubr.f32.mxu0 0.0
  %4197 = vmatmul.mubr.f32.gmra.mrb[0].mxu0 %v3929
  %v4198 = vpop.f32.mrb[0].mxu0
  %v4199 = vadd.f32 %v4125, %v4198
  %v4200 = vpop.f32.mrb[0].mxu0
  %4201 = vmatprep.mubr.f32.mxu0 0.0
  %4202 = vmatmul.mubr.f32.gmra.mrb[0].mxu0 %v3932
  %v4203 = vpop.f32.mrb[0].mxu0
  %v4204 = vadd.f32 %v4125, %v4203
  %v4205 = vpop.f32.mrb[0].mxu0
  %4206 = vmatprep.mubr.f32.mxu0 0.0
  %4207 = vmatmul.mubr.f32.gmra.mrb[0].mxu0 %v3935
  %v4208 = vpop.f32.mrb[0].mxu0
  %v4209 = vadd.f32 %v4125, %v4208
  %v4210 = vpop.f32.mrb[0].mxu0
  %4211 = vdwg.mxu0
  %v4212 = vmul.f32 %v4004, %v500
  %v4213 = vmul.f32 %v4009, %v500
  %v4214 = vmul.f32 %v4014, %v500
  %v4215 = vmul.f32 %v4019, %v500
  %v4216 = vmul.f32 %v4004, %v508
  %v4217 = vmul.f32 %v4009, %v508
  %v4218 = vmul.f32 %v4014, %v508
  %v4219 = vmul.f32 %v4019, %v508
  %v4220 = vmul.f32 %v4004, %v516
  %v4221 = vmul.f32 %v4009, %v516
  %v4222 = vmul.f32 %v4014, %v516
  %v4223 = vmul.f32 %v4019, %v516
  %v4224 = vmul.f32 %v4004, %v524
  %v4225 = vmul.f32 %v4009, %v524
  %v4226 = vmul.f32 %v4014, %v524
  %v4227 = vmul.f32 %v4019, %v524
  %v4229 = vsel %vm213, %v4212, 0
  %v4232 = vsel %vm213, %v4216, 0
  %v4235 = vsel %vm213, %v4220, 0
  %v4238 = vsel %vm213, %v4224, 0
  %v4241 = vsel %vm213, %v4099, 0
  %4243 = vmatprep.subr.mxu0 0.0
  %4244 = vmatpush1.xpose.msra.mxu0 %v4241
  %4245 = vmatprep.subr.mxu0 0.0
  %4246 = vmatpush1.xpose.msra.mxu0 0.0
  %4247 = vmatprep.subr.mxu0 0.0
  %4248 = vmatpush1.xpose.msra.mxu0 0.0
  %4249 = vmatprep.subr.mxu0 0.0
  %4250 = vmatpush1.xpose.msra.mxu0 0.0
  %4251 = vmatprep.subr.mxu0 0.0
  %4252 = vmatpush1.xpose.msra.mxu0 0.0
  %4253 = vmatprep.subr.mxu0 0.0
  %4254 = vmatpush1.xpose.msra.mxu0 0.0
  %4255 = vmatprep.subr.mxu0 0.0
  %4256 = vmatpush1.xpose.msra.mxu0 0.0
  %4257 = vmatprep.subr.mxu0 0.0
  %4258 = vmatpush1.xpose.msra.mxu0 0.0
  %4259 = vmatprep.subr.mxu0 0.0
  %4260 = vmatpush1.xpose.msra.mxu0 0.0
  %4261 = vmatprep.subr.mxu0 0.0
  %4262 = vmatpush1.xpose.msra.mxu0 0.0
  %4263 = vmatprep.subr.mxu0 0.0
  %4264 = vmatpush1.xpose.msra.mxu0 0.0
  %4265 = vmatprep.subr.mxu0 0.0
  %4266 = vmatpush1.xpose.msra.mxu0 0.0
  %4267 = vmatprep.subr.mxu0 0.0
  %4268 = vmatpush1.xpose.msra.mxu0 0.0
  %4269 = vmatprep.subr.mxu0 0.0
  %4270 = vmatpush1.xpose.msra.mxu0 0.0
  %4271 = vmatprep.subr.mxu0 0.0
  %4272 = vmatpush1.xpose.msra.mxu0 0.0
  %4273 = vmatprep.subr.mxu0 0.0
  %4274 = vmatpush1.xpose.msra.mxu0 0.0
  %4275 = vmatprep.subr.mxu0 0.0
  %4276 = vmatpush1.xpose.msra.mxu0 0.0
  %4277 = vmatprep.subr.mxu0 0.0
  %4278 = vmatpush1.xpose.msra.mxu0 0.0
  %4279 = vmatprep.subr.mxu0 0.0
  %4280 = vmatpush1.xpose.msra.mxu0 0.0
  %4281 = vmatprep.subr.mxu0 0.0
  %4282 = vmatpush1.xpose.msra.mxu0 0.0
  %4283 = vmatprep.subr.mxu0 0.0
  %4284 = vmatpush1.xpose.msra.mxu0 0.0
  %4285 = vmatprep.subr.mxu0 0.0
  %4286 = vmatpush1.xpose.msra.mxu0 0.0
  %4287 = vmatprep.subr.mxu0 0.0
  %4288 = vmatpush1.xpose.msra.mxu0 0.0
  %4289 = vmatprep.subr.mxu0 0.0
  %4290 = vmatpush1.xpose.msra.mxu0 0.0
  %4291 = vmatprep.subr.mxu0 0.0
  %4292 = vmatpush1.xpose.msra.mxu0 0.0
  %4293 = vmatprep.subr.mxu0 0.0
  %4294 = vmatpush1.xpose.msra.mxu0 0.0
  %4295 = vmatprep.subr.mxu0 0.0
  %4296 = vmatpush1.xpose.msra.mxu0 0.0
  %4297 = vmatprep.subr.mxu0 0.0
  %4298 = vmatpush1.xpose.msra.mxu0 0.0
  %4299 = vmatprep.subr.mxu0 0.0
  %4300 = vmatpush1.xpose.msra.mxu0 0.0
  %4301 = vmatprep.subr.mxu0 0.0
  %4302 = vmatpush1.xpose.msra.mxu0 0.0
  %4303 = vmatprep.subr.mxu0 0.0
  %4304 = vmatpush1.xpose.msra.mxu0 0.0
  %4305 = vmatprep.subr.mxu0 0.0
  %4306 = vmatpush1.xpose.msra.mxu0 0.0
  %4307 = vmatprep.mubr.f32.mxu0 0.0
  %4308 = vmatmul.mubr.f32.gmra.mrb[0].mxu0 %v4229
  %v4309 = vpop.f32.mrb[0].mxu0
  %v4310 = vadd.f32 0.0, %v4309
  %v4311 = vpop.f32.mrb[0].mxu0
  %4312 = vmatprep.mubr.f32.mxu0 0.0
  %4313 = vmatmul.mubr.f32.gmra.mrb[0].mxu0 %v4232
  %v4314 = vpop.f32.mrb[0].mxu0
  %v4315 = vadd.f32 0.0, %v4314
  %v4316 = vpop.f32.mrb[0].mxu0
  %4317 = vmatprep.mubr.f32.mxu0 0.0
  %4318 = vmatmul.mubr.f32.gmra.mrb[0].mxu0 %v4235
  %v4319 = vpop.f32.mrb[0].mxu0
  %v4320 = vadd.f32 0.0, %v4319
  %v4321 = vpop.f32.mrb[0].mxu0
  %4322 = vmatprep.mubr.f32.mxu0 0.0
  %4323 = vmatmul.mubr.f32.gmra.mrb[0].mxu0 %v4238
  %v4324 = vpop.f32.mrb[0].mxu0
  %v4325 = vadd.f32 0.0, %v4324
  %v4326 = vpop.f32.mrb[0].mxu0
  %4327 = vdwg.mxu0
  %v4329 = vsel %vm213, %v4213, 0
  %v4332 = vsel %vm213, %v4217, 0
  %v4335 = vsel %vm213, %v4221, 0
  %v4338 = vsel %vm213, %v4225, 0
  %v4341 = vsel %vm213, %v4104, 0
  %4343 = vmatprep.subr.mxu0 0.0
  %4344 = vmatpush1.xpose.msra.mxu0 %v4341
  %4345 = vmatprep.subr.mxu0 0.0
  %4346 = vmatpush1.xpose.msra.mxu0 0.0
  %4347 = vmatprep.subr.mxu0 0.0
  %4348 = vmatpush1.xpose.msra.mxu0 0.0
  %4349 = vmatprep.subr.mxu0 0.0
  %4350 = vmatpush1.xpose.msra.mxu0 0.0
  %4351 = vmatprep.subr.mxu0 0.0
  %4352 = vmatpush1.xpose.msra.mxu0 0.0
  %4353 = vmatprep.subr.mxu0 0.0
  %4354 = vmatpush1.xpose.msra.mxu0 0.0
  %4355 = vmatprep.subr.mxu0 0.0
  %4356 = vmatpush1.xpose.msra.mxu0 0.0
  %4357 = vmatprep.subr.mxu0 0.0
  %4358 = vmatpush1.xpose.msra.mxu0 0.0
  %4359 = vmatprep.subr.mxu0 0.0
  %4360 = vmatpush1.xpose.msra.mxu0 0.0
  %4361 = vmatprep.subr.mxu0 0.0
  %4362 = vmatpush1.xpose.msra.mxu0 0.0
  %4363 = vmatprep.subr.mxu0 0.0
  %4364 = vmatpush1.xpose.msra.mxu0 0.0
  %4365 = vmatprep.subr.mxu0 0.0
  %4366 = vmatpush1.xpose.msra.mxu0 0.0
  %4367 = vmatprep.subr.mxu0 0.0
  %4368 = vmatpush1.xpose.msra.mxu0 0.0
  %4369 = vmatprep.subr.mxu0 0.0
  %4370 = vmatpush1.xpose.msra.mxu0 0.0
  %4371 = vmatprep.subr.mxu0 0.0
  %4372 = vmatpush1.xpose.msra.mxu0 0.0
  %4373 = vmatprep.subr.mxu0 0.0
  %4374 = vmatpush1.xpose.msra.mxu0 0.0
  %4375 = vmatprep.subr.mxu0 0.0
  %4376 = vmatpush1.xpose.msra.mxu0 0.0
  %4377 = vmatprep.subr.mxu0 0.0
  %4378 = vmatpush1.xpose.msra.mxu0 0.0
  %4379 = vmatprep.subr.mxu0 0.0
  %4380 = vmatpush1.xpose.msra.mxu0 0.0
  %4381 = vmatprep.subr.mxu0 0.0
  %4382 = vmatpush1.xpose.msra.mxu0 0.0
  %4383 = vmatprep.subr.mxu0 0.0
  %4384 = vmatpush1.xpose.msra.mxu0 0.0
  %4385 = vmatprep.subr.mxu0 0.0
  %4386 = vmatpush1.xpose.msra.mxu0 0.0
  %4387 = vmatprep.subr.mxu0 0.0
  %4388 = vmatpush1.xpose.msra.mxu0 0.0
  %4389 = vmatprep.subr.mxu0 0.0
  %4390 = vmatpush1.xpose.msra.mxu0 0.0
  %4391 = vmatprep.subr.mxu0 0.0
  %4392 = vmatpush1.xpose.msra.mxu0 0.0
  %4393 = vmatprep.subr.mxu0 0.0
  %4394 = vmatpush1.xpose.msra.mxu0 0.0
  %4395 = vmatprep.subr.mxu0 0.0
  %4396 = vmatpush1.xpose.msra.mxu0 0.0
  %4397 = vmatprep.subr.mxu0 0.0
  %4398 = vmatpush1.xpose.msra.mxu0 0.0
  %4399 = vmatprep.subr.mxu0 0.0
  %4400 = vmatpush1.xpose.msra.mxu0 0.0
  %4401 = vmatprep.subr.mxu0 0.0
  %4402 = vmatpush1.xpose.msra.mxu0 0.0
  %4403 = vmatprep.subr.mxu0 0.0
  %4404 = vmatpush1.xpose.msra.mxu0 0.0
  %4405 = vmatprep.subr.mxu0 0.0
  %4406 = vmatpush1.xpose.msra.mxu0 0.0
  %4407 = vmatprep.mubr.f32.mxu0 0.0
  %4408 = vmatmul.mubr.f32.gmra.mrb[0].mxu0 %v4329
  %v4409 = vpop.f32.mrb[0].mxu0
  %v4410 = vadd.f32 0.0, %v4409
  %v4411 = vpop.f32.mrb[0].mxu0
  %4412 = vmatprep.mubr.f32.mxu0 0.0
  %4413 = vmatmul.mubr.f32.gmra.mrb[0].mxu0 %v4332
  %v4414 = vpop.f32.mrb[0].mxu0
  %v4415 = vadd.f32 0.0, %v4414
  %v4416 = vpop.f32.mrb[0].mxu0
  %4417 = vmatprep.mubr.f32.mxu0 0.0
  %4418 = vmatmul.mubr.f32.gmra.mrb[0].mxu0 %v4335
  %v4419 = vpop.f32.mrb[0].mxu0
  %v4420 = vadd.f32 0.0, %v4419
  %v4421 = vpop.f32.mrb[0].mxu0
  %4422 = vmatprep.mubr.f32.mxu0 0.0
  %4423 = vmatmul.mubr.f32.gmra.mrb[0].mxu0 %v4338
  %v4424 = vpop.f32.mrb[0].mxu0
  %v4425 = vadd.f32 0.0, %v4424
  %v4426 = vpop.f32.mrb[0].mxu0
  %4427 = vdwg.mxu0
  %v4429 = vsel %vm213, %v4214, 0
  %v4432 = vsel %vm213, %v4218, 0
  %v4435 = vsel %vm213, %v4222, 0
  %v4438 = vsel %vm213, %v4226, 0
  %v4441 = vsel %vm213, %v4109, 0
  %4443 = vmatprep.subr.mxu0 0.0
  %4444 = vmatpush1.xpose.msra.mxu0 %v4441
  %4445 = vmatprep.subr.mxu0 0.0
  %4446 = vmatpush1.xpose.msra.mxu0 0.0
  %4447 = vmatprep.subr.mxu0 0.0
  %4448 = vmatpush1.xpose.msra.mxu0 0.0
  %4449 = vmatprep.subr.mxu0 0.0
  %4450 = vmatpush1.xpose.msra.mxu0 0.0
  %4451 = vmatprep.subr.mxu0 0.0
  %4452 = vmatpush1.xpose.msra.mxu0 0.0
  %4453 = vmatprep.subr.mxu0 0.0
  %4454 = vmatpush1.xpose.msra.mxu0 0.0
  %4455 = vmatprep.subr.mxu0 0.0
  %4456 = vmatpush1.xpose.msra.mxu0 0.0
  %4457 = vmatprep.subr.mxu0 0.0
  %4458 = vmatpush1.xpose.msra.mxu0 0.0
  %4459 = vmatprep.subr.mxu0 0.0
  %4460 = vmatpush1.xpose.msra.mxu0 0.0
  %4461 = vmatprep.subr.mxu0 0.0
  %4462 = vmatpush1.xpose.msra.mxu0 0.0
  %4463 = vmatprep.subr.mxu0 0.0
  %4464 = vmatpush1.xpose.msra.mxu0 0.0
  %4465 = vmatprep.subr.mxu0 0.0
  %4466 = vmatpush1.xpose.msra.mxu0 0.0
  %4467 = vmatprep.subr.mxu0 0.0
  %4468 = vmatpush1.xpose.msra.mxu0 0.0
  %4469 = vmatprep.subr.mxu0 0.0
  %4470 = vmatpush1.xpose.msra.mxu0 0.0
  %4471 = vmatprep.subr.mxu0 0.0
  %4472 = vmatpush1.xpose.msra.mxu0 0.0
  %4473 = vmatprep.subr.mxu0 0.0
  %4474 = vmatpush1.xpose.msra.mxu0 0.0
  %4475 = vmatprep.subr.mxu0 0.0
  %4476 = vmatpush1.xpose.msra.mxu0 0.0
  %4477 = vmatprep.subr.mxu0 0.0
  %4478 = vmatpush1.xpose.msra.mxu0 0.0
  %4479 = vmatprep.subr.mxu0 0.0
  %4480 = vmatpush1.xpose.msra.mxu0 0.0
  %4481 = vmatprep.subr.mxu0 0.0
  %4482 = vmatpush1.xpose.msra.mxu0 0.0
  %4483 = vmatprep.subr.mxu0 0.0
  %4484 = vmatpush1.xpose.msra.mxu0 0.0
  %4485 = vmatprep.subr.mxu0 0.0
  %4486 = vmatpush1.xpose.msra.mxu0 0.0
  %4487 = vmatprep.subr.mxu0 0.0
  %4488 = vmatpush1.xpose.msra.mxu0 0.0
  %4489 = vmatprep.subr.mxu0 0.0
  %4490 = vmatpush1.xpose.msra.mxu0 0.0
  %4491 = vmatprep.subr.mxu0 0.0
  %4492 = vmatpush1.xpose.msra.mxu0 0.0
  %4493 = vmatprep.subr.mxu0 0.0
  %4494 = vmatpush1.xpose.msra.mxu0 0.0
  %4495 = vmatprep.subr.mxu0 0.0
  %4496 = vmatpush1.xpose.msra.mxu0 0.0
  %4497 = vmatprep.subr.mxu0 0.0
  %4498 = vmatpush1.xpose.msra.mxu0 0.0
  %4499 = vmatprep.subr.mxu0 0.0
  %4500 = vmatpush1.xpose.msra.mxu0 0.0
  %4501 = vmatprep.subr.mxu0 0.0
  %4502 = vmatpush1.xpose.msra.mxu0 0.0
  %4503 = vmatprep.subr.mxu0 0.0
  %4504 = vmatpush1.xpose.msra.mxu0 0.0
  %4505 = vmatprep.subr.mxu0 0.0
  %4506 = vmatpush1.xpose.msra.mxu0 0.0
  %4507 = vmatprep.mubr.f32.mxu0 0.0
  %4508 = vmatmul.mubr.f32.gmra.mrb[0].mxu0 %v4429
  %v4509 = vpop.f32.mrb[0].mxu0
  %v4510 = vadd.f32 0.0, %v4509
  %v4511 = vpop.f32.mrb[0].mxu0
  %4512 = vmatprep.mubr.f32.mxu0 0.0
  %4513 = vmatmul.mubr.f32.gmra.mrb[0].mxu0 %v4432
  %v4514 = vpop.f32.mrb[0].mxu0
  %v4515 = vadd.f32 0.0, %v4514
  %v4516 = vpop.f32.mrb[0].mxu0
  %4517 = vmatprep.mubr.f32.mxu0 0.0
  %4518 = vmatmul.mubr.f32.gmra.mrb[0].mxu0 %v4435
  %v4519 = vpop.f32.mrb[0].mxu0
  %v4520 = vadd.f32 0.0, %v4519
  %v4521 = vpop.f32.mrb[0].mxu0
  %4522 = vmatprep.mubr.f32.mxu0 0.0
  %4523 = vmatmul.mubr.f32.gmra.mrb[0].mxu0 %v4438
  %v4524 = vpop.f32.mrb[0].mxu0
  %v4525 = vadd.f32 0.0, %v4524
  %v4526 = vpop.f32.mrb[0].mxu0
  %4527 = vdwg.mxu0
  %v4529 = vsel %vm213, %v4215, 0
  %v4532 = vsel %vm213, %v4219, 0
  %v4535 = vsel %vm213, %v4223, 0
  %v4538 = vsel %vm213, %v4227, 0
  %v4541 = vsel %vm213, %v4114, 0
  %4543 = vmatprep.subr.mxu0 0.0
  %4544 = vmatpush1.xpose.msra.mxu0 %v4541
  %4545 = vmatprep.subr.mxu0 0.0
  %4546 = vmatpush1.xpose.msra.mxu0 0.0
  %4547 = vmatprep.subr.mxu0 0.0
  %4548 = vmatpush1.xpose.msra.mxu0 0.0
  %4549 = vmatprep.subr.mxu0 0.0
  %4550 = vmatpush1.xpose.msra.mxu0 0.0
  %4551 = vmatprep.subr.mxu0 0.0
  %4552 = vmatpush1.xpose.msra.mxu0 0.0
  %4553 = vmatprep.subr.mxu0 0.0
  %4554 = vmatpush1.xpose.msra.mxu0 0.0
  %4555 = vmatprep.subr.mxu0 0.0
  %4556 = vmatpush1.xpose.msra.mxu0 0.0
  %4557 = vmatprep.subr.mxu0 0.0
  %4558 = vmatpush1.xpose.msra.mxu0 0.0
  %4559 = vmatprep.subr.mxu0 0.0
  %4560 = vmatpush1.xpose.msra.mxu0 0.0
  %4561 = vmatprep.subr.mxu0 0.0
  %4562 = vmatpush1.xpose.msra.mxu0 0.0
  %4563 = vmatprep.subr.mxu0 0.0
  %4564 = vmatpush1.xpose.msra.mxu0 0.0
  %4565 = vmatprep.subr.mxu0 0.0
  %4566 = vmatpush1.xpose.msra.mxu0 0.0
  %4567 = vmatprep.subr.mxu0 0.0
  %4568 = vmatpush1.xpose.msra.mxu0 0.0
  %4569 = vmatprep.subr.mxu0 0.0
  %4570 = vmatpush1.xpose.msra.mxu0 0.0
  %4571 = vmatprep.subr.mxu0 0.0
  %4572 = vmatpush1.xpose.msra.mxu0 0.0
  %4573 = vmatprep.subr.mxu0 0.0
  %4574 = vmatpush1.xpose.msra.mxu0 0.0
  %4575 = vmatprep.subr.mxu0 0.0
  %4576 = vmatpush1.xpose.msra.mxu0 0.0
  %4577 = vmatprep.subr.mxu0 0.0
  %4578 = vmatpush1.xpose.msra.mxu0 0.0
  %4579 = vmatprep.subr.mxu0 0.0
  %4580 = vmatpush1.xpose.msra.mxu0 0.0
  %4581 = vmatprep.subr.mxu0 0.0
  %4582 = vmatpush1.xpose.msra.mxu0 0.0
  %4583 = vmatprep.subr.mxu0 0.0
  %4584 = vmatpush1.xpose.msra.mxu0 0.0
  %4585 = vmatprep.subr.mxu0 0.0
  %4586 = vmatpush1.xpose.msra.mxu0 0.0
  %4587 = vmatprep.subr.mxu0 0.0
  %4588 = vmatpush1.xpose.msra.mxu0 0.0
  %4589 = vmatprep.subr.mxu0 0.0
  %4590 = vmatpush1.xpose.msra.mxu0 0.0
  %4591 = vmatprep.subr.mxu0 0.0
  %4592 = vmatpush1.xpose.msra.mxu0 0.0
  %4593 = vmatprep.subr.mxu0 0.0
  %4594 = vmatpush1.xpose.msra.mxu0 0.0
  %4595 = vmatprep.subr.mxu0 0.0
  %4596 = vmatpush1.xpose.msra.mxu0 0.0
  %4597 = vmatprep.subr.mxu0 0.0
  %4598 = vmatpush1.xpose.msra.mxu0 0.0
  %4599 = vmatprep.subr.mxu0 0.0
  %4600 = vmatpush1.xpose.msra.mxu0 0.0
  %4601 = vmatprep.subr.mxu0 0.0
  %4602 = vmatpush1.xpose.msra.mxu0 0.0
  %4603 = vmatprep.subr.mxu0 0.0
  %4604 = vmatpush1.xpose.msra.mxu0 0.0
  %4605 = vmatprep.subr.mxu0 0.0
  %4606 = vmatpush1.xpose.msra.mxu0 0.0
  %4607 = vmatprep.mubr.f32.mxu0 0.0
  %4608 = vmatmul.mubr.f32.gmra.mrb[0].mxu0 %v4529
  %v4609 = vpop.f32.mrb[0].mxu0
  %v4610 = vadd.f32 0.0, %v4609
  %v4611 = vpop.f32.mrb[0].mxu0
  %4612 = vmatprep.mubr.f32.mxu0 0.0
  %4613 = vmatmul.mubr.f32.gmra.mrb[0].mxu0 %v4532
  %v4614 = vpop.f32.mrb[0].mxu0
  %v4615 = vadd.f32 0.0, %v4614
  %v4616 = vpop.f32.mrb[0].mxu0
  %4617 = vmatprep.mubr.f32.mxu0 0.0
  %4618 = vmatmul.mubr.f32.gmra.mrb[0].mxu0 %v4535
  %v4619 = vpop.f32.mrb[0].mxu0
  %v4620 = vadd.f32 0.0, %v4619
  %v4621 = vpop.f32.mrb[0].mxu0
  %4622 = vmatprep.mubr.f32.mxu0 0.0
  %4623 = vmatmul.mubr.f32.gmra.mrb[0].mxu0 %v4538
  %v4624 = vpop.f32.mrb[0].mxu0
  %v4625 = vadd.f32 0.0, %v4624
  %v4626 = vpop.f32.mrb[0].mxu0
  %4627 = vdwg.mxu0
  %v4628 = vsel %vm213, %v4310, -inf
  %4629 = vmax.xlane.f32.xlu0 %v4628
  %v4630 = vpop.xlane.xlu0 %4629
  %v4631 = vsel %vm213, %v4315, -inf
  %4632 = vmax.xlane.f32.xlu0 %v4631
  %v4633 = vpop.xlane.xlu0 %4632
  %v4634 = vsel %vm213, %v4320, -inf
  %4635 = vmax.xlane.f32.xlu0 %v4634
  %v4636 = vpop.xlane.xlu0 %4635
  %v4637 = vsel %vm213, %v4325, -inf
  %4638 = vmax.xlane.f32.xlu0 %v4637
  %v4639 = vpop.xlane.xlu0 %4638
  %v4640 = vsel %vm213, %v4410, -inf
  %4641 = vmax.xlane.f32.xlu0 %v4640
  %v4642 = vpop.xlane.xlu0 %4641
  %v4643 = vsel %vm213, %v4415, -inf
  %4644 = vmax.xlane.f32.xlu0 %v4643
  %v4645 = vpop.xlane.xlu0 %4644
  %v4646 = vsel %vm213, %v4420, -inf
  %4647 = vmax.xlane.f32.xlu0 %v4646
  %v4648 = vpop.xlane.xlu0 %4647
  %v4649 = vsel %vm213, %v4425, -inf
  %4650 = vmax.xlane.f32.xlu0 %v4649
  %v4651 = vpop.xlane.xlu0 %4650
  %v4652 = vsel %vm213, %v4510, -inf
  %4653 = vmax.xlane.f32.xlu0 %v4652
  %v4654 = vpop.xlane.xlu0 %4653
  %v4655 = vsel %vm213, %v4515, -inf
  %4656 = vmax.xlane.f32.xlu0 %v4655
  %v4657 = vpop.xlane.xlu0 %4656
  %v4658 = vsel %vm213, %v4520, -inf
  %4659 = vmax.xlane.f32.xlu0 %v4658
  %v4660 = vpop.xlane.xlu0 %4659
  %v4661 = vsel %vm213, %v4525, -inf
  %4662 = vmax.xlane.f32.xlu0 %v4661
  %v4663 = vpop.xlane.xlu0 %4662
  %v4664 = vsel %vm213, %v4610, -inf
  %4665 = vmax.xlane.f32.xlu0 %v4664
  %v4666 = vpop.xlane.xlu0 %4665
  %v4667 = vsel %vm213, %v4615, -inf
  %4668 = vmax.xlane.f32.xlu0 %v4667
  %v4669 = vpop.xlane.xlu0 %4668
  %v4670 = vsel %vm213, %v4620, -inf
  %4671 = vmax.xlane.f32.xlu0 %v4670
  %v4672 = vpop.xlane.xlu0 %4671
  %v4673 = vsel %vm213, %v4625, -inf
  %4674 = vmax.xlane.f32.xlu0 %v4673
  %v4675 = vpop.xlane.xlu0 %4674
  %v4676 = vsub.f32 %v4310, %v4630
  %v4677 = vsub.f32 %v4315, %v4633
  %v4678 = vsub.f32 %v4320, %v4636
  %v4679 = vsub.f32 %v4325, %v4639
  %v4680 = vsub.f32 %v4410, %v4642
  %v4681 = vsub.f32 %v4415, %v4645
  %v4682 = vsub.f32 %v4420, %v4648
  %v4683 = vsub.f32 %v4425, %v4651
  %v4684 = vsub.f32 %v4510, %v4654
  %v4685 = vsub.f32 %v4515, %v4657
  %v4686 = vsub.f32 %v4520, %v4660
  %v4687 = vsub.f32 %v4525, %v4663
  %v4688 = vsub.f32 %v4610, %v4666
  %v4689 = vsub.f32 %v4615, %v4669
  %v4690 = vsub.f32 %v4620, %v4672
  %v4691 = vsub.f32 %v4625, %v4675
  %v4692 = vmul.f32 %v4676, 1.442695
  %v4693 = vpow.pop %v4692
  %v4694 = vmul.f32 %v4677, 1.442695
  %v4695 = vpow.pop %v4694
  %v4696 = vmul.f32 %v4678, 1.442695
  %v4697 = vpow.pop %v4696
  %v4698 = vmul.f32 %v4679, 1.442695
  %v4699 = vpow.pop %v4698
  %v4700 = vmul.f32 %v4680, 1.442695
  %v4701 = vpow.pop %v4700
  %v4702 = vmul.f32 %v4681, 1.442695
  %v4703 = vpow.pop %v4702
  %v4704 = vmul.f32 %v4682, 1.442695
  %v4705 = vpow.pop %v4704
  %v4706 = vmul.f32 %v4683, 1.442695
  %v4707 = vpow.pop %v4706
  %v4708 = vmul.f32 %v4684, 1.442695
  %v4709 = vpow.pop %v4708
  %v4710 = vmul.f32 %v4685, 1.442695
  %v4711 = vpow.pop %v4710
  %v4712 = vmul.f32 %v4686, 1.442695
  %v4713 = vpow.pop %v4712
  %v4714 = vmul.f32 %v4687, 1.442695
  %v4715 = vpow.pop %v4714
  %v4716 = vmul.f32 %v4688, 1.442695
  %v4717 = vpow.pop %v4716
  %v4718 = vmul.f32 %v4689, 1.442695
  %v4719 = vpow.pop %v4718
  %v4720 = vmul.f32 %v4690, 1.442695
  %v4721 = vpow.pop %v4720
  %v4722 = vmul.f32 %v4691, 1.442695
  %v4723 = vpow.pop %v4722
  %v4724 = vsel %vm213, %v4693, 0.0
  %4725 = vadd.xlane.f32.xlu0 %v4724
  %v4726 = vpop.xlane.xlu0 %4725
  %v4727 = vsel %vm213, %v4695, 0.0
  %4728 = vadd.xlane.f32.xlu0 %v4727
  %v4729 = vpop.xlane.xlu0 %4728
  %v4730 = vsel %vm213, %v4697, 0.0
  %4731 = vadd.xlane.f32.xlu0 %v4730
  %v4732 = vpop.xlane.xlu0 %4731
  %v4733 = vsel %vm213, %v4699, 0.0
  %4734 = vadd.xlane.f32.xlu0 %v4733
  %v4735 = vpop.xlane.xlu0 %4734
  %v4736 = vsel %vm213, %v4701, 0.0
  %4737 = vadd.xlane.f32.xlu0 %v4736
  %v4738 = vpop.xlane.xlu0 %4737
  %v4739 = vsel %vm213, %v4703, 0.0
  %4740 = vadd.xlane.f32.xlu0 %v4739
  %v4741 = vpop.xlane.xlu0 %4740
  %v4742 = vsel %vm213, %v4705, 0.0
  %4743 = vadd.xlane.f32.xlu0 %v4742
  %v4744 = vpop.xlane.xlu0 %4743
  %v4745 = vsel %vm213, %v4707, 0.0
  %4746 = vadd.xlane.f32.xlu0 %v4745
  %v4747 = vpop.xlane.xlu0 %4746
  %v4748 = vsel %vm213, %v4709, 0.0
  %4749 = vadd.xlane.f32.xlu0 %v4748
  %v4750 = vpop.xlane.xlu0 %4749
  %v4751 = vsel %vm213, %v4711, 0.0
  %4752 = vadd.xlane.f32.xlu0 %v4751
  %v4753 = vpop.xlane.xlu0 %4752
  %v4754 = vsel %vm213, %v4713, 0.0
  %4755 = vadd.xlane.f32.xlu0 %v4754
  %v4756 = vpop.xlane.xlu0 %4755
  %v4757 = vsel %vm213, %v4715, 0.0
  %4758 = vadd.xlane.f32.xlu0 %v4757
  %v4759 = vpop.xlane.xlu0 %4758
  %v4760 = vsel %vm213, %v4717, 0.0
  %4761 = vadd.xlane.f32.xlu0 %v4760
  %v4762 = vpop.xlane.xlu0 %4761
  %v4763 = vsel %vm213, %v4719, 0.0
  %4764 = vadd.xlane.f32.xlu0 %v4763
  %v4765 = vpop.xlane.xlu0 %4764
  %v4766 = vsel %vm213, %v4721, 0.0
  %4767 = vadd.xlane.f32.xlu0 %v4766
  %v4768 = vpop.xlane.xlu0 %4767
  %v4769 = vsel %vm213, %v4723, 0.0
  %4770 = vadd.xlane.f32.xlu0 %v4769
  %v4771 = vpop.xlane.xlu0 %4770
  %v4772 = vrcp.pop %v4726
  %v4773 = vrcp.pop %v4729
  %v4774 = vrcp.pop %v4732
  %v4775 = vrcp.pop %v4735
  %v4776 = vrcp.pop %v4738
  %v4777 = vrcp.pop %v4741
  %v4778 = vrcp.pop %v4744
  %v4779 = vrcp.pop %v4747
  %v4780 = vrcp.pop %v4750
  %v4781 = vrcp.pop %v4753
  %v4782 = vrcp.pop %v4756
  %v4783 = vrcp.pop %v4759
  %v4784 = vrcp.pop %v4762
  %v4785 = vrcp.pop %v4765
  %v4786 = vrcp.pop %v4768
  %v4787 = vrcp.pop %v4771
  %v4788 = vmul.f32 %v4693, %v4772
  %v4789 = vmul.f32 %v4695, %v4773
  %v4790 = vmul.f32 %v4697, %v4774
  %v4791 = vmul.f32 %v4699, %v4775
  %v4792 = vmul.f32 %v4701, %v4776
  %v4793 = vmul.f32 %v4703, %v4777
  %v4794 = vmul.f32 %v4705, %v4778
  %v4795 = vmul.f32 %v4707, %v4779
  %v4796 = vmul.f32 %v4709, %v4780
  %v4797 = vmul.f32 %v4711, %v4781
  %v4798 = vmul.f32 %v4713, %v4782
  %v4799 = vmul.f32 %v4715, %v4783
  %v4800 = vmul.f32 %v4717, %v4784
  %v4801 = vmul.f32 %v4719, %v4785
  %v4802 = vmul.f32 %v4721, %v4786
  %v4803 = vmul.f32 %v4723, %v4787
  %v4805 = vsel %vm213, %v4788, 0
  %v4808 = vsel %vm213, %v4789, 0
  %v4811 = vsel %vm213, %v4790, 0
  %v4814 = vsel %vm213, %v4791, 0
  %4816 = vmatprep.subr.mxu0 0.0
  %4817 = vmatpush1.msra.mxu0 %v4194
  %4818 = vmatprep.subr.mxu0 0.0
  %4819 = vmatpush1.msra.mxu0 0.0
  %4820 = vmatprep.subr.mxu0 0.0
  %4821 = vmatpush1.msra.mxu0 0.0
  %4822 = vmatprep.subr.mxu0 0.0
  %4823 = vmatpush1.msra.mxu0 0.0
  %4824 = vmatprep.subr.mxu0 0.0
  %4825 = vmatpush1.msra.mxu0 0.0
  %4826 = vmatprep.subr.mxu0 0.0
  %4827 = vmatpush1.msra.mxu0 0.0
  %4828 = vmatprep.subr.mxu0 0.0
  %4829 = vmatpush1.msra.mxu0 0.0
  %4830 = vmatprep.subr.mxu0 0.0
  %4831 = vmatpush1.msra.mxu0 0.0
  %4832 = vmatprep.subr.mxu0 0.0
  %4833 = vmatpush1.msra.mxu0 0.0
  %4834 = vmatprep.subr.mxu0 0.0
  %4835 = vmatpush1.msra.mxu0 0.0
  %4836 = vmatprep.subr.mxu0 0.0
  %4837 = vmatpush1.msra.mxu0 0.0
  %4838 = vmatprep.subr.mxu0 0.0
  %4839 = vmatpush1.msra.mxu0 0.0
  %4840 = vmatprep.subr.mxu0 0.0
  %4841 = vmatpush1.msra.mxu0 0.0
  %4842 = vmatprep.subr.mxu0 0.0
  %4843 = vmatpush1.msra.mxu0 0.0
  %4844 = vmatprep.subr.mxu0 0.0
  %4845 = vmatpush1.msra.mxu0 0.0
  %4846 = vmatprep.subr.mxu0 0.0
  %4847 = vmatpush1.msra.mxu0 0.0
  %4848 = vmatprep.subr.mxu0 0.0
  %4849 = vmatpush1.msra.mxu0 0.0
  %4850 = vmatprep.subr.mxu0 0.0
  %4851 = vmatpush1.msra.mxu0 0.0
  %4852 = vmatprep.subr.mxu0 0.0
  %4853 = vmatpush1.msra.mxu0 0.0
  %4854 = vmatprep.subr.mxu0 0.0
  %4855 = vmatpush1.msra.mxu0 0.0
  %4856 = vmatprep.subr.mxu0 0.0
  %4857 = vmatpush1.msra.mxu0 0.0
  %4858 = vmatprep.subr.mxu0 0.0
  %4859 = vmatpush1.msra.mxu0 0.0
  %4860 = vmatprep.subr.mxu0 0.0
  %4861 = vmatpush1.msra.mxu0 0.0
  %4862 = vmatprep.subr.mxu0 0.0
  %4863 = vmatpush1.msra.mxu0 0.0
  %4864 = vmatprep.subr.mxu0 0.0
  %4865 = vmatpush1.msra.mxu0 0.0
  %4866 = vmatprep.subr.mxu0 0.0
  %4867 = vmatpush1.msra.mxu0 0.0
  %4868 = vmatprep.subr.mxu0 0.0
  %4869 = vmatpush1.msra.mxu0 0.0
  %4870 = vmatprep.subr.mxu0 0.0
  %4871 = vmatpush1.msra.mxu0 0.0
  %4872 = vmatprep.subr.mxu0 0.0
  %4873 = vmatpush1.msra.mxu0 0.0
  %4874 = vmatprep.subr.mxu0 0.0
  %4875 = vmatpush1.msra.mxu0 0.0
  %4876 = vmatprep.subr.mxu0 0.0
  %4877 = vmatpush1.msra.mxu0 0.0
  %4878 = vmatprep.subr.mxu0 0.0
  %4879 = vmatpush1.msra.mxu0 0.0
  %4880 = vmatprep.mubr.f32.mxu0 0.0
  %4881 = vmatmul.mubr.f32.gmra.mrb[0].mxu0 %v4805
  %v4882 = vpop.f32.mrb[0].mxu0
  %v4883 = vadd.f32 0.0, %v4882
  %v4884 = vpop.f32.mrb[0].mxu0
  %4885 = vmatprep.mubr.f32.mxu0 0.0
  %4886 = vmatmul.mubr.f32.gmra.mrb[0].mxu0 %v4808
  %v4887 = vpop.f32.mrb[0].mxu0
  %v4888 = vadd.f32 0.0, %v4887
  %v4889 = vpop.f32.mrb[0].mxu0
  %4890 = vmatprep.mubr.f32.mxu0 0.0
  %4891 = vmatmul.mubr.f32.gmra.mrb[0].mxu0 %v4811
  %v4892 = vpop.f32.mrb[0].mxu0
  %v4893 = vadd.f32 0.0, %v4892
  %v4894 = vpop.f32.mrb[0].mxu0
  %4895 = vmatprep.mubr.f32.mxu0 0.0
  %4896 = vmatmul.mubr.f32.gmra.mrb[0].mxu0 %v4814
  %v4897 = vpop.f32.mrb[0].mxu0
  %v4898 = vadd.f32 0.0, %v4897
  %v4899 = vpop.f32.mrb[0].mxu0
  %4900 = vdwg.mxu0
  %v4902 = vsel %vm213, %v4792, 0
  %v4905 = vsel %vm213, %v4793, 0
  %v4908 = vsel %vm213, %v4794, 0
  %v4911 = vsel %vm213, %v4795, 0
  %4913 = vmatprep.subr.mxu0 0.0
  %4914 = vmatpush1.msra.mxu0 %v4199
  %4915 = vmatprep.subr.mxu0 0.0
  %4916 = vmatpush1.msra.mxu0 0.0
  %4917 = vmatprep.subr.mxu0 0.0
  %4918 = vmatpush1.msra.mxu0 0.0
  %4919 = vmatprep.subr.mxu0 0.0
  %4920 = vmatpush1.msra.mxu0 0.0
  %4921 = vmatprep.subr.mxu0 0.0
  %4922 = vmatpush1.msra.mxu0 0.0
  %4923 = vmatprep.subr.mxu0 0.0
  %4924 = vmatpush1.msra.mxu0 0.0
  %4925 = vmatprep.subr.mxu0 0.0
  %4926 = vmatpush1.msra.mxu0 0.0
  %4927 = vmatprep.subr.mxu0 0.0
  %4928 = vmatpush1.msra.mxu0 0.0
  %4929 = vmatprep.subr.mxu0 0.0
  %4930 = vmatpush1.msra.mxu0 0.0
  %4931 = vmatprep.subr.mxu0 0.0
  %4932 = vmatpush1.msra.mxu0 0.0
  %4933 = vmatprep.subr.mxu0 0.0
  %4934 = vmatpush1.msra.mxu0 0.0
  %4935 = vmatprep.subr.mxu0 0.0
  %4936 = vmatpush1.msra.mxu0 0.0
  %4937 = vmatprep.subr.mxu0 0.0
  %4938 = vmatpush1.msra.mxu0 0.0
  %4939 = vmatprep.subr.mxu0 0.0
  %4940 = vmatpush1.msra.mxu0 0.0
  %4941 = vmatprep.subr.mxu0 0.0
  %4942 = vmatpush1.msra.mxu0 0.0
  %4943 = vmatprep.subr.mxu0 0.0
  %4944 = vmatpush1.msra.mxu0 0.0
  %4945 = vmatprep.subr.mxu0 0.0
  %4946 = vmatpush1.msra.mxu0 0.0
  %4947 = vmatprep.subr.mxu0 0.0
  %4948 = vmatpush1.msra.mxu0 0.0
  %4949 = vmatprep.subr.mxu0 0.0
  %4950 = vmatpush1.msra.mxu0 0.0
  %4951 = vmatprep.subr.mxu0 0.0
  %4952 = vmatpush1.msra.mxu0 0.0
  %4953 = vmatprep.subr.mxu0 0.0
  %4954 = vmatpush1.msra.mxu0 0.0
  %4955 = vmatprep.subr.mxu0 0.0
  %4956 = vmatpush1.msra.mxu0 0.0
  %4957 = vmatprep.subr.mxu0 0.0
  %4958 = vmatpush1.msra.mxu0 0.0
  %4959 = vmatprep.subr.mxu0 0.0
  %4960 = vmatpush1.msra.mxu0 0.0
  %4961 = vmatprep.subr.mxu0 0.0
  %4962 = vmatpush1.msra.mxu0 0.0
  %4963 = vmatprep.subr.mxu0 0.0
  %4964 = vmatpush1.msra.mxu0 0.0
  %4965 = vmatprep.subr.mxu0 0.0
  %4966 = vmatpush1.msra.mxu0 0.0
  %4967 = vmatprep.subr.mxu0 0.0
  %4968 = vmatpush1.msra.mxu0 0.0
  %4969 = vmatprep.subr.mxu0 0.0
  %4970 = vmatpush1.msra.mxu0 0.0
  %4971 = vmatprep.subr.mxu0 0.0
  %4972 = vmatpush1.msra.mxu0 0.0
  %4973 = vmatprep.subr.mxu0 0.0
  %4974 = vmatpush1.msra.mxu0 0.0
  %4975 = vmatprep.subr.mxu0 0.0
  %4976 = vmatpush1.msra.mxu0 0.0
  %4977 = vmatprep.mubr.f32.mxu0 0.0
  %4978 = vmatmul.mubr.f32.gmra.mrb[0].mxu0 %v4902
  %v4979 = vpop.f32.mrb[0].mxu0
  %v4980 = vadd.f32 0.0, %v4979
  %v4981 = vpop.f32.mrb[0].mxu0
  %4982 = vmatprep.mubr.f32.mxu0 0.0
  %4983 = vmatmul.mubr.f32.gmra.mrb[0].mxu0 %v4905
  %v4984 = vpop.f32.mrb[0].mxu0
  %v4985 = vadd.f32 0.0, %v4984
  %v4986 = vpop.f32.mrb[0].mxu0
  %4987 = vmatprep.mubr.f32.mxu0 0.0
  %4988 = vmatmul.mubr.f32.gmra.mrb[0].mxu0 %v4908
  %v4989 = vpop.f32.mrb[0].mxu0
  %v4990 = vadd.f32 0.0, %v4989
  %v4991 = vpop.f32.mrb[0].mxu0
  %4992 = vmatprep.mubr.f32.mxu0 0.0
  %4993 = vmatmul.mubr.f32.gmra.mrb[0].mxu0 %v4911
  %v4994 = vpop.f32.mrb[0].mxu0
  %v4995 = vadd.f32 0.0, %v4994
  %v4996 = vpop.f32.mrb[0].mxu0
  %4997 = vdwg.mxu0
  %v4999 = vsel %vm213, %v4796, 0
  %v5002 = vsel %vm213, %v4797, 0
  %v5005 = vsel %vm213, %v4798, 0
  %v5008 = vsel %vm213, %v4799, 0
  %5010 = vmatprep.subr.mxu0 0.0
  %5011 = vmatpush1.msra.mxu0 %v4204
  %5012 = vmatprep.subr.mxu0 0.0
  %5013 = vmatpush1.msra.mxu0 0.0
  %5014 = vmatprep.subr.mxu0 0.0
  %5015 = vmatpush1.msra.mxu0 0.0
  %5016 = vmatprep.subr.mxu0 0.0
  %5017 = vmatpush1.msra.mxu0 0.0
  %5018 = vmatprep.subr.mxu0 0.0
  %5019 = vmatpush1.msra.mxu0 0.0
  %5020 = vmatprep.subr.mxu0 0.0
  %5021 = vmatpush1.msra.mxu0 0.0
  %5022 = vmatprep.subr.mxu0 0.0
  %5023 = vmatpush1.msra.mxu0 0.0
  %5024 = vmatprep.subr.mxu0 0.0
  %5025 = vmatpush1.msra.mxu0 0.0
  %5026 = vmatprep.subr.mxu0 0.0
  %5027 = vmatpush1.msra.mxu0 0.0
  %5028 = vmatprep.subr.mxu0 0.0
  %5029 = vmatpush1.msra.mxu0 0.0
  %5030 = vmatprep.subr.mxu0 0.0
  %5031 = vmatpush1.msra.mxu0 0.0
  %5032 = vmatprep.subr.mxu0 0.0
  %5033 = vmatpush1.msra.mxu0 0.0
  %5034 = vmatprep.subr.mxu0 0.0
  %5035 = vmatpush1.msra.mxu0 0.0
  %5036 = vmatprep.subr.mxu0 0.0
  %5037 = vmatpush1.msra.mxu0 0.0
  %5038 = vmatprep.subr.mxu0 0.0
  %5039 = vmatpush1.msra.mxu0 0.0
  %5040 = vmatprep.subr.mxu0 0.0
  %5041 = vmatpush1.msra.mxu0 0.0
  %5042 = vmatprep.subr.mxu0 0.0
  %5043 = vmatpush1.msra.mxu0 0.0
  %5044 = vmatprep.subr.mxu0 0.0
  %5045 = vmatpush1.msra.mxu0 0.0
  %5046 = vmatprep.subr.mxu0 0.0
  %5047 = vmatpush1.msra.mxu0 0.0
  %5048 = vmatprep.subr.mxu0 0.0
  %5049 = vmatpush1.msra.mxu0 0.0
  %5050 = vmatprep.subr.mxu0 0.0
  %5051 = vmatpush1.msra.mxu0 0.0
  %5052 = vmatprep.subr.mxu0 0.0
  %5053 = vmatpush1.msra.mxu0 0.0
  %5054 = vmatprep.subr.mxu0 0.0
  %5055 = vmatpush1.msra.mxu0 0.0
  %5056 = vmatprep.subr.mxu0 0.0
  %5057 = vmatpush1.msra.mxu0 0.0
  %5058 = vmatprep.subr.mxu0 0.0
  %5059 = vmatpush1.msra.mxu0 0.0
  %5060 = vmatprep.subr.mxu0 0.0
  %5061 = vmatpush1.msra.mxu0 0.0
  %5062 = vmatprep.subr.mxu0 0.0
  %5063 = vmatpush1.msra.mxu0 0.0
  %5064 = vmatprep.subr.mxu0 0.0
  %5065 = vmatpush1.msra.mxu0 0.0
  %5066 = vmatprep.subr.mxu0 0.0
  %5067 = vmatpush1.msra.mxu0 0.0
  %5068 = vmatprep.subr.mxu0 0.0
  %5069 = vmatpush1.msra.mxu0 0.0
  %5070 = vmatprep.subr.mxu0 0.0
  %5071 = vmatpush1.msra.mxu0 0.0
  %5072 = vmatprep.subr.mxu0 0.0
  %5073 = vmatpush1.msra.mxu0 0.0
  %5074 = vmatprep.mubr.f32.mxu0 0.0
  %5075 = vmatmul.mubr.f32.gmra.mrb[0].mxu0 %v4999
  %v5076 = vpop.f32.mrb[0].mxu0
  %v5077 = vadd.f32 0.0, %v5076
  %v5078 = vpop.f32.mrb[0].mxu0
  %5079 = vmatprep.mubr.f32.mxu0 0.0
  %5080 = vmatmul.mubr.f32.gmra.mrb[0].mxu0 %v5002
  %v5081 = vpop.f32.mrb[0].mxu0
  %v5082 = vadd.f32 0.0, %v5081
  %v5083 = vpop.f32.mrb[0].mxu0
  %5084 = vmatprep.mubr.f32.mxu0 0.0
  %5085 = vmatmul.mubr.f32.gmra.mrb[0].mxu0 %v5005
  %v5086 = vpop.f32.mrb[0].mxu0
  %v5087 = vadd.f32 0.0, %v5086
  %v5088 = vpop.f32.mrb[0].mxu0
  %5089 = vmatprep.mubr.f32.mxu0 0.0
  %5090 = vmatmul.mubr.f32.gmra.mrb[0].mxu0 %v5008
  %v5091 = vpop.f32.mrb[0].mxu0
  %v5092 = vadd.f32 0.0, %v5091
  %v5093 = vpop.f32.mrb[0].mxu0
  %5094 = vdwg.mxu0
  %v5096 = vsel %vm213, %v4800, 0
  %v5099 = vsel %vm213, %v4801, 0
  %v5102 = vsel %vm213, %v4802, 0
  %v5105 = vsel %vm213, %v4803, 0
  %5107 = vmatprep.subr.mxu0 0.0
  %5108 = vmatpush1.msra.mxu0 %v4209
  %5109 = vmatprep.subr.mxu0 0.0
  %5110 = vmatpush1.msra.mxu0 0.0
  %5111 = vmatprep.subr.mxu0 0.0
  %5112 = vmatpush1.msra.mxu0 0.0
  %5113 = vmatprep.subr.mxu0 0.0
  %5114 = vmatpush1.msra.mxu0 0.0
  %5115 = vmatprep.subr.mxu0 0.0
  %5116 = vmatpush1.msra.mxu0 0.0
  %5117 = vmatprep.subr.mxu0 0.0
  %5118 = vmatpush1.msra.mxu0 0.0
  %5119 = vmatprep.subr.mxu0 0.0
  %5120 = vmatpush1.msra.mxu0 0.0
  %5121 = vmatprep.subr.mxu0 0.0
  %5122 = vmatpush1.msra.mxu0 0.0
  %5123 = vmatprep.subr.mxu0 0.0
  %5124 = vmatpush1.msra.mxu0 0.0
  %5125 = vmatprep.subr.mxu0 0.0
  %5126 = vmatpush1.msra.mxu0 0.0
  %5127 = vmatprep.subr.mxu0 0.0
  %5128 = vmatpush1.msra.mxu0 0.0
  %5129 = vmatprep.subr.mxu0 0.0
  %5130 = vmatpush1.msra.mxu0 0.0
  %5131 = vmatprep.subr.mxu0 0.0
  %5132 = vmatpush1.msra.mxu0 0.0
  %5133 = vmatprep.subr.mxu0 0.0
  %5134 = vmatpush1.msra.mxu0 0.0
  %5135 = vmatprep.subr.mxu0 0.0
  %5136 = vmatpush1.msra.mxu0 0.0
  %5137 = vmatprep.subr.mxu0 0.0
  %5138 = vmatpush1.msra.mxu0 0.0
  %5139 = vmatprep.subr.mxu0 0.0
  %5140 = vmatpush1.msra.mxu0 0.0
  %5141 = vmatprep.subr.mxu0 0.0
  %5142 = vmatpush1.msra.mxu0 0.0
  %5143 = vmatprep.subr.mxu0 0.0
  %5144 = vmatpush1.msra.mxu0 0.0
  %5145 = vmatprep.subr.mxu0 0.0
  %5146 = vmatpush1.msra.mxu0 0.0
  %5147 = vmatprep.subr.mxu0 0.0
  %5148 = vmatpush1.msra.mxu0 0.0
  %5149 = vmatprep.subr.mxu0 0.0
  %5150 = vmatpush1.msra.mxu0 0.0
  %5151 = vmatprep.subr.mxu0 0.0
  %5152 = vmatpush1.msra.mxu0 0.0
  %5153 = vmatprep.subr.mxu0 0.0
  %5154 = vmatpush1.msra.mxu0 0.0
  %5155 = vmatprep.subr.mxu0 0.0
  %5156 = vmatpush1.msra.mxu0 0.0
  %5157 = vmatprep.subr.mxu0 0.0
  %5158 = vmatpush1.msra.mxu0 0.0
  %5159 = vmatprep.subr.mxu0 0.0
  %5160 = vmatpush1.msra.mxu0 0.0
  %5161 = vmatprep.subr.mxu0 0.0
  %5162 = vmatpush1.msra.mxu0 0.0
  %5163 = vmatprep.subr.mxu0 0.0
  %5164 = vmatpush1.msra.mxu0 0.0
  %5165 = vmatprep.subr.mxu0 0.0
  %5166 = vmatpush1.msra.mxu0 0.0
  %5167 = vmatprep.subr.mxu0 0.0
  %5168 = vmatpush1.msra.mxu0 0.0
  %5169 = vmatprep.subr.mxu0 0.0
  %5170 = vmatpush1.msra.mxu0 0.0
  %5171 = vmatprep.mubr.f32.mxu0 0.0
  %5172 = vmatmul.mubr.f32.gmra.mrb[0].mxu0 %v5096
  %v5173 = vpop.f32.mrb[0].mxu0
  %v5174 = vadd.f32 0.0, %v5173
  %v5175 = vpop.f32.mrb[0].mxu0
  %5176 = vmatprep.mubr.f32.mxu0 0.0
  %5177 = vmatmul.mubr.f32.gmra.mrb[0].mxu0 %v5099
  %v5178 = vpop.f32.mrb[0].mxu0
  %v5179 = vadd.f32 0.0, %v5178
  %v5180 = vpop.f32.mrb[0].mxu0
  %5181 = vmatprep.mubr.f32.mxu0 0.0
  %5182 = vmatmul.mubr.f32.gmra.mrb[0].mxu0 %v5102
  %v5183 = vpop.f32.mrb[0].mxu0
  %v5184 = vadd.f32 0.0, %v5183
  %v5185 = vpop.f32.mrb[0].mxu0
  %5186 = vmatprep.mubr.f32.mxu0 0.0
  %5187 = vmatmul.mubr.f32.gmra.mrb[0].mxu0 %v5105
  %v5188 = vpop.f32.mrb[0].mxu0
  %v5189 = vadd.f32 0.0, %v5188
  %v5190 = vpop.f32.mrb[0].mxu0
  %5191 = vdwg.mxu0
  %v5192 = vmul.f32 %v4883, %v500
  %v5193 = vmul.f32 %v4980, %v500
  %v5194 = vmul.f32 %v5077, %v500
  %v5195 = vmul.f32 %v5174, %v500
  %v5196 = vmul.f32 %v4888, %v508
  %v5197 = vmul.f32 %v4985, %v508
  %v5198 = vmul.f32 %v5082, %v508
  %v5199 = vmul.f32 %v5179, %v508
  %v5200 = vadd.f32 %v5192, %v5196
  %v5201 = vadd.f32 %v5193, %v5197
  %v5202 = vadd.f32 %v5194, %v5198
  %v5203 = vadd.f32 %v5195, %v5199
  %v5204 = vmul.f32 %v4893, %v516
  %v5205 = vmul.f32 %v4990, %v516
  %v5206 = vmul.f32 %v5087, %v516
  %v5207 = vmul.f32 %v5184, %v516
  %v5208 = vadd.f32 %v5200, %v5204
  %v5209 = vadd.f32 %v5201, %v5205
  %v5210 = vadd.f32 %v5202, %v5206
  %v5211 = vadd.f32 %v5203, %v5207
  %v5212 = vmul.f32 %v4898, %v524
  %v5213 = vmul.f32 %v4995, %v524
  %v5214 = vmul.f32 %v5092, %v524
  %v5215 = vmul.f32 %v5189, %v524
  %v5216 = vadd.f32 %v5208, %v5212
  %v5217 = vadd.f32 %v5209, %v5213
  %v5218 = vadd.f32 %v5210, %v5214
  %v5219 = vadd.f32 %v5211, %v5215
  %s5220 = scalar_lea.vmem %s11, 8
  %v5221 = vld [vmem:[%s5220] sm:$0xff]
  %s5222 = scalar_lea.vmem %s12, 1
  %v5223 = vld [vmem:[%s5222] sm:$0x1]
  %v5225 = vlaneseq
  %v5226 = vshrl.u32 %v5225, 7
  %v5227 = vsub.s32 0, %v5226
  %v5228 = vrot.slane %v5223, %v5227
  %v5231 = vsel %vm213, %v5216, 0
  %v5234 = vsel %vm213, %v5217, 0
  %v5237 = vsel %vm213, %v5218, 0
  %v5240 = vsel %vm213, %v5219, 0
  %5242 = vmatprep.subr.mxu0 0.0
  %5243 = vmatpush1.msra.mxu0 %v5221
  %5244 = vmatprep.subr.mxu0 0.0
  %5245 = vmatpush1.msra.mxu0 0.0
  %5246 = vmatprep.subr.mxu0 0.0
  %5247 = vmatpush1.msra.mxu0 0.0
  %5248 = vmatprep.subr.mxu0 0.0
  %5249 = vmatpush1.msra.mxu0 0.0
  %5250 = vmatprep.subr.mxu0 0.0
  %5251 = vmatpush1.msra.mxu0 0.0
  %5252 = vmatprep.subr.mxu0 0.0
  %5253 = vmatpush1.msra.mxu0 0.0
  %5254 = vmatprep.subr.mxu0 0.0
  %5255 = vmatpush1.msra.mxu0 0.0
  %5256 = vmatprep.subr.mxu0 0.0
  %5257 = vmatpush1.msra.mxu0 0.0
  %5258 = vmatprep.subr.mxu0 0.0
  %5259 = vmatpush1.msra.mxu0 0.0
  %5260 = vmatprep.subr.mxu0 0.0
  %5261 = vmatpush1.msra.mxu0 0.0
  %5262 = vmatprep.subr.mxu0 0.0
  %5263 = vmatpush1.msra.mxu0 0.0
  %5264 = vmatprep.subr.mxu0 0.0
  %5265 = vmatpush1.msra.mxu0 0.0
  %5266 = vmatprep.subr.mxu0 0.0
  %5267 = vmatpush1.msra.mxu0 0.0
  %5268 = vmatprep.subr.mxu0 0.0
  %5269 = vmatpush1.msra.mxu0 0.0
  %5270 = vmatprep.subr.mxu0 0.0
  %5271 = vmatpush1.msra.mxu0 0.0
  %5272 = vmatprep.subr.mxu0 0.0
  %5273 = vmatpush1.msra.mxu0 0.0
  %5274 = vmatprep.subr.mxu0 0.0
  %5275 = vmatpush1.msra.mxu0 0.0
  %5276 = vmatprep.subr.mxu0 0.0
  %5277 = vmatpush1.msra.mxu0 0.0
  %5278 = vmatprep.subr.mxu0 0.0
  %5279 = vmatpush1.msra.mxu0 0.0
  %5280 = vmatprep.subr.mxu0 0.0
  %5281 = vmatpush1.msra.mxu0 0.0
  %5282 = vmatprep.subr.mxu0 0.0
  %5283 = vmatpush1.msra.mxu0 0.0
  %5284 = vmatprep.subr.mxu0 0.0
  %5285 = vmatpush1.msra.mxu0 0.0
  %5286 = vmatprep.subr.mxu0 0.0
  %5287 = vmatpush1.msra.mxu0 0.0
  %5288 = vmatprep.subr.mxu0 0.0
  %5289 = vmatpush1.msra.mxu0 0.0
  %5290 = vmatprep.subr.mxu0 0.0
  %5291 = vmatpush1.msra.mxu0 0.0
  %5292 = vmatprep.subr.mxu0 0.0
  %5293 = vmatpush1.msra.mxu0 0.0
  %5294 = vmatprep.subr.mxu0 0.0
  %5295 = vmatpush1.msra.mxu0 0.0
  %5296 = vmatprep.subr.mxu0 0.0
  %5297 = vmatpush1.msra.mxu0 0.0
  %5298 = vmatprep.subr.mxu0 0.0
  %5299 = vmatpush1.msra.mxu0 0.0
  %5300 = vmatprep.subr.mxu0 0.0
  %5301 = vmatpush1.msra.mxu0 0.0
  %5302 = vmatprep.subr.mxu0 0.0
  %5303 = vmatpush1.msra.mxu0 0.0
  %5304 = vmatprep.subr.mxu0 0.0
  %5305 = vmatpush1.msra.mxu0 0.0
  %5306 = vmatprep.mubr.f32.mxu0 0.0
  %5307 = vmatmul.mubr.f32.gmra.mrb[0].mxu0 %v5231
  %v5308 = vpop.f32.mrb[0].mxu0
  %v5309 = vadd.f32 %v5228, %v5308
  %v5310 = vpop.f32.mrb[0].mxu0
  %5311 = vmatprep.mubr.f32.mxu0 0.0
  %5312 = vmatmul.mubr.f32.gmra.mrb[0].mxu0 %v5234
  %v5313 = vpop.f32.mrb[0].mxu0
  %v5314 = vadd.f32 %v5228, %v5313
  %v5315 = vpop.f32.mrb[0].mxu0
  %5316 = vmatprep.mubr.f32.mxu0 0.0
  %5317 = vmatmul.mubr.f32.gmra.mrb[0].mxu0 %v5237
  %v5318 = vpop.f32.mrb[0].mxu0
  %v5319 = vadd.f32 %v5228, %v5318
  %v5320 = vpop.f32.mrb[0].mxu0
  %5321 = vmatprep.mubr.f32.mxu0 0.0
  %5322 = vmatmul.mubr.f32.gmra.mrb[0].mxu0 %v5240
  %v5323 = vpop.f32.mrb[0].mxu0
  %v5324 = vadd.f32 %v5228, %v5323
  %v5325 = vpop.f32.mrb[0].mxu0
  %5326 = vdwg.mxu0
  %v5327 = vadd.f32 %v3911, %v5309
  %v5328 = vadd.f32 %v3912, %v5314
  %v5329 = vadd.f32 %v3913, %v5319
  %v5330 = vadd.f32 %v3914, %v5324
  %s5331 = scalar_lea.vmem %s13, 1
  %v5332 = vld [vmem:[%s5331] sm:$0x1]
  %s5333 = scalar_lea.vmem %s14, 1
  %v5334 = vld [vmem:[%s5333] sm:$0x1]
  %v5335 = vsel %vm213, %v5327, 0.0
  %5336 = vadd.xlane.f32.xlu0 %v5335
  %v5337 = vpop.xlane.xlu0 %5336
  %v5338 = vsel %vm213, %v5328, 0.0
  %5339 = vadd.xlane.f32.xlu0 %v5338
  %v5340 = vpop.xlane.xlu0 %5339
  %v5341 = vsel %vm213, %v5329, 0.0
  %5342 = vadd.xlane.f32.xlu0 %v5341
  %v5343 = vpop.xlane.xlu0 %5342
  %v5344 = vsel %vm213, %v5330, 0.0
  %5345 = vadd.xlane.f32.xlu0 %v5344
  %v5346 = vpop.xlane.xlu0 %5345
  %v5347 = vmul.f32 %v5337, %v1644
  %v5348 = vmul.f32 %v5340, %v1644
  %v5349 = vmul.f32 %v5343, %v1644
  %v5350 = vmul.f32 %v5346, %v1644
  %v5351 = vsub.f32 %v5327, %v5347
  %v5352 = vsub.f32 %v5328, %v5348
  %v5353 = vsub.f32 %v5329, %v5349
  %v5354 = vsub.f32 %v5330, %v5350
  %v5355 = vmul.f32 %v5351, %v5351
  %v5356 = vmul.f32 %v5352, %v5352
  %v5357 = vmul.f32 %v5353, %v5353
  %v5358 = vmul.f32 %v5354, %v5354
  %v5359 = vsel %vm213, %v5355, 0.0
  %5360 = vadd.xlane.f32.xlu0 %v5359
  %v5361 = vpop.xlane.xlu0 %5360
  %v5362 = vsel %vm213, %v5356, 0.0
  %5363 = vadd.xlane.f32.xlu0 %v5362
  %v5364 = vpop.xlane.xlu0 %5363
  %v5365 = vsel %vm213, %v5357, 0.0
  %5366 = vadd.xlane.f32.xlu0 %v5365
  %v5367 = vpop.xlane.xlu0 %5366
  %v5368 = vsel %vm213, %v5358, 0.0
  %5369 = vadd.xlane.f32.xlu0 %v5368
  %v5370 = vpop.xlane.xlu0 %5369
  %v5371 = vmul.f32 %v5361, %v1644
  %v5372 = vmul.f32 %v5364, %v1644
  %v5373 = vmul.f32 %v5367, %v1644
  %v5374 = vmul.f32 %v5370, %v1644
  %v5375 = vadd.f32 %v5371, 1e-05
  %v5376 = vadd.f32 %v5372, 1e-05
  %v5377 = vadd.f32 %v5373, 1e-05
  %v5378 = vadd.f32 %v5374, 1e-05
  %v5379 = vrsqrt.pop %v5375
  %v5380 = vrsqrt.pop %v5376
  %v5381 = vrsqrt.pop %v5377
  %v5382 = vrsqrt.pop %v5378
  %v5383 = vmul.f32 %v5351, %v5379
  %v5384 = vmul.f32 %v5352, %v5380
  %v5385 = vmul.f32 %v5353, %v5381
  %v5386 = vmul.f32 %v5354, %v5382
  %v5388 = vlaneseq
  %v5389 = vshrl.u32 %v5388, 7
  %v5390 = vsub.s32 0, %v5389
  %v5391 = vrot.slane %v5332, %v5390
  %v5393 = vmul.f32 %v5383, %v5391
  %v5394 = vmul.f32 %v5384, %v5391
  %v5395 = vmul.f32 %v5385, %v5391
  %v5396 = vmul.f32 %v5386, %v5391
  %v5398 = vlaneseq
  %v5399 = vshrl.u32 %v5398, 7
  %v5400 = vsub.s32 0, %v5399
  %v5401 = vrot.slane %v5334, %v5400
  %v5403 = vadd.f32 %v5393, %v5401
  %v5404 = vadd.f32 %v5394, %v5401
  %v5405 = vadd.f32 %v5395, %v5401
  %v5406 = vadd.f32 %v5396, %v5401
  %v5407 = vpack.c.bf16 %v5404, %v5403
  %v5408 = vpack.c.bf16 %v5406, %v5405
  %s5409 = scalar_lea.vmem %s15, 64
  %v5410 = vld [vmem:[%s5409] sm:$0xff]
  %v5411 = vld [vmem:[%s5409 + $0x8] sm:$0xff]
  %v5412 = vld [vmem:[%s5409 + $0x10] sm:$0xff]
  %v5413 = vld [vmem:[%s5409 + $0x18] sm:$0xff]
  %v5414 = vld [vmem:[%s5409 + $0x20] sm:$0xff]
  %v5415 = vld [vmem:[%s5409 + $0x28] sm:$0xff]
  %v5416 = vld [vmem:[%s5409 + $0x30] sm:$0xff]
  %v5417 = vld [vmem:[%s5409 + $0x38] sm:$0xff]
  %s5418 = scalar_lea.vmem %s16, 16
  %v5419 = vld [vmem:[%s5418] sm:$0xff]
  %v5420 = vld [vmem:[%s5418 + $0x8] sm:$0xff]
  %v5423 = vlaneseq
  %v5424 = vshrl.u32 %v5423, 7
  %v5425 = vsub.s32 0, %v5424
  %v5426 = vrot.slane %v5419, %v5425
  %v5427 = vlaneseq
  %v5428 = vshrl.u32 %v5427, 7
  %v5429 = vsub.s32 1, %v5428
  %v5430 = vrot.slane %v5419, %v5429
  %v5431 = vlaneseq
  %v5432 = vshrl.u32 %v5431, 7
  %v5433 = vsub.s32 2, %v5432
  %v5434 = vrot.slane %v5419, %v5433
  %v5435 = vlaneseq
  %v5436 = vshrl.u32 %v5435, 7
  %v5437 = vsub.s32 3, %v5436
  %v5438 = vrot.slane %v5419, %v5437
  %v5439 = vlaneseq
  %v5440 = vshrl.u32 %v5439, 7
  %v5441 = vsub.s32 4, %v5440
  %v5442 = vrot.slane %v5419, %v5441
  %v5443 = vlaneseq
  %v5444 = vshrl.u32 %v5443, 7
  %v5445 = vsub.s32 5, %v5444
  %v5446 = vrot.slane %v5419, %v5445
  %v5447 = vlaneseq
  %v5448 = vshrl.u32 %v5447, 7
  %v5449 = vsub.s32 6, %v5448
  %v5450 = vrot.slane %v5419, %v5449
  %v5451 = vlaneseq
  %v5452 = vshrl.u32 %v5451, 7
  %v5453 = vsub.s32 7, %v5452
  %v5454 = vrot.slane %v5419, %v5453
  %v5455 = vlaneseq
  %v5456 = vshrl.u32 %v5455, 7
  %v5457 = vsub.s32 0, %v5456
  %v5458 = vrot.slane %v5420, %v5457
  %v5459 = vlaneseq
  %v5460 = vshrl.u32 %v5459, 7
  %v5461 = vsub.s32 1, %v5460
  %v5462 = vrot.slane %v5420, %v5461
  %v5463 = vlaneseq
  %v5464 = vshrl.u32 %v5463, 7
  %v5465 = vsub.s32 2, %v5464
  %v5466 = vrot.slane %v5420, %v5465
  %v5467 = vlaneseq
  %v5468 = vshrl.u32 %v5467, 7
  %v5469 = vsub.s32 3, %v5468
  %v5470 = vrot.slane %v5420, %v5469
  %v5471 = vlaneseq
  %v5472 = vshrl.u32 %v5471, 7
  %v5473 = vsub.s32 4, %v5472
  %v5474 = vrot.slane %v5420, %v5473
  %v5475 = vlaneseq
  %v5476 = vshrl.u32 %v5475, 7
  %v5477 = vsub.s32 5, %v5476
  %v5478 = vrot.slane %v5420, %v5477
  %v5479 = vlaneseq
  %v5480 = vshrl.u32 %v5479, 7
  %v5481 = vsub.s32 6, %v5480
  %v5482 = vrot.slane %v5420, %v5481
  %v5483 = vlaneseq
  %v5484 = vshrl.u32 %v5483, 7
  %v5485 = vsub.s32 7, %v5484
  %v5486 = vrot.slane %v5420, %v5485
  %v5511 = vunpack.c.l.b16 %v5410
  %v5512 = vunpack.c.h.b16 %v5410
  %v5513 = vunpack.c.l.b16 %v5411
  %v5514 = vunpack.c.h.b16 %v5411
  %v5515 = vunpack.c.l.b16 %v5412
  %v5516 = vunpack.c.h.b16 %v5412
  %v5517 = vunpack.c.l.b16 %v5413
  %v5518 = vunpack.c.h.b16 %v5413
  %v5519 = vunpack.c.l.b16 %v5414
  %v5520 = vunpack.c.h.b16 %v5414
  %v5521 = vunpack.c.l.b16 %v5415
  %v5522 = vunpack.c.h.b16 %v5415
  %v5523 = vunpack.c.l.b16 %v5416
  %v5524 = vunpack.c.h.b16 %v5416
  %v5525 = vunpack.c.l.b16 %v5417
  %v5526 = vunpack.c.h.b16 %v5417
  %v5527 = vpack.c.b16 %v5511, %v5511
  %v5528 = vpack.c.b16 %v5512, %v5512
  %v5529 = vpack.c.b16 %v5513, %v5513
  %v5530 = vpack.c.b16 %v5514, %v5514
  %v5531 = vpack.c.b16 %v5515, %v5515
  %v5532 = vpack.c.b16 %v5516, %v5516
  %v5533 = vpack.c.b16 %v5517, %v5517
  %v5534 = vpack.c.b16 %v5518, %v5518
  %v5535 = vpack.c.b16 %v5519, %v5519
  %v5536 = vpack.c.b16 %v5520, %v5520
  %v5537 = vpack.c.b16 %v5521, %v5521
  %v5538 = vpack.c.b16 %v5522, %v5522
  %v5539 = vpack.c.b16 %v5523, %v5523
  %v5540 = vpack.c.b16 %v5524, %v5524
  %v5541 = vpack.c.b16 %v5525, %v5525
  %v5542 = vpack.c.b16 %v5526, %v5526
  %v5544 = vsel %vm213, %v5407, 0
  %v5547 = vsel %vm213, %v5408, 0
  %v5550 = vsel %vm1845, %v5527, 0
  %v5553 = vsel %vm1845, %v5528, 0
  %v5556 = vsel %vm1845, %v5529, 0
  %v5559 = vsel %vm1845, %v5530, 0
  %v5562 = vsel %vm1845, %v5531, 0
  %v5565 = vsel %vm1845, %v5532, 0
  %v5568 = vsel %vm1845, %v5533, 0
  %v5571 = vsel %vm1845, %v5534, 0
  %v5574 = vsel %vm1845, %v5535, 0
  %v5577 = vsel %vm1845, %v5536, 0
  %v5580 = vsel %vm1845, %v5537, 0
  %v5583 = vsel %vm1845, %v5538, 0
  %v5586 = vsel %vm1845, %v5539, 0
  %v5589 = vsel %vm1845, %v5540, 0
  %v5592 = vsel %vm1845, %v5541, 0
  %v5595 = vsel %vm1845, %v5542, 0
  %5597 = vmatprep.subr.bf16.mxu0 %v5553
  %5598 = vmatpush1.bf16.msra.mxu0 %v5550
  %5599 = vmatprep.subr.bf16.mxu0 0
  %5600 = vmatpush1.bf16.msra.mxu0 0
  %5601 = vmatprep.subr.bf16.mxu0 0
  %5602 = vmatpush1.bf16.msra.mxu0 0
  %5603 = vmatprep.subr.bf16.mxu0 0
  %5604 = vmatpush1.bf16.msra.mxu0 0
  %5605 = vmatprep.subr.bf16.mxu0 0
  %5606 = vmatpush1.bf16.msra.mxu0 0
  %5607 = vmatprep.subr.bf16.mxu0 0
  %5608 = vmatpush1.bf16.msra.mxu0 0
  %5609 = vmatprep.subr.bf16.mxu0 0
  %5610 = vmatpush1.bf16.msra.mxu0 0
  %5611 = vmatprep.subr.bf16.mxu0 0
  %5612 = vmatpush1.bf16.msra.mxu0 0
  %5613 = vmatprep.subr.bf16.mxu0 0
  %5614 = vmatpush1.bf16.msra.mxu0 0
  %5615 = vmatprep.subr.bf16.mxu0 0
  %5616 = vmatpush1.bf16.msra.mxu0 0
  %5617 = vmatprep.subr.bf16.mxu0 0
  %5618 = vmatpush1.bf16.msra.mxu0 0
  %5619 = vmatprep.subr.bf16.mxu0 0
  %5620 = vmatpush1.bf16.msra.mxu0 0
  %5621 = vmatprep.subr.bf16.mxu0 0
  %5622 = vmatpush1.bf16.msra.mxu0 0
  %5623 = vmatprep.subr.bf16.mxu0 0
  %5624 = vmatpush1.bf16.msra.mxu0 0
  %5625 = vmatprep.subr.bf16.mxu0 0
  %5626 = vmatpush1.bf16.msra.mxu0 0
  %5627 = vmatprep.subr.bf16.mxu0 0
  %5628 = vmatpush1.bf16.msra.mxu0 0
  %5629 = vmatprep.mubr.bf16.mxu0 0
  %5630 = vmatmul.mubr.bf16.gmra.mrb[0].mxu0 %v5544
  %v5631 = vpop.f32.mrb[0].mxu0
  %v5632 = vadd.f32 %v5426, %v5631
  %v5633 = vpop.f32.mrb[0].mxu0
  %v5634 = vadd.f32 %v5430, %v5633
  %v5635 = vpop.f32.mrb[0].mxu0
  %v5636 = vadd.f32 %v5426, %v5635
  %v5637 = vpop.f32.mrb[0].mxu0
  %v5638 = vadd.f32 %v5430, %v5637
  %5639 = vmatprep.mubr.bf16.mxu0 0
  %5640 = vmatmul.mubr.bf16.gmra.mrb[0].mxu0 %v5547
  %v5641 = vpop.f32.mrb[0].mxu0
  %v5642 = vadd.f32 %v5426, %v5641
  %v5643 = vpop.f32.mrb[0].mxu0
  %v5644 = vadd.f32 %v5430, %v5643
  %v5645 = vpop.f32.mrb[0].mxu0
  %v5646 = vadd.f32 %v5426, %v5645
  %v5647 = vpop.f32.mrb[0].mxu0
  %v5648 = vadd.f32 %v5430, %v5647
  %5649 = vdwg.mxu0
  %5650 = vmatprep.subr.bf16.mxu0 %v5559
  %5651 = vmatpush1.bf16.msra.mxu0 %v5556
  %5652 = vmatprep.subr.bf16.mxu0 0
  %5653 = vmatpush1.bf16.msra.mxu0 0
  %5654 = vmatprep.subr.bf16.mxu0 0
  %5655 = vmatpush1.bf16.msra.mxu0 0
  %5656 = vmatprep.subr.bf16.mxu0 0
  %5657 = vmatpush1.bf16.msra.mxu0 0
  %5658 = vmatprep.subr.bf16.mxu0 0
  %5659 = vmatpush1.bf16.msra.mxu0 0
  %5660 = vmatprep.subr.bf16.mxu0 0
  %5661 = vmatpush1.bf16.msra.mxu0 0
  %5662 = vmatprep.subr.bf16.mxu0 0
  %5663 = vmatpush1.bf16.msra.mxu0 0
  %5664 = vmatprep.subr.bf16.mxu0 0
  %5665 = vmatpush1.bf16.msra.mxu0 0
  %5666 = vmatprep.subr.bf16.mxu0 0
  %5667 = vmatpush1.bf16.msra.mxu0 0
  %5668 = vmatprep.subr.bf16.mxu0 0
  %5669 = vmatpush1.bf16.msra.mxu0 0
  %5670 = vmatprep.subr.bf16.mxu0 0
  %5671 = vmatpush1.bf16.msra.mxu0 0
  %5672 = vmatprep.subr.bf16.mxu0 0
  %5673 = vmatpush1.bf16.msra.mxu0 0
  %5674 = vmatprep.subr.bf16.mxu0 0
  %5675 = vmatpush1.bf16.msra.mxu0 0
  %5676 = vmatprep.subr.bf16.mxu0 0
  %5677 = vmatpush1.bf16.msra.mxu0 0
  %5678 = vmatprep.subr.bf16.mxu0 0
  %5679 = vmatpush1.bf16.msra.mxu0 0
  %5680 = vmatprep.subr.bf16.mxu0 0
  %5681 = vmatpush1.bf16.msra.mxu0 0
  %5682 = vmatprep.mubr.bf16.mxu0 0
  %5683 = vmatmul.mubr.bf16.gmra.mrb[0].mxu0 %v5544
  %v5684 = vpop.f32.mrb[0].mxu0
  %v5685 = vadd.f32 %v5434, %v5684
  %v5686 = vpop.f32.mrb[0].mxu0
  %v5687 = vadd.f32 %v5438, %v5686
  %v5688 = vpop.f32.mrb[0].mxu0
  %v5689 = vadd.f32 %v5434, %v5688
  %v5690 = vpop.f32.mrb[0].mxu0
  %v5691 = vadd.f32 %v5438, %v5690
  %5692 = vmatprep.mubr.bf16.mxu0 0
  %5693 = vmatmul.mubr.bf16.gmra.mrb[0].mxu0 %v5547
  %v5694 = vpop.f32.mrb[0].mxu0
  %v5695 = vadd.f32 %v5434, %v5694
  %v5696 = vpop.f32.mrb[0].mxu0
  %v5697 = vadd.f32 %v5438, %v5696
  %v5698 = vpop.f32.mrb[0].mxu0
  %v5699 = vadd.f32 %v5434, %v5698
  %v5700 = vpop.f32.mrb[0].mxu0
  %v5701 = vadd.f32 %v5438, %v5700
  %5702 = vdwg.mxu0
  %5703 = vmatprep.subr.bf16.mxu0 %v5565
  %5704 = vmatpush1.bf16.msra.mxu0 %v5562
  %5705 = vmatprep.subr.bf16.mxu0 0
  %5706 = vmatpush1.bf16.msra.mxu0 0
  %5707 = vmatprep.subr.bf16.mxu0 0
  %5708 = vmatpush1.bf16.msra.mxu0 0
  %5709 = vmatprep.subr.bf16.mxu0 0
  %5710 = vmatpush1.bf16.msra.mxu0 0
  %5711 = vmatprep.subr.bf16.mxu0 0
  %5712 = vmatpush1.bf16.msra.mxu0 0
  %5713 = vmatprep.subr.bf16.mxu0 0
  %5714 = vmatpush1.bf16.msra.mxu0 0
  %5715 = vmatprep.subr.bf16.mxu0 0
  %5716 = vmatpush1.bf16.msra.mxu0 0
  %5717 = vmatprep.subr.bf16.mxu0 0
  %5718 = vmatpush1.bf16.msra.mxu0 0
  %5719 = vmatprep.subr.bf16.mxu0 0
  %5720 = vmatpush1.bf16.msra.mxu0 0
  %5721 = vmatprep.subr.bf16.mxu0 0
  %5722 = vmatpush1.bf16.msra.mxu0 0
  %5723 = vmatprep.subr.bf16.mxu0 0
  %5724 = vmatpush1.bf16.msra.mxu0 0
  %5725 = vmatprep.subr.bf16.mxu0 0
  %5726 = vmatpush1.bf16.msra.mxu0 0
  %5727 = vmatprep.subr.bf16.mxu0 0
  %5728 = vmatpush1.bf16.msra.mxu0 0
  %5729 = vmatprep.subr.bf16.mxu0 0
  %5730 = vmatpush1.bf16.msra.mxu0 0
  %5731 = vmatprep.subr.bf16.mxu0 0
  %5732 = vmatpush1.bf16.msra.mxu0 0
  %5733 = vmatprep.subr.bf16.mxu0 0
  %5734 = vmatpush1.bf16.msra.mxu0 0
  %5735 = vmatprep.mubr.bf16.mxu0 0
  %5736 = vmatmul.mubr.bf16.gmra.mrb[0].mxu0 %v5544
  %v5737 = vpop.f32.mrb[0].mxu0
  %v5738 = vadd.f32 %v5442, %v5737
  %v5739 = vpop.f32.mrb[0].mxu0
  %v5740 = vadd.f32 %v5446, %v5739
  %v5741 = vpop.f32.mrb[0].mxu0
  %v5742 = vadd.f32 %v5442, %v5741
  %v5743 = vpop.f32.mrb[0].mxu0
  %v5744 = vadd.f32 %v5446, %v5743
  %5745 = vmatprep.mubr.bf16.mxu0 0
  %5746 = vmatmul.mubr.bf16.gmra.mrb[0].mxu0 %v5547
  %v5747 = vpop.f32.mrb[0].mxu0
  %v5748 = vadd.f32 %v5442, %v5747
  %v5749 = vpop.f32.mrb[0].mxu0
  %v5750 = vadd.f32 %v5446, %v5749
  %v5751 = vpop.f32.mrb[0].mxu0
  %v5752 = vadd.f32 %v5442, %v5751
  %v5753 = vpop.f32.mrb[0].mxu0
  %v5754 = vadd.f32 %v5446, %v5753
  %5755 = vdwg.mxu0
  %5756 = vmatprep.subr.bf16.mxu0 %v5571
  %5757 = vmatpush1.bf16.msra.mxu0 %v5568
  %5758 = vmatprep.subr.bf16.mxu0 0
  %5759 = vmatpush1.bf16.msra.mxu0 0
  %5760 = vmatprep.subr.bf16.mxu0 0
  %5761 = vmatpush1.bf16.msra.mxu0 0
  %5762 = vmatprep.subr.bf16.mxu0 0
  %5763 = vmatpush1.bf16.msra.mxu0 0
  %5764 = vmatprep.subr.bf16.mxu0 0
  %5765 = vmatpush1.bf16.msra.mxu0 0
  %5766 = vmatprep.subr.bf16.mxu0 0
  %5767 = vmatpush1.bf16.msra.mxu0 0
  %5768 = vmatprep.subr.bf16.mxu0 0
  %5769 = vmatpush1.bf16.msra.mxu0 0
  %5770 = vmatprep.subr.bf16.mxu0 0
  %5771 = vmatpush1.bf16.msra.mxu0 0
  %5772 = vmatprep.subr.bf16.mxu0 0
  %5773 = vmatpush1.bf16.msra.mxu0 0
  %5774 = vmatprep.subr.bf16.mxu0 0
  %5775 = vmatpush1.bf16.msra.mxu0 0
  %5776 = vmatprep.subr.bf16.mxu0 0
  %5777 = vmatpush1.bf16.msra.mxu0 0
  %5778 = vmatprep.subr.bf16.mxu0 0
  %5779 = vmatpush1.bf16.msra.mxu0 0
  %5780 = vmatprep.subr.bf16.mxu0 0
  %5781 = vmatpush1.bf16.msra.mxu0 0
  %5782 = vmatprep.subr.bf16.mxu0 0
  %5783 = vmatpush1.bf16.msra.mxu0 0
  %5784 = vmatprep.subr.bf16.mxu0 0
  %5785 = vmatpush1.bf16.msra.mxu0 0
  %5786 = vmatprep.subr.bf16.mxu0 0
  %5787 = vmatpush1.bf16.msra.mxu0 0
  %5788 = vmatprep.mubr.bf16.mxu0 0
  %5789 = vmatmul.mubr.bf16.gmra.mrb[0].mxu0 %v5544
  %v5790 = vpop.f32.mrb[0].mxu0
  %v5791 = vadd.f32 %v5450, %v5790
  %v5792 = vpop.f32.mrb[0].mxu0
  %v5793 = vadd.f32 %v5454, %v5792
  %v5794 = vpop.f32.mrb[0].mxu0
  %v5795 = vadd.f32 %v5450, %v5794
  %v5796 = vpop.f32.mrb[0].mxu0
  %v5797 = vadd.f32 %v5454, %v5796
  %5798 = vmatprep.mubr.bf16.mxu0 0
  %5799 = vmatmul.mubr.bf16.gmra.mrb[0].mxu0 %v5547
  %v5800 = vpop.f32.mrb[0].mxu0
  %v5801 = vadd.f32 %v5450, %v5800
  %v5802 = vpop.f32.mrb[0].mxu0
  %v5803 = vadd.f32 %v5454, %v5802
  %v5804 = vpop.f32.mrb[0].mxu0
  %v5805 = vadd.f32 %v5450, %v5804
  %v5806 = vpop.f32.mrb[0].mxu0
  %v5807 = vadd.f32 %v5454, %v5806
  %5808 = vdwg.mxu0
  %5809 = vmatprep.subr.bf16.mxu0 %v5577
  %5810 = vmatpush1.bf16.msra.mxu0 %v5574
  %5811 = vmatprep.subr.bf16.mxu0 0
  %5812 = vmatpush1.bf16.msra.mxu0 0
  %5813 = vmatprep.subr.bf16.mxu0 0
  %5814 = vmatpush1.bf16.msra.mxu0 0
  %5815 = vmatprep.subr.bf16.mxu0 0
  %5816 = vmatpush1.bf16.msra.mxu0 0
  %5817 = vmatprep.subr.bf16.mxu0 0
  %5818 = vmatpush1.bf16.msra.mxu0 0
  %5819 = vmatprep.subr.bf16.mxu0 0
  %5820 = vmatpush1.bf16.msra.mxu0 0
  %5821 = vmatprep.subr.bf16.mxu0 0
  %5822 = vmatpush1.bf16.msra.mxu0 0
  %5823 = vmatprep.subr.bf16.mxu0 0
  %5824 = vmatpush1.bf16.msra.mxu0 0
  %5825 = vmatprep.subr.bf16.mxu0 0
  %5826 = vmatpush1.bf16.msra.mxu0 0
  %5827 = vmatprep.subr.bf16.mxu0 0
  %5828 = vmatpush1.bf16.msra.mxu0 0
  %5829 = vmatprep.subr.bf16.mxu0 0
  %5830 = vmatpush1.bf16.msra.mxu0 0
  %5831 = vmatprep.subr.bf16.mxu0 0
  %5832 = vmatpush1.bf16.msra.mxu0 0
  %5833 = vmatprep.subr.bf16.mxu0 0
  %5834 = vmatpush1.bf16.msra.mxu0 0
  %5835 = vmatprep.subr.bf16.mxu0 0
  %5836 = vmatpush1.bf16.msra.mxu0 0
  %5837 = vmatprep.subr.bf16.mxu0 0
  %5838 = vmatpush1.bf16.msra.mxu0 0
  %5839 = vmatprep.subr.bf16.mxu0 0
  %5840 = vmatpush1.bf16.msra.mxu0 0
  %5841 = vmatprep.mubr.bf16.mxu0 0
  %5842 = vmatmul.mubr.bf16.gmra.mrb[0].mxu0 %v5544
  %v5843 = vpop.f32.mrb[0].mxu0
  %v5844 = vadd.f32 %v5458, %v5843
  %v5845 = vpop.f32.mrb[0].mxu0
  %v5846 = vadd.f32 %v5462, %v5845
  %v5847 = vpop.f32.mrb[0].mxu0
  %v5848 = vadd.f32 %v5458, %v5847
  %v5849 = vpop.f32.mrb[0].mxu0
  %v5850 = vadd.f32 %v5462, %v5849
  %5851 = vmatprep.mubr.bf16.mxu0 0
  %5852 = vmatmul.mubr.bf16.gmra.mrb[0].mxu0 %v5547
  %v5853 = vpop.f32.mrb[0].mxu0
  %v5854 = vadd.f32 %v5458, %v5853
  %v5855 = vpop.f32.mrb[0].mxu0
  %v5856 = vadd.f32 %v5462, %v5855
  %v5857 = vpop.f32.mrb[0].mxu0
  %v5858 = vadd.f32 %v5458, %v5857
  %v5859 = vpop.f32.mrb[0].mxu0
  %v5860 = vadd.f32 %v5462, %v5859
  %5861 = vdwg.mxu0
  %5862 = vmatprep.subr.bf16.mxu0 %v5583
  %5863 = vmatpush1.bf16.msra.mxu0 %v5580
  %5864 = vmatprep.subr.bf16.mxu0 0
  %5865 = vmatpush1.bf16.msra.mxu0 0
  %5866 = vmatprep.subr.bf16.mxu0 0
  %5867 = vmatpush1.bf16.msra.mxu0 0
  %5868 = vmatprep.subr.bf16.mxu0 0
  %5869 = vmatpush1.bf16.msra.mxu0 0
  %5870 = vmatprep.subr.bf16.mxu0 0
  %5871 = vmatpush1.bf16.msra.mxu0 0
  %5872 = vmatprep.subr.bf16.mxu0 0
  %5873 = vmatpush1.bf16.msra.mxu0 0
  %5874 = vmatprep.subr.bf16.mxu0 0
  %5875 = vmatpush1.bf16.msra.mxu0 0
  %5876 = vmatprep.subr.bf16.mxu0 0
  %5877 = vmatpush1.bf16.msra.mxu0 0
  %5878 = vmatprep.subr.bf16.mxu0 0
  %5879 = vmatpush1.bf16.msra.mxu0 0
  %5880 = vmatprep.subr.bf16.mxu0 0
  %5881 = vmatpush1.bf16.msra.mxu0 0
  %5882 = vmatprep.subr.bf16.mxu0 0
  %5883 = vmatpush1.bf16.msra.mxu0 0
  %5884 = vmatprep.subr.bf16.mxu0 0
  %5885 = vmatpush1.bf16.msra.mxu0 0
  %5886 = vmatprep.subr.bf16.mxu0 0
  %5887 = vmatpush1.bf16.msra.mxu0 0
  %5888 = vmatprep.subr.bf16.mxu0 0
  %5889 = vmatpush1.bf16.msra.mxu0 0
  %5890 = vmatprep.subr.bf16.mxu0 0
  %5891 = vmatpush1.bf16.msra.mxu0 0
  %5892 = vmatprep.subr.bf16.mxu0 0
  %5893 = vmatpush1.bf16.msra.mxu0 0
  %5894 = vmatprep.mubr.bf16.mxu0 0
  %5895 = vmatmul.mubr.bf16.gmra.mrb[0].mxu0 %v5544
  %v5896 = vpop.f32.mrb[0].mxu0
  %v5897 = vadd.f32 %v5466, %v5896
  %v5898 = vpop.f32.mrb[0].mxu0
  %v5899 = vadd.f32 %v5470, %v5898
  %v5900 = vpop.f32.mrb[0].mxu0
  %v5901 = vadd.f32 %v5466, %v5900
  %v5902 = vpop.f32.mrb[0].mxu0
  %v5903 = vadd.f32 %v5470, %v5902
  %5904 = vmatprep.mubr.bf16.mxu0 0
  %5905 = vmatmul.mubr.bf16.gmra.mrb[0].mxu0 %v5547
  %v5906 = vpop.f32.mrb[0].mxu0
  %v5907 = vadd.f32 %v5466, %v5906
  %v5908 = vpop.f32.mrb[0].mxu0
  %v5909 = vadd.f32 %v5470, %v5908
  %v5910 = vpop.f32.mrb[0].mxu0
  %v5911 = vadd.f32 %v5466, %v5910
  %v5912 = vpop.f32.mrb[0].mxu0
  %v5913 = vadd.f32 %v5470, %v5912
  %5914 = vdwg.mxu0
  %5915 = vmatprep.subr.bf16.mxu0 %v5589
  %5916 = vmatpush1.bf16.msra.mxu0 %v5586
  %5917 = vmatprep.subr.bf16.mxu0 0
  %5918 = vmatpush1.bf16.msra.mxu0 0
  %5919 = vmatprep.subr.bf16.mxu0 0
  %5920 = vmatpush1.bf16.msra.mxu0 0
  %5921 = vmatprep.subr.bf16.mxu0 0
  %5922 = vmatpush1.bf16.msra.mxu0 0
  %5923 = vmatprep.subr.bf16.mxu0 0
  %5924 = vmatpush1.bf16.msra.mxu0 0
  %5925 = vmatprep.subr.bf16.mxu0 0
  %5926 = vmatpush1.bf16.msra.mxu0 0
  %5927 = vmatprep.subr.bf16.mxu0 0
  %5928 = vmatpush1.bf16.msra.mxu0 0
  %5929 = vmatprep.subr.bf16.mxu0 0
  %5930 = vmatpush1.bf16.msra.mxu0 0
  %5931 = vmatprep.subr.bf16.mxu0 0
  %5932 = vmatpush1.bf16.msra.mxu0 0
  %5933 = vmatprep.subr.bf16.mxu0 0
  %5934 = vmatpush1.bf16.msra.mxu0 0
  %5935 = vmatprep.subr.bf16.mxu0 0
  %5936 = vmatpush1.bf16.msra.mxu0 0
  %5937 = vmatprep.subr.bf16.mxu0 0
  %5938 = vmatpush1.bf16.msra.mxu0 0
  %5939 = vmatprep.subr.bf16.mxu0 0
  %5940 = vmatpush1.bf16.msra.mxu0 0
  %5941 = vmatprep.subr.bf16.mxu0 0
  %5942 = vmatpush1.bf16.msra.mxu0 0
  %5943 = vmatprep.subr.bf16.mxu0 0
  %5944 = vmatpush1.bf16.msra.mxu0 0
  %5945 = vmatprep.subr.bf16.mxu0 0
  %5946 = vmatpush1.bf16.msra.mxu0 0
  %5947 = vmatprep.mubr.bf16.mxu0 0
  %5948 = vmatmul.mubr.bf16.gmra.mrb[0].mxu0 %v5544
  %v5949 = vpop.f32.mrb[0].mxu0
  %v5950 = vadd.f32 %v5474, %v5949
  %v5951 = vpop.f32.mrb[0].mxu0
  %v5952 = vadd.f32 %v5478, %v5951
  %v5953 = vpop.f32.mrb[0].mxu0
  %v5954 = vadd.f32 %v5474, %v5953
  %v5955 = vpop.f32.mrb[0].mxu0
  %v5956 = vadd.f32 %v5478, %v5955
  %5957 = vmatprep.mubr.bf16.mxu0 0
  %5958 = vmatmul.mubr.bf16.gmra.mrb[0].mxu0 %v5547
  %v5959 = vpop.f32.mrb[0].mxu0
  %v5960 = vadd.f32 %v5474, %v5959
  %v5961 = vpop.f32.mrb[0].mxu0
  %v5962 = vadd.f32 %v5478, %v5961
  %v5963 = vpop.f32.mrb[0].mxu0
  %v5964 = vadd.f32 %v5474, %v5963
  %v5965 = vpop.f32.mrb[0].mxu0
  %v5966 = vadd.f32 %v5478, %v5965
  %5967 = vdwg.mxu0
  %5968 = vmatprep.subr.bf16.mxu0 %v5595
  %5969 = vmatpush1.bf16.msra.mxu0 %v5592
  %5970 = vmatprep.subr.bf16.mxu0 0
  %5971 = vmatpush1.bf16.msra.mxu0 0
  %5972 = vmatprep.subr.bf16.mxu0 0
  %5973 = vmatpush1.bf16.msra.mxu0 0
  %5974 = vmatprep.subr.bf16.mxu0 0
  %5975 = vmatpush1.bf16.msra.mxu0 0
  %5976 = vmatprep.subr.bf16.mxu0 0
  %5977 = vmatpush1.bf16.msra.mxu0 0
  %5978 = vmatprep.subr.bf16.mxu0 0
  %5979 = vmatpush1.bf16.msra.mxu0 0
  %5980 = vmatprep.subr.bf16.mxu0 0
  %5981 = vmatpush1.bf16.msra.mxu0 0
  %5982 = vmatprep.subr.bf16.mxu0 0
  %5983 = vmatpush1.bf16.msra.mxu0 0
  %5984 = vmatprep.subr.bf16.mxu0 0
  %5985 = vmatpush1.bf16.msra.mxu0 0
  %5986 = vmatprep.subr.bf16.mxu0 0
  %5987 = vmatpush1.bf16.msra.mxu0 0
  %5988 = vmatprep.subr.bf16.mxu0 0
  %5989 = vmatpush1.bf16.msra.mxu0 0
  %5990 = vmatprep.subr.bf16.mxu0 0
  %5991 = vmatpush1.bf16.msra.mxu0 0
  %5992 = vmatprep.subr.bf16.mxu0 0
  %5993 = vmatpush1.bf16.msra.mxu0 0
  %5994 = vmatprep.subr.bf16.mxu0 0
  %5995 = vmatpush1.bf16.msra.mxu0 0
  %5996 = vmatprep.subr.bf16.mxu0 0
  %5997 = vmatpush1.bf16.msra.mxu0 0
  %5998 = vmatprep.subr.bf16.mxu0 0
  %5999 = vmatpush1.bf16.msra.mxu0 0
  %6000 = vmatprep.mubr.bf16.mxu0 0
  %6001 = vmatmul.mubr.bf16.gmra.mrb[0].mxu0 %v5544
  %v6002 = vpop.f32.mrb[0].mxu0
  %v6003 = vadd.f32 %v5482, %v6002
  %v6004 = vpop.f32.mrb[0].mxu0
  %v6005 = vadd.f32 %v5486, %v6004
  %v6006 = vpop.f32.mrb[0].mxu0
  %v6007 = vadd.f32 %v5482, %v6006
  %v6008 = vpop.f32.mrb[0].mxu0
  %v6009 = vadd.f32 %v5486, %v6008
  %6010 = vmatprep.mubr.bf16.mxu0 0
  %6011 = vmatmul.mubr.bf16.gmra.mrb[0].mxu0 %v5547
  %v6012 = vpop.f32.mrb[0].mxu0
  %v6013 = vadd.f32 %v5482, %v6012
  %v6014 = vpop.f32.mrb[0].mxu0
  %v6015 = vadd.f32 %v5486, %v6014
  %v6016 = vpop.f32.mrb[0].mxu0
  %v6017 = vadd.f32 %v5482, %v6016
  %v6018 = vpop.f32.mrb[0].mxu0
  %v6019 = vadd.f32 %v5486, %v6018
  %6020 = vdwg.mxu0
  %v6021 = vmax.f32 %v5632, 0.0
  %v6022 = vmax.f32 %v5634, 0.0
  %v6023 = vmax.f32 %v5685, 0.0
  %v6024 = vmax.f32 %v5687, 0.0
  %v6025 = vmax.f32 %v5738, 0.0
  %v6026 = vmax.f32 %v5740, 0.0
  %v6027 = vmax.f32 %v5791, 0.0
  %v6028 = vmax.f32 %v5793, 0.0
  %v6029 = vmax.f32 %v5844, 0.0
  %v6030 = vmax.f32 %v5846, 0.0
  %v6031 = vmax.f32 %v5897, 0.0
  %v6032 = vmax.f32 %v5899, 0.0
  %v6033 = vmax.f32 %v5950, 0.0
  %v6034 = vmax.f32 %v5952, 0.0
  %v6035 = vmax.f32 %v6003, 0.0
  %v6036 = vmax.f32 %v6005, 0.0
  %v6037 = vmax.f32 %v5636, 0.0
  %v6038 = vmax.f32 %v5638, 0.0
  %v6039 = vmax.f32 %v5689, 0.0
  %v6040 = vmax.f32 %v5691, 0.0
  %v6041 = vmax.f32 %v5742, 0.0
  %v6042 = vmax.f32 %v5744, 0.0
  %v6043 = vmax.f32 %v5795, 0.0
  %v6044 = vmax.f32 %v5797, 0.0
  %v6045 = vmax.f32 %v5848, 0.0
  %v6046 = vmax.f32 %v5850, 0.0
  %v6047 = vmax.f32 %v5901, 0.0
  %v6048 = vmax.f32 %v5903, 0.0
  %v6049 = vmax.f32 %v5954, 0.0
  %v6050 = vmax.f32 %v5956, 0.0
  %v6051 = vmax.f32 %v6007, 0.0
  %v6052 = vmax.f32 %v6009, 0.0
  %v6053 = vmax.f32 %v5642, 0.0
  %v6054 = vmax.f32 %v5644, 0.0
  %v6055 = vmax.f32 %v5695, 0.0
  %v6056 = vmax.f32 %v5697, 0.0
  %v6057 = vmax.f32 %v5748, 0.0
  %v6058 = vmax.f32 %v5750, 0.0
  %v6059 = vmax.f32 %v5801, 0.0
  %v6060 = vmax.f32 %v5803, 0.0
  %v6061 = vmax.f32 %v5854, 0.0
  %v6062 = vmax.f32 %v5856, 0.0
  %v6063 = vmax.f32 %v5907, 0.0
  %v6064 = vmax.f32 %v5909, 0.0
  %v6065 = vmax.f32 %v5960, 0.0
  %v6066 = vmax.f32 %v5962, 0.0
  %v6067 = vmax.f32 %v6013, 0.0
  %v6068 = vmax.f32 %v6015, 0.0
  %v6069 = vmax.f32 %v5646, 0.0
  %v6070 = vmax.f32 %v5648, 0.0
  %v6071 = vmax.f32 %v5699, 0.0
  %v6072 = vmax.f32 %v5701, 0.0
  %v6073 = vmax.f32 %v5752, 0.0
  %v6074 = vmax.f32 %v5754, 0.0
  %v6075 = vmax.f32 %v5805, 0.0
  %v6076 = vmax.f32 %v5807, 0.0
  %v6077 = vmax.f32 %v5858, 0.0
  %v6078 = vmax.f32 %v5860, 0.0
  %v6079 = vmax.f32 %v5911, 0.0
  %v6080 = vmax.f32 %v5913, 0.0
  %v6081 = vmax.f32 %v5964, 0.0
  %v6082 = vmax.f32 %v5966, 0.0
  %v6083 = vmax.f32 %v6017, 0.0
  %v6084 = vmax.f32 %v6019, 0.0
  %v6085 = vpack.c.bf16 %v6037, %v6021
  %v6086 = vpack.c.bf16 %v6038, %v6022
  %v6087 = vpack.c.bf16 %v6039, %v6023
  %v6088 = vpack.c.bf16 %v6040, %v6024
  %v6089 = vpack.c.bf16 %v6041, %v6025
  %v6090 = vpack.c.bf16 %v6042, %v6026
  %v6091 = vpack.c.bf16 %v6043, %v6027
  %v6092 = vpack.c.bf16 %v6044, %v6028
  %v6093 = vpack.c.bf16 %v6045, %v6029
  %v6094 = vpack.c.bf16 %v6046, %v6030
  %v6095 = vpack.c.bf16 %v6047, %v6031
  %v6096 = vpack.c.bf16 %v6048, %v6032
  %v6097 = vpack.c.bf16 %v6049, %v6033
  %v6098 = vpack.c.bf16 %v6050, %v6034
  %v6099 = vpack.c.bf16 %v6051, %v6035
  %v6100 = vpack.c.bf16 %v6052, %v6036
  %v6101 = vpack.c.bf16 %v6069, %v6053
  %v6102 = vpack.c.bf16 %v6070, %v6054
  %v6103 = vpack.c.bf16 %v6071, %v6055
  %v6104 = vpack.c.bf16 %v6072, %v6056
  %v6105 = vpack.c.bf16 %v6073, %v6057
  %v6106 = vpack.c.bf16 %v6074, %v6058
  %v6107 = vpack.c.bf16 %v6075, %v6059
  %v6108 = vpack.c.bf16 %v6076, %v6060
  %v6109 = vpack.c.bf16 %v6077, %v6061
  %v6110 = vpack.c.bf16 %v6078, %v6062
  %v6111 = vpack.c.bf16 %v6079, %v6063
  %v6112 = vpack.c.bf16 %v6080, %v6064
  %v6113 = vpack.c.bf16 %v6081, %v6065
  %v6114 = vpack.c.bf16 %v6082, %v6066
  %v6115 = vpack.c.bf16 %v6083, %v6067
  %v6116 = vpack.c.bf16 %v6084, %v6068
  %s6117 = scalar_lea.vmem %s17, 1024
  %v6118 = vld [vmem:[%s6117] sm:$0xf]
  %v6119 = vld [vmem:[%s6117 + $0x4] sm:$0xf]
  %v6120 = vld [vmem:[%s6117 + $0x8] sm:$0xf]
  %v6121 = vld [vmem:[%s6117 + $0xc] sm:$0xf]
  %v6122 = vld [vmem:[%s6117 + $0x10] sm:$0xf]
  %v6123 = vld [vmem:[%s6117 + $0x14] sm:$0xf]
  %v6124 = vld [vmem:[%s6117 + $0x18] sm:$0xf]
  %v6125 = vld [vmem:[%s6117 + $0x1c] sm:$0xf]
  %v6126 = vld [vmem:[%s6117 + $0x20] sm:$0xf]
  %v6127 = vld [vmem:[%s6117 + $0x24] sm:$0xf]
  %v6128 = vld [vmem:[%s6117 + $0x28] sm:$0xf]
  %v6129 = vld [vmem:[%s6117 + $0x2c] sm:$0xf]
  %v6130 = vld [vmem:[%s6117 + $0x30] sm:$0xf]
  %v6131 = vld [vmem:[%s6117 + $0x34] sm:$0xf]
  %v6132 = vld [vmem:[%s6117 + $0x38] sm:$0xf]
  %v6133 = vld [vmem:[%s6117 + $0x3c] sm:$0xf]
  %v6134 = vld [vmem:[%s6117 + $0x40] sm:$0xf]
  %v6135 = vld [vmem:[%s6117 + $0x44] sm:$0xf]
  %v6136 = vld [vmem:[%s6117 + $0x48] sm:$0xf]
  %v6137 = vld [vmem:[%s6117 + $0x4c] sm:$0xf]
  %v6138 = vld [vmem:[%s6117 + $0x50] sm:$0xf]
  %v6139 = vld [vmem:[%s6117 + $0x54] sm:$0xf]
  %v6140 = vld [vmem:[%s6117 + $0x58] sm:$0xf]
  %v6141 = vld [vmem:[%s6117 + $0x5c] sm:$0xf]
  %v6142 = vld [vmem:[%s6117 + $0x60] sm:$0xf]
  %v6143 = vld [vmem:[%s6117 + $0x64] sm:$0xf]
  %v6144 = vld [vmem:[%s6117 + $0x68] sm:$0xf]
  %v6145 = vld [vmem:[%s6117 + $0x6c] sm:$0xf]
  %v6146 = vld [vmem:[%s6117 + $0x70] sm:$0xf]
  %v6147 = vld [vmem:[%s6117 + $0x74] sm:$0xf]
  %v6148 = vld [vmem:[%s6117 + $0x78] sm:$0xf]
  %v6149 = vld [vmem:[%s6117 + $0x7c] sm:$0xf]
  %v6150 = vld [vmem:[%s6117 + $0x80] sm:$0xf]
  %v6151 = vld [vmem:[%s6117 + $0x84] sm:$0xf]
  %v6152 = vld [vmem:[%s6117 + $0x88] sm:$0xf]
  %v6153 = vld [vmem:[%s6117 + $0x8c] sm:$0xf]
  %v6154 = vld [vmem:[%s6117 + $0x90] sm:$0xf]
  %v6155 = vld [vmem:[%s6117 + $0x94] sm:$0xf]
  %v6156 = vld [vmem:[%s6117 + $0x98] sm:$0xf]
  %v6157 = vld [vmem:[%s6117 + $0x9c] sm:$0xf]
  %v6158 = vld [vmem:[%s6117 + $0xa0] sm:$0xf]
  %v6159 = vld [vmem:[%s6117 + $0xa4] sm:$0xf]
  %v6160 = vld [vmem:[%s6117 + $0xa8] sm:$0xf]
  %v6161 = vld [vmem:[%s6117 + $0xac] sm:$0xf]
  %v6162 = vld [vmem:[%s6117 + $0xb0] sm:$0xf]
  %v6163 = vld [vmem:[%s6117 + $0xb4] sm:$0xf]
  %v6164 = vld [vmem:[%s6117 + $0xb8] sm:$0xf]
  %v6165 = vld [vmem:[%s6117 + $0xbc] sm:$0xf]
  %v6166 = vld [vmem:[%s6117 + $0xc0] sm:$0xf]
  %v6167 = vld [vmem:[%s6117 + $0xc4] sm:$0xf]
  %v6168 = vld [vmem:[%s6117 + $0xc8] sm:$0xf]
  %v6169 = vld [vmem:[%s6117 + $0xcc] sm:$0xf]
  %v6170 = vld [vmem:[%s6117 + $0xd0] sm:$0xf]
  %v6171 = vld [vmem:[%s6117 + $0xd4] sm:$0xf]
  %v6172 = vld [vmem:[%s6117 + $0xd8] sm:$0xf]
  %v6173 = vld [vmem:[%s6117 + $0xdc] sm:$0xf]
  %v6174 = vld [vmem:[%s6117 + $0xe0] sm:$0xf]
  %v6175 = vld [vmem:[%s6117 + $0xe4] sm:$0xf]
  %v6176 = vld [vmem:[%s6117 + $0xe8] sm:$0xf]
  %v6177 = vld [vmem:[%s6117 + $0xec] sm:$0xf]
  %v6178 = vld [vmem:[%s6117 + $0xf0] sm:$0xf]
  %v6179 = vld [vmem:[%s6117 + $0xf4] sm:$0xf]
  %v6180 = vld [vmem:[%s6117 + $0xf8] sm:$0xf]
  %v6181 = vld [vmem:[%s6117 + $0xfc] sm:$0xf]
  %v6182 = vld [vmem:[%s6117 + $0x100] sm:$0xf]
  %v6183 = vld [vmem:[%s6117 + $0x104] sm:$0xf]
  %v6184 = vld [vmem:[%s6117 + $0x108] sm:$0xf]
  %v6185 = vld [vmem:[%s6117 + $0x10c] sm:$0xf]
  %v6186 = vld [vmem:[%s6117 + $0x110] sm:$0xf]
  %v6187 = vld [vmem:[%s6117 + $0x114] sm:$0xf]
  %v6188 = vld [vmem:[%s6117 + $0x118] sm:$0xf]
  %v6189 = vld [vmem:[%s6117 + $0x11c] sm:$0xf]
  %v6190 = vld [vmem:[%s6117 + $0x120] sm:$0xf]
  %v6191 = vld [vmem:[%s6117 + $0x124] sm:$0xf]
  %v6192 = vld [vmem:[%s6117 + $0x128] sm:$0xf]
  %v6193 = vld [vmem:[%s6117 + $0x12c] sm:$0xf]
  %v6194 = vld [vmem:[%s6117 + $0x130] sm:$0xf]
  %v6195 = vld [vmem:[%s6117 + $0x134] sm:$0xf]
  %v6196 = vld [vmem:[%s6117 + $0x138] sm:$0xf]
  %v6197 = vld [vmem:[%s6117 + $0x13c] sm:$0xf]
  %v6198 = vld [vmem:[%s6117 + $0x140] sm:$0xf]
  %v6199 = vld [vmem:[%s6117 + $0x144] sm:$0xf]
  %v6200 = vld [vmem:[%s6117 + $0x148] sm:$0xf]
  %v6201 = vld [vmem:[%s6117 + $0x14c] sm:$0xf]
  %v6202 = vld [vmem:[%s6117 + $0x150] sm:$0xf]
  %v6203 = vld [vmem:[%s6117 + $0x154] sm:$0xf]
  %v6204 = vld [vmem:[%s6117 + $0x158] sm:$0xf]
  %v6205 = vld [vmem:[%s6117 + $0x15c] sm:$0xf]
  %v6206 = vld [vmem:[%s6117 + $0x160] sm:$0xf]
  %v6207 = vld [vmem:[%s6117 + $0x164] sm:$0xf]
  %v6208 = vld [vmem:[%s6117 + $0x168] sm:$0xf]
  %v6209 = vld [vmem:[%s6117 + $0x16c] sm:$0xf]
  %v6210 = vld [vmem:[%s6117 + $0x170] sm:$0xf]
  %v6211 = vld [vmem:[%s6117 + $0x174] sm:$0xf]
  %v6212 = vld [vmem:[%s6117 + $0x178] sm:$0xf]
  %v6213 = vld [vmem:[%s6117 + $0x17c] sm:$0xf]
  %v6214 = vld [vmem:[%s6117 + $0x180] sm:$0xf]
  %v6215 = vld [vmem:[%s6117 + $0x184] sm:$0xf]
  %v6216 = vld [vmem:[%s6117 + $0x188] sm:$0xf]
  %v6217 = vld [vmem:[%s6117 + $0x18c] sm:$0xf]
  %v6218 = vld [vmem:[%s6117 + $0x190] sm:$0xf]
  %v6219 = vld [vmem:[%s6117 + $0x194] sm:$0xf]
  %v6220 = vld [vmem:[%s6117 + $0x198] sm:$0xf]
  %v6221 = vld [vmem:[%s6117 + $0x19c] sm:$0xf]
  %v6222 = vld [vmem:[%s6117 + $0x1a0] sm:$0xf]
  %v6223 = vld [vmem:[%s6117 + $0x1a4] sm:$0xf]
  %v6224 = vld [vmem:[%s6117 + $0x1a8] sm:$0xf]
  %v6225 = vld [vmem:[%s6117 + $0x1ac] sm:$0xf]
  %v6226 = vld [vmem:[%s6117 + $0x1b0] sm:$0xf]
  %v6227 = vld [vmem:[%s6117 + $0x1b4] sm:$0xf]
  %v6228 = vld [vmem:[%s6117 + $0x1b8] sm:$0xf]
  %v6229 = vld [vmem:[%s6117 + $0x1bc] sm:$0xf]
  %v6230 = vld [vmem:[%s6117 + $0x1c0] sm:$0xf]
  %v6231 = vld [vmem:[%s6117 + $0x1c4] sm:$0xf]
  %v6232 = vld [vmem:[%s6117 + $0x1c8] sm:$0xf]
  %v6233 = vld [vmem:[%s6117 + $0x1cc] sm:$0xf]
  %v6234 = vld [vmem:[%s6117 + $0x1d0] sm:$0xf]
  %v6235 = vld [vmem:[%s6117 + $0x1d4] sm:$0xf]
  %v6236 = vld [vmem:[%s6117 + $0x1d8] sm:$0xf]
  %v6237 = vld [vmem:[%s6117 + $0x1dc] sm:$0xf]
  %v6238 = vld [vmem:[%s6117 + $0x1e0] sm:$0xf]
  %v6239 = vld [vmem:[%s6117 + $0x1e4] sm:$0xf]
  %v6240 = vld [vmem:[%s6117 + $0x1e8] sm:$0xf]
  %v6241 = vld [vmem:[%s6117 + $0x1ec] sm:$0xf]
  %v6242 = vld [vmem:[%s6117 + $0x1f0] sm:$0xf]
  %v6243 = vld [vmem:[%s6117 + $0x1f4] sm:$0xf]
  %v6244 = vld [vmem:[%s6117 + $0x1f8] sm:$0xf]
  %v6245 = vld [vmem:[%s6117 + $0x1fc] sm:$0xf]
  %v6246 = vld [vmem:[%s6117 + $0x200] sm:$0xf]
  %v6247 = vld [vmem:[%s6117 + $0x204] sm:$0xf]
  %v6248 = vld [vmem:[%s6117 + $0x208] sm:$0xf]
  %v6249 = vld [vmem:[%s6117 + $0x20c] sm:$0xf]
  %v6250 = vld [vmem:[%s6117 + $0x210] sm:$0xf]
  %v6251 = vld [vmem:[%s6117 + $0x214] sm:$0xf]
  %v6252 = vld [vmem:[%s6117 + $0x218] sm:$0xf]
  %v6253 = vld [vmem:[%s6117 + $0x21c] sm:$0xf]
  %v6254 = vld [vmem:[%s6117 + $0x220] sm:$0xf]
  %v6255 = vld [vmem:[%s6117 + $0x224] sm:$0xf]
  %v6256 = vld [vmem:[%s6117 + $0x228] sm:$0xf]
  %v6257 = vld [vmem:[%s6117 + $0x22c] sm:$0xf]
  %v6258 = vld [vmem:[%s6117 + $0x230] sm:$0xf]
  %v6259 = vld [vmem:[%s6117 + $0x234] sm:$0xf]
  %v6260 = vld [vmem:[%s6117 + $0x238] sm:$0xf]
  %v6261 = vld [vmem:[%s6117 + $0x23c] sm:$0xf]
  %v6262 = vld [vmem:[%s6117 + $0x240] sm:$0xf]
  %v6263 = vld [vmem:[%s6117 + $0x244] sm:$0xf]
  %v6264 = vld [vmem:[%s6117 + $0x248] sm:$0xf]
  %v6265 = vld [vmem:[%s6117 + $0x24c] sm:$0xf]
  %v6266 = vld [vmem:[%s6117 + $0x250] sm:$0xf]
  %v6267 = vld [vmem:[%s6117 + $0x254] sm:$0xf]
  %v6268 = vld [vmem:[%s6117 + $0x258] sm:$0xf]
  %v6269 = vld [vmem:[%s6117 + $0x25c] sm:$0xf]
  %v6270 = vld [vmem:[%s6117 + $0x260] sm:$0xf]
  %v6271 = vld [vmem:[%s6117 + $0x264] sm:$0xf]
  %v6272 = vld [vmem:[%s6117 + $0x268] sm:$0xf]
  %v6273 = vld [vmem:[%s6117 + $0x26c] sm:$0xf]
  %v6274 = vld [vmem:[%s6117 + $0x270] sm:$0xf]
  %v6275 = vld [vmem:[%s6117 + $0x274] sm:$0xf]
  %v6276 = vld [vmem:[%s6117 + $0x278] sm:$0xf]
  %v6277 = vld [vmem:[%s6117 + $0x27c] sm:$0xf]
  %v6278 = vld [vmem:[%s6117 + $0x280] sm:$0xf]
  %v6279 = vld [vmem:[%s6117 + $0x284] sm:$0xf]
  %v6280 = vld [vmem:[%s6117 + $0x288] sm:$0xf]
  %v6281 = vld [vmem:[%s6117 + $0x28c] sm:$0xf]
  %v6282 = vld [vmem:[%s6117 + $0x290] sm:$0xf]
  %v6283 = vld [vmem:[%s6117 + $0x294] sm:$0xf]
  %v6284 = vld [vmem:[%s6117 + $0x298] sm:$0xf]
  %v6285 = vld [vmem:[%s6117 + $0x29c] sm:$0xf]
  %v6286 = vld [vmem:[%s6117 + $0x2a0] sm:$0xf]
  %v6287 = vld [vmem:[%s6117 + $0x2a4] sm:$0xf]
  %v6288 = vld [vmem:[%s6117 + $0x2a8] sm:$0xf]
  %v6289 = vld [vmem:[%s6117 + $0x2ac] sm:$0xf]
  %v6290 = vld [vmem:[%s6117 + $0x2b0] sm:$0xf]
  %v6291 = vld [vmem:[%s6117 + $0x2b4] sm:$0xf]
  %v6292 = vld [vmem:[%s6117 + $0x2b8] sm:$0xf]
  %v6293 = vld [vmem:[%s6117 + $0x2bc] sm:$0xf]
  %v6294 = vld [vmem:[%s6117 + $0x2c0] sm:$0xf]
  %v6295 = vld [vmem:[%s6117 + $0x2c4] sm:$0xf]
  %v6296 = vld [vmem:[%s6117 + $0x2c8] sm:$0xf]
  %v6297 = vld [vmem:[%s6117 + $0x2cc] sm:$0xf]
  %v6298 = vld [vmem:[%s6117 + $0x2d0] sm:$0xf]
  %v6299 = vld [vmem:[%s6117 + $0x2d4] sm:$0xf]
  %v6300 = vld [vmem:[%s6117 + $0x2d8] sm:$0xf]
  %v6301 = vld [vmem:[%s6117 + $0x2dc] sm:$0xf]
  %v6302 = vld [vmem:[%s6117 + $0x2e0] sm:$0xf]
  %v6303 = vld [vmem:[%s6117 + $0x2e4] sm:$0xf]
  %v6304 = vld [vmem:[%s6117 + $0x2e8] sm:$0xf]
  %v6305 = vld [vmem:[%s6117 + $0x2ec] sm:$0xf]
  %v6306 = vld [vmem:[%s6117 + $0x2f0] sm:$0xf]
  %v6307 = vld [vmem:[%s6117 + $0x2f4] sm:$0xf]
  %v6308 = vld [vmem:[%s6117 + $0x2f8] sm:$0xf]
  %v6309 = vld [vmem:[%s6117 + $0x2fc] sm:$0xf]
  %v6310 = vld [vmem:[%s6117 + $0x300] sm:$0xf]
  %v6311 = vld [vmem:[%s6117 + $0x304] sm:$0xf]
  %v6312 = vld [vmem:[%s6117 + $0x308] sm:$0xf]
  %v6313 = vld [vmem:[%s6117 + $0x30c] sm:$0xf]
  %v6314 = vld [vmem:[%s6117 + $0x310] sm:$0xf]
  %v6315 = vld [vmem:[%s6117 + $0x314] sm:$0xf]
  %v6316 = vld [vmem:[%s6117 + $0x318] sm:$0xf]
  %v6317 = vld [vmem:[%s6117 + $0x31c] sm:$0xf]
  %v6318 = vld [vmem:[%s6117 + $0x320] sm:$0xf]
  %v6319 = vld [vmem:[%s6117 + $0x324] sm:$0xf]
  %v6320 = vld [vmem:[%s6117 + $0x328] sm:$0xf]
  %v6321 = vld [vmem:[%s6117 + $0x32c] sm:$0xf]
  %v6322 = vld [vmem:[%s6117 + $0x330] sm:$0xf]
  %v6323 = vld [vmem:[%s6117 + $0x334] sm:$0xf]
  %v6324 = vld [vmem:[%s6117 + $0x338] sm:$0xf]
  %v6325 = vld [vmem:[%s6117 + $0x33c] sm:$0xf]
  %v6326 = vld [vmem:[%s6117 + $0x340] sm:$0xf]
  %v6327 = vld [vmem:[%s6117 + $0x344] sm:$0xf]
  %v6328 = vld [vmem:[%s6117 + $0x348] sm:$0xf]
  %v6329 = vld [vmem:[%s6117 + $0x34c] sm:$0xf]
  %v6330 = vld [vmem:[%s6117 + $0x350] sm:$0xf]
  %v6331 = vld [vmem:[%s6117 + $0x354] sm:$0xf]
  %v6332 = vld [vmem:[%s6117 + $0x358] sm:$0xf]
  %v6333 = vld [vmem:[%s6117 + $0x35c] sm:$0xf]
  %v6334 = vld [vmem:[%s6117 + $0x360] sm:$0xf]
  %v6335 = vld [vmem:[%s6117 + $0x364] sm:$0xf]
  %v6336 = vld [vmem:[%s6117 + $0x368] sm:$0xf]
  %v6337 = vld [vmem:[%s6117 + $0x36c] sm:$0xf]
  %v6338 = vld [vmem:[%s6117 + $0x370] sm:$0xf]
  %v6339 = vld [vmem:[%s6117 + $0x374] sm:$0xf]
  %v6340 = vld [vmem:[%s6117 + $0x378] sm:$0xf]
  %v6341 = vld [vmem:[%s6117 + $0x37c] sm:$0xf]
  %v6342 = vld [vmem:[%s6117 + $0x380] sm:$0xf]
  %v6343 = vld [vmem:[%s6117 + $0x384] sm:$0xf]
  %v6344 = vld [vmem:[%s6117 + $0x388] sm:$0xf]
  %v6345 = vld [vmem:[%s6117 + $0x38c] sm:$0xf]
  %v6346 = vld [vmem:[%s6117 + $0x390] sm:$0xf]
  %v6347 = vld [vmem:[%s6117 + $0x394] sm:$0xf]
  %v6348 = vld [vmem:[%s6117 + $0x398] sm:$0xf]
  %v6349 = vld [vmem:[%s6117 + $0x39c] sm:$0xf]
  %v6350 = vld [vmem:[%s6117 + $0x3a0] sm:$0xf]
  %v6351 = vld [vmem:[%s6117 + $0x3a4] sm:$0xf]
  %v6352 = vld [vmem:[%s6117 + $0x3a8] sm:$0xf]
  %v6353 = vld [vmem:[%s6117 + $0x3ac] sm:$0xf]
  %v6354 = vld [vmem:[%s6117 + $0x3b0] sm:$0xf]
  %v6355 = vld [vmem:[%s6117 + $0x3b4] sm:$0xf]
  %v6356 = vld [vmem:[%s6117 + $0x3b8] sm:$0xf]
  %v6357 = vld [vmem:[%s6117 + $0x3bc] sm:$0xf]
  %v6358 = vld [vmem:[%s6117 + $0x3c0] sm:$0xf]
  %v6359 = vld [vmem:[%s6117 + $0x3c4] sm:$0xf]
  %v6360 = vld [vmem:[%s6117 + $0x3c8] sm:$0xf]
  %v6361 = vld [vmem:[%s6117 + $0x3cc] sm:$0xf]
  %v6362 = vld [vmem:[%s6117 + $0x3d0] sm:$0xf]
  %v6363 = vld [vmem:[%s6117 + $0x3d4] sm:$0xf]
  %v6364 = vld [vmem:[%s6117 + $0x3d8] sm:$0xf]
  %v6365 = vld [vmem:[%s6117 + $0x3dc] sm:$0xf]
  %v6366 = vld [vmem:[%s6117 + $0x3e0] sm:$0xf]
  %v6367 = vld [vmem:[%s6117 + $0x3e4] sm:$0xf]
  %v6368 = vld [vmem:[%s6117 + $0x3e8] sm:$0xf]
  %v6369 = vld [vmem:[%s6117 + $0x3ec] sm:$0xf]
  %v6370 = vld [vmem:[%s6117 + $0x3f0] sm:$0xf]
  %v6371 = vld [vmem:[%s6117 + $0x3f4] sm:$0xf]
  %v6372 = vld [vmem:[%s6117 + $0x3f8] sm:$0xf]
  %v6373 = vld [vmem:[%s6117 + $0x3fc] sm:$0xf]
  %s6374 = scalar_lea.vmem %s18, 1
  %v6375 = vld [vmem:[%s6374] sm:$0x1]
  %v6377 = vlaneseq
  %v6378 = vshrl.u32 %v6377, 7
  %v6379 = vsub.s32 0, %v6378
  %v6380 = vrot.slane %v6375, %v6379
  %v6638 = vunpack.c.l.b16 %v6118
  %v6639 = vunpack.c.l.b16 %v6119
  %v6640 = vunpack.c.l.b16 %v6120
  %v6641 = vunpack.c.l.b16 %v6121
  %v6642 = vunpack.c.l.b16 %v6122
  %v6643 = vunpack.c.l.b16 %v6123
  %v6644 = vunpack.c.l.b16 %v6124
  %v6645 = vunpack.c.l.b16 %v6125
  %v6646 = vunpack.c.l.b16 %v6126
  %v6647 = vunpack.c.l.b16 %v6127
  %v6648 = vunpack.c.l.b16 %v6128
  %v6649 = vunpack.c.l.b16 %v6129
  %v6650 = vunpack.c.l.b16 %v6130
  %v6651 = vunpack.c.l.b16 %v6131
  %v6652 = vunpack.c.l.b16 %v6132
  %v6653 = vunpack.c.l.b16 %v6133
  %v6654 = vunpack.c.l.b16 %v6134
  %v6655 = vunpack.c.l.b16 %v6135
  %v6656 = vunpack.c.l.b16 %v6136
  %v6657 = vunpack.c.l.b16 %v6137
  %v6658 = vunpack.c.l.b16 %v6138
  %v6659 = vunpack.c.l.b16 %v6139
  %v6660 = vunpack.c.l.b16 %v6140
  %v6661 = vunpack.c.l.b16 %v6141
  %v6662 = vunpack.c.l.b16 %v6142
  %v6663 = vunpack.c.l.b16 %v6143
  %v6664 = vunpack.c.l.b16 %v6144
  %v6665 = vunpack.c.l.b16 %v6145
  %v6666 = vunpack.c.l.b16 %v6146
  %v6667 = vunpack.c.l.b16 %v6147
  %v6668 = vunpack.c.l.b16 %v6148
  %v6669 = vunpack.c.l.b16 %v6149
  %v6670 = vunpack.c.l.b16 %v6150
  %v6671 = vunpack.c.l.b16 %v6151
  %v6672 = vunpack.c.l.b16 %v6152
  %v6673 = vunpack.c.l.b16 %v6153
  %v6674 = vunpack.c.l.b16 %v6154
  %v6675 = vunpack.c.l.b16 %v6155
  %v6676 = vunpack.c.l.b16 %v6156
  %v6677 = vunpack.c.l.b16 %v6157
  %v6678 = vunpack.c.l.b16 %v6158
  %v6679 = vunpack.c.l.b16 %v6159
  %v6680 = vunpack.c.l.b16 %v6160
  %v6681 = vunpack.c.l.b16 %v6161
  %v6682 = vunpack.c.l.b16 %v6162
  %v6683 = vunpack.c.l.b16 %v6163
  %v6684 = vunpack.c.l.b16 %v6164
  %v6685 = vunpack.c.l.b16 %v6165
  %v6686 = vunpack.c.l.b16 %v6166
  %v6687 = vunpack.c.l.b16 %v6167
  %v6688 = vunpack.c.l.b16 %v6168
  %v6689 = vunpack.c.l.b16 %v6169
  %v6690 = vunpack.c.l.b16 %v6170
  %v6691 = vunpack.c.l.b16 %v6171
  %v6692 = vunpack.c.l.b16 %v6172
  %v6693 = vunpack.c.l.b16 %v6173
  %v6694 = vunpack.c.l.b16 %v6174
  %v6695 = vunpack.c.l.b16 %v6175
  %v6696 = vunpack.c.l.b16 %v6176
  %v6697 = vunpack.c.l.b16 %v6177
  %v6698 = vunpack.c.l.b16 %v6178
  %v6699 = vunpack.c.l.b16 %v6179
  %v6700 = vunpack.c.l.b16 %v6180
  %v6701 = vunpack.c.l.b16 %v6181
  %v6702 = vunpack.c.l.b16 %v6182
  %v6703 = vunpack.c.l.b16 %v6183
  %v6704 = vunpack.c.l.b16 %v6184
  %v6705 = vunpack.c.l.b16 %v6185
  %v6706 = vunpack.c.l.b16 %v6186
  %v6707 = vunpack.c.l.b16 %v6187
  %v6708 = vunpack.c.l.b16 %v6188
  %v6709 = vunpack.c.l.b16 %v6189
  %v6710 = vunpack.c.l.b16 %v6190
  %v6711 = vunpack.c.l.b16 %v6191
  %v6712 = vunpack.c.l.b16 %v6192
  %v6713 = vunpack.c.l.b16 %v6193
  %v6714 = vunpack.c.l.b16 %v6194
  %v6715 = vunpack.c.l.b16 %v6195
  %v6716 = vunpack.c.l.b16 %v6196
  %v6717 = vunpack.c.l.b16 %v6197
  %v6718 = vunpack.c.l.b16 %v6198
  %v6719 = vunpack.c.l.b16 %v6199
  %v6720 = vunpack.c.l.b16 %v6200
  %v6721 = vunpack.c.l.b16 %v6201
  %v6722 = vunpack.c.l.b16 %v6202
  %v6723 = vunpack.c.l.b16 %v6203
  %v6724 = vunpack.c.l.b16 %v6204
  %v6725 = vunpack.c.l.b16 %v6205
  %v6726 = vunpack.c.l.b16 %v6206
  %v6727 = vunpack.c.l.b16 %v6207
  %v6728 = vunpack.c.l.b16 %v6208
  %v6729 = vunpack.c.l.b16 %v6209
  %v6730 = vunpack.c.l.b16 %v6210
  %v6731 = vunpack.c.l.b16 %v6211
  %v6732 = vunpack.c.l.b16 %v6212
  %v6733 = vunpack.c.l.b16 %v6213
  %v6734 = vunpack.c.l.b16 %v6214
  %v6735 = vunpack.c.l.b16 %v6215
  %v6736 = vunpack.c.l.b16 %v6216
  %v6737 = vunpack.c.l.b16 %v6217
  %v6738 = vunpack.c.l.b16 %v6218
  %v6739 = vunpack.c.l.b16 %v6219
  %v6740 = vunpack.c.l.b16 %v6220
  %v6741 = vunpack.c.l.b16 %v6221
  %v6742 = vunpack.c.l.b16 %v6222
  %v6743 = vunpack.c.l.b16 %v6223
  %v6744 = vunpack.c.l.b16 %v6224
  %v6745 = vunpack.c.l.b16 %v6225
  %v6746 = vunpack.c.l.b16 %v6226
  %v6747 = vunpack.c.l.b16 %v6227
  %v6748 = vunpack.c.l.b16 %v6228
  %v6749 = vunpack.c.l.b16 %v6229
  %v6750 = vunpack.c.l.b16 %v6230
  %v6751 = vunpack.c.l.b16 %v6231
  %v6752 = vunpack.c.l.b16 %v6232
  %v6753 = vunpack.c.l.b16 %v6233
  %v6754 = vunpack.c.l.b16 %v6234
  %v6755 = vunpack.c.l.b16 %v6235
  %v6756 = vunpack.c.l.b16 %v6236
  %v6757 = vunpack.c.l.b16 %v6237
  %v6758 = vunpack.c.l.b16 %v6238
  %v6759 = vunpack.c.l.b16 %v6239
  %v6760 = vunpack.c.l.b16 %v6240
  %v6761 = vunpack.c.l.b16 %v6241
  %v6762 = vunpack.c.l.b16 %v6242
  %v6763 = vunpack.c.l.b16 %v6243
  %v6764 = vunpack.c.l.b16 %v6244
  %v6765 = vunpack.c.l.b16 %v6245
  %v6766 = vunpack.c.l.b16 %v6246
  %v6767 = vunpack.c.l.b16 %v6247
  %v6768 = vunpack.c.l.b16 %v6248
  %v6769 = vunpack.c.l.b16 %v6249
  %v6770 = vunpack.c.l.b16 %v6250
  %v6771 = vunpack.c.l.b16 %v6251
  %v6772 = vunpack.c.l.b16 %v6252
  %v6773 = vunpack.c.l.b16 %v6253
  %v6774 = vunpack.c.l.b16 %v6254
  %v6775 = vunpack.c.l.b16 %v6255
  %v6776 = vunpack.c.l.b16 %v6256
  %v6777 = vunpack.c.l.b16 %v6257
  %v6778 = vunpack.c.l.b16 %v6258
  %v6779 = vunpack.c.l.b16 %v6259
  %v6780 = vunpack.c.l.b16 %v6260
  %v6781 = vunpack.c.l.b16 %v6261
  %v6782 = vunpack.c.l.b16 %v6262
  %v6783 = vunpack.c.l.b16 %v6263
  %v6784 = vunpack.c.l.b16 %v6264
  %v6785 = vunpack.c.l.b16 %v6265
  %v6786 = vunpack.c.l.b16 %v6266
  %v6787 = vunpack.c.l.b16 %v6267
  %v6788 = vunpack.c.l.b16 %v6268
  %v6789 = vunpack.c.l.b16 %v6269
  %v6790 = vunpack.c.l.b16 %v6270
  %v6791 = vunpack.c.l.b16 %v6271
  %v6792 = vunpack.c.l.b16 %v6272
  %v6793 = vunpack.c.l.b16 %v6273
  %v6794 = vunpack.c.l.b16 %v6274
  %v6795 = vunpack.c.l.b16 %v6275
  %v6796 = vunpack.c.l.b16 %v6276
  %v6797 = vunpack.c.l.b16 %v6277
  %v6798 = vunpack.c.l.b16 %v6278
  %v6799 = vunpack.c.l.b16 %v6279
  %v6800 = vunpack.c.l.b16 %v6280
  %v6801 = vunpack.c.l.b16 %v6281
  %v6802 = vunpack.c.l.b16 %v6282
  %v6803 = vunpack.c.l.b16 %v6283
  %v6804 = vunpack.c.l.b16 %v6284
  %v6805 = vunpack.c.l.b16 %v6285
  %v6806 = vunpack.c.l.b16 %v6286
  %v6807 = vunpack.c.l.b16 %v6287
  %v6808 = vunpack.c.l.b16 %v6288
  %v6809 = vunpack.c.l.b16 %v6289
  %v6810 = vunpack.c.l.b16 %v6290
  %v6811 = vunpack.c.l.b16 %v6291
  %v6812 = vunpack.c.l.b16 %v6292
  %v6813 = vunpack.c.l.b16 %v6293
  %v6814 = vunpack.c.l.b16 %v6294
  %v6815 = vunpack.c.l.b16 %v6295
  %v6816 = vunpack.c.l.b16 %v6296
  %v6817 = vunpack.c.l.b16 %v6297
  %v6818 = vunpack.c.l.b16 %v6298
  %v6819 = vunpack.c.l.b16 %v6299
  %v6820 = vunpack.c.l.b16 %v6300
  %v6821 = vunpack.c.l.b16 %v6301
  %v6822 = vunpack.c.l.b16 %v6302
  %v6823 = vunpack.c.l.b16 %v6303
  %v6824 = vunpack.c.l.b16 %v6304
  %v6825 = vunpack.c.l.b16 %v6305
  %v6826 = vunpack.c.l.b16 %v6306
  %v6827 = vunpack.c.l.b16 %v6307
  %v6828 = vunpack.c.l.b16 %v6308
  %v6829 = vunpack.c.l.b16 %v6309
  %v6830 = vunpack.c.l.b16 %v6310
  %v6831 = vunpack.c.l.b16 %v6311
  %v6832 = vunpack.c.l.b16 %v6312
  %v6833 = vunpack.c.l.b16 %v6313
  %v6834 = vunpack.c.l.b16 %v6314
  %v6835 = vunpack.c.l.b16 %v6315
  %v6836 = vunpack.c.l.b16 %v6316
  %v6837 = vunpack.c.l.b16 %v6317
  %v6838 = vunpack.c.l.b16 %v6318
  %v6839 = vunpack.c.l.b16 %v6319
  %v6840 = vunpack.c.l.b16 %v6320
  %v6841 = vunpack.c.l.b16 %v6321
  %v6842 = vunpack.c.l.b16 %v6322
  %v6843 = vunpack.c.l.b16 %v6323
  %v6844 = vunpack.c.l.b16 %v6324
  %v6845 = vunpack.c.l.b16 %v6325
  %v6846 = vunpack.c.l.b16 %v6326
  %v6847 = vunpack.c.l.b16 %v6327
  %v6848 = vunpack.c.l.b16 %v6328
  %v6849 = vunpack.c.l.b16 %v6329
  %v6850 = vunpack.c.l.b16 %v6330
  %v6851 = vunpack.c.l.b16 %v6331
  %v6852 = vunpack.c.l.b16 %v6332
  %v6853 = vunpack.c.l.b16 %v6333
  %v6854 = vunpack.c.l.b16 %v6334
  %v6855 = vunpack.c.l.b16 %v6335
  %v6856 = vunpack.c.l.b16 %v6336
  %v6857 = vunpack.c.l.b16 %v6337
  %v6858 = vunpack.c.l.b16 %v6338
  %v6859 = vunpack.c.l.b16 %v6339
  %v6860 = vunpack.c.l.b16 %v6340
  %v6861 = vunpack.c.l.b16 %v6341
  %v6862 = vunpack.c.l.b16 %v6342
  %v6863 = vunpack.c.l.b16 %v6343
  %v6864 = vunpack.c.l.b16 %v6344
  %v6865 = vunpack.c.l.b16 %v6345
  %v6866 = vunpack.c.l.b16 %v6346
  %v6867 = vunpack.c.l.b16 %v6347
  %v6868 = vunpack.c.l.b16 %v6348
  %v6869 = vunpack.c.l.b16 %v6349
  %v6870 = vunpack.c.l.b16 %v6350
  %v6871 = vunpack.c.l.b16 %v6351
  %v6872 = vunpack.c.l.b16 %v6352
  %v6873 = vunpack.c.l.b16 %v6353
  %v6874 = vunpack.c.l.b16 %v6354
  %v6875 = vunpack.c.l.b16 %v6355
  %v6876 = vunpack.c.l.b16 %v6356
  %v6877 = vunpack.c.l.b16 %v6357
  %v6878 = vunpack.c.l.b16 %v6358
  %v6879 = vunpack.c.l.b16 %v6359
  %v6880 = vunpack.c.l.b16 %v6360
  %v6881 = vunpack.c.l.b16 %v6361
  %v6882 = vunpack.c.l.b16 %v6362
  %v6883 = vunpack.c.l.b16 %v6363
  %v6884 = vunpack.c.l.b16 %v6364
  %v6885 = vunpack.c.l.b16 %v6365
  %v6886 = vunpack.c.l.b16 %v6366
  %v6887 = vunpack.c.l.b16 %v6367
  %v6888 = vunpack.c.l.b16 %v6368
  %v6889 = vunpack.c.l.b16 %v6369
  %v6890 = vunpack.c.l.b16 %v6370
  %v6891 = vunpack.c.l.b16 %v6371
  %v6892 = vunpack.c.l.b16 %v6372
  %v6893 = vunpack.c.l.b16 %v6373
  %v6894 = vpack.c.b16 %v6639, %v6638
  %v6895 = vpack.c.b16 %v6641, %v6640
  %v6896 = vpack.c.b16 %v6643, %v6642
  %v6897 = vpack.c.b16 %v6645, %v6644
  %v6898 = vpack.c.b16 %v6647, %v6646
  %v6899 = vpack.c.b16 %v6649, %v6648
  %v6900 = vpack.c.b16 %v6651, %v6650
  %v6901 = vpack.c.b16 %v6653, %v6652
  %v6902 = vpack.c.b16 %v6655, %v6654
  %v6903 = vpack.c.b16 %v6657, %v6656
  %v6904 = vpack.c.b16 %v6659, %v6658
  %v6905 = vpack.c.b16 %v6661, %v6660
  %v6906 = vpack.c.b16 %v6663, %v6662
  %v6907 = vpack.c.b16 %v6665, %v6664
  %v6908 = vpack.c.b16 %v6667, %v6666
  %v6909 = vpack.c.b16 %v6669, %v6668
  %v6910 = vpack.c.b16 %v6671, %v6670
  %v6911 = vpack.c.b16 %v6673, %v6672
  %v6912 = vpack.c.b16 %v6675, %v6674
  %v6913 = vpack.c.b16 %v6677, %v6676
  %v6914 = vpack.c.b16 %v6679, %v6678
  %v6915 = vpack.c.b16 %v6681, %v6680
  %v6916 = vpack.c.b16 %v6683, %v6682
  %v6917 = vpack.c.b16 %v6685, %v6684
  %v6918 = vpack.c.b16 %v6687, %v6686
  %v6919 = vpack.c.b16 %v6689, %v6688
  %v6920 = vpack.c.b16 %v6691, %v6690
  %v6921 = vpack.c.b16 %v6693, %v6692
  %v6922 = vpack.c.b16 %v6695, %v6694
  %v6923 = vpack.c.b16 %v6697, %v6696
  %v6924 = vpack.c.b16 %v6699, %v6698
  %v6925 = vpack.c.b16 %v6701, %v6700
  %v6926 = vpack.c.b16 %v6703, %v6702
  %v6927 = vpack.c.b16 %v6705, %v6704
  %v6928 = vpack.c.b16 %v6707, %v6706
  %v6929 = vpack.c.b16 %v6709, %v6708
  %v6930 = vpack.c.b16 %v6711, %v6710
  %v6931 = vpack.c.b16 %v6713, %v6712
  %v6932 = vpack.c.b16 %v6715, %v6714
  %v6933 = vpack.c.b16 %v6717, %v6716
  %v6934 = vpack.c.b16 %v6719, %v6718
  %v6935 = vpack.c.b16 %v6721, %v6720
  %v6936 = vpack.c.b16 %v6723, %v6722
  %v6937 = vpack.c.b16 %v6725, %v6724
  %v6938 = vpack.c.b16 %v6727, %v6726
  %v6939 = vpack.c.b16 %v6729, %v6728
  %v6940 = vpack.c.b16 %v6731, %v6730
  %v6941 = vpack.c.b16 %v6733, %v6732
  %v6942 = vpack.c.b16 %v6735, %v6734
  %v6943 = vpack.c.b16 %v6737, %v6736
  %v6944 = vpack.c.b16 %v6739, %v6738
  %v6945 = vpack.c.b16 %v6741, %v6740
  %v6946 = vpack.c.b16 %v6743, %v6742
  %v6947 = vpack.c.b16 %v6745, %v6744
  %v6948 = vpack.c.b16 %v6747, %v6746
  %v6949 = vpack.c.b16 %v6749, %v6748
  %v6950 = vpack.c.b16 %v6751, %v6750
  %v6951 = vpack.c.b16 %v6753, %v6752
  %v6952 = vpack.c.b16 %v6755, %v6754
  %v6953 = vpack.c.b16 %v6757, %v6756
  %v6954 = vpack.c.b16 %v6759, %v6758
  %v6955 = vpack.c.b16 %v6761, %v6760
  %v6956 = vpack.c.b16 %v6763, %v6762
  %v6957 = vpack.c.b16 %v6765, %v6764
  %v6958 = vpack.c.b16 %v6767, %v6766
  %v6959 = vpack.c.b16 %v6769, %v6768
  %v6960 = vpack.c.b16 %v6771, %v6770
  %v6961 = vpack.c.b16 %v6773, %v6772
  %v6962 = vpack.c.b16 %v6775, %v6774
  %v6963 = vpack.c.b16 %v6777, %v6776
  %v6964 = vpack.c.b16 %v6779, %v6778
  %v6965 = vpack.c.b16 %v6781, %v6780
  %v6966 = vpack.c.b16 %v6783, %v6782
  %v6967 = vpack.c.b16 %v6785, %v6784
  %v6968 = vpack.c.b16 %v6787, %v6786
  %v6969 = vpack.c.b16 %v6789, %v6788
  %v6970 = vpack.c.b16 %v6791, %v6790
  %v6971 = vpack.c.b16 %v6793, %v6792
  %v6972 = vpack.c.b16 %v6795, %v6794
  %v6973 = vpack.c.b16 %v6797, %v6796
  %v6974 = vpack.c.b16 %v6799, %v6798
  %v6975 = vpack.c.b16 %v6801, %v6800
  %v6976 = vpack.c.b16 %v6803, %v6802
  %v6977 = vpack.c.b16 %v6805, %v6804
  %v6978 = vpack.c.b16 %v6807, %v6806
  %v6979 = vpack.c.b16 %v6809, %v6808
  %v6980 = vpack.c.b16 %v6811, %v6810
  %v6981 = vpack.c.b16 %v6813, %v6812
  %v6982 = vpack.c.b16 %v6815, %v6814
  %v6983 = vpack.c.b16 %v6817, %v6816
  %v6984 = vpack.c.b16 %v6819, %v6818
  %v6985 = vpack.c.b16 %v6821, %v6820
  %v6986 = vpack.c.b16 %v6823, %v6822
  %v6987 = vpack.c.b16 %v6825, %v6824
  %v6988 = vpack.c.b16 %v6827, %v6826
  %v6989 = vpack.c.b16 %v6829, %v6828
  %v6990 = vpack.c.b16 %v6831, %v6830
  %v6991 = vpack.c.b16 %v6833, %v6832
  %v6992 = vpack.c.b16 %v6835, %v6834
  %v6993 = vpack.c.b16 %v6837, %v6836
  %v6994 = vpack.c.b16 %v6839, %v6838
  %v6995 = vpack.c.b16 %v6841, %v6840
  %v6996 = vpack.c.b16 %v6843, %v6842
  %v6997 = vpack.c.b16 %v6845, %v6844
  %v6998 = vpack.c.b16 %v6847, %v6846
  %v6999 = vpack.c.b16 %v6849, %v6848
  %v7000 = vpack.c.b16 %v6851, %v6850
  %v7001 = vpack.c.b16 %v6853, %v6852
  %v7002 = vpack.c.b16 %v6855, %v6854
  %v7003 = vpack.c.b16 %v6857, %v6856
  %v7004 = vpack.c.b16 %v6859, %v6858
  %v7005 = vpack.c.b16 %v6861, %v6860
  %v7006 = vpack.c.b16 %v6863, %v6862
  %v7007 = vpack.c.b16 %v6865, %v6864
  %v7008 = vpack.c.b16 %v6867, %v6866
  %v7009 = vpack.c.b16 %v6869, %v6868
  %v7010 = vpack.c.b16 %v6871, %v6870
  %v7011 = vpack.c.b16 %v6873, %v6872
  %v7012 = vpack.c.b16 %v6875, %v6874
  %v7013 = vpack.c.b16 %v6877, %v6876
  %v7014 = vpack.c.b16 %v6879, %v6878
  %v7015 = vpack.c.b16 %v6881, %v6880
  %v7016 = vpack.c.b16 %v6883, %v6882
  %v7017 = vpack.c.b16 %v6885, %v6884
  %v7018 = vpack.c.b16 %v6887, %v6886
  %v7019 = vpack.c.b16 %v6889, %v6888
  %v7020 = vpack.c.b16 %v6891, %v6890
  %v7021 = vpack.c.b16 %v6893, %v6892
  %7150 = vmatprep.subr.bf16.mxu0 0
  %7151 = vmatpush1.bf16.msra.mxu0 %v6894
  %7152 = vmatprep.subr.bf16.mxu0 0
  %7153 = vmatpush1.bf16.msra.mxu0 %v6895
  %7154 = vmatprep.subr.bf16.mxu0 0
  %7155 = vmatpush1.bf16.msra.mxu0 %v6896
  %7156 = vmatprep.subr.bf16.mxu0 0
  %7157 = vmatpush1.bf16.msra.mxu0 %v6897
  %7158 = vmatprep.subr.bf16.mxu0 0
  %7159 = vmatpush1.bf16.msra.mxu0 %v6898
  %7160 = vmatprep.subr.bf16.mxu0 0
  %7161 = vmatpush1.bf16.msra.mxu0 %v6899
  %7162 = vmatprep.subr.bf16.mxu0 0
  %7163 = vmatpush1.bf16.msra.mxu0 %v6900
  %7164 = vmatprep.subr.bf16.mxu0 0
  %7165 = vmatpush1.bf16.msra.mxu0 %v6901
  %7166 = vmatprep.subr.bf16.mxu0 0
  %7167 = vmatpush1.bf16.msra.mxu0 %v6902
  %7168 = vmatprep.subr.bf16.mxu0 0
  %7169 = vmatpush1.bf16.msra.mxu0 %v6903
  %7170 = vmatprep.subr.bf16.mxu0 0
  %7171 = vmatpush1.bf16.msra.mxu0 %v6904
  %7172 = vmatprep.subr.bf16.mxu0 0
  %7173 = vmatpush1.bf16.msra.mxu0 %v6905
  %7174 = vmatprep.subr.bf16.mxu0 0
  %7175 = vmatpush1.bf16.msra.mxu0 %v6906
  %7176 = vmatprep.subr.bf16.mxu0 0
  %7177 = vmatpush1.bf16.msra.mxu0 %v6907
  %7178 = vmatprep.subr.bf16.mxu0 0
  %7179 = vmatpush1.bf16.msra.mxu0 %v6908
  %7180 = vmatprep.subr.bf16.mxu0 0
  %7181 = vmatpush1.bf16.msra.mxu0 %v6909
  %7182 = vmatprep.mubr.bf16.mxu0 %v6086
  %7183 = vmatmul.mubr.bf16.gmra.mrb[0].mxu0 %v6085
  %v7184 = vpop.f32.mrb[0].mxu0
  %v7185 = vadd.f32 %v6380, %v7184
  %v7186 = vpop.f32.mrb[0].mxu0
  %v7187 = vpop.f32.mrb[0].mxu0
  %v7188 = vadd.f32 %v6380, %v7187
  %v7189 = vpop.f32.mrb[0].mxu0
  %7190 = vmatprep.mubr.bf16.mxu0 %v6102
  %7191 = vmatmul.mubr.bf16.gmra.mrb[0].mxu0 %v6101
  %v7192 = vpop.f32.mrb[0].mxu0
  %v7193 = vadd.f32 %v6380, %v7192
  %v7194 = vpop.f32.mrb[0].mxu0
  %v7195 = vpop.f32.mrb[0].mxu0
  %v7196 = vadd.f32 %v6380, %v7195
  %v7197 = vpop.f32.mrb[0].mxu0
  %7198 = vdwg.mxu0
  %7199 = vmatprep.subr.bf16.mxu0 0
  %7200 = vmatpush1.bf16.msra.mxu0 %v6910
  %7201 = vmatprep.subr.bf16.mxu0 0
  %7202 = vmatpush1.bf16.msra.mxu0 %v6911
  %7203 = vmatprep.subr.bf16.mxu0 0
  %7204 = vmatpush1.bf16.msra.mxu0 %v6912
  %7205 = vmatprep.subr.bf16.mxu0 0
  %7206 = vmatpush1.bf16.msra.mxu0 %v6913
  %7207 = vmatprep.subr.bf16.mxu0 0
  %7208 = vmatpush1.bf16.msra.mxu0 %v6914
  %7209 = vmatprep.subr.bf16.mxu0 0
  %7210 = vmatpush1.bf16.msra.mxu0 %v6915
  %7211 = vmatprep.subr.bf16.mxu0 0
  %7212 = vmatpush1.bf16.msra.mxu0 %v6916
  %7213 = vmatprep.subr.bf16.mxu0 0
  %7214 = vmatpush1.bf16.msra.mxu0 %v6917
  %7215 = vmatprep.subr.bf16.mxu0 0
  %7216 = vmatpush1.bf16.msra.mxu0 %v6918
  %7217 = vmatprep.subr.bf16.mxu0 0
  %7218 = vmatpush1.bf16.msra.mxu0 %v6919
  %7219 = vmatprep.subr.bf16.mxu0 0
  %7220 = vmatpush1.bf16.msra.mxu0 %v6920
  %7221 = vmatprep.subr.bf16.mxu0 0
  %7222 = vmatpush1.bf16.msra.mxu0 %v6921
  %7223 = vmatprep.subr.bf16.mxu0 0
  %7224 = vmatpush1.bf16.msra.mxu0 %v6922
  %7225 = vmatprep.subr.bf16.mxu0 0
  %7226 = vmatpush1.bf16.msra.mxu0 %v6923
  %7227 = vmatprep.subr.bf16.mxu0 0
  %7228 = vmatpush1.bf16.msra.mxu0 %v6924
  %7229 = vmatprep.subr.bf16.mxu0 0
  %7230 = vmatpush1.bf16.msra.mxu0 %v6925
  %7231 = vmatprep.mubr.bf16.mxu0 %v6088
  %7232 = vmatmul.mubr.bf16.gmra.mrb[0].mxu0 %v6087
  %v7233 = vpop.f32.mrb[0].mxu0
  %v7234 = vadd.f32 %v7185, %v7233
  %v7235 = vpop.f32.mrb[0].mxu0
  %v7236 = vpop.f32.mrb[0].mxu0
  %v7237 = vadd.f32 %v7188, %v7236
  %v7238 = vpop.f32.mrb[0].mxu0
  %7239 = vmatprep.mubr.bf16.mxu0 %v6104
  %7240 = vmatmul.mubr.bf16.gmra.mrb[0].mxu0 %v6103
  %v7241 = vpop.f32.mrb[0].mxu0
  %v7242 = vadd.f32 %v7193, %v7241
  %v7243 = vpop.f32.mrb[0].mxu0
  %v7244 = vpop.f32.mrb[0].mxu0
  %v7245 = vadd.f32 %v7196, %v7244
  %v7246 = vpop.f32.mrb[0].mxu0
  %7247 = vdwg.mxu0
  %7248 = vmatprep.subr.bf16.mxu0 0
  %7249 = vmatpush1.bf16.msra.mxu0 %v6926
  %7250 = vmatprep.subr.bf16.mxu0 0
  %7251 = vmatpush1.bf16.msra.mxu0 %v6927
  %7252 = vmatprep.subr.bf16.mxu0 0
  %7253 = vmatpush1.bf16.msra.mxu0 %v6928
  %7254 = vmatprep.subr.bf16.mxu0 0
  %7255 = vmatpush1.bf16.msra.mxu0 %v6929
  %7256 = vmatprep.subr.bf16.mxu0 0
  %7257 = vmatpush1.bf16.msra.mxu0 %v6930
  %7258 = vmatprep.subr.bf16.mxu0 0
  %7259 = vmatpush1.bf16.msra.mxu0 %v6931
  %7260 = vmatprep.subr.bf16.mxu0 0
  %7261 = vmatpush1.bf16.msra.mxu0 %v6932
  %7262 = vmatprep.subr.bf16.mxu0 0
  %7263 = vmatpush1.bf16.msra.mxu0 %v6933
  %7264 = vmatprep.subr.bf16.mxu0 0
  %7265 = vmatpush1.bf16.msra.mxu0 %v6934
  %7266 = vmatprep.subr.bf16.mxu0 0
  %7267 = vmatpush1.bf16.msra.mxu0 %v6935
  %7268 = vmatprep.subr.bf16.mxu0 0
  %7269 = vmatpush1.bf16.msra.mxu0 %v6936
  %7270 = vmatprep.subr.bf16.mxu0 0
  %7271 = vmatpush1.bf16.msra.mxu0 %v6937
  %7272 = vmatprep.subr.bf16.mxu0 0
  %7273 = vmatpush1.bf16.msra.mxu0 %v6938
  %7274 = vmatprep.subr.bf16.mxu0 0
  %7275 = vmatpush1.bf16.msra.mxu0 %v6939
  %7276 = vmatprep.subr.bf16.mxu0 0
  %7277 = vmatpush1.bf16.msra.mxu0 %v6940
  %7278 = vmatprep.subr.bf16.mxu0 0
  %7279 = vmatpush1.bf16.msra.mxu0 %v6941
  %7280 = vmatprep.mubr.bf16.mxu0 %v6090
  %7281 = vmatmul.mubr.bf16.gmra.mrb[0].mxu0 %v6089
  %v7282 = vpop.f32.mrb[0].mxu0
  %v7283 = vadd.f32 %v7234, %v7282
  %v7284 = vpop.f32.mrb[0].mxu0
  %v7285 = vpop.f32.mrb[0].mxu0
  %v7286 = vadd.f32 %v7237, %v7285
  %v7287 = vpop.f32.mrb[0].mxu0
  %7288 = vmatprep.mubr.bf16.mxu0 %v6106
  %7289 = vmatmul.mubr.bf16.gmra.mrb[0].mxu0 %v6105
  %v7290 = vpop.f32.mrb[0].mxu0
  %v7291 = vadd.f32 %v7242, %v7290
  %v7292 = vpop.f32.mrb[0].mxu0
  %v7293 = vpop.f32.mrb[0].mxu0
  %v7294 = vadd.f32 %v7245, %v7293
  %v7295 = vpop.f32.mrb[0].mxu0
  %7296 = vdwg.mxu0
  %7297 = vmatprep.subr.bf16.mxu0 0
  %7298 = vmatpush1.bf16.msra.mxu0 %v6942
  %7299 = vmatprep.subr.bf16.mxu0 0
  %7300 = vmatpush1.bf16.msra.mxu0 %v6943
  %7301 = vmatprep.subr.bf16.mxu0 0
  %7302 = vmatpush1.bf16.msra.mxu0 %v6944
  %7303 = vmatprep.subr.bf16.mxu0 0
  %7304 = vmatpush1.bf16.msra.mxu0 %v6945
  %7305 = vmatprep.subr.bf16.mxu0 0
  %7306 = vmatpush1.bf16.msra.mxu0 %v6946
  %7307 = vmatprep.subr.bf16.mxu0 0
  %7308 = vmatpush1.bf16.msra.mxu0 %v6947
  %7309 = vmatprep.subr.bf16.mxu0 0
  %7310 = vmatpush1.bf16.msra.mxu0 %v6948
  %7311 = vmatprep.subr.bf16.mxu0 0
  %7312 = vmatpush1.bf16.msra.mxu0 %v6949
  %7313 = vmatprep.subr.bf16.mxu0 0
  %7314 = vmatpush1.bf16.msra.mxu0 %v6950
  %7315 = vmatprep.subr.bf16.mxu0 0
  %7316 = vmatpush1.bf16.msra.mxu0 %v6951
  %7317 = vmatprep.subr.bf16.mxu0 0
  %7318 = vmatpush1.bf16.msra.mxu0 %v6952
  %7319 = vmatprep.subr.bf16.mxu0 0
  %7320 = vmatpush1.bf16.msra.mxu0 %v6953
  %7321 = vmatprep.subr.bf16.mxu0 0
  %7322 = vmatpush1.bf16.msra.mxu0 %v6954
  %7323 = vmatprep.subr.bf16.mxu0 0
  %7324 = vmatpush1.bf16.msra.mxu0 %v6955
  %7325 = vmatprep.subr.bf16.mxu0 0
  %7326 = vmatpush1.bf16.msra.mxu0 %v6956
  %7327 = vmatprep.subr.bf16.mxu0 0
  %7328 = vmatpush1.bf16.msra.mxu0 %v6957
  %7329 = vmatprep.mubr.bf16.mxu0 %v6092
  %7330 = vmatmul.mubr.bf16.gmra.mrb[0].mxu0 %v6091
  %v7331 = vpop.f32.mrb[0].mxu0
  %v7332 = vadd.f32 %v7283, %v7331
  %v7333 = vpop.f32.mrb[0].mxu0
  %v7334 = vpop.f32.mrb[0].mxu0
  %v7335 = vadd.f32 %v7286, %v7334
  %v7336 = vpop.f32.mrb[0].mxu0
  %7337 = vmatprep.mubr.bf16.mxu0 %v6108
  %7338 = vmatmul.mubr.bf16.gmra.mrb[0].mxu0 %v6107
  %v7339 = vpop.f32.mrb[0].mxu0
  %v7340 = vadd.f32 %v7291, %v7339
  %v7341 = vpop.f32.mrb[0].mxu0
  %v7342 = vpop.f32.mrb[0].mxu0
  %v7343 = vadd.f32 %v7294, %v7342
  %v7344 = vpop.f32.mrb[0].mxu0
  %7345 = vdwg.mxu0
  %7346 = vmatprep.subr.bf16.mxu0 0
  %7347 = vmatpush1.bf16.msra.mxu0 %v6958
  %7348 = vmatprep.subr.bf16.mxu0 0
  %7349 = vmatpush1.bf16.msra.mxu0 %v6959
  %7350 = vmatprep.subr.bf16.mxu0 0
  %7351 = vmatpush1.bf16.msra.mxu0 %v6960
  %7352 = vmatprep.subr.bf16.mxu0 0
  %7353 = vmatpush1.bf16.msra.mxu0 %v6961
  %7354 = vmatprep.subr.bf16.mxu0 0
  %7355 = vmatpush1.bf16.msra.mxu0 %v6962
  %7356 = vmatprep.subr.bf16.mxu0 0
  %7357 = vmatpush1.bf16.msra.mxu0 %v6963
  %7358 = vmatprep.subr.bf16.mxu0 0
  %7359 = vmatpush1.bf16.msra.mxu0 %v6964
  %7360 = vmatprep.subr.bf16.mxu0 0
  %7361 = vmatpush1.bf16.msra.mxu0 %v6965
  %7362 = vmatprep.subr.bf16.mxu0 0
  %7363 = vmatpush1.bf16.msra.mxu0 %v6966
  %7364 = vmatprep.subr.bf16.mxu0 0
  %7365 = vmatpush1.bf16.msra.mxu0 %v6967
  %7366 = vmatprep.subr.bf16.mxu0 0
  %7367 = vmatpush1.bf16.msra.mxu0 %v6968
  %7368 = vmatprep.subr.bf16.mxu0 0
  %7369 = vmatpush1.bf16.msra.mxu0 %v6969
  %7370 = vmatprep.subr.bf16.mxu0 0
  %7371 = vmatpush1.bf16.msra.mxu0 %v6970
  %7372 = vmatprep.subr.bf16.mxu0 0
  %7373 = vmatpush1.bf16.msra.mxu0 %v6971
  %7374 = vmatprep.subr.bf16.mxu0 0
  %7375 = vmatpush1.bf16.msra.mxu0 %v6972
  %7376 = vmatprep.subr.bf16.mxu0 0
  %7377 = vmatpush1.bf16.msra.mxu0 %v6973
  %7378 = vmatprep.mubr.bf16.mxu0 %v6094
  %7379 = vmatmul.mubr.bf16.gmra.mrb[0].mxu0 %v6093
  %v7380 = vpop.f32.mrb[0].mxu0
  %v7381 = vadd.f32 %v7332, %v7380
  %v7382 = vpop.f32.mrb[0].mxu0
  %v7383 = vpop.f32.mrb[0].mxu0
  %v7384 = vadd.f32 %v7335, %v7383
  %v7385 = vpop.f32.mrb[0].mxu0
  %7386 = vmatprep.mubr.bf16.mxu0 %v6110
  %7387 = vmatmul.mubr.bf16.gmra.mrb[0].mxu0 %v6109
  %v7388 = vpop.f32.mrb[0].mxu0
  %v7389 = vadd.f32 %v7340, %v7388
  %v7390 = vpop.f32.mrb[0].mxu0
  %v7391 = vpop.f32.mrb[0].mxu0
  %v7392 = vadd.f32 %v7343, %v7391
  %v7393 = vpop.f32.mrb[0].mxu0
  %7394 = vdwg.mxu0
  %7395 = vmatprep.subr.bf16.mxu0 0
  %7396 = vmatpush1.bf16.msra.mxu0 %v6974
  %7397 = vmatprep.subr.bf16.mxu0 0
  %7398 = vmatpush1.bf16.msra.mxu0 %v6975
  %7399 = vmatprep.subr.bf16.mxu0 0
  %7400 = vmatpush1.bf16.msra.mxu0 %v6976
  %7401 = vmatprep.subr.bf16.mxu0 0
  %7402 = vmatpush1.bf16.msra.mxu0 %v6977
  %7403 = vmatprep.subr.bf16.mxu0 0
  %7404 = vmatpush1.bf16.msra.mxu0 %v6978
  %7405 = vmatprep.subr.bf16.mxu0 0
  %7406 = vmatpush1.bf16.msra.mxu0 %v6979
  %7407 = vmatprep.subr.bf16.mxu0 0
  %7408 = vmatpush1.bf16.msra.mxu0 %v6980
  %7409 = vmatprep.subr.bf16.mxu0 0
  %7410 = vmatpush1.bf16.msra.mxu0 %v6981
  %7411 = vmatprep.subr.bf16.mxu0 0
  %7412 = vmatpush1.bf16.msra.mxu0 %v6982
  %7413 = vmatprep.subr.bf16.mxu0 0
  %7414 = vmatpush1.bf16.msra.mxu0 %v6983
  %7415 = vmatprep.subr.bf16.mxu0 0
  %7416 = vmatpush1.bf16.msra.mxu0 %v6984
  %7417 = vmatprep.subr.bf16.mxu0 0
  %7418 = vmatpush1.bf16.msra.mxu0 %v6985
  %7419 = vmatprep.subr.bf16.mxu0 0
  %7420 = vmatpush1.bf16.msra.mxu0 %v6986
  %7421 = vmatprep.subr.bf16.mxu0 0
  %7422 = vmatpush1.bf16.msra.mxu0 %v6987
  %7423 = vmatprep.subr.bf16.mxu0 0
  %7424 = vmatpush1.bf16.msra.mxu0 %v6988
  %7425 = vmatprep.subr.bf16.mxu0 0
  %7426 = vmatpush1.bf16.msra.mxu0 %v6989
  %7427 = vmatprep.mubr.bf16.mxu0 %v6096
  %7428 = vmatmul.mubr.bf16.gmra.mrb[0].mxu0 %v6095
  %v7429 = vpop.f32.mrb[0].mxu0
  %v7430 = vadd.f32 %v7381, %v7429
  %v7431 = vpop.f32.mrb[0].mxu0
  %v7432 = vpop.f32.mrb[0].mxu0
  %v7433 = vadd.f32 %v7384, %v7432
  %v7434 = vpop.f32.mrb[0].mxu0
  %7435 = vmatprep.mubr.bf16.mxu0 %v6112
  %7436 = vmatmul.mubr.bf16.gmra.mrb[0].mxu0 %v6111
  %v7437 = vpop.f32.mrb[0].mxu0
  %v7438 = vadd.f32 %v7389, %v7437
  %v7439 = vpop.f32.mrb[0].mxu0
  %v7440 = vpop.f32.mrb[0].mxu0
  %v7441 = vadd.f32 %v7392, %v7440
  %v7442 = vpop.f32.mrb[0].mxu0
  %7443 = vdwg.mxu0
  %7444 = vmatprep.subr.bf16.mxu0 0
  %7445 = vmatpush1.bf16.msra.mxu0 %v6990
  %7446 = vmatprep.subr.bf16.mxu0 0
  %7447 = vmatpush1.bf16.msra.mxu0 %v6991
  %7448 = vmatprep.subr.bf16.mxu0 0
  %7449 = vmatpush1.bf16.msra.mxu0 %v6992
  %7450 = vmatprep.subr.bf16.mxu0 0
  %7451 = vmatpush1.bf16.msra.mxu0 %v6993
  %7452 = vmatprep.subr.bf16.mxu0 0
  %7453 = vmatpush1.bf16.msra.mxu0 %v6994
  %7454 = vmatprep.subr.bf16.mxu0 0
  %7455 = vmatpush1.bf16.msra.mxu0 %v6995
  %7456 = vmatprep.subr.bf16.mxu0 0
  %7457 = vmatpush1.bf16.msra.mxu0 %v6996
  %7458 = vmatprep.subr.bf16.mxu0 0
  %7459 = vmatpush1.bf16.msra.mxu0 %v6997
  %7460 = vmatprep.subr.bf16.mxu0 0
  %7461 = vmatpush1.bf16.msra.mxu0 %v6998
  %7462 = vmatprep.subr.bf16.mxu0 0
  %7463 = vmatpush1.bf16.msra.mxu0 %v6999
  %7464 = vmatprep.subr.bf16.mxu0 0
  %7465 = vmatpush1.bf16.msra.mxu0 %v7000
  %7466 = vmatprep.subr.bf16.mxu0 0
  %7467 = vmatpush1.bf16.msra.mxu0 %v7001
  %7468 = vmatprep.subr.bf16.mxu0 0
  %7469 = vmatpush1.bf16.msra.mxu0 %v7002
  %7470 = vmatprep.subr.bf16.mxu0 0
  %7471 = vmatpush1.bf16.msra.mxu0 %v7003
  %7472 = vmatprep.subr.bf16.mxu0 0
  %7473 = vmatpush1.bf16.msra.mxu0 %v7004
  %7474 = vmatprep.subr.bf16.mxu0 0
  %7475 = vmatpush1.bf16.msra.mxu0 %v7005
  %7476 = vmatprep.mubr.bf16.mxu0 %v6098
  %7477 = vmatmul.mubr.bf16.gmra.mrb[0].mxu0 %v6097
  %v7478 = vpop.f32.mrb[0].mxu0
  %v7479 = vadd.f32 %v7430, %v7478
  %v7480 = vpop.f32.mrb[0].mxu0
  %v7481 = vpop.f32.mrb[0].mxu0
  %v7482 = vadd.f32 %v7433, %v7481
  %v7483 = vpop.f32.mrb[0].mxu0
  %7484 = vmatprep.mubr.bf16.mxu0 %v6114
  %7485 = vmatmul.mubr.bf16.gmra.mrb[0].mxu0 %v6113
  %v7486 = vpop.f32.mrb[0].mxu0
  %v7487 = vadd.f32 %v7438, %v7486
  %v7488 = vpop.f32.mrb[0].mxu0
  %v7489 = vpop.f32.mrb[0].mxu0
  %v7490 = vadd.f32 %v7441, %v7489
  %v7491 = vpop.f32.mrb[0].mxu0
  %7492 = vdwg.mxu0
  %7493 = vmatprep.subr.bf16.mxu0 0
  %7494 = vmatpush1.bf16.msra.mxu0 %v7006
  %7495 = vmatprep.subr.bf16.mxu0 0
  %7496 = vmatpush1.bf16.msra.mxu0 %v7007
  %7497 = vmatprep.subr.bf16.mxu0 0
  %7498 = vmatpush1.bf16.msra.mxu0 %v7008
  %7499 = vmatprep.subr.bf16.mxu0 0
  %7500 = vmatpush1.bf16.msra.mxu0 %v7009
  %7501 = vmatprep.subr.bf16.mxu0 0
  %7502 = vmatpush1.bf16.msra.mxu0 %v7010
  %7503 = vmatprep.subr.bf16.mxu0 0
  %7504 = vmatpush1.bf16.msra.mxu0 %v7011
  %7505 = vmatprep.subr.bf16.mxu0 0
  %7506 = vmatpush1.bf16.msra.mxu0 %v7012
  %7507 = vmatprep.subr.bf16.mxu0 0
  %7508 = vmatpush1.bf16.msra.mxu0 %v7013
  %7509 = vmatprep.subr.bf16.mxu0 0
  %7510 = vmatpush1.bf16.msra.mxu0 %v7014
  %7511 = vmatprep.subr.bf16.mxu0 0
  %7512 = vmatpush1.bf16.msra.mxu0 %v7015
  %7513 = vmatprep.subr.bf16.mxu0 0
  %7514 = vmatpush1.bf16.msra.mxu0 %v7016
  %7515 = vmatprep.subr.bf16.mxu0 0
  %7516 = vmatpush1.bf16.msra.mxu0 %v7017
  %7517 = vmatprep.subr.bf16.mxu0 0
  %7518 = vmatpush1.bf16.msra.mxu0 %v7018
  %7519 = vmatprep.subr.bf16.mxu0 0
  %7520 = vmatpush1.bf16.msra.mxu0 %v7019
  %7521 = vmatprep.subr.bf16.mxu0 0
  %7522 = vmatpush1.bf16.msra.mxu0 %v7020
  %7523 = vmatprep.subr.bf16.mxu0 0
  %7524 = vmatpush1.bf16.msra.mxu0 %v7021
  %7525 = vmatprep.mubr.bf16.mxu0 %v6100
  %7526 = vmatmul.mubr.bf16.gmra.mrb[0].mxu0 %v6099
  %v7527 = vpop.f32.mrb[0].mxu0
  %v7528 = vadd.f32 %v7479, %v7527
  %v7529 = vpop.f32.mrb[0].mxu0
  %v7530 = vpop.f32.mrb[0].mxu0
  %v7531 = vadd.f32 %v7482, %v7530
  %v7532 = vpop.f32.mrb[0].mxu0
  %7533 = vmatprep.mubr.bf16.mxu0 %v6116
  %7534 = vmatmul.mubr.bf16.gmra.mrb[0].mxu0 %v6115
  %v7535 = vpop.f32.mrb[0].mxu0
  %v7536 = vadd.f32 %v7487, %v7535
  %v7537 = vpop.f32.mrb[0].mxu0
  %v7538 = vpop.f32.mrb[0].mxu0
  %v7539 = vadd.f32 %v7490, %v7538
  %v7540 = vpop.f32.mrb[0].mxu0
  %7541 = vdwg.mxu0
  %v7542 = vadd.f32 %v5403, %v7528
  %v7543 = vadd.f32 %v5404, %v7531
  %v7544 = vadd.f32 %v5405, %v7536
  %v7545 = vadd.f32 %v5406, %v7539
  %s7546 = scalar_lea.vmem %s19, 1
  %v7547 = vld [vmem:[%s7546] sm:$0x1]
  %s7548 = scalar_lea.vmem %s20, 1
  %v7549 = vld [vmem:[%s7548] sm:$0x1]
  %v7550 = vsel %vm213, %v7542, 0.0
  %7551 = vadd.xlane.f32.xlu0 %v7550
  %v7552 = vpop.xlane.xlu0 %7551
  %v7553 = vsel %vm213, %v7543, 0.0
  %7554 = vadd.xlane.f32.xlu0 %v7553
  %v7555 = vpop.xlane.xlu0 %7554
  %v7556 = vsel %vm213, %v7544, 0.0
  %7557 = vadd.xlane.f32.xlu0 %v7556
  %v7558 = vpop.xlane.xlu0 %7557
  %v7559 = vsel %vm213, %v7545, 0.0
  %7560 = vadd.xlane.f32.xlu0 %v7559
  %v7561 = vpop.xlane.xlu0 %7560
  %v7562 = vmul.f32 %v7552, %v1644
  %v7563 = vmul.f32 %v7555, %v1644
  %v7564 = vmul.f32 %v7558, %v1644
  %v7565 = vmul.f32 %v7561, %v1644
  %v7566 = vsub.f32 %v7542, %v7562
  %v7567 = vsub.f32 %v7543, %v7563
  %v7568 = vsub.f32 %v7544, %v7564
  %v7569 = vsub.f32 %v7545, %v7565
  %v7570 = vmul.f32 %v7566, %v7566
  %v7571 = vmul.f32 %v7567, %v7567
  %v7572 = vmul.f32 %v7568, %v7568
  %v7573 = vmul.f32 %v7569, %v7569
  %v7574 = vsel %vm213, %v7570, 0.0
  %7575 = vadd.xlane.f32.xlu0 %v7574
  %v7576 = vpop.xlane.xlu0 %7575
  %v7577 = vsel %vm213, %v7571, 0.0
  %7578 = vadd.xlane.f32.xlu0 %v7577
  %v7579 = vpop.xlane.xlu0 %7578
  %v7580 = vsel %vm213, %v7572, 0.0
  %7581 = vadd.xlane.f32.xlu0 %v7580
  %v7582 = vpop.xlane.xlu0 %7581
  %v7583 = vsel %vm213, %v7573, 0.0
  %7584 = vadd.xlane.f32.xlu0 %v7583
  %v7585 = vpop.xlane.xlu0 %7584
  %v7586 = vmul.f32 %v7576, %v1644
  %v7587 = vmul.f32 %v7579, %v1644
  %v7588 = vmul.f32 %v7582, %v1644
  %v7589 = vmul.f32 %v7585, %v1644
  %v7590 = vadd.f32 %v7586, 1e-05
  %v7591 = vadd.f32 %v7587, 1e-05
  %v7592 = vadd.f32 %v7588, 1e-05
  %v7593 = vadd.f32 %v7589, 1e-05
  %v7594 = vrsqrt.pop %v7590
  %v7595 = vrsqrt.pop %v7591
  %v7596 = vrsqrt.pop %v7592
  %v7597 = vrsqrt.pop %v7593
  %v7598 = vmul.f32 %v7566, %v7594
  %v7599 = vmul.f32 %v7567, %v7595
  %v7600 = vmul.f32 %v7568, %v7596
  %v7601 = vmul.f32 %v7569, %v7597
  %v7603 = vlaneseq
  %v7604 = vshrl.u32 %v7603, 7
  %v7605 = vsub.s32 0, %v7604
  %v7606 = vrot.slane %v7547, %v7605
  %v7608 = vmul.f32 %v7598, %v7606
  %v7609 = vmul.f32 %v7599, %v7606
  %v7610 = vmul.f32 %v7600, %v7606
  %v7611 = vmul.f32 %v7601, %v7606
  %v7613 = vlaneseq
  %v7614 = vshrl.u32 %v7613, 7
  %v7615 = vsub.s32 0, %v7614
  %v7616 = vrot.slane %v7549, %v7615
  %v7618 = vadd.f32 %v7608, %v7616
  %v7619 = vadd.f32 %v7609, %v7616
  %v7620 = vadd.f32 %v7610, %v7616
  %v7621 = vadd.f32 %v7611, %v7616
  %v7622 = vld [vmem:[%s22] sm:$0xff]
  %v7623 = vld [vmem:[%s1] sm:$0xf]
  %v7624 = vld [vmem:[#allocation2] sm:$0x1]
  %v7626 = vlaneseq
  %v7627 = vshrl.u32 %v7626, 7
  %v7628 = vsub.s32 0, %v7627
  %v7629 = vrot.slane %v7624, %v7628
  %v7631 = vmul.f32 %v7623, %v7629
  %v7636 = vrot.slane %v7618, 7
  %v7637 = vrot.slane %v7619, 6
  %vm7638 = vcmask 1041409
  %v7639 = vsel %vm7638, %v7637, %v7636
  %v7640 = vrot.slane %v7620, 5
  %vm7641 = vcmask 1042434
  %v7642 = vsel %vm7641, %v7640, %v7639
  %v7643 = vrot.slane %v7621, 4
  %vm7644 = vcmask 1043459
  %v7645 = vsel %vm7644, %v7643, %v7642
  %v7646 = vsel %vm213, %v7645, 0
  %7648 = vmatprep.subr.mxu0 0.0
  %7649 = vmatpush1.msra.mxu0 %v7622
  %7650 = vmatprep.subr.mxu0 0.0
  %7651 = vmatpush1.msra.mxu0 0.0
  %7652 = vmatprep.subr.mxu0 0.0
  %7653 = vmatpush1.msra.mxu0 0.0
  %7654 = vmatprep.subr.mxu0 0.0
  %7655 = vmatpush1.msra.mxu0 0.0
  %7656 = vmatprep.subr.mxu0 0.0
  %7657 = vmatpush1.msra.mxu0 0.0
  %7658 = vmatprep.subr.mxu0 0.0
  %7659 = vmatpush1.msra.mxu0 0.0
  %7660 = vmatprep.subr.mxu0 0.0
  %7661 = vmatpush1.msra.mxu0 0.0
  %7662 = vmatprep.subr.mxu0 0.0
  %7663 = vmatpush1.msra.mxu0 0.0
  %7664 = vmatprep.subr.mxu0 0.0
  %7665 = vmatpush1.msra.mxu0 0.0
  %7666 = vmatprep.subr.mxu0 0.0
  %7667 = vmatpush1.msra.mxu0 0.0
  %7668 = vmatprep.subr.mxu0 0.0
  %7669 = vmatpush1.msra.mxu0 0.0
  %7670 = vmatprep.subr.mxu0 0.0
  %7671 = vmatpush1.msra.mxu0 0.0
  %7672 = vmatprep.subr.mxu0 0.0
  %7673 = vmatpush1.msra.mxu0 0.0
  %7674 = vmatprep.subr.mxu0 0.0
  %7675 = vmatpush1.msra.mxu0 0.0
  %7676 = vmatprep.subr.mxu0 0.0
  %7677 = vmatpush1.msra.mxu0 0.0
  %7678 = vmatprep.subr.mxu0 0.0
  %7679 = vmatpush1.msra.mxu0 0.0
  %7680 = vmatprep.subr.mxu0 0.0
  %7681 = vmatpush1.msra.mxu0 0.0
  %7682 = vmatprep.subr.mxu0 0.0
  %7683 = vmatpush1.msra.mxu0 0.0
  %7684 = vmatprep.subr.mxu0 0.0
  %7685 = vmatpush1.msra.mxu0 0.0
  %7686 = vmatprep.subr.mxu0 0.0
  %7687 = vmatpush1.msra.mxu0 0.0
  %7688 = vmatprep.subr.mxu0 0.0
  %7689 = vmatpush1.msra.mxu0 0.0
  %7690 = vmatprep.subr.mxu0 0.0
  %7691 = vmatpush1.msra.mxu0 0.0
  %7692 = vmatprep.subr.mxu0 0.0
  %7693 = vmatpush1.msra.mxu0 0.0
  %7694 = vmatprep.subr.mxu0 0.0
  %7695 = vmatpush1.msra.mxu0 0.0
  %7696 = vmatprep.subr.mxu0 0.0
  %7697 = vmatpush1.msra.mxu0 0.0
  %7698 = vmatprep.subr.mxu0 0.0
  %7699 = vmatpush1.msra.mxu0 0.0
  %7700 = vmatprep.subr.mxu0 0.0
  %7701 = vmatpush1.msra.mxu0 0.0
  %7702 = vmatprep.subr.mxu0 0.0
  %7703 = vmatpush1.msra.mxu0 0.0
  %7704 = vmatprep.subr.mxu0 0.0
  %7705 = vmatpush1.msra.mxu0 0.0
  %7706 = vmatprep.subr.mxu0 0.0
  %7707 = vmatpush1.msra.mxu0 0.0
  %7708 = vmatprep.subr.mxu0 0.0
  %7709 = vmatpush1.msra.mxu0 0.0
  %7710 = vmatprep.subr.mxu0 0.0
  %7711 = vmatpush1.msra.mxu0 0.0
  %7712 = vmatprep.mubr.f32.mxu0 0.0
  %7713 = vmatmul.mubr.f32.gmra.mrb[0].mxu0 %v7646
  %v7714 = vpop.f32.mrb[0].mxu0
  %v7715 = vadd.f32 %v7631, %v7714
  %v7716 = vpop.f32.mrb[0].mxu0
  %7717 = vdwg.mxu0
  %v7718 = vld [vmem:[#allocation3] sm:$0x1]
  %v7720 = vlaneseq
  %v7721 = vshrl.u32 %v7720, 7
  %v7722 = vsub.s32 0, %v7721
  %v7723 = vrot.slane %v7718, %v7722
  %v7725 = vadd.f32 %v7715, %v7723
  %vm7726 = vcmask 3072
  %7727 = vst.msk [vmem:[%s25] sm:$0xf] %vm7726, %v7725
  // Predicated region
  $region102: #{critic_forward.1} parent=0 // pred_check
    _
  $region103: #{critic_forward.1} parent=0 // pred_check_branch
    %7729 = sbr.rel (0) target = $region105
  $region104: #{critic_forward.1} parent=0 // pred_region
    _
  $region105: #{critic_forward.1} parent=0 // pred_fallthru
    _
  // Predicated region
  $region106: #{critic_forward.1} parent=0 // pred_check
    _
  $region107: #{critic_forward.1} parent=0 // pred_check_branch
    %7731 = sbr.rel (0) target = $region109
  $region108: #{critic_forward.1} parent=0 // pred_region
    _
  $region109: #{critic_forward.1} parent=0 // pred_fallthru
    _

</llo_original>
